<compile_context>
chip_gen: v5e
topology: v5e:2x2
jax: 0.10.0
libtpu: 0.0.40
codegen_flags: <defaults>
</compile_context>

<pallas_src>
import functools

import jax
import jax.numpy as jnp
from jax import lax
from jax.experimental import pallas as pl
from jax.experimental.pallas import tpu as pltpu

C1 = 64          # hidden channels
COUT = 3         # output channels
K1 = 9           # first conv kernel size
K2 = 3           # second conv / phase-packed transposed-conv kernel size
KT = 4           # transposed conv kernel size
NLANE = 128      # lane-padded output columns (4 phases * 3 channels = 12 -> 128)
KMERGE = K2 * C1  # 192: kx-merged contraction depth for layers 2 and 3


def _fused_kernel(lhs1_ref, w1_ref, b1_ref, w2_ref, b2_ref, w3_ref, b3_ref,
                  alpha_ref, o_ref, hbuf, lbuf, *, h, w):
    """Whole SRGAN generator for one batch element.

    lhs1_ref : (1, H*W, 243)   bf16  im2col patches of the padded input
    w1_ref   : (243, 64)       bf16  layer-1 weight (im2col rows = ky,kx,ci)
    b1_ref   : (1, 64)         f32
    w2_ref   : (3, 192, 64)    bf16  layer-2 weight, kx-merged (K = kx*64+ci)
    b2_ref   : (1, 64)         f32
    w3_ref   : (3, 192, 128)   bf16  phase-packed transposed-conv, kx-merged
    b3_ref   : (1, 128)        f32
    alpha_ref: (2,)            f32   PReLU slopes (SMEM)
    o_ref    : (1, H*W, 128)   bf16  lane-dense output (columns 0..11 used)
    hbuf     : (H+2, W+2, 64)  bf16  VMEM scratch: zero-bordered activations
    lbuf     : (H+2, W, 192)   bf16  VMEM scratch: kx-merged im2col LHS
    """
    hw = h * w
    bf16 = jnp.bfloat16

    # Zero only the 1-pixel border of the activation scratch (interior is
    # fully overwritten by each layer).  Done every grid step on purpose.
    zrow = jnp.zeros((1, w + 2, C1), bf16)
    hbuf[0:1, :, :] = zrow
    hbuf[h + 1:h + 2, :, :] = zrow
    zcol = jnp.zeros((h + 2, 1, C1), bf16)
    hbuf[:, 0:1, :] = zcol
    hbuf[:, w + 1:w + 2, :] = zcol

    # ---------------- layer 1: 9x9 conv as one im2col matmul (K=243) -------
    acc = jnp.dot(lhs1_ref[0], w1_ref[...],
                  preferred_element_type=jnp.float32) + b1_ref[...]
    a1 = alpha_ref[0]
    acc = jnp.where(acc >= 0, acc, a1 * acc)                     # PReLU (f32)
    hbuf[1:1 + h, 1:1 + w, :] = acc.astype(bf16).reshape(h, w, C1)

    def build_lhs():
        # kx-merged im2col: lbuf[r, x, kx*64 + ci] = hbuf[r, x + kx, ci].
        for kx in range(K2):
            lbuf[:, :, kx * C1:(kx + 1) * C1] = hbuf[:, kx:kx + w, :]

    def conv3x3(w_ref, b_ref):
        # 3 dots with K=192; accumulation chain seeded with dot + bias.
        build_lhs()
        a = jnp.dot(lbuf[0:h].reshape(hw, KMERGE), w_ref[0],
                    preferred_element_type=jnp.float32) + b_ref[...]
        for ky in range(1, K2):
            a = a + jnp.dot(lbuf[ky:ky + h].reshape(hw, KMERGE), w_ref[ky],
                            preferred_element_type=jnp.float32)
        return a

    # ---------------- layer 2: 3x3 conv, 3 dots with K=192 -----------------
    acc = conv3x3(w2_ref, b2_ref)
    a2 = alpha_ref[1]
    acc = jnp.where(acc >= 0, acc, a2 * acc)                     # PReLU (f32)
    hbuf[1:1 + h, 1:1 + w, :] = acc.astype(bf16).reshape(h, w, C1)

    # ---- layer 3: stride-2 ConvTranspose as a phase-packed 3x3 conv -------
    acc = conv3x3(w3_ref, b3_ref)
    o_ref[0] = jnp.tanh(acc).astype(o_ref.dtype)                 # tanh -> bf16


def init_params(key):
    """Synthetic parameters in the PyTorch module's native layouts."""
    ks = jax.random.split(key, 6)
    w1 = jax.random.normal(ks[0], (C1, 3, K1, K1), jnp.float32) / (3 * K1 * K1) ** 0.5
    b1 = jax.random.normal(ks[1], (C1,), jnp.float32) * 0.01
    w2 = jax.random.normal(ks[2], (C1, C1, K2, K2), jnp.float32) / (C1 * K2 * K2) ** 0.5
    b2 = jax.random.normal(ks[3], (C1,), jnp.float32) * 0.01
    wt = jax.random.normal(ks[4], (C1, COUT, KT, KT), jnp.float32) / (C1 * KT * KT) ** 0.5
    bt = jax.random.normal(ks[5], (COUT,), jnp.float32) * 0.01
    return {"w1": w1, "b1": b1, "a1": 0.25,     # OIHW conv layouts
            "w2": w2, "b2": b2, "a2": 0.25,
            "wt": wt, "bt": bt}                 # ConvTranspose (Cin,Cout,KH,KW)


def prepare_params(params):
    """Convert PyTorch-layout parameters to the kernel's packed layouts."""
    bf16 = jnp.bfloat16
    # layer 1: OIHW (64,3,9,9) -> im2col matrix (243, 64), rows = (ky, kx, ci)
    w1 = jnp.transpose(params["w1"], (2, 3, 1, 0)).reshape(K1 * K1 * 3, C1)
    # layer 2: OIHW (64,64,3,3) -> HWIO (3,3,64,64) -> kx-merged (3, 192, 64)
    w2 = jnp.transpose(params["w2"], (2, 3, 1, 0)).reshape(K2, KMERGE, C1)
    # layer 3: ConvTranspose2d(64->3, k=4, s=2, p=1) phase decomposition.
    # Output pixel (2u+py, 2v+px, co) = sum over a 2x2 window of the 1-padded
    # input; re-pack into a 3x3 conv weight whose output column is
    # (2*py + px)*3 + co, then zero-pad columns 12..127 and kx-merge to
    # (3, 192, 128) for lane-dense stores / K=192 dots.
    wt = params["wt"]
    ky_of = ((3, 1), (2, 0))          # [parity][dy] -> original kernel index
    phase_blocks = []
    for py in range(2):
        for px in range(2):
            blk = jnp.zeros((K2, K2, C1, COUT), wt.dtype)
            for dy in range(2):
                for dx in range(2):
                    tap = wt[:, :, ky_of[py][dy], ky_of[px][dx]]   # (64, 3)
                    blk = blk.at[dy + py, dx + px].set(tap)
            phase_blocks.append(blk)
    w3 = jnp.concatenate(phase_blocks, axis=-1)                    # (3,3,64,12)
    w3 = jnp.pad(w3, ((0, 0), (0, 0), (0, 0), (0, NLANE - 4 * COUT)))
    w3 = w3.reshape(K2, KMERGE, NLANE)
    b3 = jnp.pad(jnp.tile(params["bt"], 4), (0, NLANE - 4 * COUT))
    return {
        "w1": w1.astype(bf16),
        "b1": params["b1"].reshape(1, C1).astype(jnp.float32),
        "w2": w2.astype(bf16),
        "b2": params["b2"].reshape(1, C1).astype(jnp.float32),
        "w3": w3.astype(bf16),
        "b3": b3.reshape(1, NLANE).astype(jnp.float32),
        "alphas": jnp.asarray([params["a1"], params["a2"]], jnp.float32),
    }


def srgan_generator_forward(x_nchw, kp):
    """x_nchw: (N, 3, H, W) float32 -> (N, 3, 2H, 2W) float32."""
    n, cin, h, w = x_nchw.shape
    assert cin == 3
    hw = h * w
    pad = K1 // 2
    # Layer-1 im2col built wrapper-side in bf16 (pure slices + concat).
    # TODO(synk): if xprof shows this XLA glue dominating, fuse it in-kernel.
    x = jnp.transpose(x_nchw, (0, 2, 3, 1)).astype(jnp.bfloat16)   # NHWC bf16
    xp = jnp.pad(x, ((0, 0), (pad, pad), (pad, pad), (0, 0)))
    patches = jnp.concatenate(
        [xp[:, ky:ky + h, kx:kx + w, :] for ky in range(K1) for kx in range(K1)],
        axis=-1)
    lhs1 = patches.reshape(n, hw, K1 * K1 * cin)

    flops = 2 * n * hw * (K1 * K1 * cin * C1 + K2 * KMERGE * C1
                          + K2 * KMERGE * NLANE)
    bytes_accessed = (n * hw * K1 * K1 * cin * 2
                      + (K1 * K1 * cin * C1 + K2 * KMERGE * C1
                         + K2 * KMERGE * NLANE) * 2
                      + n * hw * NLANE * 2)
    cost = pl.CostEstimate(flops=flops, transcendentals=n * hw * NLANE,
                           bytes_accessed=bytes_accessed)

    kernel = functools.partial(_fused_kernel, h=h, w=w)
    out = pl.pallas_call(
        kernel,
        out_shape=jax.ShapeDtypeStruct((n, hw, NLANE), jnp.bfloat16),
        grid=(n,),
        in_specs=[
            pl.BlockSpec((1, hw, K1 * K1 * cin), lambda i: (i, 0, 0)),
            pl.BlockSpec((K1 * K1 * cin, C1), lambda i: (0, 0)),
            pl.BlockSpec((1, C1), lambda i: (0, 0)),
            pl.BlockSpec((K2, KMERGE, C1), lambda i: (0, 0, 0)),
            pl.BlockSpec((1, C1), lambda i: (0, 0)),
            pl.BlockSpec((K2, KMERGE, NLANE), lambda i: (0, 0, 0)),
            pl.BlockSpec((1, NLANE), lambda i: (0, 0)),
            pl.BlockSpec(memory_space=pltpu.MemorySpace.SMEM),
        ],
        out_specs=pl.BlockSpec((1, hw, NLANE), lambda i: (i, 0, 0)),
        scratch_shapes=[pltpu.VMEM((h + 2, w + 2, C1), jnp.bfloat16),
                        pltpu.VMEM((h + 2, w, KMERGE), jnp.bfloat16)],
        compiler_params=pltpu.CompilerParams(
            dimension_semantics=("parallel",)),
        cost_estimate=cost,
    )(lhs1, kp["w1"], kp["b1"], kp["w2"], kp["b2"], kp["w3"], kp["b3"],
      kp["alphas"])

    # (N, H*W, 128) bf16: keep the 12 real columns and interleave the phases.
    y = out[:, :, :4 * COUT].astype(jnp.float32)
    y = y.reshape(n, h, w, 2, 2, COUT)                  # (n, u, v, py, px, co)
    y = jnp.transpose(y, (0, 5, 1, 3, 2, 4))            # (n, co, u, py, v, px)
    return y.reshape(n, COUT, 2 * h, 2 * w)             # NCHW


def ref_forward(x_nchw, p):
    """Pure-JAX reference (lax convs) with bf16 operands like the kernel."""
    dn = ("NHWC", "HWIO", "NHWC")
    bf16, f32 = jnp.bfloat16, jnp.float32
    x = jnp.transpose(x_nchw, (0, 2, 3, 1))
    w1 = jnp.transpose(p["w1"], (2, 3, 1, 0)).astype(bf16)
    h = lax.conv_general_dilated(x.astype(bf16), w1, (1, 1), [(4, 4), (4, 4)],
                                 dimension_numbers=dn, preferred_element_type=f32)
    h = h + p["b1"]
    h = jnp.where(h >= 0, h, p["a1"] * h)
    w2 = jnp.transpose(p["w2"], (2, 3, 1, 0)).astype(bf16)
    h = lax.conv_general_dilated(h.astype(bf16), w2, (1, 1), [(1, 1), (1, 1)],
                                 dimension_numbers=dn, preferred_element_type=f32)
    h = h + p["b2"]
    h = jnp.where(h >= 0, h, p["a2"] * h)
    # ConvTranspose2d(s=2, p=1, k=4) == lhs-dilated conv with flipped kernel.
    wt = jnp.transpose(p["wt"][:, :, ::-1, ::-1], (2, 3, 0, 1)).astype(bf16)
    h = lax.conv_general_dilated(h.astype(bf16), wt, (1, 1), [(2, 2), (2, 2)],
                                 lhs_dilation=(2, 2), dimension_numbers=dn,
                                 preferred_element_type=f32)
    h = jnp.tanh(h + p["bt"])
    return jnp.transpose(h, (0, 3, 1, 2))


if __name__ == "__main__":
    key = jax.random.PRNGKey(0)
    pkey, xkey = jax.random.split(key)
    params = init_params(pkey)
    kparams = prepare_params(params)
    x = jax.random.normal(xkey, (2, 3, 16, 16), jnp.float32)   # NCHW as in PyTorch

    fwd = jax.jit(srgan_generator_forward)
    out = jax.block_until_ready(fwd(x, kparams))

    assert out.shape == (2, 3, 32, 32), out.shape              # 2x spatial upsample
    assert bool(jnp.all(jnp.isfinite(out)))
    assert bool(jnp.all(jnp.abs(out) <= 1.0))                  # tanh range

    ref = jax.block_until_ready(ref_forward(x, params))
    err = float(jnp.max(jnp.abs(out - ref)))
    assert err < 2e-2, f"max abs error vs reference: {err}"
    print("KERNEL_OK")
</pallas_src>

<mosaic_0001>
module attributes {stable_mosaic.version = 11 : i64} {
  func.func @_fused_kernel(%arg0: i32, %arg1: memref<1x256x243xbf16, #tpu.memory_space<vmem>>, %arg2: memref<243x64xbf16, #tpu.memory_space<vmem>>, %arg3: memref<1x64xf32, #tpu.memory_space<vmem>>, %arg4: memref<3x192x64xbf16, #tpu.memory_space<vmem>>, %arg5: memref<1x64xf32, #tpu.memory_space<vmem>>, %arg6: memref<3x192x128xbf16, #tpu.memory_space<vmem>>, %arg7: memref<1x128xf32, #tpu.memory_space<vmem>>, %arg8: memref<2xf32, #tpu.memory_space<smem>>, %arg9: memref<1x256x128xbf16, #tpu.memory_space<vmem>>, %arg10: memref<18x18x64xbf16, #tpu.memory_space<vmem>>, %arg11: memref<18x16x192xbf16, #tpu.memory_space<vmem>>) attributes {dimension_semantics = [#tpu.dimension_semantics<parallel>], iteration_bounds = array<i64: 2>, scalar_prefetch = 0 : i64, scratch_operands = 2 : i64, tpu.core_type = #tpu.core_type<tc>, window_params = [{transform_indices = @transform_0, window_bounds = array<i64: 1, 256, 243>}, {pipeline_mode = #tpu.pipeline_mode<synchronous>, transform_indices = @transform_1, window_bounds = array<i64: 243, 64>}, {pipeline_mode = #tpu.pipeline_mode<synchronous>, transform_indices = @transform_2, window_bounds = array<i64: 1, 64>}, {pipeline_mode = #tpu.pipeline_mode<synchronous>, transform_indices = @transform_3, window_bounds = array<i64: 3, 192, 64>}, {pipeline_mode = #tpu.pipeline_mode<synchronous>, transform_indices = @transform_4, window_bounds = array<i64: 1, 64>}, {pipeline_mode = #tpu.pipeline_mode<synchronous>, transform_indices = @transform_5, window_bounds = array<i64: 3, 192, 128>}, {pipeline_mode = #tpu.pipeline_mode<synchronous>, transform_indices = @transform_6, window_bounds = array<i64: 1, 128>}, {transform_indices = @transform_7, window_bounds = array<i64: 2>}, {transform_indices = @transform_8, window_bounds = array<i64: 1, 256, 128>}]} {
    %cst = arith.constant 0.000000e+00 : bf16
    %0 = vector.broadcast %cst : bf16 to vector<1x18x64xbf16>
    %c0 = arith.constant 0 : index
    %c0_0 = arith.constant 0 : index
    %c0_1 = arith.constant 0 : index
    %1 = vector.load %arg10[%c0, %c0_0, %c0_1] : memref<18x18x64xbf16, #tpu.memory_space<vmem>>, vector<1x18x64xbf16>
    tpu.vector_store %arg10[%c0, %c0_0, %c0_1], %0 {strides = array<i32>} : memref<18x18x64xbf16, #tpu.memory_space<vmem>>, vector<1x18x64xbf16>,
    %c17 = arith.constant 17 : index
    %c0_2 = arith.constant 0 : index
    %c0_3 = arith.constant 0 : index
    %2 = vector.load %arg10[%c17, %c0_2, %c0_3] : memref<18x18x64xbf16, #tpu.memory_space<vmem>>, vector<1x18x64xbf16>
    tpu.vector_store %arg10[%c17, %c0_2, %c0_3], %0 {strides = array<i32>} : memref<18x18x64xbf16, #tpu.memory_space<vmem>>, vector<1x18x64xbf16>,
    %cst_4 = arith.constant 0.000000e+00 : bf16
    %3 = vector.broadcast %cst_4 : bf16 to vector<18x1x64xbf16>
    %c0_5 = arith.constant 0 : index
    %c0_6 = arith.constant 0 : index
    %c0_7 = arith.constant 0 : index
    %4 = vector.load %arg10[%c0_5, %c0_6, %c0_7] : memref<18x18x64xbf16, #tpu.memory_space<vmem>>, vector<18x1x64xbf16>
    tpu.vector_store %arg10[%c0_5, %c0_6, %c0_7], %3 {strides = array<i32>} : memref<18x18x64xbf16, #tpu.memory_space<vmem>>, vector<18x1x64xbf16>,
    %c0_8 = arith.constant 0 : index
    %c17_9 = arith.constant 17 : index
    %c0_10 = arith.constant 0 : index
    %5 = vector.load %arg10[%c0_8, %c17_9, %c0_10] : memref<18x18x64xbf16, #tpu.memory_space<vmem>>, vector<18x1x64xbf16>
    tpu.vector_store %arg10[%c0_8, %c17_9, %c0_10], %3 {strides = array<i32>} : memref<18x18x64xbf16, #tpu.memory_space<vmem>>, vector<18x1x64xbf16>,
    %c0_11 = arith.constant 0 : index
    %c0_12 = arith.constant 0 : index
    %c0_13 = arith.constant 0 : index
    %6 = vector.load %arg1[%c0_11, %c0_12, %c0_13] : memref<1x256x243xbf16, #tpu.memory_space<vmem>>, vector<1x256x243xbf16>
    %7 = vector.shape_cast %6 : vector<1x256x243xbf16> to vector<256x243xbf16>
    %c0_14 = arith.constant 0 : index
    %c0_15 = arith.constant 0 : index
    %8 = vector.load %arg2[%c0_14, %c0_15] : memref<243x64xbf16, #tpu.memory_space<vmem>>, vector<243x64xbf16>
    %cst_16 = arith.constant dense<0.000000e+00> : vector<256x64xf32>
    %9 = tpu.matmul %7, %8, %cst_16 {dimension_numbers = #tpu.dot_dimension_numbers<[1], [0], [0], [1], [0, 0, 1, 1], [], []>} : vector<256x243xbf16>, vector<243x64xbf16>, vector<256x64xf32> -> vector<256x64xf32>
    %c0_17 = arith.constant 0 : index
    %c0_18 = arith.constant 0 : index
    %10 = vector.load %arg3[%c0_17, %c0_18] : memref<1x64xf32, #tpu.memory_space<vmem>>, vector<1x64xf32>
    %11 = vector.broadcast %10 : vector<1x64xf32> to vector<256x64xf32>
    %12 = arith.addf %9, %11 : vector<256x64xf32>
    %c0_19 = arith.constant 0 : index
    %13 = memref.load %arg8[%c0_19] : memref<2xf32, #tpu.memory_space<smem>>
    %cst_20 = arith.constant 0.000000e+00 : f32
    %14 = vector.broadcast %cst_20 : f32 to vector<256x64xf32>
    %15 = arith.cmpf oge, %12, %14 : vector<256x64xf32>
    %16 = vector.broadcast %13 : f32 to vector<256x64xf32>
    %17 = arith.mulf %16, %12 : vector<256x64xf32>
    %18 = arith.select %15, %12, %17 : vector<256x64xi1>, vector<256x64xf32>
    %19 = arith.truncf %18 : vector<256x64xf32> to vector<256x64xbf16>
    %20 = vector.shape_cast %19 : vector<256x64xbf16> to vector<16x16x64xbf16>
    %c1 = arith.constant 1 : index
    %c1_21 = arith.constant 1 : index
    %c0_22 = arith.constant 0 : index
    %21 = vector.load %arg10[%c1, %c1_21, %c0_22] : memref<18x18x64xbf16, #tpu.memory_space<vmem>>, vector<16x16x64xbf16>
    tpu.vector_store %arg10[%c1, %c1_21, %c0_22], %20 {strides = array<i32>} : memref<18x18x64xbf16, #tpu.memory_space<vmem>>, vector<16x16x64xbf16>,
    %c0_23 = arith.constant 0 : index
    %c0_24 = arith.constant 0 : index
    %c0_25 = arith.constant 0 : index
    %22 = vector.load %arg10[%c0_23, %c0_24, %c0_25] : memref<18x18x64xbf16, #tpu.memory_space<vmem>>, vector<18x16x64xbf16>
    %c0_26 = arith.constant 0 : index
    %c0_27 = arith.constant 0 : index
    %c0_28 = arith.constant 0 : index
    %23 = vector.load %arg11[%c0_26, %c0_27, %c0_28] : memref<18x16x192xbf16, #tpu.memory_space<vmem>>, vector<18x16x64xbf16>
    tpu.vector_store %arg11[%c0_26, %c0_27, %c0_28], %22 {strides = array<i32>} : memref<18x16x192xbf16, #tpu.memory_space<vmem>>, vector<18x16x64xbf16>,
    %c0_29 = arith.constant 0 : index
    %c1_30 = arith.constant 1 : index
    %c0_31 = arith.constant 0 : index
    %24 = vector.load %arg10[%c0_29, %c1_30, %c0_31] : memref<18x18x64xbf16, #tpu.memory_space<vmem>>, vector<18x16x64xbf16>
    %c0_32 = arith.constant 0 : index
    %c0_33 = arith.constant 0 : index
    %c64 = arith.constant 64 : index
    %25 = vector.load %arg11[%c0_32, %c0_33, %c64] : memref<18x16x192xbf16, #tpu.memory_space<vmem>>, vector<18x16x64xbf16>
    tpu.vector_store %arg11[%c0_32, %c0_33, %c64], %24 {strides = array<i32>} : memref<18x16x192xbf16, #tpu.memory_space<vmem>>, vector<18x16x64xbf16>,
    %c0_34 = arith.constant 0 : index
    %c2 = arith.constant 2 : index
    %c0_35 = arith.constant 0 : index
    %26 = vector.load %arg10[%c0_34, %c2, %c0_35] : memref<18x18x64xbf16, #tpu.memory_space<vmem>>, vector<18x16x64xbf16>
    %c0_36 = arith.constant 0 : index
    %c0_37 = arith.constant 0 : index
    %c128 = arith.constant 128 : index
    %27 = vector.load %arg11[%c0_36, %c0_37, %c128] : memref<18x16x192xbf16, #tpu.memory_space<vmem>>, vector<18x16x64xbf16>
    tpu.vector_store %arg11[%c0_36, %c0_37, %c128], %26 {strides = array<i32>} : memref<18x16x192xbf16, #tpu.memory_space<vmem>>, vector<18x16x64xbf16>,
    %c0_38 = arith.constant 0 : index
    %c0_39 = arith.constant 0 : index
    %c0_40 = arith.constant 0 : index
    %28 = vector.load %arg11[%c0_38, %c0_39, %c0_40] : memref<18x16x192xbf16, #tpu.memory_space<vmem>>, vector<16x16x192xbf16>
    %29 = vector.shape_cast %28 : vector<16x16x192xbf16> to vector<256x192xbf16>
    %c0_41 = arith.constant 0 : index
    %c0_42 = arith.constant 0 : index
    %c0_43 = arith.constant 0 : index
    %30 = vector.load %arg4[%c0_41, %c0_42, %c0_43] : memref<3x192x64xbf16, #tpu.memory_space<vmem>>, vector<1x192x64xbf16>
    %31 = vector.shape_cast %30 : vector<1x192x64xbf16> to vector<192x64xbf16>
    %cst_44 = arith.constant dense<0.000000e+00> : vector<256x64xf32>
    %32 = tpu.matmul %29, %31, %cst_44 {dimension_numbers = #tpu.dot_dimension_numbers<[1], [0], [0], [1], [0, 0, 1, 1], [], []>} : vector<256x192xbf16>, vector<192x64xbf16>, vector<256x64xf32> -> vector<256x64xf32>
    %c0_45 = arith.constant 0 : index
    %c0_46 = arith.constant 0 : index
    %33 = vector.load %arg5[%c0_45, %c0_46] : memref<1x64xf32, #tpu.memory_space<vmem>>, vector<1x64xf32>
    %34 = vector.broadcast %33 : vector<1x64xf32> to vector<256x64xf32>
    %35 = arith.addf %32, %34 : vector<256x64xf32>
    %c1_47 = arith.constant 1 : index
    %c0_48 = arith.constant 0 : index
    %c0_49 = arith.constant 0 : index
    %36 = vector.load %arg11[%c1_47, %c0_48, %c0_49] : memref<18x16x192xbf16, #tpu.memory_space<vmem>>, vector<16x16x192xbf16>
    %37 = vector.shape_cast %36 : vector<16x16x192xbf16> to vector<256x192xbf16>
    %c1_50 = arith.constant 1 : index
    %c0_51 = arith.constant 0 : index
    %c0_52 = arith.constant 0 : index
    %38 = vector.load %arg4[%c1_50, %c0_51, %c0_52] : memref<3x192x64xbf16, #tpu.memory_space<vmem>>, vector<1x192x64xbf16>
    %39 = vector.shape_cast %38 : vector<1x192x64xbf16> to vector<192x64xbf16>
    %cst_53 = arith.constant dense<0.000000e+00> : vector<256x64xf32>
    %40 = tpu.matmul %37, %39, %cst_53 {dimension_numbers = #tpu.dot_dimension_numbers<[1], [0], [0], [1], [0, 0, 1, 1], [], []>} : vector<256x192xbf16>, vector<192x64xbf16>, vector<256x64xf32> -> vector<256x64xf32>
    %41 = arith.addf %35, %40 : vector<256x64xf32>
    %c2_54 = arith.constant 2 : index
    %c0_55 = arith.constant 0 : index
    %c0_56 = arith.constant 0 : index
    %42 = vector.load %arg11[%c2_54, %c0_55, %c0_56] : memref<18x16x192xbf16, #tpu.memory_space<vmem>>, vector<16x16x192xbf16>
    %43 = vector.shape_cast %42 : vector<16x16x192xbf16> to vector<256x192xbf16>
    %c2_57 = arith.constant 2 : index
    %c0_58 = arith.constant 0 : index
    %c0_59 = arith.constant 0 : index
    %44 = vector.load %arg4[%c2_57, %c0_58, %c0_59] : memref<3x192x64xbf16, #tpu.memory_space<vmem>>, vector<1x192x64xbf16>
    %45 = vector.shape_cast %44 : vector<1x192x64xbf16> to vector<192x64xbf16>
    %cst_60 = arith.constant dense<0.000000e+00> : vector<256x64xf32>
    %46 = tpu.matmul %43, %45, %cst_60 {dimension_numbers = #tpu.dot_dimension_numbers<[1], [0], [0], [1], [0, 0, 1, 1], [], []>} : vector<256x192xbf16>, vector<192x64xbf16>, vector<256x64xf32> -> vector<256x64xf32>
    %47 = arith.addf %41, %46 : vector<256x64xf32>
    %c1_61 = arith.constant 1 : index
    %48 = memref.load %arg8[%c1_61] : memref<2xf32, #tpu.memory_space<smem>>
    %cst_62 = arith.constant 0.000000e+00 : f32
    %49 = vector.broadcast %cst_62 : f32 to vector<256x64xf32>
    %50 = arith.cmpf oge, %47, %49 : vector<256x64xf32>
    %51 = vector.broadcast %48 : f32 to vector<256x64xf32>
    %52 = arith.mulf %51, %47 : vector<256x64xf32>
    %53 = arith.select %50, %47, %52 : vector<256x64xi1>, vector<256x64xf32>
    %54 = arith.truncf %53 : vector<256x64xf32> to vector<256x64xbf16>
    %55 = vector.shape_cast %54 : vector<256x64xbf16> to vector<16x16x64xbf16>
    %c1_63 = arith.constant 1 : index
    %c1_64 = arith.constant 1 : index
    %c0_65 = arith.constant 0 : index
    %56 = vector.load %arg10[%c1_63, %c1_64, %c0_65] : memref<18x18x64xbf16, #tpu.memory_space<vmem>>, vector<16x16x64xbf16>
    tpu.vector_store %arg10[%c1_63, %c1_64, %c0_65], %55 {strides = array<i32>} : memref<18x18x64xbf16, #tpu.memory_space<vmem>>, vector<16x16x64xbf16>,
    %c0_66 = arith.constant 0 : index
    %c0_67 = arith.constant 0 : index
    %c0_68 = arith.constant 0 : index
    %57 = vector.load %arg10[%c0_66, %c0_67, %c0_68] : memref<18x18x64xbf16, #tpu.memory_space<vmem>>, vector<18x16x64xbf16>
    %c0_69 = arith.constant 0 : index
    %c0_70 = arith.constant 0 : index
    %c0_71 = arith.constant 0 : index
    %58 = vector.load %arg11[%c0_69, %c0_70, %c0_71] : memref<18x16x192xbf16, #tpu.memory_space<vmem>>, vector<18x16x64xbf16>
    tpu.vector_store %arg11[%c0_69, %c0_70, %c0_71], %57 {strides = array<i32>} : memref<18x16x192xbf16, #tpu.memory_space<vmem>>, vector<18x16x64xbf16>,
    %c0_72 = arith.constant 0 : index
    %c1_73 = arith.constant 1 : index
    %c0_74 = arith.constant 0 : index
    %59 = vector.load %arg10[%c0_72, %c1_73, %c0_74] : memref<18x18x64xbf16, #tpu.memory_space<vmem>>, vector<18x16x64xbf16>
    %c0_75 = arith.constant 0 : index
    %c0_76 = arith.constant 0 : index
    %c64_77 = arith.constant 64 : index
    %60 = vector.load %arg11[%c0_75, %c0_76, %c64_77] : memref<18x16x192xbf16, #tpu.memory_space<vmem>>, vector<18x16x64xbf16>
    tpu.vector_store %arg11[%c0_75, %c0_76, %c64_77], %59 {strides = array<i32>} : memref<18x16x192xbf16, #tpu.memory_space<vmem>>, vector<18x16x64xbf16>,
    %c0_78 = arith.constant 0 : index
    %c2_79 = arith.constant 2 : index
    %c0_80 = arith.constant 0 : index
    %61 = vector.load %arg10[%c0_78, %c2_79, %c0_80] : memref<18x18x64xbf16, #tpu.memory_space<vmem>>, vector<18x16x64xbf16>
    %c0_81 = arith.constant 0 : index
    %c0_82 = arith.constant 0 : index
    %c128_83 = arith.constant 128 : index
    %62 = vector.load %arg11[%c0_81, %c0_82, %c128_83] : memref<18x16x192xbf16, #tpu.memory_space<vmem>>, vector<18x16x64xbf16>
    tpu.vector_store %arg11[%c0_81, %c0_82, %c128_83], %61 {strides = array<i32>} : memref<18x16x192xbf16, #tpu.memory_space<vmem>>, vector<18x16x64xbf16>,
    %c0_84 = arith.constant 0 : index
    %c0_85 = arith.constant 0 : index
    %c0_86 = arith.constant 0 : index
    %63 = vector.load %arg11[%c0_84, %c0_85, %c0_86] : memref<18x16x192xbf16, #tpu.memory_space<vmem>>, vector<16x16x192xbf16>
    %64 = vector.shape_cast %63 : vector<16x16x192xbf16> to vector<256x192xbf16>
    %c0_87 = arith.constant 0 : index
    %c0_88 = arith.constant 0 : index
    %c0_89 = arith.constant 0 : index
    %65 = vector.load %arg6[%c0_87, %c0_88, %c0_89] : memref<3x192x128xbf16, #tpu.memory_space<vmem>>, vector<1x192x128xbf16>
    %66 = vector.shape_cast %65 : vector<1x192x128xbf16> to vector<192x128xbf16>
    %cst_90 = arith.constant dense<0.000000e+00> : vector<256x128xf32>
    %67 = tpu.matmul %64, %66, %cst_90 {dimension_numbers = #tpu.dot_dimension_numbers<[1], [0], [0], [1], [0, 0, 1, 1], [], []>} : vector<256x192xbf16>, vector<192x128xbf16>, vector<256x128xf32> -> vector<256x128xf32>
    %c0_91 = arith.constant 0 : index
    %c0_92 = arith.constant 0 : index
    %68 = vector.load %arg7[%c0_91, %c0_92] : memref<1x128xf32, #tpu.memory_space<vmem>>, vector<1x128xf32>
    %69 = vector.broadcast %68 : vector<1x128xf32> to vector<256x128xf32>
    %70 = arith.addf %67, %69 : vector<256x128xf32>
    %c1_93 = arith.constant 1 : index
    %c0_94 = arith.constant 0 : index
    %c0_95 = arith.constant 0 : index
    %71 = vector.load %arg11[%c1_93, %c0_94, %c0_95] : memref<18x16x192xbf16, #tpu.memory_space<vmem>>, vector<16x16x192xbf16>
    %72 = vector.shape_cast %71 : vector<16x16x192xbf16> to vector<256x192xbf16>
    %c1_96 = arith.constant 1 : index
    %c0_97 = arith.constant 0 : index
    %c0_98 = arith.constant 0 : index
    %73 = vector.load %arg6[%c1_96, %c0_97, %c0_98] : memref<3x192x128xbf16, #tpu.memory_space<vmem>>, vector<1x192x128xbf16>
    %74 = vector.shape_cast %73 : vector<1x192x128xbf16> to vector<192x128xbf16>
    %cst_99 = arith.constant dense<0.000000e+00> : vector<256x128xf32>
    %75 = tpu.matmul %72, %74, %cst_99 {dimension_numbers = #tpu.dot_dimension_numbers<[1], [0], [0], [1], [0, 0, 1, 1], [], []>} : vector<256x192xbf16>, vector<192x128xbf16>, vector<256x128xf32> -> vector<256x128xf32>
    %76 = arith.addf %70, %75 : vector<256x128xf32>
    %c2_100 = arith.constant 2 : index
    %c0_101 = arith.constant 0 : index
    %c0_102 = arith.constant 0 : index
    %77 = vector.load %arg11[%c2_100, %c0_101, %c0_102] : memref<18x16x192xbf16, #tpu.memory_space<vmem>>, vector<16x16x192xbf16>
    %78 = vector.shape_cast %77 : vector<16x16x192xbf16> to vector<256x192xbf16>
    %c2_103 = arith.constant 2 : index
    %c0_104 = arith.constant 0 : index
    %c0_105 = arith.constant 0 : index
    %79 = vector.load %arg6[%c2_103, %c0_104, %c0_105] : memref<3x192x128xbf16, #tpu.memory_space<vmem>>, vector<1x192x128xbf16>
    %80 = vector.shape_cast %79 : vector<1x192x128xbf16> to vector<192x128xbf16>
    %cst_106 = arith.constant dense<0.000000e+00> : vector<256x128xf32>
    %81 = tpu.matmul %78, %80, %cst_106 {dimension_numbers = #tpu.dot_dimension_numbers<[1], [0], [0], [1], [0, 0, 1, 1], [], []>} : vector<256x192xbf16>, vector<192x128xbf16>, vector<256x128xf32> -> vector<256x128xf32>
    %82 = arith.addf %76, %81 : vector<256x128xf32>
    %83 = math.tanh %82 : vector<256x128xf32>
    %84 = arith.truncf %83 : vector<256x128xf32> to vector<256x128xbf16>
    %c0_107 = arith.constant 0 : index
    %c0_108 = arith.constant 0 : index
    %c0_109 = arith.constant 0 : index
    %85 = vector.load %arg9[%c0_107, %c0_108, %c0_109] : memref<1x256x128xbf16, #tpu.memory_space<vmem>>, vector<1x256x128xbf16>
    %86 = vector.shape_cast %85 : vector<1x256x128xbf16> to vector<256x128xbf16>
    %87 = vector.shape_cast %84 : vector<256x128xbf16> to vector<1x256x128xbf16>
    tpu.vector_store %arg9[%c0_107, %c0_108, %c0_109], %87 {strides = array<i32>} : memref<1x256x128xbf16, #tpu.memory_space<vmem>>, vector<1x256x128xbf16>,
    return
  }
  func.func @transform_0(%arg0: i32) -> (i32, i32, i32) {
    %c0_i32 = arith.constant 0 : i32
    %c0_i32_0 = arith.constant 0 : i32
    %c0_i32_1 = arith.constant 0 : i32
    return %arg0, %c0_i32, %c0_i32_0 : i32, i32, i32
  }
  func.func @transform_1(%arg0: i32) -> (i32, i32) {
    %c0_i32 = arith.constant 0 : i32
    %c0_i32_0 = arith.constant 0 : i32
    %c0_i32_1 = arith.constant 0 : i32
    return %c0_i32, %c0_i32_0 : i32, i32
  }
  func.func @transform_2(%arg0: i32) -> (i32, i32) {
    %c0_i32 = arith.constant 0 : i32
    %c0_i32_0 = arith.constant 0 : i32
    %c0_i32_1 = arith.constant 0 : i32
    return %c0_i32, %c0_i32_0 : i32, i32
  }
  func.func @transform_3(%arg0: i32) -> (i32, i32, i32) {
    %c0_i32 = arith.constant 0 : i32
    %c0_i32_0 = arith.constant 0 : i32
    %c0_i32_1 = arith.constant 0 : i32
    %c0_i32_2 = arith.constant 0 : i32
    return %c0_i32, %c0_i32_0, %c0_i32_1 : i32, i32, i32
  }
  func.func @transform_4(%arg0: i32) -> (i32, i32) {
    %c0_i32 = arith.constant 0 : i32
    %c0_i32_0 = arith.constant 0 : i32
    %c0_i32_1 = arith.constant 0 : i32
    return %c0_i32, %c0_i32_0 : i32, i32
  }
  func.func @transform_5(%arg0: i32) -> (i32, i32, i32) {
    %c0_i32 = arith.constant 0 : i32
    %c0_i32_0 = arith.constant 0 : i32
    %c0_i32_1 = arith.constant 0 : i32
    %c0_i32_2 = arith.constant 0 : i32
    return %c0_i32, %c0_i32_0, %c0_i32_1 : i32, i32, i32
  }
  func.func @transform_6(%arg0: i32) -> (i32, i32) {
    %c0_i32 = arith.constant 0 : i32
    %c0_i32_0 = arith.constant 0 : i32
    %c0_i32_1 = arith.constant 0 : i32
    return %c0_i32, %c0_i32_0 : i32, i32
  }
  func.func @transform_7(%arg0: i32) -> i32 {
    %c0_i32 = arith.constant 0 : i32
    %c0_i32_0 = arith.constant 0 : i32
    return %c0_i32 : i32
  }
  func.func @transform_8(%arg0: i32) -> (i32, i32, i32) {
    %c0_i32 = arith.constant 0 : i32
    %c0_i32_0 = arith.constant 0 : i32
    %c0_i32_1 = arith.constant 0 : i32
    return %arg0, %c0_i32, %c0_i32_0 : i32, i32, i32
  }
}

</mosaic_0001>

<llo_original>
// kernel: srgan_generator_forward.1
$region0: #{srgan_generator_forward.1}
  #allocation0 [shape = 'u32[]', space=smem, size = 0x4, offset = 0x4, fixed_abs, tag = 'smem constant byte address 0x4 - core index']
  #allocation1 [shape = 'u32[72,128]{1,0:T(1,128)}', space=vmem, size = 0x9000, scoped, tag = 'internal scratch']
  #allocation2 [shape = 'bf16[18,18,64]{2,1,0:T(8,128)(2,1)}', space=vmem, size = 0x1b000, scoped, tag = 'scratch operand']
  #allocation3 [shape = 'bf16[18,16,192]{2,1,0:T(8,128)(2,1)}', space=vmem, size = 0x24000, scoped, tag = 'scratch operand']
  %s0 = inlined_call_operand.vmem [shape: bf16[2,256,243], index: 0, kind: input, shape index: {}]
  %s1 = inlined_call_operand.vmem [shape: bf16[243,64], index: 1, kind: input, shape index: {}]
  %s2 = inlined_call_operand.vmem [shape: f32[1,64], index: 2, kind: input, shape index: {}]
  %s3 = inlined_call_operand.vmem [shape: bf16[3,192,64], index: 3, kind: input, shape index: {}]
  %s4 = inlined_call_operand.vmem [shape: f32[1,64], index: 4, kind: input, shape index: {}]
  %s5 = inlined_call_operand.vmem [shape: bf16[3,192,128], index: 5, kind: input, shape index: {}]
  %s6 = inlined_call_operand.vmem [shape: f32[1,128], index: 6, kind: input, shape index: {}]
  %s7 = inlined_call_operand.vmem [shape: f32[2], index: 7, kind: input, shape index: {}]
  %s8 = inlined_call_operand.vmem [shape: bf16[2,256,128], index: 8, kind: output, shape index: {}]
  %s9 = sld [smem:[#allocation0]]
  $region69: #{srgan_generator_forward.1} parent=0
    _
  %s11 = ssub.s32 1, %s9
  %s12 = scalar_select 0, %s11, %s9
  $region1: #{srgan_generator_forward.1} parent=0
    #allocation4 [shape = 'u8[512]{0}', space=smem, size = 0x200, scoped, tag = 'input window, operand 7, single buffered']
    #allocation5 [shape = 's32[2]{0}', space=sflag, size = 0x8, scoped, tag = 'scoped memory for srgan_generator_forward.1']
    %13 = vsyncpa [#allocation5], 0
    loop: start=0, step=1, limit=4
    $region2: #{srgan_generator_forward.1} parent=1 // loop_pre_header
      _
    $region3: #{srgan_generator_forward.1} parent=1 // loop_header
      %s15 = sphi 0, %s19
      %p16 = scmp.ge.s32.totalorder %s15, 4
      %s25 = sphi 0, %s27
      %s28 = sphi 0, %s25
      %s29 = sphi 0, %s28
      %s45 = sphi 0, %s29
      %s49 = sphi 0, %s49
      %s51 = sphi 0, %s49
      %s52 = sphi 0, %s51
      %s66 = sphi 0, %s52
      %s70 = sphi 0, %s70
      %s72 = sphi 0, %s70
      %s73 = sphi 0, %s72
      %s87 = sphi 0, %s73
      %s91 = sphi 0, %s91
      %s93 = sphi 0, %s91
      %s94 = sphi 0, %s93
      %s108 = sphi 0, %s94
      %s112 = sphi 0, %s112
      %s114 = sphi 0, %s112
      %s115 = sphi 0, %s114
      %s129 = sphi 0, %s115
      %s133 = sphi 0, %s133
      %s135 = sphi 0, %s133
      %s136 = sphi 0, %s135
      %s150 = sphi 0, %s136
      %s154 = sphi 0, %s154
      %s156 = sphi 0, %s154
      %s157 = sphi 0, %s156
      %s171 = sphi 0, %s157
      %s175 = sphi 0, %s175
      %s177 = sphi 0, %s175
      %s178 = sphi 0, %s177
      %s192 = sphi 0, %s178
      %s198 = sphi 0, %s200
      %s201 = sphi 0, %s198
      %s202 = sphi 0, %s201
      %s218 = sphi 0, %s202
    $region4: #{srgan_generator_forward.1} parent=1 // loop_header_branch
      %18 = sbr.rel (%p16) target = $region8
    $region5: #{srgan_generator_forward.1} parent=1 // loop_body
      %s20 = ssub.s32 %s15, 1
      %s21 = ssub.s32 %s15, 2
      %s22 = sadd.s32 %s15, 1
      %s23 = ssub.s32 %s15, %s22
      %p24 = scmp.eq.s32.totalorder %s23, 0
      %s26 = sadd.s32 %s25, 1
      %s27 = scalar_select %p24, %s25, %s26
      %p30 = pneg %p24
      %p31 = scmp.eq.s32.totalorder %s15, 1
      %p32 = por %p30, %p31
      %p33 = scmp.ne.s32.totalorder %s25, %s28
      %p34 = scmp.eq.s32.totalorder %s15, 0
      %p35 = por %p33, %p34
      %p36 = scmp.ne.s32.totalorder %s25, %s28
      %p37 = scmp.eq.s32.totalorder %s20, 1
      %p38 = por %p36, %p37
      %p39 = scmp.ne.s32.totalorder %s28, %s29
      %p40 = scmp.eq.s32.totalorder %s20, 0
      %p41 = por %p39, %p40
      %p42 = scmp.ne.s32.totalorder %s28, %s29
      %p43 = scmp.eq.s32.totalorder %s21, 1
      %p44 = por %p42, %p43
      %p46 = scmp.ne.s32.totalorder %s29, %s45
      %p47 = scmp.eq.s32.totalorder %s21, 0
      %p48 = por %p46, %p47
      %s50 = sadd.s32 %s49, 1
      %p53 = scmp.eq.s32.totalorder %s15, 1
      %p54 = scmp.ne.s32.totalorder %s49, %s51
      %p55 = scmp.eq.s32.totalorder %s15, 0
      %p56 = por %p54, %p55
      %p57 = scmp.ne.s32.totalorder %s49, %s51
      %p58 = scmp.eq.s32.totalorder %s20, 1
      %p59 = por %p57, %p58
      %p60 = scmp.ne.s32.totalorder %s51, %s52
      %p61 = scmp.eq.s32.totalorder %s20, 0
      %p62 = por %p60, %p61
      %p63 = scmp.ne.s32.totalorder %s51, %s52
      %p64 = scmp.eq.s32.totalorder %s21, 1
      %p65 = por %p63, %p64
      %p67 = scmp.ne.s32.totalorder %s52, %s66
      %p68 = scmp.eq.s32.totalorder %s21, 0
      %p69 = por %p67, %p68
      %s71 = sadd.s32 %s70, 1
      %p74 = scmp.eq.s32.totalorder %s15, 1
      %p75 = scmp.ne.s32.totalorder %s70, %s72
      %p76 = scmp.eq.s32.totalorder %s15, 0
      %p77 = por %p75, %p76
      %p78 = scmp.ne.s32.totalorder %s70, %s72
      %p79 = scmp.eq.s32.totalorder %s20, 1
      %p80 = por %p78, %p79
      %p81 = scmp.ne.s32.totalorder %s72, %s73
      %p82 = scmp.eq.s32.totalorder %s20, 0
      %p83 = por %p81, %p82
      %p84 = scmp.ne.s32.totalorder %s72, %s73
      %p85 = scmp.eq.s32.totalorder %s21, 1
      %p86 = por %p84, %p85
      %p88 = scmp.ne.s32.totalorder %s73, %s87
      %p89 = scmp.eq.s32.totalorder %s21, 0
      %p90 = por %p88, %p89
      %s92 = sadd.s32 %s91, 1
      %p95 = scmp.eq.s32.totalorder %s15, 1
      %p96 = scmp.ne.s32.totalorder %s91, %s93
      %p97 = scmp.eq.s32.totalorder %s15, 0
      %p98 = por %p96, %p97
      %p99 = scmp.ne.s32.totalorder %s91, %s93
      %p100 = scmp.eq.s32.totalorder %s20, 1
      %p101 = por %p99, %p100
      %p102 = scmp.ne.s32.totalorder %s93, %s94
      %p103 = scmp.eq.s32.totalorder %s20, 0
      %p104 = por %p102, %p103
      %p105 = scmp.ne.s32.totalorder %s93, %s94
      %p106 = scmp.eq.s32.totalorder %s21, 1
      %p107 = por %p105, %p106
      %p109 = scmp.ne.s32.totalorder %s94, %s108
      %p110 = scmp.eq.s32.totalorder %s21, 0
      %p111 = por %p109, %p110
      %s113 = sadd.s32 %s112, 1
      %p116 = scmp.eq.s32.totalorder %s15, 1
      %p117 = scmp.ne.s32.totalorder %s112, %s114
      %p118 = scmp.eq.s32.totalorder %s15, 0
      %p119 = por %p117, %p118
      %p120 = scmp.ne.s32.totalorder %s112, %s114
      %p121 = scmp.eq.s32.totalorder %s20, 1
      %p122 = por %p120, %p121
      %p123 = scmp.ne.s32.totalorder %s114, %s115
      %p124 = scmp.eq.s32.totalorder %s20, 0
      %p125 = por %p123, %p124
      %p126 = scmp.ne.s32.totalorder %s114, %s115
      %p127 = scmp.eq.s32.totalorder %s21, 1
      %p128 = por %p126, %p127
      %p130 = scmp.ne.s32.totalorder %s115, %s129
      %p131 = scmp.eq.s32.totalorder %s21, 0
      %p132 = por %p130, %p131
      %s134 = sadd.s32 %s133, 1
      %p137 = scmp.eq.s32.totalorder %s15, 1
      %p138 = scmp.ne.s32.totalorder %s133, %s135
      %p139 = scmp.eq.s32.totalorder %s15, 0
      %p140 = por %p138, %p139
      %p141 = scmp.ne.s32.totalorder %s133, %s135
      %p142 = scmp.eq.s32.totalorder %s20, 1
      %p143 = por %p141, %p142
      %p144 = scmp.ne.s32.totalorder %s135, %s136
      %p145 = scmp.eq.s32.totalorder %s20, 0
      %p146 = por %p144, %p145
      %p147 = scmp.ne.s32.totalorder %s135, %s136
      %p148 = scmp.eq.s32.totalorder %s21, 1
      %p149 = por %p147, %p148
      %p151 = scmp.ne.s32.totalorder %s136, %s150
      %p152 = scmp.eq.s32.totalorder %s21, 0
      %p153 = por %p151, %p152
      %s155 = sadd.s32 %s154, 1
      %p158 = scmp.eq.s32.totalorder %s15, 1
      %p159 = scmp.ne.s32.totalorder %s154, %s156
      %p160 = scmp.eq.s32.totalorder %s15, 0
      %p161 = por %p159, %p160
      %p162 = scmp.ne.s32.totalorder %s154, %s156
      %p163 = scmp.eq.s32.totalorder %s20, 1
      %p164 = por %p162, %p163
      %p165 = scmp.ne.s32.totalorder %s156, %s157
      %p166 = scmp.eq.s32.totalorder %s20, 0
      %p167 = por %p165, %p166
      %p168 = scmp.ne.s32.totalorder %s156, %s157
      %p169 = scmp.eq.s32.totalorder %s21, 1
      %p170 = por %p168, %p169
      %p172 = scmp.ne.s32.totalorder %s157, %s171
      %p173 = scmp.eq.s32.totalorder %s21, 0
      %p174 = por %p172, %p173
      %s176 = sadd.s32 %s175, 1
      %p179 = scmp.eq.s32.totalorder %s15, 1
      %p180 = scmp.ne.s32.totalorder %s175, %s177
      %p181 = scmp.eq.s32.totalorder %s15, 0
      %p182 = por %p180, %p181
      %p183 = scmp.ne.s32.totalorder %s175, %s177
      %p184 = scmp.eq.s32.totalorder %s20, 1
      %p185 = por %p183, %p184
      %p186 = scmp.ne.s32.totalorder %s177, %s178
      %p187 = scmp.eq.s32.totalorder %s20, 0
      %p188 = por %p186, %p187
      %p189 = scmp.ne.s32.totalorder %s177, %s178
      %p190 = scmp.eq.s32.totalorder %s21, 1
      %p191 = por %p189, %p190
      %p193 = scmp.ne.s32.totalorder %s178, %s192
      %p194 = scmp.eq.s32.totalorder %s21, 0
      %p195 = por %p193, %p194
      %s196 = ssub.s32 %s15, %s22
      %p197 = scmp.eq.s32.totalorder %s196, 0
      %s199 = sadd.s32 %s198, 1
      %s200 = scalar_select %p197, %s198, %s199
      %p203 = pneg %p197
      %p204 = scmp.eq.s32.totalorder %s15, 1
      %p205 = por %p203, %p204
      %p206 = scmp.ne.s32.totalorder %s198, %s201
      %p207 = scmp.eq.s32.totalorder %s15, 0
      %p208 = por %p206, %p207
      %p209 = scmp.ne.s32.totalorder %s198, %s201
      %p210 = scmp.eq.s32.totalorder %s20, 1
      %p211 = por %p209, %p210
      %p212 = scmp.ne.s32.totalorder %s201, %s202
      %p213 = scmp.eq.s32.totalorder %s20, 0
      %p214 = por %p212, %p213
      %p215 = scmp.ne.s32.totalorder %s201, %s202
      %p216 = scmp.eq.s32.totalorder %s21, 1
      %p217 = por %p215, %p216
      %p219 = scmp.ne.s32.totalorder %s202, %s218
      %p220 = scmp.eq.s32.totalorder %s21, 0
      %p221 = por %p219, %p220
      %p222 = scmp.le.s32.totalorder 1, %s15
      %p223 = scmp.lt.s32.totalorder %s15, 3
      %p224 = pnand %p222, %p223
      %p225 = pneg %p224
      // Predicated region
      $region9: #{srgan_generator_forward.1} parent=5 // pred_check
        _
      $region10: #{srgan_generator_forward.1} parent=5 // pred_check_branch
        %227 = sbr.rel (%p224) target = $region12
      $region11: #{srgan_generator_forward.1} parent=5 // pred_region
        %s228 = ssub.s32 %s15, 1
        // Predicated region
        $region13: #{srgan_generator_forward.1} parent=11 // pred_check
          %p229 = pneg %p62
        $region14: #{srgan_generator_forward.1} parent=11 // pred_check_branch
          %231 = sbr.rel (%p229) target = $region16
        $region15: #{srgan_generator_forward.1} parent=11 // pred_region
          _
        $region16: #{srgan_generator_forward.1} parent=11 // pred_fallthru
          _
        // Predicated region
        $region17: #{srgan_generator_forward.1} parent=11 // pred_check
          %p232 = pneg %p83
        $region18: #{srgan_generator_forward.1} parent=11 // pred_check_branch
          %234 = sbr.rel (%p232) target = $region20
        $region19: #{srgan_generator_forward.1} parent=11 // pred_region
          _
        $region20: #{srgan_generator_forward.1} parent=11 // pred_fallthru
          _
        // Predicated region
        $region21: #{srgan_generator_forward.1} parent=11 // pred_check
          %p235 = pneg %p104
        $region22: #{srgan_generator_forward.1} parent=11 // pred_check_branch
          %237 = sbr.rel (%p235) target = $region24
        $region23: #{srgan_generator_forward.1} parent=11 // pred_region
          _
        $region24: #{srgan_generator_forward.1} parent=11 // pred_fallthru
          _
        // Predicated region
        $region25: #{srgan_generator_forward.1} parent=11 // pred_check
          %p238 = pneg %p125
        $region26: #{srgan_generator_forward.1} parent=11 // pred_check_branch
          %240 = sbr.rel (%p238) target = $region28
        $region27: #{srgan_generator_forward.1} parent=11 // pred_region
          _
        $region28: #{srgan_generator_forward.1} parent=11 // pred_fallthru
          _
        // Predicated region
        $region29: #{srgan_generator_forward.1} parent=11 // pred_check
          %p241 = pneg %p146
        $region30: #{srgan_generator_forward.1} parent=11 // pred_check_branch
          %243 = sbr.rel (%p241) target = $region32
        $region31: #{srgan_generator_forward.1} parent=11 // pred_region
          _
        $region32: #{srgan_generator_forward.1} parent=11 // pred_fallthru
          _
        // Predicated region
        $region33: #{srgan_generator_forward.1} parent=11 // pred_check
          %p244 = pneg %p167
        $region34: #{srgan_generator_forward.1} parent=11 // pred_check_branch
          %246 = sbr.rel (%p244) target = $region36
        $region35: #{srgan_generator_forward.1} parent=11 // pred_region
          _
        $region36: #{srgan_generator_forward.1} parent=11 // pred_fallthru
          _
        // Predicated region
        $region37: #{srgan_generator_forward.1} parent=11 // pred_check
          %p247 = pneg %p188
        $region38: #{srgan_generator_forward.1} parent=11 // pred_check_branch
          %249 = sbr.rel (%p247) target = $region40
        $region39: #{srgan_generator_forward.1} parent=11 // pred_region
          %251 = vsyncadd [#allocation5], 0
          %s253 = sshll.u32 %s7, 4
          %s254 = int_to_ptr.vmem [resolvable:$true] %s253
          %256 = dma.vmem_to_smem %s254, 16, [#allocation4], [#allocation5]
        $region40: #{srgan_generator_forward.1} parent=11 // pred_fallthru
          _
      $region12: #{srgan_generator_forward.1} parent=5 // pred_fallthru
        _
      %p257 = scmp.lt.s32.totalorder %s15, 2
      // Predicated region
      $region41: #{srgan_generator_forward.1} parent=5 // pred_check
        %p258 = pneg %p257
      $region42: #{srgan_generator_forward.1} parent=5 // pred_check_branch
        %260 = sbr.rel (%p258) target = $region44
      $region43: #{srgan_generator_forward.1} parent=5 // pred_region
        // Predicated region
        $region45: #{srgan_generator_forward.1} parent=43 // pred_check
          %p261 = pneg %p35
        $region46: #{srgan_generator_forward.1} parent=43 // pred_check_branch
          %263 = sbr.rel (%p261) target = $region48
        $region47: #{srgan_generator_forward.1} parent=43 // pred_region
          %p264 = scmp.lt.s32.totalorder %s15, 1
          %s265 = scalar_select %p264, %s15, 1
          %s266 = smul.addr %s265, 64
          %s267 = smul.addr %s266, 4
          %s268 = scalar_lea.vmem %s0, %s267
        $region48: #{srgan_generator_forward.1} parent=43 // pred_fallthru
          _
      $region44: #{srgan_generator_forward.1} parent=5 // pred_fallthru
        _
      %p269 = scmp.le.s32.totalorder 1, %s15
      %p270 = scmp.lt.s32.totalorder %s15, 3
      %p271 = pnand %p269, %p270
      %p272 = pneg %p271
      // Predicated region
      $region49: #{srgan_generator_forward.1} parent=5 // pred_check
        _
      $region50: #{srgan_generator_forward.1} parent=5 // pred_check_branch
        %274 = sbr.rel (%p271) target = $region52
      $region51: #{srgan_generator_forward.1} parent=5 // pred_region
        %s275 = ssub.s32 %s15, 1
        // Predicated region
        $region53: #{srgan_generator_forward.1} parent=51 // pred_check
          %p276 = pneg %p188
        $region54: #{srgan_generator_forward.1} parent=51 // pred_check_branch
          %278 = sbr.rel (%p276) target = $region56
        $region55: #{srgan_generator_forward.1} parent=51 // pred_region
          %280 = dma.done [#allocation5], 16
        $region56: #{srgan_generator_forward.1} parent=51 // pred_fallthru
          _
        %281 = sfence
        %p282 = scmp.lt.s32.totalorder %s20, 1
        %s283 = scalar_select %p282, %s20, 1
        %s284 = smul.addr %s283, 64
        %s285 = smul.addr %s284, 4
        %s286 = scalar_lea.vmem %s0, %s285
        %p287 = pneg %p41
        %p288 = pneg %p38
        %p289 = pneg %p62
        %p290 = pneg %p59
        %p291 = pneg %p83
        %p292 = pneg %p80
        %p293 = pneg %p104
        %p294 = pneg %p101
        %p295 = pneg %p125
        %p296 = pneg %p122
        %p297 = pneg %p146
        %p298 = pneg %p143
        %p299 = pneg %p167
        %p300 = pneg %p164
        %p301 = pneg %p188
        %p302 = pneg %p185
        %p303 = pneg %p214
        %p304 = pneg %p211
        %p305 = scmp.lt.s32.totalorder %s20, 1
        %s306 = scalar_select %p305, %s20, 1
        %s307 = smul.addr %s306, 32
        %s308 = smul.addr %s307, 4
        %s309 = scalar_lea.vmem %s8, %s308
        %p310 = scmp.lt.s32.totalorder %s20, 1
        %s311 = scalar_select %p310, %s20, 1
        %s312 = smul.addr %s311, 64
        %s313 = smul.addr %s312, 4
        %s314 = scalar_lea.vmem %s0, %s313
        %p315 = scmp.lt.s32.totalorder %s20, 1
        %s316 = scalar_select %p315, %s20, 1
        %s317 = smul.addr %s316, 32
        %s318 = smul.addr %s317, 4
        %s319 = scalar_lea.vmem %s8, %s318
        %vm321 = vcmask 519168
        %322 = vst.msk [vmem:[#allocation2] sm:$0xf] %vm321, 0
        %323 = vst.msk [vmem:[#allocation2 + $0x4] sm:$0xf] %vm321, 0
        %vm324 = vcmask 516096
        %325 = vst.msk [vmem:[#allocation2 + $0x8] sm:$0x1] %vm324, 0
        %s326 = scalar_lea.vmem [#allocation2], 204
        %327 = vst.msk [vmem:[%s326] sm:$0xf] %vm321, 0
        %328 = vst.msk [vmem:[%s326 + $0x4] sm:$0xf] %vm321, 0
        %329 = vst.msk [vmem:[%s326 + $0x8] sm:$0x1] %vm324, 0
        %vm330 = vcmask 516096
        %vm331 = vsmask.f32 256
        %vm332 = vmand %vm330, %vm331
        %v333 = vld [vmem:[#allocation2] sm:$0x1]
        %v334 = vsel %vm332, 0, %v333
        %335 = vst [vmem:[#allocation2] sm:$0x1] %v334
        %v336 = vld [vmem:[#allocation2 + $0xc] sm:$0x1]
        %v337 = vsel %vm332, 0, %v336
        %338 = vst [vmem:[#allocation2 + $0xc] sm:$0x1] %v337
        %v339 = vld [vmem:[#allocation2 + $0x18] sm:$0x1]
        %v340 = vsel %vm332, 0, %v339
        %341 = vst [vmem:[#allocation2 + $0x18] sm:$0x1] %v340
        %v342 = vld [vmem:[#allocation2 + $0x24] sm:$0x1]
        %v343 = vsel %vm332, 0, %v342
        %344 = vst [vmem:[#allocation2 + $0x24] sm:$0x1] %v343
        %v345 = vld [vmem:[#allocation2 + $0x30] sm:$0x1]
        %v346 = vsel %vm332, 0, %v345
        %347 = vst [vmem:[#allocation2 + $0x30] sm:$0x1] %v346
        %v348 = vld [vmem:[#allocation2 + $0x3c] sm:$0x1]
        %v349 = vsel %vm332, 0, %v348
        %350 = vst [vmem:[#allocation2 + $0x3c] sm:$0x1] %v349
        %v351 = vld [vmem:[#allocation2 + $0x48] sm:$0x1]
        %v352 = vsel %vm332, 0, %v351
        %353 = vst [vmem:[#allocation2 + $0x48] sm:$0x1] %v352
        %v354 = vld [vmem:[#allocation2 + $0x54] sm:$0x1]
        %v355 = vsel %vm332, 0, %v354
        %356 = vst [vmem:[#allocation2 + $0x54] sm:$0x1] %v355
        %v357 = vld [vmem:[#allocation2 + $0x60] sm:$0x1]
        %v358 = vsel %vm332, 0, %v357
        %359 = vst [vmem:[#allocation2 + $0x60] sm:$0x1] %v358
        %v360 = vld [vmem:[#allocation2 + $0x6c] sm:$0x1]
        %v361 = vsel %vm332, 0, %v360
        %362 = vst [vmem:[#allocation2 + $0x6c] sm:$0x1] %v361
        %v363 = vld [vmem:[#allocation2 + $0x78] sm:$0x1]
        %v364 = vsel %vm332, 0, %v363
        %365 = vst [vmem:[#allocation2 + $0x78] sm:$0x1] %v364
        %v366 = vld [vmem:[#allocation2 + $0x84] sm:$0x1]
        %v367 = vsel %vm332, 0, %v366
        %368 = vst [vmem:[#allocation2 + $0x84] sm:$0x1] %v367
        %v369 = vld [vmem:[#allocation2 + $0x90] sm:$0x1]
        %v370 = vsel %vm332, 0, %v369
        %371 = vst [vmem:[#allocation2 + $0x90] sm:$0x1] %v370
        %v372 = vld [vmem:[#allocation2 + $0x9c] sm:$0x1]
        %v373 = vsel %vm332, 0, %v372
        %374 = vst [vmem:[#allocation2 + $0x9c] sm:$0x1] %v373
        %v375 = vld [vmem:[#allocation2 + $0xa8] sm:$0x1]
        %v376 = vsel %vm332, 0, %v375
        %377 = vst [vmem:[#allocation2 + $0xa8] sm:$0x1] %v376
        %v378 = vld [vmem:[#allocation2 + $0xb4] sm:$0x1]
        %v379 = vsel %vm332, 0, %v378
        %380 = vst [vmem:[#allocation2 + $0xb4] sm:$0x1] %v379
        %v381 = vld [vmem:[#allocation2 + $0xc0] sm:$0x1]
        %v382 = vsel %vm332, 0, %v381
        %383 = vst [vmem:[#allocation2 + $0xc0] sm:$0x1] %v382
        %v384 = vld [vmem:[#allocation2 + $0xcc] sm:$0x1]
        %v385 = vsel %vm332, 0, %v384
        %386 = vst [vmem:[#allocation2 + $0xcc] sm:$0x1] %v385
        %vm387 = vsmask.f32 7938
        %vm388 = vmand %vm330, %vm387
        %v389 = vld [vmem:[#allocation2 + $0x8] sm:$0x1]
        %v390 = vsel %vm388, 0, %v389
        %391 = vst [vmem:[#allocation2 + $0x8] sm:$0x1] %v390
        %v392 = vld [vmem:[#allocation2 + $0x14] sm:$0x1]
        %v393 = vsel %vm388, 0, %v392
        %394 = vst [vmem:[#allocation2 + $0x14] sm:$0x1] %v393
        %v395 = vld [vmem:[#allocation2 + $0x20] sm:$0x1]
        %v396 = vsel %vm388, 0, %v395
        %397 = vst [vmem:[#allocation2 + $0x20] sm:$0x1] %v396
        %v398 = vld [vmem:[#allocation2 + $0x2c] sm:$0x1]
        %v399 = vsel %vm388, 0, %v398
        %400 = vst [vmem:[#allocation2 + $0x2c] sm:$0x1] %v399
        %v401 = vld [vmem:[#allocation2 + $0x38] sm:$0x1]
        %v402 = vsel %vm388, 0, %v401
        %403 = vst [vmem:[#allocation2 + $0x38] sm:$0x1] %v402
        %v404 = vld [vmem:[#allocation2 + $0x44] sm:$0x1]
        %v405 = vsel %vm388, 0, %v404
        %406 = vst [vmem:[#allocation2 + $0x44] sm:$0x1] %v405
        %v407 = vld [vmem:[#allocation2 + $0x50] sm:$0x1]
        %v408 = vsel %vm388, 0, %v407
        %409 = vst [vmem:[#allocation2 + $0x50] sm:$0x1] %v408
        %v410 = vld [vmem:[#allocation2 + $0x5c] sm:$0x1]
        %v411 = vsel %vm388, 0, %v410
        %412 = vst [vmem:[#allocation2 + $0x5c] sm:$0x1] %v411
        %v413 = vld [vmem:[#allocation2 + $0x68] sm:$0x1]
        %v414 = vsel %vm388, 0, %v413
        %415 = vst [vmem:[#allocation2 + $0x68] sm:$0x1] %v414
        %v416 = vld [vmem:[#allocation2 + $0x74] sm:$0x1]
        %v417 = vsel %vm388, 0, %v416
        %418 = vst [vmem:[#allocation2 + $0x74] sm:$0x1] %v417
        %v419 = vld [vmem:[#allocation2 + $0x80] sm:$0x1]
        %v420 = vsel %vm388, 0, %v419
        %421 = vst [vmem:[#allocation2 + $0x80] sm:$0x1] %v420
        %v422 = vld [vmem:[#allocation2 + $0x8c] sm:$0x1]
        %v423 = vsel %vm388, 0, %v422
        %424 = vst [vmem:[#allocation2 + $0x8c] sm:$0x1] %v423
        %v425 = vld [vmem:[#allocation2 + $0x98] sm:$0x1]
        %v426 = vsel %vm388, 0, %v425
        %427 = vst [vmem:[#allocation2 + $0x98] sm:$0x1] %v426
        %v428 = vld [vmem:[#allocation2 + $0xa4] sm:$0x1]
        %v429 = vsel %vm388, 0, %v428
        %430 = vst [vmem:[#allocation2 + $0xa4] sm:$0x1] %v429
        %v431 = vld [vmem:[#allocation2 + $0xb0] sm:$0x1]
        %v432 = vsel %vm388, 0, %v431
        %433 = vst [vmem:[#allocation2 + $0xb0] sm:$0x1] %v432
        %v434 = vld [vmem:[#allocation2 + $0xbc] sm:$0x1]
        %v435 = vsel %vm388, 0, %v434
        %436 = vst [vmem:[#allocation2 + $0xbc] sm:$0x1] %v435
        %v437 = vld [vmem:[#allocation2 + $0xc8] sm:$0x1]
        %v438 = vsel %vm388, 0, %v437
        %439 = vst [vmem:[#allocation2 + $0xc8] sm:$0x1] %v438
        %v440 = vld [vmem:[#allocation2 + $0xd4] sm:$0x1]
        %v441 = vsel %vm388, 0, %v440
        %442 = vst [vmem:[#allocation2 + $0xd4] sm:$0x1] %v441
        %v443 = vld [vmem:[%s314] sm:$0xff]
        %v444 = vld [vmem:[%s314 + $0x8] sm:$0xff]
        %v445 = vld [vmem:[%s314 + $0x10] sm:$0xff]
        %v446 = vld [vmem:[%s314 + $0x18] sm:$0xff]
        %v447 = vld [vmem:[%s314 + $0x20] sm:$0xff]
        %v448 = vld [vmem:[%s314 + $0x28] sm:$0xff]
        %v449 = vld [vmem:[%s314 + $0x30] sm:$0xff]
        %v450 = vld [vmem:[%s314 + $0x38] sm:$0xff]
        %v451 = vld [vmem:[%s314 + $0x40] sm:$0xff]
        %v452 = vld [vmem:[%s314 + $0x48] sm:$0xff]
        %v453 = vld [vmem:[%s314 + $0x50] sm:$0xff]
        %v454 = vld [vmem:[%s314 + $0x58] sm:$0xff]
        %v455 = vld [vmem:[%s314 + $0x60] sm:$0xff]
        %v456 = vld [vmem:[%s314 + $0x68] sm:$0xff]
        %v457 = vld [vmem:[%s314 + $0x70] sm:$0xff]
        %v458 = vld [vmem:[%s314 + $0x78] sm:$0xff]
        %v459 = vld [vmem:[%s314 + $0x80] sm:$0xff]
        %v460 = vld [vmem:[%s314 + $0x88] sm:$0xff]
        %v461 = vld [vmem:[%s314 + $0x90] sm:$0xff]
        %v462 = vld [vmem:[%s314 + $0x98] sm:$0xff]
        %v463 = vld [vmem:[%s314 + $0xa0] sm:$0xff]
        %v464 = vld [vmem:[%s314 + $0xa8] sm:$0xff]
        %v465 = vld [vmem:[%s314 + $0xb0] sm:$0xff]
        %v466 = vld [vmem:[%s314 + $0xb8] sm:$0xff]
        %v467 = vld [vmem:[%s314 + $0xc0] sm:$0xff]
        %v468 = vld [vmem:[%s314 + $0xc8] sm:$0xff]
        %v469 = vld [vmem:[%s314 + $0xd0] sm:$0xff]
        %v470 = vld [vmem:[%s314 + $0xd8] sm:$0xff]
        %v471 = vld [vmem:[%s314 + $0xe0] sm:$0xff]
        %v472 = vld [vmem:[%s314 + $0xe8] sm:$0xff]
        %v473 = vld [vmem:[%s314 + $0xf0] sm:$0xff]
        %v474 = vld [vmem:[%s314 + $0xf8] sm:$0xff]
        %v475 = vld [vmem:[%s1] sm:$0xf]
        %v476 = vld [vmem:[%s1 + $0x4] sm:$0xf]
        %v477 = vld [vmem:[%s1 + $0x8] sm:$0xf]
        %v478 = vld [vmem:[%s1 + $0xc] sm:$0xf]
        %v479 = vld [vmem:[%s1 + $0x10] sm:$0xf]
        %v480 = vld [vmem:[%s1 + $0x14] sm:$0xf]
        %v481 = vld [vmem:[%s1 + $0x18] sm:$0xf]
        %v482 = vld [vmem:[%s1 + $0x1c] sm:$0xf]
        %v483 = vld [vmem:[%s1 + $0x20] sm:$0xf]
        %v484 = vld [vmem:[%s1 + $0x24] sm:$0xf]
        %v485 = vld [vmem:[%s1 + $0x28] sm:$0xf]
        %v486 = vld [vmem:[%s1 + $0x2c] sm:$0xf]
        %v487 = vld [vmem:[%s1 + $0x30] sm:$0xf]
        %v488 = vld [vmem:[%s1 + $0x34] sm:$0xf]
        %v489 = vld [vmem:[%s1 + $0x38] sm:$0xf]
        %v490 = vld [vmem:[%s1 + $0x3c] sm:$0xf]
        %v491 = vld [vmem:[%s1 + $0x40] sm:$0xf]
        %v492 = vld [vmem:[%s1 + $0x44] sm:$0xf]
        %v493 = vld [vmem:[%s1 + $0x48] sm:$0xf]
        %v494 = vld [vmem:[%s1 + $0x4c] sm:$0xf]
        %v495 = vld [vmem:[%s1 + $0x50] sm:$0xf]
        %v496 = vld [vmem:[%s1 + $0x54] sm:$0xf]
        %v497 = vld [vmem:[%s1 + $0x58] sm:$0xf]
        %v498 = vld [vmem:[%s1 + $0x5c] sm:$0xf]
        %v499 = vld [vmem:[%s1 + $0x60] sm:$0xf]
        %v500 = vld [vmem:[%s1 + $0x64] sm:$0xf]
        %v501 = vld [vmem:[%s1 + $0x68] sm:$0xf]
        %v502 = vld [vmem:[%s1 + $0x6c] sm:$0xf]
        %v503 = vld [vmem:[%s1 + $0x70] sm:$0xf]
        %v504 = vld [vmem:[%s1 + $0x74] sm:$0xf]
        %v505 = vld [vmem:[%s1 + $0x78] sm:$0x3]
        %v506 = vld [vmem:[%s2] sm:$0x1]
        %v508 = vperm.slane %v506, 0
        %v542 = vunpack.c.l.b16 %v443
        %v543 = vunpack.c.h.b16 %v443
        %v544 = vunpack.c.l.b16 %v444
        %v545 = vunpack.c.h.b16 %v444
        %v546 = vunpack.c.l.b16 %v445
        %v547 = vunpack.c.h.b16 %v445
        %v548 = vunpack.c.l.b16 %v446
        %v549 = vunpack.c.h.b16 %v446
        %v550 = vunpack.c.l.b16 %v447
        %v551 = vunpack.c.h.b16 %v447
        %v552 = vunpack.c.l.b16 %v448
        %v553 = vunpack.c.h.b16 %v448
        %v554 = vunpack.c.l.b16 %v449
        %v555 = vunpack.c.h.b16 %v449
        %v556 = vunpack.c.l.b16 %v450
        %v557 = vunpack.c.h.b16 %v450
        %v558 = vunpack.c.l.b16 %v451
        %v559 = vunpack.c.h.b16 %v451
        %v560 = vunpack.c.l.b16 %v452
        %v561 = vunpack.c.h.b16 %v452
        %v562 = vunpack.c.l.b16 %v453
        %v563 = vunpack.c.h.b16 %v453
        %v564 = vunpack.c.l.b16 %v454
        %v565 = vunpack.c.h.b16 %v454
        %v566 = vunpack.c.l.b16 %v455
        %v567 = vunpack.c.h.b16 %v455
        %v568 = vunpack.c.l.b16 %v456
        %v569 = vunpack.c.h.b16 %v456
        %v570 = vunpack.c.l.b16 %v457
        %v571 = vunpack.c.h.b16 %v457
        %v572 = vunpack.c.l.b16 %v458
        %v573 = vunpack.c.h.b16 %v458
        %v574 = vunpack.c.l.b16 %v459
        %v575 = vunpack.c.h.b16 %v459
        %v576 = vunpack.c.l.b16 %v460
        %v577 = vunpack.c.h.b16 %v460
        %v578 = vunpack.c.l.b16 %v461
        %v579 = vunpack.c.h.b16 %v461
        %v580 = vunpack.c.l.b16 %v462
        %v581 = vunpack.c.h.b16 %v462
        %v582 = vunpack.c.l.b16 %v463
        %v583 = vunpack.c.h.b16 %v463
        %v584 = vunpack.c.l.b16 %v464
        %v585 = vunpack.c.h.b16 %v464
        %v586 = vunpack.c.l.b16 %v465
        %v587 = vunpack.c.h.b16 %v465
        %v588 = vunpack.c.l.b16 %v466
        %v589 = vunpack.c.h.b16 %v466
        %v590 = vunpack.c.l.b16 %v467
        %v591 = vunpack.c.h.b16 %v467
        %v592 = vunpack.c.l.b16 %v468
        %v593 = vunpack.c.h.b16 %v468
        %v594 = vunpack.c.l.b16 %v469
        %v595 = vunpack.c.h.b16 %v469
        %v596 = vunpack.c.l.b16 %v470
        %v597 = vunpack.c.h.b16 %v470
        %v598 = vunpack.c.l.b16 %v471
        %v599 = vunpack.c.h.b16 %v471
        %v600 = vunpack.c.l.b16 %v472
        %v601 = vunpack.c.h.b16 %v472
        %v602 = vunpack.c.l.b16 %v473
        %v603 = vunpack.c.h.b16 %v473
        %v604 = vunpack.c.l.b16 %v474
        %v605 = vunpack.c.h.b16 %v474
        %v606 = vpack.c.b16 %v544, %v542
        %v607 = vpack.c.b16 %v545, %v543
        %v608 = vpack.c.b16 %v548, %v546
        %v609 = vpack.c.b16 %v549, %v547
        %v610 = vpack.c.b16 %v552, %v550
        %v611 = vpack.c.b16 %v553, %v551
        %v612 = vpack.c.b16 %v556, %v554
        %v613 = vpack.c.b16 %v557, %v555
        %v614 = vpack.c.b16 %v560, %v558
        %v615 = vpack.c.b16 %v561, %v559
        %v616 = vpack.c.b16 %v564, %v562
        %v617 = vpack.c.b16 %v565, %v563
        %v618 = vpack.c.b16 %v568, %v566
        %v619 = vpack.c.b16 %v569, %v567
        %v620 = vpack.c.b16 %v572, %v570
        %v621 = vpack.c.b16 %v573, %v571
        %v622 = vpack.c.b16 %v576, %v574
        %v623 = vpack.c.b16 %v577, %v575
        %v624 = vpack.c.b16 %v580, %v578
        %v625 = vpack.c.b16 %v581, %v579
        %v626 = vpack.c.b16 %v584, %v582
        %v627 = vpack.c.b16 %v585, %v583
        %v628 = vpack.c.b16 %v588, %v586
        %v629 = vpack.c.b16 %v589, %v587
        %v630 = vpack.c.b16 %v592, %v590
        %v631 = vpack.c.b16 %v593, %v591
        %v632 = vpack.c.b16 %v596, %v594
        %v633 = vpack.c.b16 %v597, %v595
        %v634 = vpack.c.b16 %v600, %v598
        %v635 = vpack.c.b16 %v601, %v599
        %v636 = vpack.c.b16 %v604, %v602
        %v637 = vpack.c.b16 %v605, %v603
        %v685 = vunpack.c.l.b16 %v475
        %v686 = vunpack.c.l.b16 %v476
        %v687 = vunpack.c.l.b16 %v477
        %v688 = vunpack.c.l.b16 %v478
        %v689 = vunpack.c.l.b16 %v479
        %v690 = vunpack.c.l.b16 %v480
        %v691 = vunpack.c.l.b16 %v481
        %v692 = vunpack.c.l.b16 %v482
        %v693 = vunpack.c.l.b16 %v483
        %v694 = vunpack.c.l.b16 %v484
        %v695 = vunpack.c.l.b16 %v485
        %v696 = vunpack.c.l.b16 %v486
        %v697 = vunpack.c.l.b16 %v487
        %v698 = vunpack.c.l.b16 %v488
        %v699 = vunpack.c.l.b16 %v489
        %v700 = vunpack.c.l.b16 %v490
        %v701 = vunpack.c.l.b16 %v491
        %v702 = vunpack.c.l.b16 %v492
        %v703 = vunpack.c.l.b16 %v493
        %v704 = vunpack.c.l.b16 %v494
        %v705 = vunpack.c.l.b16 %v495
        %v706 = vunpack.c.l.b16 %v496
        %v707 = vunpack.c.l.b16 %v497
        %v708 = vunpack.c.l.b16 %v498
        %v709 = vunpack.c.l.b16 %v499
        %v710 = vunpack.c.l.b16 %v500
        %v711 = vunpack.c.l.b16 %v501
        %v712 = vunpack.c.l.b16 %v502
        %v713 = vunpack.c.l.b16 %v503
        %v714 = vunpack.c.l.b16 %v504
        %v715 = vunpack.c.l.b16 %v505
        %v716 = vpack.c.b16 %v686, %v685
        %v717 = vpack.c.b16 %v688, %v687
        %v718 = vpack.c.b16 %v690, %v689
        %v719 = vpack.c.b16 %v692, %v691
        %v720 = vpack.c.b16 %v694, %v693
        %v721 = vpack.c.b16 %v696, %v695
        %v722 = vpack.c.b16 %v698, %v697
        %v723 = vpack.c.b16 %v700, %v699
        %v724 = vpack.c.b16 %v702, %v701
        %v725 = vpack.c.b16 %v704, %v703
        %v726 = vpack.c.b16 %v706, %v705
        %v727 = vpack.c.b16 %v708, %v707
        %v728 = vpack.c.b16 %v710, %v709
        %v729 = vpack.c.b16 %v712, %v711
        %v730 = vpack.c.b16 %v714, %v713
        %v731 = vpack.c.b16 %v715, %v715
        %vm747 = vcmask 941056
        %v749 = vsel %vm747, %v607, 0
        %v752 = vsel %vm747, %v609, 0
        %v755 = vsel %vm747, %v611, 0
        %v758 = vsel %vm747, %v613, 0
        %v761 = vsel %vm747, %v615, 0
        %v764 = vsel %vm747, %v617, 0
        %v767 = vsel %vm747, %v619, 0
        %v770 = vsel %vm747, %v621, 0
        %v773 = vsel %vm747, %v623, 0
        %v776 = vsel %vm747, %v625, 0
        %v779 = vsel %vm747, %v627, 0
        %v782 = vsel %vm747, %v629, 0
        %v785 = vsel %vm747, %v631, 0
        %v788 = vsel %vm747, %v633, 0
        %v791 = vsel %vm747, %v635, 0
        %v794 = vsel %vm747, %v637, 0
        %vm796 = vcmask 1040384
        %vm797 = vcmask 1041408
        %v798 = vsel %vm796, 4294967295, 65535
        %v799 = vsel %vm797, %v798, 0
        %v801 = vand.u32 %v731, %v799
        %803 = vmatpush.bf16.msra.mxu0 %v723
        %804 = vmatpush.bf16.msra.mxu0 %v722
        %805 = vmatpush.bf16.msra.mxu0 %v721
        %806 = vmatpush.bf16.msra.mxu0 %v720
        %807 = vmatpush.bf16.msra.mxu0 %v719
        %808 = vmatpush.bf16.msra.mxu0 %v718
        %809 = vmatpush.bf16.msra.mxu0 %v717
        %810 = vmatpush.bf16.msra.mxu0 %v716
        %811 = vmatmul.bf16.gmra.mxu0 %v606
        %v812 = vpop.f32.mrf.mxu0
        %v813 = vadd.f32 %v508, %v812
        %v814 = vpop.f32.mrf.mxu0
        %v815 = vadd.f32 %v508, %v814
        %816 = vmatmul.bf16.gmra.mxu0 %v608
        %v817 = vpop.f32.mrf.mxu0
        %v818 = vadd.f32 %v508, %v817
        %v819 = vpop.f32.mrf.mxu0
        %v820 = vadd.f32 %v508, %v819
        %821 = vmatmul.bf16.gmra.mxu0 %v610
        %v822 = vpop.f32.mrf.mxu0
        %v823 = vadd.f32 %v508, %v822
        %v824 = vpop.f32.mrf.mxu0
        %v825 = vadd.f32 %v508, %v824
        %826 = vmatmul.bf16.gmra.mxu0 %v612
        %v827 = vpop.f32.mrf.mxu0
        %v828 = vadd.f32 %v508, %v827
        %v829 = vpop.f32.mrf.mxu0
        %v830 = vadd.f32 %v508, %v829
        %831 = vmatmul.bf16.gmra.mxu0 %v614
        %v832 = vpop.f32.mrf.mxu0
        %v833 = vadd.f32 %v508, %v832
        %v834 = vpop.f32.mrf.mxu0
        %v835 = vadd.f32 %v508, %v834
        %836 = vmatmul.bf16.gmra.mxu0 %v616
        %v837 = vpop.f32.mrf.mxu0
        %v838 = vadd.f32 %v508, %v837
        %v839 = vpop.f32.mrf.mxu0
        %v840 = vadd.f32 %v508, %v839
        %841 = vmatmul.bf16.gmra.mxu0 %v618
        %v842 = vpop.f32.mrf.mxu0
        %v843 = vadd.f32 %v508, %v842
        %v844 = vpop.f32.mrf.mxu0
        %v845 = vadd.f32 %v508, %v844
        %846 = vmatmul.bf16.gmra.mxu0 %v620
        %v847 = vpop.f32.mrf.mxu0
        %v848 = vadd.f32 %v508, %v847
        %v849 = vpop.f32.mrf.mxu0
        %v850 = vadd.f32 %v508, %v849
        %851 = vmatmul.bf16.gmra.mxu0 %v622
        %v852 = vpop.f32.mrf.mxu0
        %v853 = vadd.f32 %v508, %v852
        %v854 = vpop.f32.mrf.mxu0
        %v855 = vadd.f32 %v508, %v854
        %856 = vmatmul.bf16.gmra.mxu0 %v624
        %v857 = vpop.f32.mrf.mxu0
        %v858 = vadd.f32 %v508, %v857
        %v859 = vpop.f32.mrf.mxu0
        %v860 = vadd.f32 %v508, %v859
        %861 = vmatmul.bf16.gmra.mxu0 %v626
        %v862 = vpop.f32.mrf.mxu0
        %v863 = vadd.f32 %v508, %v862
        %v864 = vpop.f32.mrf.mxu0
        %v865 = vadd.f32 %v508, %v864
        %866 = vmatmul.bf16.gmra.mxu0 %v628
        %v867 = vpop.f32.mrf.mxu0
        %v868 = vadd.f32 %v508, %v867
        %v869 = vpop.f32.mrf.mxu0
        %v870 = vadd.f32 %v508, %v869
        %871 = vmatmul.bf16.gmra.mxu0 %v630
        %v872 = vpop.f32.mrf.mxu0
        %v873 = vadd.f32 %v508, %v872
        %v874 = vpop.f32.mrf.mxu0
        %v875 = vadd.f32 %v508, %v874
        %876 = vmatmul.bf16.gmra.mxu0 %v632
        %v877 = vpop.f32.mrf.mxu0
        %v878 = vadd.f32 %v508, %v877
        %v879 = vpop.f32.mrf.mxu0
        %v880 = vadd.f32 %v508, %v879
        %881 = vmatmul.bf16.gmra.mxu0 %v634
        %v882 = vpop.f32.mrf.mxu0
        %v883 = vadd.f32 %v508, %v882
        %v884 = vpop.f32.mrf.mxu0
        %v885 = vadd.f32 %v508, %v884
        %886 = vmatmul.bf16.gmra.mxu0 %v636
        %v887 = vpop.f32.mrf.mxu0
        %v888 = vadd.f32 %v508, %v887
        %v889 = vpop.f32.mrf.mxu0
        %v890 = vadd.f32 %v508, %v889
        %891 = vdwg.mxu0
        %892 = vmatpush.bf16.msra.mxu0 %v801
        %893 = vmatpush.bf16.msra.mxu0 %v730
        %894 = vmatpush.bf16.msra.mxu0 %v729
        %895 = vmatpush.bf16.msra.mxu0 %v728
        %896 = vmatpush.bf16.msra.mxu0 %v727
        %897 = vmatpush.bf16.msra.mxu0 %v726
        %898 = vmatpush.bf16.msra.mxu0 %v725
        %899 = vmatpush.bf16.msra.mxu0 %v724
        %900 = vmatmul.bf16.gmra.mxu0 %v749
        %v901 = vpop.f32.mrf.mxu0
        %v902 = vadd.f32 %v813, %v901
        %v903 = vpop.f32.mrf.mxu0
        %v904 = vadd.f32 %v815, %v903
        %905 = vmatmul.bf16.gmra.mxu0 %v752
        %v906 = vpop.f32.mrf.mxu0
        %v907 = vadd.f32 %v818, %v906
        %v908 = vpop.f32.mrf.mxu0
        %v909 = vadd.f32 %v820, %v908
        %910 = vmatmul.bf16.gmra.mxu0 %v755
        %v911 = vpop.f32.mrf.mxu0
        %v912 = vadd.f32 %v823, %v911
        %v913 = vpop.f32.mrf.mxu0
        %v914 = vadd.f32 %v825, %v913
        %915 = vmatmul.bf16.gmra.mxu0 %v758
        %v916 = vpop.f32.mrf.mxu0
        %v917 = vadd.f32 %v828, %v916
        %v918 = vpop.f32.mrf.mxu0
        %v919 = vadd.f32 %v830, %v918
        %920 = vmatmul.bf16.gmra.mxu0 %v761
        %v921 = vpop.f32.mrf.mxu0
        %v922 = vadd.f32 %v833, %v921
        %v923 = vpop.f32.mrf.mxu0
        %v924 = vadd.f32 %v835, %v923
        %925 = vmatmul.bf16.gmra.mxu0 %v764
        %v926 = vpop.f32.mrf.mxu0
        %v927 = vadd.f32 %v838, %v926
        %v928 = vpop.f32.mrf.mxu0
        %v929 = vadd.f32 %v840, %v928
        %930 = vmatmul.bf16.gmra.mxu0 %v767
        %v931 = vpop.f32.mrf.mxu0
        %v932 = vadd.f32 %v843, %v931
        %v933 = vpop.f32.mrf.mxu0
        %v934 = vadd.f32 %v845, %v933
        %935 = vmatmul.bf16.gmra.mxu0 %v770
        %v936 = vpop.f32.mrf.mxu0
        %v937 = vadd.f32 %v848, %v936
        %v938 = vpop.f32.mrf.mxu0
        %v939 = vadd.f32 %v850, %v938
        %940 = vmatmul.bf16.gmra.mxu0 %v773
        %v941 = vpop.f32.mrf.mxu0
        %v942 = vadd.f32 %v853, %v941
        %v943 = vpop.f32.mrf.mxu0
        %v944 = vadd.f32 %v855, %v943
        %945 = vmatmul.bf16.gmra.mxu0 %v776
        %v946 = vpop.f32.mrf.mxu0
        %v947 = vadd.f32 %v858, %v946
        %v948 = vpop.f32.mrf.mxu0
        %v949 = vadd.f32 %v860, %v948
        %950 = vmatmul.bf16.gmra.mxu0 %v779
        %v951 = vpop.f32.mrf.mxu0
        %v952 = vadd.f32 %v863, %v951
        %v953 = vpop.f32.mrf.mxu0
        %v954 = vadd.f32 %v865, %v953
        %955 = vmatmul.bf16.gmra.mxu0 %v782
        %v956 = vpop.f32.mrf.mxu0
        %v957 = vadd.f32 %v868, %v956
        %v958 = vpop.f32.mrf.mxu0
        %v959 = vadd.f32 %v870, %v958
        %960 = vmatmul.bf16.gmra.mxu0 %v785
        %v961 = vpop.f32.mrf.mxu0
        %v962 = vadd.f32 %v873, %v961
        %v963 = vpop.f32.mrf.mxu0
        %v964 = vadd.f32 %v875, %v963
        %965 = vmatmul.bf16.gmra.mxu0 %v788
        %v966 = vpop.f32.mrf.mxu0
        %v967 = vadd.f32 %v878, %v966
        %v968 = vpop.f32.mrf.mxu0
        %v969 = vadd.f32 %v880, %v968
        %970 = vmatmul.bf16.gmra.mxu0 %v791
        %v971 = vpop.f32.mrf.mxu0
        %v972 = vadd.f32 %v883, %v971
        %v973 = vpop.f32.mrf.mxu0
        %v974 = vadd.f32 %v885, %v973
        %975 = vmatmul.bf16.gmra.mxu0 %v794
        %v976 = vpop.f32.mrf.mxu0
        %v977 = vadd.f32 %v888, %v976
        %v978 = vpop.f32.mrf.mxu0
        %v979 = vadd.f32 %v890, %v978
        %980 = vdwg.mxu0
        %s981 = sld [smem:[#allocation4]]
        %vm982 = vcmp.ge.f32.partialorder %v902, 0.0
        %vm983 = vcmp.ge.f32.partialorder %v904, 0.0
        %vm984 = vcmp.ge.f32.partialorder %v907, 0.0
        %vm985 = vcmp.ge.f32.partialorder %v909, 0.0
        %vm986 = vcmp.ge.f32.partialorder %v912, 0.0
        %vm987 = vcmp.ge.f32.partialorder %v914, 0.0
        %vm988 = vcmp.ge.f32.partialorder %v917, 0.0
        %vm989 = vcmp.ge.f32.partialorder %v919, 0.0
        %vm990 = vcmp.ge.f32.partialorder %v922, 0.0
        %vm991 = vcmp.ge.f32.partialorder %v924, 0.0
        %vm992 = vcmp.ge.f32.partialorder %v927, 0.0
        %vm993 = vcmp.ge.f32.partialorder %v929, 0.0
        %vm994 = vcmp.ge.f32.partialorder %v932, 0.0
        %vm995 = vcmp.ge.f32.partialorder %v934, 0.0
        %vm996 = vcmp.ge.f32.partialorder %v937, 0.0
        %vm997 = vcmp.ge.f32.partialorder %v939, 0.0
        %vm998 = vcmp.ge.f32.partialorder %v942, 0.0
        %vm999 = vcmp.ge.f32.partialorder %v944, 0.0
        %vm1000 = vcmp.ge.f32.partialorder %v947, 0.0
        %vm1001 = vcmp.ge.f32.partialorder %v949, 0.0
        %vm1002 = vcmp.ge.f32.partialorder %v952, 0.0
        %vm1003 = vcmp.ge.f32.partialorder %v954, 0.0
        %vm1004 = vcmp.ge.f32.partialorder %v957, 0.0
        %vm1005 = vcmp.ge.f32.partialorder %v959, 0.0
        %vm1006 = vcmp.ge.f32.partialorder %v962, 0.0
        %vm1007 = vcmp.ge.f32.partialorder %v964, 0.0
        %vm1008 = vcmp.ge.f32.partialorder %v967, 0.0
        %vm1009 = vcmp.ge.f32.partialorder %v969, 0.0
        %vm1010 = vcmp.ge.f32.partialorder %v972, 0.0
        %vm1011 = vcmp.ge.f32.partialorder %v974, 0.0
        %vm1012 = vcmp.ge.f32.partialorder %v977, 0.0
        %vm1013 = vcmp.ge.f32.partialorder %v979, 0.0
        %v1014 = vstv %s981
        %v1015 = vmul.f32 %v1014, %v902
        %v1016 = vmul.f32 %v1014, %v904
        %v1017 = vmul.f32 %v1014, %v907
        %v1018 = vmul.f32 %v1014, %v909
        %v1019 = vmul.f32 %v1014, %v912
        %v1020 = vmul.f32 %v1014, %v914
        %v1021 = vmul.f32 %v1014, %v917
        %v1022 = vmul.f32 %v1014, %v919
        %v1023 = vmul.f32 %v1014, %v922
        %v1024 = vmul.f32 %v1014, %v924
        %v1025 = vmul.f32 %v1014, %v927
        %v1026 = vmul.f32 %v1014, %v929
        %v1027 = vmul.f32 %v1014, %v932
        %v1028 = vmul.f32 %v1014, %v934
        %v1029 = vmul.f32 %v1014, %v937
        %v1030 = vmul.f32 %v1014, %v939
        %v1031 = vmul.f32 %v1014, %v942
        %v1032 = vmul.f32 %v1014, %v944
        %v1033 = vmul.f32 %v1014, %v947
        %v1034 = vmul.f32 %v1014, %v949
        %v1035 = vmul.f32 %v1014, %v952
        %v1036 = vmul.f32 %v1014, %v954
        %v1037 = vmul.f32 %v1014, %v957
        %v1038 = vmul.f32 %v1014, %v959
        %v1039 = vmul.f32 %v1014, %v962
        %v1040 = vmul.f32 %v1014, %v964
        %v1041 = vmul.f32 %v1014, %v967
        %v1042 = vmul.f32 %v1014, %v969
        %v1043 = vmul.f32 %v1014, %v972
        %v1044 = vmul.f32 %v1014, %v974
        %v1045 = vmul.f32 %v1014, %v977
        %v1046 = vmul.f32 %v1014, %v979
        %v1047 = vsel %vm982, %v902, %v1015
        %v1048 = vsel %vm983, %v904, %v1016
        %v1049 = vsel %vm984, %v907, %v1017
        %v1050 = vsel %vm985, %v909, %v1018
        %v1051 = vsel %vm986, %v912, %v1019
        %v1052 = vsel %vm987, %v914, %v1020
        %v1053 = vsel %vm988, %v917, %v1021
        %v1054 = vsel %vm989, %v919, %v1022
        %v1055 = vsel %vm990, %v922, %v1023
        %v1056 = vsel %vm991, %v924, %v1024
        %v1057 = vsel %vm992, %v927, %v1025
        %v1058 = vsel %vm993, %v929, %v1026
        %v1059 = vsel %vm994, %v932, %v1027
        %v1060 = vsel %vm995, %v934, %v1028
        %v1061 = vsel %vm996, %v937, %v1029
        %v1062 = vsel %vm997, %v939, %v1030
        %v1063 = vsel %vm998, %v942, %v1031
        %v1064 = vsel %vm999, %v944, %v1032
        %v1065 = vsel %vm1000, %v947, %v1033
        %v1066 = vsel %vm1001, %v949, %v1034
        %v1067 = vsel %vm1002, %v952, %v1035
        %v1068 = vsel %vm1003, %v954, %v1036
        %v1069 = vsel %vm1004, %v957, %v1037
        %v1070 = vsel %vm1005, %v959, %v1038
        %v1071 = vsel %vm1006, %v962, %v1039
        %v1072 = vsel %vm1007, %v964, %v1040
        %v1073 = vsel %vm1008, %v967, %v1041
        %v1074 = vsel %vm1009, %v969, %v1042
        %v1075 = vsel %vm1010, %v972, %v1043
        %v1076 = vsel %vm1011, %v974, %v1044
        %v1077 = vsel %vm1012, %v977, %v1045
        %v1078 = vsel %vm1013, %v979, %v1046
        %v1079 = vpack.c.bf16 %v1047, %v1047
        %v1080 = vpack.c.bf16 %v1048, %v1048
        %v1081 = vpack.c.bf16 %v1049, %v1049
        %v1082 = vpack.c.bf16 %v1050, %v1050
        %v1083 = vpack.c.bf16 %v1051, %v1051
        %v1084 = vpack.c.bf16 %v1052, %v1052
        %v1085 = vpack.c.bf16 %v1053, %v1053
        %v1086 = vpack.c.bf16 %v1054, %v1054
        %v1087 = vpack.c.bf16 %v1055, %v1055
        %v1088 = vpack.c.bf16 %v1056, %v1056
        %v1089 = vpack.c.bf16 %v1057, %v1057
        %v1090 = vpack.c.bf16 %v1058, %v1058
        %v1091 = vpack.c.bf16 %v1059, %v1059
        %v1092 = vpack.c.bf16 %v1060, %v1060
        %v1093 = vpack.c.bf16 %v1061, %v1061
        %v1094 = vpack.c.bf16 %v1062, %v1062
        %v1095 = vpack.c.bf16 %v1063, %v1063
        %v1096 = vpack.c.bf16 %v1064, %v1064
        %v1097 = vpack.c.bf16 %v1065, %v1065
        %v1098 = vpack.c.bf16 %v1066, %v1066
        %v1099 = vpack.c.bf16 %v1067, %v1067
        %v1100 = vpack.c.bf16 %v1068, %v1068
        %v1101 = vpack.c.bf16 %v1069, %v1069
        %v1102 = vpack.c.bf16 %v1070, %v1070
        %v1103 = vpack.c.bf16 %v1071, %v1071
        %v1104 = vpack.c.bf16 %v1072, %v1072
        %v1105 = vpack.c.bf16 %v1073, %v1073
        %v1106 = vpack.c.bf16 %v1074, %v1074
        %v1107 = vpack.c.bf16 %v1075, %v1075
        %v1108 = vpack.c.bf16 %v1076, %v1076
        %v1109 = vpack.c.bf16 %v1077, %v1077
        %v1110 = vpack.c.bf16 %v1078, %v1078
        %vm1111 = vsmask.f32 4368
        %vm1112 = vmor %vm331, %vm1111
        %v1114 = vshrl.u32 %v1079, 16
        %v1116 = vrot.slane %v1114, 7
        %v1117 = vshll.u32 %v1079, 16
        %v1119 = vor.u32 %v1116, %v1117
        %v1120 = vrot.slane %v1116, 4
        %v1122 = vshrl.u32 %v1080, 16
        %v1124 = vrot.slane %v1122, 7
        %v1125 = vshll.u32 %v1080, 16
        %v1127 = vor.u32 %v1124, %v1125
        %v1128 = vsel %vm1112, %v1120, %v1127
        %v1129 = vrot.slane %v1124, 4
        %v1131 = vshrl.u32 %v1081, 16
        %v1133 = vrot.slane %v1131, 7
        %v1134 = vshll.u32 %v1081, 16
        %v1136 = vor.u32 %v1133, %v1134
        %v1137 = vrot.slane %v1133, 4
        %v1139 = vshrl.u32 %v1082, 16
        %v1141 = vrot.slane %v1139, 7
        %v1142 = vshll.u32 %v1082, 16
        %v1144 = vor.u32 %v1141, %v1142
        %v1145 = vsel %vm1112, %v1137, %v1144
        %v1146 = vrot.slane %v1141, 4
        %v1148 = vshrl.u32 %v1083, 16
        %v1150 = vrot.slane %v1148, 7
        %v1151 = vshll.u32 %v1083, 16
        %v1153 = vor.u32 %v1150, %v1151
        %v1154 = vrot.slane %v1150, 4
        %v1156 = vshrl.u32 %v1084, 16
        %v1158 = vrot.slane %v1156, 7
        %v1159 = vshll.u32 %v1084, 16
        %v1161 = vor.u32 %v1158, %v1159
        %v1162 = vsel %vm1112, %v1154, %v1161
        %v1163 = vrot.slane %v1158, 4
        %v1165 = vshrl.u32 %v1085, 16
        %v1167 = vrot.slane %v1165, 7
        %v1168 = vshll.u32 %v1085, 16
        %v1170 = vor.u32 %v1167, %v1168
        %v1171 = vrot.slane %v1167, 4
        %v1173 = vshrl.u32 %v1086, 16
        %v1175 = vrot.slane %v1173, 7
        %v1176 = vshll.u32 %v1086, 16
        %v1178 = vor.u32 %v1175, %v1176
        %v1179 = vsel %vm1112, %v1171, %v1178
        %v1180 = vrot.slane %v1175, 4
        %v1182 = vshrl.u32 %v1087, 16
        %v1184 = vrot.slane %v1182, 7
        %v1185 = vshll.u32 %v1087, 16
        %v1187 = vor.u32 %v1184, %v1185
        %v1188 = vrot.slane %v1184, 4
        %v1190 = vshrl.u32 %v1088, 16
        %v1192 = vrot.slane %v1190, 7
        %v1193 = vshll.u32 %v1088, 16
        %v1195 = vor.u32 %v1192, %v1193
        %v1196 = vsel %vm1112, %v1188, %v1195
        %v1197 = vrot.slane %v1192, 4
        %v1199 = vshrl.u32 %v1089, 16
        %v1201 = vrot.slane %v1199, 7
        %v1202 = vshll.u32 %v1089, 16
        %v1204 = vor.u32 %v1201, %v1202
        %v1205 = vrot.slane %v1201, 4
        %v1207 = vshrl.u32 %v1090, 16
        %v1209 = vrot.slane %v1207, 7
        %v1210 = vshll.u32 %v1090, 16
        %v1212 = vor.u32 %v1209, %v1210
        %v1213 = vsel %vm1112, %v1205, %v1212
        %v1214 = vrot.slane %v1209, 4
        %v1216 = vshrl.u32 %v1091, 16
        %v1218 = vrot.slane %v1216, 7
        %v1219 = vshll.u32 %v1091, 16
        %v1221 = vor.u32 %v1218, %v1219
        %v1222 = vrot.slane %v1218, 4
        %v1224 = vshrl.u32 %v1092, 16
        %v1226 = vrot.slane %v1224, 7
        %v1227 = vshll.u32 %v1092, 16
        %v1229 = vor.u32 %v1226, %v1227
        %v1230 = vsel %vm1112, %v1222, %v1229
        %v1231 = vrot.slane %v1226, 4
        %v1233 = vshrl.u32 %v1093, 16
        %v1235 = vrot.slane %v1233, 7
        %v1236 = vshll.u32 %v1093, 16
        %v1238 = vor.u32 %v1235, %v1236
        %v1239 = vrot.slane %v1235, 4
        %v1241 = vshrl.u32 %v1094, 16
        %v1243 = vrot.slane %v1241, 7
        %v1244 = vshll.u32 %v1094, 16
        %v1246 = vor.u32 %v1243, %v1244
        %v1247 = vsel %vm1112, %v1239, %v1246
        %v1248 = vrot.slane %v1243, 4
        %v1250 = vshrl.u32 %v1095, 16
        %v1252 = vrot.slane %v1250, 7
        %v1253 = vshll.u32 %v1095, 16
        %v1255 = vor.u32 %v1252, %v1253
        %v1256 = vrot.slane %v1252, 4
        %v1258 = vshrl.u32 %v1096, 16
        %v1260 = vrot.slane %v1258, 7
        %v1261 = vshll.u32 %v1096, 16
        %v1263 = vor.u32 %v1260, %v1261
        %v1264 = vsel %vm1112, %v1256, %v1263
        %v1265 = vrot.slane %v1260, 4
        %v1267 = vshrl.u32 %v1097, 16
        %v1269 = vrot.slane %v1267, 7
        %v1270 = vshll.u32 %v1097, 16
        %v1272 = vor.u32 %v1269, %v1270
        %v1273 = vrot.slane %v1269, 4
        %v1275 = vshrl.u32 %v1098, 16
        %v1277 = vrot.slane %v1275, 7
        %v1278 = vshll.u32 %v1098, 16
        %v1280 = vor.u32 %v1277, %v1278
        %v1281 = vsel %vm1112, %v1273, %v1280
        %v1282 = vrot.slane %v1277, 4
        %v1284 = vshrl.u32 %v1099, 16
        %v1286 = vrot.slane %v1284, 7
        %v1287 = vshll.u32 %v1099, 16
        %v1289 = vor.u32 %v1286, %v1287
        %v1290 = vrot.slane %v1286, 4
        %v1292 = vshrl.u32 %v1100, 16
        %v1294 = vrot.slane %v1292, 7
        %v1295 = vshll.u32 %v1100, 16
        %v1297 = vor.u32 %v1294, %v1295
        %v1298 = vsel %vm1112, %v1290, %v1297
        %v1299 = vrot.slane %v1294, 4
        %v1301 = vshrl.u32 %v1101, 16
        %v1303 = vrot.slane %v1301, 7
        %v1304 = vshll.u32 %v1101, 16
        %v1306 = vor.u32 %v1303, %v1304
        %v1307 = vrot.slane %v1303, 4
        %v1309 = vshrl.u32 %v1102, 16
        %v1311 = vrot.slane %v1309, 7
        %v1312 = vshll.u32 %v1102, 16
        %v1314 = vor.u32 %v1311, %v1312
        %v1315 = vsel %vm1112, %v1307, %v1314
        %v1316 = vrot.slane %v1311, 4
        %v1318 = vshrl.u32 %v1103, 16
        %v1320 = vrot.slane %v1318, 7
        %v1321 = vshll.u32 %v1103, 16
        %v1323 = vor.u32 %v1320, %v1321
        %v1324 = vrot.slane %v1320, 4
        %v1326 = vshrl.u32 %v1104, 16
        %v1328 = vrot.slane %v1326, 7
        %v1329 = vshll.u32 %v1104, 16
        %v1331 = vor.u32 %v1328, %v1329
        %v1332 = vsel %vm1112, %v1324, %v1331
        %v1333 = vrot.slane %v1328, 4
        %v1335 = vshrl.u32 %v1105, 16
        %v1337 = vrot.slane %v1335, 7
        %v1338 = vshll.u32 %v1105, 16
        %v1340 = vor.u32 %v1337, %v1338
        %v1341 = vrot.slane %v1337, 4
        %v1343 = vshrl.u32 %v1106, 16
        %v1345 = vrot.slane %v1343, 7
        %v1346 = vshll.u32 %v1106, 16
        %v1348 = vor.u32 %v1345, %v1346
        %v1349 = vsel %vm1112, %v1341, %v1348
        %v1350 = vrot.slane %v1345, 4
        %v1352 = vshrl.u32 %v1107, 16
        %v1354 = vrot.slane %v1352, 7
        %v1355 = vshll.u32 %v1107, 16
        %v1357 = vor.u32 %v1354, %v1355
        %v1358 = vrot.slane %v1354, 4
        %v1360 = vshrl.u32 %v1108, 16
        %v1362 = vrot.slane %v1360, 7
        %v1363 = vshll.u32 %v1108, 16
        %v1365 = vor.u32 %v1362, %v1363
        %v1366 = vsel %vm1112, %v1358, %v1365
        %v1367 = vrot.slane %v1362, 4
        %v1369 = vshrl.u32 %v1109, 16
        %v1371 = vrot.slane %v1369, 7
        %v1372 = vshll.u32 %v1109, 16
        %v1374 = vor.u32 %v1371, %v1372
        %v1375 = vrot.slane %v1371, 4
        %v1377 = vshrl.u32 %v1110, 16
        %v1379 = vrot.slane %v1377, 7
        %v1380 = vshll.u32 %v1110, 16
        %v1382 = vor.u32 %v1379, %v1380
        %v1383 = vsel %vm1112, %v1375, %v1382
        %v1384 = vrot.slane %v1379, 4
        %s1433 = scalar_lea.vmem [#allocation2], 12
        %vm1434 = vcmask 519168
        %vm1435 = vmand %vm1434, %vm387
        %v1436 = vld [vmem:[%s1433] sm:$0xf]
        %v1437 = vsel %vm1435, %v1119, %v1436
        %1438 = vst [vmem:[%s1433] sm:$0xf] %v1437
        %1439 = vst.msk [vmem:[%s1433 + $0x4] sm:$0xf] %vm321, %v1128
        %v1440 = vld [vmem:[%s1433 + $0x8] sm:$0x1]
        %v1441 = vsel %vm332, %v1129, %v1440
        %1442 = vst [vmem:[%s1433 + $0x8] sm:$0x1] %v1441
        %v1443 = vld [vmem:[%s1433 + $0xc] sm:$0xf]
        %v1444 = vsel %vm1435, %v1136, %v1443
        %1445 = vst [vmem:[%s1433 + $0xc] sm:$0xf] %v1444
        %1446 = vst.msk [vmem:[%s1433 + $0x10] sm:$0xf] %vm321, %v1145
        %v1447 = vld [vmem:[%s1433 + $0x14] sm:$0x1]
        %v1448 = vsel %vm332, %v1146, %v1447
        %1449 = vst [vmem:[%s1433 + $0x14] sm:$0x1] %v1448
        %v1450 = vld [vmem:[%s1433 + $0x18] sm:$0xf]
        %v1451 = vsel %vm1435, %v1153, %v1450
        %1452 = vst [vmem:[%s1433 + $0x18] sm:$0xf] %v1451
        %1453 = vst.msk [vmem:[%s1433 + $0x1c] sm:$0xf] %vm321, %v1162
        %v1454 = vld [vmem:[%s1433 + $0x20] sm:$0x1]
        %v1455 = vsel %vm332, %v1163, %v1454
        %1456 = vst [vmem:[%s1433 + $0x20] sm:$0x1] %v1455
        %v1457 = vld [vmem:[%s1433 + $0x24] sm:$0xf]
        %v1458 = vsel %vm1435, %v1170, %v1457
        %1459 = vst [vmem:[%s1433 + $0x24] sm:$0xf] %v1458
        %1460 = vst.msk [vmem:[%s1433 + $0x28] sm:$0xf] %vm321, %v1179
        %v1461 = vld [vmem:[%s1433 + $0x2c] sm:$0x1]
        %v1462 = vsel %vm332, %v1180, %v1461
        %1463 = vst [vmem:[%s1433 + $0x2c] sm:$0x1] %v1462
        %v1464 = vld [vmem:[%s1433 + $0x30] sm:$0xf]
        %v1465 = vsel %vm1435, %v1187, %v1464
        %1466 = vst [vmem:[%s1433 + $0x30] sm:$0xf] %v1465
        %1467 = vst.msk [vmem:[%s1433 + $0x34] sm:$0xf] %vm321, %v1196
        %v1468 = vld [vmem:[%s1433 + $0x38] sm:$0x1]
        %v1469 = vsel %vm332, %v1197, %v1468
        %1470 = vst [vmem:[%s1433 + $0x38] sm:$0x1] %v1469
        %v1471 = vld [vmem:[%s1433 + $0x3c] sm:$0xf]
        %v1472 = vsel %vm1435, %v1204, %v1471
        %1473 = vst [vmem:[%s1433 + $0x3c] sm:$0xf] %v1472
        %1474 = vst.msk [vmem:[%s1433 + $0x40] sm:$0xf] %vm321, %v1213
        %v1475 = vld [vmem:[%s1433 + $0x44] sm:$0x1]
        %v1476 = vsel %vm332, %v1214, %v1475
        %1477 = vst [vmem:[%s1433 + $0x44] sm:$0x1] %v1476
        %v1478 = vld [vmem:[%s1433 + $0x48] sm:$0xf]
        %v1479 = vsel %vm1435, %v1221, %v1478
        %1480 = vst [vmem:[%s1433 + $0x48] sm:$0xf] %v1479
        %1481 = vst.msk [vmem:[%s1433 + $0x4c] sm:$0xf] %vm321, %v1230
        %v1482 = vld [vmem:[%s1433 + $0x50] sm:$0x1]
        %v1483 = vsel %vm332, %v1231, %v1482
        %1484 = vst [vmem:[%s1433 + $0x50] sm:$0x1] %v1483
        %v1485 = vld [vmem:[%s1433 + $0x54] sm:$0xf]
        %v1486 = vsel %vm1435, %v1238, %v1485
        %1487 = vst [vmem:[%s1433 + $0x54] sm:$0xf] %v1486
        %1488 = vst.msk [vmem:[%s1433 + $0x58] sm:$0xf] %vm321, %v1247
        %v1489 = vld [vmem:[%s1433 + $0x5c] sm:$0x1]
        %v1490 = vsel %vm332, %v1248, %v1489
        %1491 = vst [vmem:[%s1433 + $0x5c] sm:$0x1] %v1490
        %v1492 = vld [vmem:[%s1433 + $0x60] sm:$0xf]
        %v1493 = vsel %vm1435, %v1255, %v1492
        %1494 = vst [vmem:[%s1433 + $0x60] sm:$0xf] %v1493
        %1495 = vst.msk [vmem:[%s1433 + $0x64] sm:$0xf] %vm321, %v1264
        %v1496 = vld [vmem:[%s1433 + $0x68] sm:$0x1]
        %v1497 = vsel %vm332, %v1265, %v1496
        %1498 = vst [vmem:[%s1433 + $0x68] sm:$0x1] %v1497
        %v1499 = vld [vmem:[%s1433 + $0x6c] sm:$0xf]
        %v1500 = vsel %vm1435, %v1272, %v1499
        %1501 = vst [vmem:[%s1433 + $0x6c] sm:$0xf] %v1500
        %1502 = vst.msk [vmem:[%s1433 + $0x70] sm:$0xf] %vm321, %v1281
        %v1503 = vld [vmem:[%s1433 + $0x74] sm:$0x1]
        %v1504 = vsel %vm332, %v1282, %v1503
        %1505 = vst [vmem:[%s1433 + $0x74] sm:$0x1] %v1504
        %v1506 = vld [vmem:[%s1433 + $0x78] sm:$0xf]
        %v1507 = vsel %vm1435, %v1289, %v1506
        %1508 = vst [vmem:[%s1433 + $0x78] sm:$0xf] %v1507
        %1509 = vst.msk [vmem:[%s1433 + $0x7c] sm:$0xf] %vm321, %v1298
        %v1510 = vld [vmem:[%s1433 + $0x80] sm:$0x1]
        %v1511 = vsel %vm332, %v1299, %v1510
        %1512 = vst [vmem:[%s1433 + $0x80] sm:$0x1] %v1511
        %v1513 = vld [vmem:[%s1433 + $0x84] sm:$0xf]
        %v1514 = vsel %vm1435, %v1306, %v1513
        %1515 = vst [vmem:[%s1433 + $0x84] sm:$0xf] %v1514
        %1516 = vst.msk [vmem:[%s1433 + $0x88] sm:$0xf] %vm321, %v1315
        %v1517 = vld [vmem:[%s1433 + $0x8c] sm:$0x1]
        %v1518 = vsel %vm332, %v1316, %v1517
        %1519 = vst [vmem:[%s1433 + $0x8c] sm:$0x1] %v1518
        %v1520 = vld [vmem:[%s1433 + $0x90] sm:$0xf]
        %v1521 = vsel %vm1435, %v1323, %v1520
        %1522 = vst [vmem:[%s1433 + $0x90] sm:$0xf] %v1521
        %1523 = vst.msk [vmem:[%s1433 + $0x94] sm:$0xf] %vm321, %v1332
        %v1524 = vld [vmem:[%s1433 + $0x98] sm:$0x1]
        %v1525 = vsel %vm332, %v1333, %v1524
        %1526 = vst [vmem:[%s1433 + $0x98] sm:$0x1] %v1525
        %v1527 = vld [vmem:[%s1433 + $0x9c] sm:$0xf]
        %v1528 = vsel %vm1435, %v1340, %v1527
        %1529 = vst [vmem:[%s1433 + $0x9c] sm:$0xf] %v1528
        %1530 = vst.msk [vmem:[%s1433 + $0xa0] sm:$0xf] %vm321, %v1349
        %v1531 = vld [vmem:[%s1433 + $0xa4] sm:$0x1]
        %v1532 = vsel %vm332, %v1350, %v1531
        %1533 = vst [vmem:[%s1433 + $0xa4] sm:$0x1] %v1532
        %v1534 = vld [vmem:[%s1433 + $0xa8] sm:$0xf]
        %v1535 = vsel %vm1435, %v1357, %v1534
        %1536 = vst [vmem:[%s1433 + $0xa8] sm:$0xf] %v1535
        %1537 = vst.msk [vmem:[%s1433 + $0xac] sm:$0xf] %vm321, %v1366
        %v1538 = vld [vmem:[%s1433 + $0xb0] sm:$0x1]
        %v1539 = vsel %vm332, %v1367, %v1538
        %1540 = vst [vmem:[%s1433 + $0xb0] sm:$0x1] %v1539
        %v1541 = vld [vmem:[%s1433 + $0xb4] sm:$0xf]
        %v1542 = vsel %vm1435, %v1374, %v1541
        %1543 = vst [vmem:[%s1433 + $0xb4] sm:$0xf] %v1542
        %1544 = vst.msk [vmem:[%s1433 + $0xb8] sm:$0xf] %vm321, %v1383
        %v1545 = vld [vmem:[%s1433 + $0xbc] sm:$0x1]
        %v1546 = vsel %vm332, %v1384, %v1545
        %1547 = vst [vmem:[%s1433 + $0xbc] sm:$0x1] %v1546
        %v1548 = vld [vmem:[#allocation2] sm:$0xf]
        %v1549 = vld [vmem:[#allocation2 + $0x4] sm:$0xf]
        %v1550 = vld [vmem:[#allocation2 + $0xc] sm:$0xf]
        %v1551 = vld [vmem:[#allocation2 + $0x10] sm:$0xf]
        %v1552 = vld [vmem:[#allocation2 + $0x18] sm:$0xf]
        %v1553 = vld [vmem:[#allocation2 + $0x1c] sm:$0xf]
        %v1554 = vld [vmem:[#allocation2 + $0x24] sm:$0xf]
        %v1555 = vld [vmem:[#allocation2 + $0x28] sm:$0xf]
        %v1556 = vld [vmem:[#allocation2 + $0x30] sm:$0xf]
        %v1557 = vld [vmem:[#allocation2 + $0x34] sm:$0xf]
        %v1558 = vld [vmem:[#allocation2 + $0x3c] sm:$0xf]
        %v1559 = vld [vmem:[#allocation2 + $0x40] sm:$0xf]
        %v1560 = vld [vmem:[#allocation2 + $0x48] sm:$0xf]
        %v1561 = vld [vmem:[#allocation2 + $0x4c] sm:$0xf]
        %v1562 = vld [vmem:[#allocation2 + $0x54] sm:$0xf]
        %v1563 = vld [vmem:[#allocation2 + $0x58] sm:$0xf]
        %v1564 = vld [vmem:[#allocation2 + $0x60] sm:$0xf]
        %v1565 = vld [vmem:[#allocation2 + $0x64] sm:$0xf]
        %v1566 = vld [vmem:[#allocation2 + $0x6c] sm:$0xf]
        %v1567 = vld [vmem:[#allocation2 + $0x70] sm:$0xf]
        %v1568 = vld [vmem:[#allocation2 + $0x78] sm:$0xf]
        %v1569 = vld [vmem:[#allocation2 + $0x7c] sm:$0xf]
        %v1570 = vld [vmem:[#allocation2 + $0x84] sm:$0xf]
        %v1571 = vld [vmem:[#allocation2 + $0x88] sm:$0xf]
        %v1572 = vld [vmem:[#allocation2 + $0x90] sm:$0xf]
        %v1573 = vld [vmem:[#allocation2 + $0x94] sm:$0xf]
        %v1574 = vld [vmem:[#allocation2 + $0x9c] sm:$0xf]
        %v1575 = vld [vmem:[#allocation2 + $0xa0] sm:$0xf]
        %v1576 = vld [vmem:[#allocation2 + $0xa8] sm:$0xf]
        %v1577 = vld [vmem:[#allocation2 + $0xac] sm:$0xf]
        %v1578 = vld [vmem:[#allocation2 + $0xb4] sm:$0xf]
        %v1579 = vld [vmem:[#allocation2 + $0xb8] sm:$0xf]
        %v1580 = vld [vmem:[#allocation2 + $0xc0] sm:$0xf]
        %v1581 = vld [vmem:[#allocation2 + $0xc4] sm:$0xf]
        %v1582 = vld [vmem:[#allocation2 + $0xcc] sm:$0xf]
        %v1583 = vld [vmem:[#allocation2 + $0xd0] sm:$0xf]
        %1584 = vst.msk [vmem:[#allocation3] sm:$0xf] %vm321, %v1548
        %1585 = vst.msk [vmem:[#allocation3 + $0x8] sm:$0xf] %vm321, %v1549
        %1586 = vst.msk [vmem:[#allocation3 + $0x10] sm:$0xf] %vm321, %v1550
        %1587 = vst.msk [vmem:[#allocation3 + $0x18] sm:$0xf] %vm321, %v1551
        %1588 = vst.msk [vmem:[#allocation3 + $0x20] sm:$0xf] %vm321, %v1552
        %1589 = vst.msk [vmem:[#allocation3 + $0x28] sm:$0xf] %vm321, %v1553
        %1590 = vst.msk [vmem:[#allocation3 + $0x30] sm:$0xf] %vm321, %v1554
        %1591 = vst.msk [vmem:[#allocation3 + $0x38] sm:$0xf] %vm321, %v1555
        %1592 = vst.msk [vmem:[#allocation3 + $0x40] sm:$0xf] %vm321, %v1556
        %1593 = vst.msk [vmem:[#allocation3 + $0x48] sm:$0xf] %vm321, %v1557
        %1594 = vst.msk [vmem:[#allocation3 + $0x50] sm:$0xf] %vm321, %v1558
        %1595 = vst.msk [vmem:[#allocation3 + $0x58] sm:$0xf] %vm321, %v1559
        %1596 = vst.msk [vmem:[#allocation3 + $0x60] sm:$0xf] %vm321, %v1560
        %1597 = vst.msk [vmem:[#allocation3 + $0x68] sm:$0xf] %vm321, %v1561
        %1598 = vst.msk [vmem:[#allocation3 + $0x70] sm:$0xf] %vm321, %v1562
        %1599 = vst.msk [vmem:[#allocation3 + $0x78] sm:$0xf] %vm321, %v1563
        %1600 = vst.msk [vmem:[#allocation3 + $0x80] sm:$0xf] %vm321, %v1564
        %1601 = vst.msk [vmem:[#allocation3 + $0x88] sm:$0xf] %vm321, %v1565
        %1602 = vst.msk [vmem:[#allocation3 + $0x90] sm:$0xf] %vm321, %v1566
        %1603 = vst.msk [vmem:[#allocation3 + $0x98] sm:$0xf] %vm321, %v1567
        %1604 = vst.msk [vmem:[#allocation3 + $0xa0] sm:$0xf] %vm321, %v1568
        %1605 = vst.msk [vmem:[#allocation3 + $0xa8] sm:$0xf] %vm321, %v1569
        %1606 = vst.msk [vmem:[#allocation3 + $0xb0] sm:$0xf] %vm321, %v1570
        %1607 = vst.msk [vmem:[#allocation3 + $0xb8] sm:$0xf] %vm321, %v1571
        %1608 = vst.msk [vmem:[#allocation3 + $0xc0] sm:$0xf] %vm321, %v1572
        %1609 = vst.msk [vmem:[#allocation3 + $0xc8] sm:$0xf] %vm321, %v1573
        %1610 = vst.msk [vmem:[#allocation3 + $0xd0] sm:$0xf] %vm321, %v1574
        %1611 = vst.msk [vmem:[#allocation3 + $0xd8] sm:$0xf] %vm321, %v1575
        %1612 = vst.msk [vmem:[#allocation3 + $0xe0] sm:$0xf] %vm321, %v1576
        %1613 = vst.msk [vmem:[#allocation3 + $0xe8] sm:$0xf] %vm321, %v1577
        %1614 = vst.msk [vmem:[#allocation3 + $0xf0] sm:$0xf] %vm321, %v1578
        %1615 = vst.msk [vmem:[#allocation3 + $0xf8] sm:$0xf] %vm321, %v1579
        %1616 = vst.msk [vmem:[#allocation3 + $0x100] sm:$0xf] %vm321, %v1580
        %1617 = vst.msk [vmem:[#allocation3 + $0x108] sm:$0xf] %vm321, %v1581
        %1618 = vst.msk [vmem:[#allocation3 + $0x110] sm:$0xf] %vm321, %v1582
        %1619 = vst.msk [vmem:[#allocation3 + $0x118] sm:$0xf] %vm321, %v1583
        %v1620 = vld [vmem:[#allocation2] sm:$0xf]
        %v1621 = vld [vmem:[#allocation2 + $0x4] sm:$0xf]
        %v1622 = vld [vmem:[#allocation2 + $0x8] sm:$0x1]
        %v1623 = vld [vmem:[#allocation2 + $0xc] sm:$0xf]
        %v1624 = vld [vmem:[#allocation2 + $0x10] sm:$0xf]
        %v1625 = vld [vmem:[#allocation2 + $0x14] sm:$0x1]
        %v1626 = vld [vmem:[#allocation2 + $0x18] sm:$0xf]
        %v1627 = vld [vmem:[#allocation2 + $0x1c] sm:$0xf]
        %v1628 = vld [vmem:[#allocation2 + $0x20] sm:$0x1]
        %v1629 = vld [vmem:[#allocation2 + $0x24] sm:$0xf]
        %v1630 = vld [vmem:[#allocation2 + $0x28] sm:$0xf]
        %v1631 = vld [vmem:[#allocation2 + $0x2c] sm:$0x1]
        %v1632 = vld [vmem:[#allocation2 + $0x30] sm:$0xf]
        %v1633 = vld [vmem:[#allocation2 + $0x34] sm:$0xf]
        %v1634 = vld [vmem:[#allocation2 + $0x38] sm:$0x1]
        %v1635 = vld [vmem:[#allocation2 + $0x3c] sm:$0xf]
        %v1636 = vld [vmem:[#allocation2 + $0x40] sm:$0xf]
        %v1637 = vld [vmem:[#allocation2 + $0x44] sm:$0x1]
        %v1638 = vld [vmem:[#allocation2 + $0x48] sm:$0xf]
        %v1639 = vld [vmem:[#allocation2 + $0x4c] sm:$0xf]
        %v1640 = vld [vmem:[#allocation2 + $0x50] sm:$0x1]
        %v1641 = vld [vmem:[#allocation2 + $0x54] sm:$0xf]
        %v1642 = vld [vmem:[#allocation2 + $0x58] sm:$0xf]
        %v1643 = vld [vmem:[#allocation2 + $0x5c] sm:$0x1]
        %v1644 = vld [vmem:[#allocation2 + $0x60] sm:$0xf]
        %v1645 = vld [vmem:[#allocation2 + $0x64] sm:$0xf]
        %v1646 = vld [vmem:[#allocation2 + $0x68] sm:$0x1]
        %v1647 = vld [vmem:[#allocation2 + $0x6c] sm:$0xf]
        %v1648 = vld [vmem:[#allocation2 + $0x70] sm:$0xf]
        %v1649 = vld [vmem:[#allocation2 + $0x74] sm:$0x1]
        %v1650 = vld [vmem:[#allocation2 + $0x78] sm:$0xf]
        %v1651 = vld [vmem:[#allocation2 + $0x7c] sm:$0xf]
        %v1652 = vld [vmem:[#allocation2 + $0x80] sm:$0x1]
        %v1653 = vld [vmem:[#allocation2 + $0x84] sm:$0xf]
        %v1654 = vld [vmem:[#allocation2 + $0x88] sm:$0xf]
        %v1655 = vld [vmem:[#allocation2 + $0x8c] sm:$0x1]
        %v1656 = vld [vmem:[#allocation2 + $0x90] sm:$0xf]
        %v1657 = vld [vmem:[#allocation2 + $0x94] sm:$0xf]
        %v1658 = vld [vmem:[#allocation2 + $0x98] sm:$0x1]
        %v1659 = vld [vmem:[#allocation2 + $0x9c] sm:$0xf]
        %v1660 = vld [vmem:[#allocation2 + $0xa0] sm:$0xf]
        %v1661 = vld [vmem:[#allocation2 + $0xa4] sm:$0x1]
        %v1662 = vld [vmem:[#allocation2 + $0xa8] sm:$0xf]
        %v1663 = vld [vmem:[#allocation2 + $0xac] sm:$0xf]
        %v1664 = vld [vmem:[#allocation2 + $0xb0] sm:$0x1]
        %v1665 = vld [vmem:[#allocation2 + $0xb4] sm:$0xf]
        %v1666 = vld [vmem:[#allocation2 + $0xb8] sm:$0xf]
        %v1667 = vld [vmem:[#allocation2 + $0xbc] sm:$0x1]
        %v1668 = vld [vmem:[#allocation2 + $0xc0] sm:$0xf]
        %v1669 = vld [vmem:[#allocation2 + $0xc4] sm:$0xf]
        %v1670 = vld [vmem:[#allocation2 + $0xc8] sm:$0x1]
        %v1671 = vld [vmem:[#allocation2 + $0xcc] sm:$0xf]
        %v1672 = vld [vmem:[#allocation2 + $0xd0] sm:$0xf]
        %v1673 = vld [vmem:[#allocation2 + $0xd4] sm:$0x1]
        %vm1674 = vsmask.f32 3328
        %vm1675 = vsmask.f32 7440
        %vm1676 = vmor %vm1674, %vm1675
        %v1678 = vshrl.u32 %v1620, 16
        %v1680 = vrot.slane %v1678, 4
        %v1681 = vshll.u32 %v1620, 16
        %v1683 = vrot.slane %v1681, 5
        %v1684 = vor.u32 %v1680, %v1683
        %v1685 = vrot.slane %v1684, 4
        %v1687 = vshll.u32 %v1621, 16
        %v1689 = vrot.slane %v1687, 5
        %v1690 = vsel %vm1676, %v1685, %v1689
        %v1691 = vshrl.u32 %v1621, 16
        %v1693 = vrot.slane %v1691, 4
        %v1694 = vor.u32 %v1693, %v1689
        %v1695 = vrot.slane %v1694, 4
        %v1697 = vshll.u32 %v1622, 16
        %v1699 = vrot.slane %v1697, 5
        %v1700 = vsel %vm1676, %v1695, %v1699
        %v1702 = vshrl.u32 %v1623, 16
        %v1704 = vrot.slane %v1702, 4
        %v1705 = vshll.u32 %v1623, 16
        %v1707 = vrot.slane %v1705, 5
        %v1708 = vor.u32 %v1704, %v1707
        %v1709 = vrot.slane %v1708, 4
        %v1711 = vshll.u32 %v1624, 16
        %v1713 = vrot.slane %v1711, 5
        %v1714 = vsel %vm1676, %v1709, %v1713
        %v1715 = vshrl.u32 %v1624, 16
        %v1717 = vrot.slane %v1715, 4
        %v1718 = vor.u32 %v1717, %v1713
        %v1719 = vrot.slane %v1718, 4
        %v1721 = vshll.u32 %v1625, 16
        %v1723 = vrot.slane %v1721, 5
        %v1724 = vsel %vm1676, %v1719, %v1723
        %v1726 = vshrl.u32 %v1626, 16
        %v1728 = vrot.slane %v1726, 4
        %v1729 = vshll.u32 %v1626, 16
        %v1731 = vrot.slane %v1729, 5
        %v1732 = vor.u32 %v1728, %v1731
        %v1733 = vrot.slane %v1732, 4
        %v1735 = vshll.u32 %v1627, 16
        %v1737 = vrot.slane %v1735, 5
        %v1738 = vsel %vm1676, %v1733, %v1737
        %v1739 = vshrl.u32 %v1627, 16
        %v1741 = vrot.slane %v1739, 4
        %v1742 = vor.u32 %v1741, %v1737
        %v1743 = vrot.slane %v1742, 4
        %v1745 = vshll.u32 %v1628, 16
        %v1747 = vrot.slane %v1745, 5
        %v1748 = vsel %vm1676, %v1743, %v1747
        %v1750 = vshrl.u32 %v1629, 16
        %v1752 = vrot.slane %v1750, 4
        %v1753 = vshll.u32 %v1629, 16
        %v1755 = vrot.slane %v1753, 5
        %v1756 = vor.u32 %v1752, %v1755
        %v1757 = vrot.slane %v1756, 4
        %v1759 = vshll.u32 %v1630, 16
        %v1761 = vrot.slane %v1759, 5
        %v1762 = vsel %vm1676, %v1757, %v1761
        %v1763 = vshrl.u32 %v1630, 16
        %v1765 = vrot.slane %v1763, 4
        %v1766 = vor.u32 %v1765, %v1761
        %v1767 = vrot.slane %v1766, 4
        %v1769 = vshll.u32 %v1631, 16
        %v1771 = vrot.slane %v1769, 5
        %v1772 = vsel %vm1676, %v1767, %v1771
        %v1774 = vshrl.u32 %v1632, 16
        %v1776 = vrot.slane %v1774, 4
        %v1777 = vshll.u32 %v1632, 16
        %v1779 = vrot.slane %v1777, 5
        %v1780 = vor.u32 %v1776, %v1779
        %v1781 = vrot.slane %v1780, 4
        %v1783 = vshll.u32 %v1633, 16
        %v1785 = vrot.slane %v1783, 5
        %v1786 = vsel %vm1676, %v1781, %v1785
        %v1787 = vshrl.u32 %v1633, 16
        %v1789 = vrot.slane %v1787, 4
        %v1790 = vor.u32 %v1789, %v1785
        %v1791 = vrot.slane %v1790, 4
        %v1793 = vshll.u32 %v1634, 16
        %v1795 = vrot.slane %v1793, 5
        %v1796 = vsel %vm1676, %v1791, %v1795
        %v1798 = vshrl.u32 %v1635, 16
        %v1800 = vrot.slane %v1798, 4
        %v1801 = vshll.u32 %v1635, 16
        %v1803 = vrot.slane %v1801, 5
        %v1804 = vor.u32 %v1800, %v1803
        %v1805 = vrot.slane %v1804, 4
        %v1807 = vshll.u32 %v1636, 16
        %v1809 = vrot.slane %v1807, 5
        %v1810 = vsel %vm1676, %v1805, %v1809
        %v1811 = vshrl.u32 %v1636, 16
        %v1813 = vrot.slane %v1811, 4
        %v1814 = vor.u32 %v1813, %v1809
        %v1815 = vrot.slane %v1814, 4
        %v1817 = vshll.u32 %v1637, 16
        %v1819 = vrot.slane %v1817, 5
        %v1820 = vsel %vm1676, %v1815, %v1819
        %v1822 = vshrl.u32 %v1638, 16
        %v1824 = vrot.slane %v1822, 4
        %v1825 = vshll.u32 %v1638, 16
        %v1827 = vrot.slane %v1825, 5
        %v1828 = vor.u32 %v1824, %v1827
        %v1829 = vrot.slane %v1828, 4
        %v1831 = vshll.u32 %v1639, 16
        %v1833 = vrot.slane %v1831, 5
        %v1834 = vsel %vm1676, %v1829, %v1833
        %v1835 = vshrl.u32 %v1639, 16
        %v1837 = vrot.slane %v1835, 4
        %v1838 = vor.u32 %v1837, %v1833
        %v1839 = vrot.slane %v1838, 4
        %v1841 = vshll.u32 %v1640, 16
        %v1843 = vrot.slane %v1841, 5
        %v1844 = vsel %vm1676, %v1839, %v1843
        %v1846 = vshrl.u32 %v1641, 16
        %v1848 = vrot.slane %v1846, 4
        %v1849 = vshll.u32 %v1641, 16
        %v1851 = vrot.slane %v1849, 5
        %v1852 = vor.u32 %v1848, %v1851
        %v1853 = vrot.slane %v1852, 4
        %v1855 = vshll.u32 %v1642, 16
        %v1857 = vrot.slane %v1855, 5
        %v1858 = vsel %vm1676, %v1853, %v1857
        %v1859 = vshrl.u32 %v1642, 16
        %v1861 = vrot.slane %v1859, 4
        %v1862 = vor.u32 %v1861, %v1857
        %v1863 = vrot.slane %v1862, 4
        %v1865 = vshll.u32 %v1643, 16
        %v1867 = vrot.slane %v1865, 5
        %v1868 = vsel %vm1676, %v1863, %v1867
        %v1870 = vshrl.u32 %v1644, 16
        %v1872 = vrot.slane %v1870, 4
        %v1873 = vshll.u32 %v1644, 16
        %v1875 = vrot.slane %v1873, 5
        %v1876 = vor.u32 %v1872, %v1875
        %v1877 = vrot.slane %v1876, 4
        %v1879 = vshll.u32 %v1645, 16
        %v1881 = vrot.slane %v1879, 5
        %v1882 = vsel %vm1676, %v1877, %v1881
        %v1883 = vshrl.u32 %v1645, 16
        %v1885 = vrot.slane %v1883, 4
        %v1886 = vor.u32 %v1885, %v1881
        %v1887 = vrot.slane %v1886, 4
        %v1889 = vshll.u32 %v1646, 16
        %v1891 = vrot.slane %v1889, 5
        %v1892 = vsel %vm1676, %v1887, %v1891
        %v1894 = vshrl.u32 %v1647, 16
        %v1896 = vrot.slane %v1894, 4
        %v1897 = vshll.u32 %v1647, 16
        %v1899 = vrot.slane %v1897, 5
        %v1900 = vor.u32 %v1896, %v1899
        %v1901 = vrot.slane %v1900, 4
        %v1903 = vshll.u32 %v1648, 16
        %v1905 = vrot.slane %v1903, 5
        %v1906 = vsel %vm1676, %v1901, %v1905
        %v1907 = vshrl.u32 %v1648, 16
        %v1909 = vrot.slane %v1907, 4
        %v1910 = vor.u32 %v1909, %v1905
        %v1911 = vrot.slane %v1910, 4
        %v1913 = vshll.u32 %v1649, 16
        %v1915 = vrot.slane %v1913, 5
        %v1916 = vsel %vm1676, %v1911, %v1915
        %v1918 = vshrl.u32 %v1650, 16
        %v1920 = vrot.slane %v1918, 4
        %v1921 = vshll.u32 %v1650, 16
        %v1923 = vrot.slane %v1921, 5
        %v1924 = vor.u32 %v1920, %v1923
        %v1925 = vrot.slane %v1924, 4
        %v1927 = vshll.u32 %v1651, 16
        %v1929 = vrot.slane %v1927, 5
        %v1930 = vsel %vm1676, %v1925, %v1929
        %v1931 = vshrl.u32 %v1651, 16
        %v1933 = vrot.slane %v1931, 4
        %v1934 = vor.u32 %v1933, %v1929
        %v1935 = vrot.slane %v1934, 4
        %v1937 = vshll.u32 %v1652, 16
        %v1939 = vrot.slane %v1937, 5
        %v1940 = vsel %vm1676, %v1935, %v1939
        %v1942 = vshrl.u32 %v1653, 16
        %v1944 = vrot.slane %v1942, 4
        %v1945 = vshll.u32 %v1653, 16
        %v1947 = vrot.slane %v1945, 5
        %v1948 = vor.u32 %v1944, %v1947
        %v1949 = vrot.slane %v1948, 4
        %v1951 = vshll.u32 %v1654, 16
        %v1953 = vrot.slane %v1951, 5
        %v1954 = vsel %vm1676, %v1949, %v1953
        %v1955 = vshrl.u32 %v1654, 16
        %v1957 = vrot.slane %v1955, 4
        %v1958 = vor.u32 %v1957, %v1953
        %v1959 = vrot.slane %v1958, 4
        %v1961 = vshll.u32 %v1655, 16
        %v1963 = vrot.slane %v1961, 5
        %v1964 = vsel %vm1676, %v1959, %v1963
        %v1966 = vshrl.u32 %v1656, 16
        %v1968 = vrot.slane %v1966, 4
        %v1969 = vshll.u32 %v1656, 16
        %v1971 = vrot.slane %v1969, 5
        %v1972 = vor.u32 %v1968, %v1971
        %v1973 = vrot.slane %v1972, 4
        %v1975 = vshll.u32 %v1657, 16
        %v1977 = vrot.slane %v1975, 5
        %v1978 = vsel %vm1676, %v1973, %v1977
        %v1979 = vshrl.u32 %v1657, 16
        %v1981 = vrot.slane %v1979, 4
        %v1982 = vor.u32 %v1981, %v1977
        %v1983 = vrot.slane %v1982, 4
        %v1985 = vshll.u32 %v1658, 16
        %v1987 = vrot.slane %v1985, 5
        %v1988 = vsel %vm1676, %v1983, %v1987
        %v1990 = vshrl.u32 %v1659, 16
        %v1992 = vrot.slane %v1990, 4
        %v1993 = vshll.u32 %v1659, 16
        %v1995 = vrot.slane %v1993, 5
        %v1996 = vor.u32 %v1992, %v1995
        %v1997 = vrot.slane %v1996, 4
        %v1999 = vshll.u32 %v1660, 16
        %v2001 = vrot.slane %v1999, 5
        %v2002 = vsel %vm1676, %v1997, %v2001
        %v2003 = vshrl.u32 %v1660, 16
        %v2005 = vrot.slane %v2003, 4
        %v2006 = vor.u32 %v2005, %v2001
        %v2007 = vrot.slane %v2006, 4
        %v2009 = vshll.u32 %v1661, 16
        %v2011 = vrot.slane %v2009, 5
        %v2012 = vsel %vm1676, %v2007, %v2011
        %v2014 = vshrl.u32 %v1662, 16
        %v2016 = vrot.slane %v2014, 4
        %v2017 = vshll.u32 %v1662, 16
        %v2019 = vrot.slane %v2017, 5
        %v2020 = vor.u32 %v2016, %v2019
        %v2021 = vrot.slane %v2020, 4
        %v2023 = vshll.u32 %v1663, 16
        %v2025 = vrot.slane %v2023, 5
        %v2026 = vsel %vm1676, %v2021, %v2025
        %v2027 = vshrl.u32 %v1663, 16
        %v2029 = vrot.slane %v2027, 4
        %v2030 = vor.u32 %v2029, %v2025
        %v2031 = vrot.slane %v2030, 4
        %v2033 = vshll.u32 %v1664, 16
        %v2035 = vrot.slane %v2033, 5
        %v2036 = vsel %vm1676, %v2031, %v2035
        %v2038 = vshrl.u32 %v1665, 16
        %v2040 = vrot.slane %v2038, 4
        %v2041 = vshll.u32 %v1665, 16
        %v2043 = vrot.slane %v2041, 5
        %v2044 = vor.u32 %v2040, %v2043
        %v2045 = vrot.slane %v2044, 4
        %v2047 = vshll.u32 %v1666, 16
        %v2049 = vrot.slane %v2047, 5
        %v2050 = vsel %vm1676, %v2045, %v2049
        %v2051 = vshrl.u32 %v1666, 16
        %v2053 = vrot.slane %v2051, 4
        %v2054 = vor.u32 %v2053, %v2049
        %v2055 = vrot.slane %v2054, 4
        %v2057 = vshll.u32 %v1667, 16
        %v2059 = vrot.slane %v2057, 5
        %v2060 = vsel %vm1676, %v2055, %v2059
        %v2062 = vshrl.u32 %v1668, 16
        %v2064 = vrot.slane %v2062, 4
        %v2065 = vshll.u32 %v1668, 16
        %v2067 = vrot.slane %v2065, 5
        %v2068 = vor.u32 %v2064, %v2067
        %v2069 = vrot.slane %v2068, 4
        %v2071 = vshll.u32 %v1669, 16
        %v2073 = vrot.slane %v2071, 5
        %v2074 = vsel %vm1676, %v2069, %v2073
        %v2075 = vshrl.u32 %v1669, 16
        %v2077 = vrot.slane %v2075, 4
        %v2078 = vor.u32 %v2077, %v2073
        %v2079 = vrot.slane %v2078, 4
        %v2081 = vshll.u32 %v1670, 16
        %v2083 = vrot.slane %v2081, 5
        %v2084 = vsel %vm1676, %v2079, %v2083
        %v2086 = vshrl.u32 %v1671, 16
        %v2088 = vrot.slane %v2086, 4
        %v2089 = vshll.u32 %v1671, 16
        %v2091 = vrot.slane %v2089, 5
        %v2092 = vor.u32 %v2088, %v2091
        %v2093 = vrot.slane %v2092, 4
        %v2095 = vshll.u32 %v1672, 16
        %v2097 = vrot.slane %v2095, 5
        %v2098 = vsel %vm1676, %v2093, %v2097
        %v2099 = vshrl.u32 %v1672, 16
        %v2101 = vrot.slane %v2099, 4
        %v2102 = vor.u32 %v2101, %v2097
        %v2103 = vrot.slane %v2102, 4
        %v2105 = vshll.u32 %v1673, 16
        %v2107 = vrot.slane %v2105, 5
        %v2108 = vsel %vm1676, %v2103, %v2107
        %2109 = vrot.lane.b32.xlu0 %v1690, 64
        %v2110 = vpop.permute.xlu0 %2109
        %2111 = vrot.lane.b32.xlu0 %v1700, 64
        %v2112 = vpop.permute.xlu0 %2111
        %2113 = vrot.lane.b32.xlu0 %v1714, 64
        %v2114 = vpop.permute.xlu0 %2113
        %2115 = vrot.lane.b32.xlu0 %v1724, 64
        %v2116 = vpop.permute.xlu0 %2115
        %2117 = vrot.lane.b32.xlu0 %v1738, 64
        %v2118 = vpop.permute.xlu0 %2117
        %2119 = vrot.lane.b32.xlu0 %v1748, 64
        %v2120 = vpop.permute.xlu0 %2119
        %2121 = vrot.lane.b32.xlu0 %v1762, 64
        %v2122 = vpop.permute.xlu0 %2121
        %2123 = vrot.lane.b32.xlu0 %v1772, 64
        %v2124 = vpop.permute.xlu0 %2123
        %2125 = vrot.lane.b32.xlu0 %v1786, 64
        %v2126 = vpop.permute.xlu0 %2125
        %2127 = vrot.lane.b32.xlu0 %v1796, 64
        %v2128 = vpop.permute.xlu0 %2127
        %2129 = vrot.lane.b32.xlu0 %v1810, 64
        %v2130 = vpop.permute.xlu0 %2129
        %2131 = vrot.lane.b32.xlu0 %v1820, 64
        %v2132 = vpop.permute.xlu0 %2131
        %2133 = vrot.lane.b32.xlu0 %v1834, 64
        %v2134 = vpop.permute.xlu0 %2133
        %2135 = vrot.lane.b32.xlu0 %v1844, 64
        %v2136 = vpop.permute.xlu0 %2135
        %2137 = vrot.lane.b32.xlu0 %v1858, 64
        %v2138 = vpop.permute.xlu0 %2137
        %2139 = vrot.lane.b32.xlu0 %v1868, 64
        %v2140 = vpop.permute.xlu0 %2139
        %2141 = vrot.lane.b32.xlu0 %v1882, 64
        %v2142 = vpop.permute.xlu0 %2141
        %2143 = vrot.lane.b32.xlu0 %v1892, 64
        %v2144 = vpop.permute.xlu0 %2143
        %2145 = vrot.lane.b32.xlu0 %v1906, 64
        %v2146 = vpop.permute.xlu0 %2145
        %2147 = vrot.lane.b32.xlu0 %v1916, 64
        %v2148 = vpop.permute.xlu0 %2147
        %2149 = vrot.lane.b32.xlu0 %v1930, 64
        %v2150 = vpop.permute.xlu0 %2149
        %2151 = vrot.lane.b32.xlu0 %v1940, 64
        %v2152 = vpop.permute.xlu0 %2151
        %2153 = vrot.lane.b32.xlu0 %v1954, 64
        %v2154 = vpop.permute.xlu0 %2153
        %2155 = vrot.lane.b32.xlu0 %v1964, 64
        %v2156 = vpop.permute.xlu0 %2155
        %2157 = vrot.lane.b32.xlu0 %v1978, 64
        %v2158 = vpop.permute.xlu0 %2157
        %2159 = vrot.lane.b32.xlu0 %v1988, 64
        %v2160 = vpop.permute.xlu0 %2159
        %2161 = vrot.lane.b32.xlu0 %v2002, 64
        %v2162 = vpop.permute.xlu0 %2161
        %2163 = vrot.lane.b32.xlu0 %v2012, 64
        %v2164 = vpop.permute.xlu0 %2163
        %2165 = vrot.lane.b32.xlu0 %v2026, 64
        %v2166 = vpop.permute.xlu0 %2165
        %2167 = vrot.lane.b32.xlu0 %v2036, 64
        %v2168 = vpop.permute.xlu0 %2167
        %2169 = vrot.lane.b32.xlu0 %v2050, 64
        %v2170 = vpop.permute.xlu0 %2169
        %2171 = vrot.lane.b32.xlu0 %v2060, 64
        %v2172 = vpop.permute.xlu0 %2171
        %2173 = vrot.lane.b32.xlu0 %v2074, 64
        %v2174 = vpop.permute.xlu0 %2173
        %2175 = vrot.lane.b32.xlu0 %v2084, 64
        %v2176 = vpop.permute.xlu0 %2175
        %2177 = vrot.lane.b32.xlu0 %v2098, 64
        %v2178 = vpop.permute.xlu0 %2177
        %2179 = vrot.lane.b32.xlu0 %v2108, 64
        %v2180 = vpop.permute.xlu0 %2179
        %vm2217 = vcmask 1043968
        %2218 = vst.msk [vmem:[#allocation3] sm:$0xf] %vm2217, %v2110
        %2219 = vst.msk [vmem:[#allocation3 + $0x8] sm:$0xf] %vm2217, %v2112
        %2220 = vst.msk [vmem:[#allocation3 + $0x10] sm:$0xf] %vm2217, %v2114
        %2221 = vst.msk [vmem:[#allocation3 + $0x18] sm:$0xf] %vm2217, %v2116
        %2222 = vst.msk [vmem:[#allocation3 + $0x20] sm:$0xf] %vm2217, %v2118
        %2223 = vst.msk [vmem:[#allocation3 + $0x28] sm:$0xf] %vm2217, %v2120
        %2224 = vst.msk [vmem:[#allocation3 + $0x30] sm:$0xf] %vm2217, %v2122
        %2225 = vst.msk [vmem:[#allocation3 + $0x38] sm:$0xf] %vm2217, %v2124
        %2226 = vst.msk [vmem:[#allocation3 + $0x40] sm:$0xf] %vm2217, %v2126
        %2227 = vst.msk [vmem:[#allocation3 + $0x48] sm:$0xf] %vm2217, %v2128
        %2228 = vst.msk [vmem:[#allocation3 + $0x50] sm:$0xf] %vm2217, %v2130
        %2229 = vst.msk [vmem:[#allocation3 + $0x58] sm:$0xf] %vm2217, %v2132
        %2230 = vst.msk [vmem:[#allocation3 + $0x60] sm:$0xf] %vm2217, %v2134
        %2231 = vst.msk [vmem:[#allocation3 + $0x68] sm:$0xf] %vm2217, %v2136
        %2232 = vst.msk [vmem:[#allocation3 + $0x70] sm:$0xf] %vm2217, %v2138
        %2233 = vst.msk [vmem:[#allocation3 + $0x78] sm:$0xf] %vm2217, %v2140
        %2234 = vst.msk [vmem:[#allocation3 + $0x80] sm:$0xf] %vm2217, %v2142
        %2235 = vst.msk [vmem:[#allocation3 + $0x88] sm:$0xf] %vm2217, %v2144
        %2236 = vst.msk [vmem:[#allocation3 + $0x90] sm:$0xf] %vm2217, %v2146
        %2237 = vst.msk [vmem:[#allocation3 + $0x98] sm:$0xf] %vm2217, %v2148
        %2238 = vst.msk [vmem:[#allocation3 + $0xa0] sm:$0xf] %vm2217, %v2150
        %2239 = vst.msk [vmem:[#allocation3 + $0xa8] sm:$0xf] %vm2217, %v2152
        %2240 = vst.msk [vmem:[#allocation3 + $0xb0] sm:$0xf] %vm2217, %v2154
        %2241 = vst.msk [vmem:[#allocation3 + $0xb8] sm:$0xf] %vm2217, %v2156
        %2242 = vst.msk [vmem:[#allocation3 + $0xc0] sm:$0xf] %vm2217, %v2158
        %2243 = vst.msk [vmem:[#allocation3 + $0xc8] sm:$0xf] %vm2217, %v2160
        %2244 = vst.msk [vmem:[#allocation3 + $0xd0] sm:$0xf] %vm2217, %v2162
        %2245 = vst.msk [vmem:[#allocation3 + $0xd8] sm:$0xf] %vm2217, %v2164
        %2246 = vst.msk [vmem:[#allocation3 + $0xe0] sm:$0xf] %vm2217, %v2166
        %2247 = vst.msk [vmem:[#allocation3 + $0xe8] sm:$0xf] %vm2217, %v2168
        %2248 = vst.msk [vmem:[#allocation3 + $0xf0] sm:$0xf] %vm2217, %v2170
        %2249 = vst.msk [vmem:[#allocation3 + $0xf8] sm:$0xf] %vm2217, %v2172
        %2250 = vst.msk [vmem:[#allocation3 + $0x100] sm:$0xf] %vm2217, %v2174
        %2251 = vst.msk [vmem:[#allocation3 + $0x108] sm:$0xf] %vm2217, %v2176
        %2252 = vst.msk [vmem:[#allocation3 + $0x110] sm:$0xf] %vm2217, %v2178
        %2253 = vst.msk [vmem:[#allocation3 + $0x118] sm:$0xf] %vm2217, %v2180
        %v2254 = vld [vmem:[#allocation2] sm:$0xe]
        %v2255 = vld [vmem:[#allocation2 + $0x4] sm:$0xf]
        %v2256 = vld [vmem:[#allocation2 + $0x8] sm:$0x1]
        %v2257 = vld [vmem:[#allocation2 + $0xc] sm:$0xe]
        %v2258 = vld [vmem:[#allocation2 + $0x10] sm:$0xf]
        %v2259 = vld [vmem:[#allocation2 + $0x14] sm:$0x1]
        %v2260 = vld [vmem:[#allocation2 + $0x18] sm:$0xe]
        %v2261 = vld [vmem:[#allocation2 + $0x1c] sm:$0xf]
        %v2262 = vld [vmem:[#allocation2 + $0x20] sm:$0x1]
        %v2263 = vld [vmem:[#allocation2 + $0x24] sm:$0xe]
        %v2264 = vld [vmem:[#allocation2 + $0x28] sm:$0xf]
        %v2265 = vld [vmem:[#allocation2 + $0x2c] sm:$0x1]
        %v2266 = vld [vmem:[#allocation2 + $0x30] sm:$0xe]
        %v2267 = vld [vmem:[#allocation2 + $0x34] sm:$0xf]
        %v2268 = vld [vmem:[#allocation2 + $0x38] sm:$0x1]
        %v2269 = vld [vmem:[#allocation2 + $0x3c] sm:$0xe]
        %v2270 = vld [vmem:[#allocation2 + $0x40] sm:$0xf]
        %v2271 = vld [vmem:[#allocation2 + $0x44] sm:$0x1]
        %v2272 = vld [vmem:[#allocation2 + $0x48] sm:$0xe]
        %v2273 = vld [vmem:[#allocation2 + $0x4c] sm:$0xf]
        %v2274 = vld [vmem:[#allocation2 + $0x50] sm:$0x1]
        %v2275 = vld [vmem:[#allocation2 + $0x54] sm:$0xe]
        %v2276 = vld [vmem:[#allocation2 + $0x58] sm:$0xf]
        %v2277 = vld [vmem:[#allocation2 + $0x5c] sm:$0x1]
        %v2278 = vld [vmem:[#allocation2 + $0x60] sm:$0xe]
        %v2279 = vld [vmem:[#allocation2 + $0x64] sm:$0xf]
        %v2280 = vld [vmem:[#allocation2 + $0x68] sm:$0x1]
        %v2281 = vld [vmem:[#allocation2 + $0x6c] sm:$0xe]
        %v2282 = vld [vmem:[#allocation2 + $0x70] sm:$0xf]
        %v2283 = vld [vmem:[#allocation2 + $0x74] sm:$0x1]
        %v2284 = vld [vmem:[#allocation2 + $0x78] sm:$0xe]
        %v2285 = vld [vmem:[#allocation2 + $0x7c] sm:$0xf]
        %v2286 = vld [vmem:[#allocation2 + $0x80] sm:$0x1]
        %v2287 = vld [vmem:[#allocation2 + $0x84] sm:$0xe]
        %v2288 = vld [vmem:[#allocation2 + $0x88] sm:$0xf]
        %v2289 = vld [vmem:[#allocation2 + $0x8c] sm:$0x1]
        %v2290 = vld [vmem:[#allocation2 + $0x90] sm:$0xe]
        %v2291 = vld [vmem:[#allocation2 + $0x94] sm:$0xf]
        %v2292 = vld [vmem:[#allocation2 + $0x98] sm:$0x1]
        %v2293 = vld [vmem:[#allocation2 + $0x9c] sm:$0xe]
        %v2294 = vld [vmem:[#allocation2 + $0xa0] sm:$0xf]
        %v2295 = vld [vmem:[#allocation2 + $0xa4] sm:$0x1]
        %v2296 = vld [vmem:[#allocation2 + $0xa8] sm:$0xe]
        %v2297 = vld [vmem:[#allocation2 + $0xac] sm:$0xf]
        %v2298 = vld [vmem:[#allocation2 + $0xb0] sm:$0x1]
        %v2299 = vld [vmem:[#allocation2 + $0xb4] sm:$0xe]
        %v2300 = vld [vmem:[#allocation2 + $0xb8] sm:$0xf]
        %v2301 = vld [vmem:[#allocation2 + $0xbc] sm:$0x1]
        %v2302 = vld [vmem:[#allocation2 + $0xc0] sm:$0xe]
        %v2303 = vld [vmem:[#allocation2 + $0xc4] sm:$0xf]
        %v2304 = vld [vmem:[#allocation2 + $0xc8] sm:$0x1]
        %v2305 = vld [vmem:[#allocation2 + $0xcc] sm:$0xe]
        %v2306 = vld [vmem:[#allocation2 + $0xd0] sm:$0xf]
        %v2307 = vld [vmem:[#allocation2 + $0xd4] sm:$0x1]
        %vm2362 = vcmask 1042432
        %vm2363 = vcmask 1046532
        %vm2364 = vmor %vm2362, %vm2363
        %v2365 = vrot.slane %v2254, 5
        %v2366 = vrot.slane %v2365, 4
        %v2367 = vrot.slane %v2255, 5
        %v2368 = vsel %vm2364, %v2366, %v2367
        %v2369 = vrot.slane %v2367, 4
        %v2370 = vrot.slane %v2256, 5
        %v2371 = vsel %vm2364, %v2369, %v2370
        %v2372 = vrot.slane %v2257, 5
        %v2373 = vrot.slane %v2372, 4
        %v2374 = vrot.slane %v2258, 5
        %v2375 = vsel %vm2364, %v2373, %v2374
        %v2376 = vrot.slane %v2374, 4
        %v2377 = vrot.slane %v2259, 5
        %v2378 = vsel %vm2364, %v2376, %v2377
        %v2379 = vrot.slane %v2260, 5
        %v2380 = vrot.slane %v2379, 4
        %v2381 = vrot.slane %v2261, 5
        %v2382 = vsel %vm2364, %v2380, %v2381
        %v2383 = vrot.slane %v2381, 4
        %v2384 = vrot.slane %v2262, 5
        %v2385 = vsel %vm2364, %v2383, %v2384
        %v2386 = vrot.slane %v2263, 5
        %v2387 = vrot.slane %v2386, 4
        %v2388 = vrot.slane %v2264, 5
        %v2389 = vsel %vm2364, %v2387, %v2388
        %v2390 = vrot.slane %v2388, 4
        %v2391 = vrot.slane %v2265, 5
        %v2392 = vsel %vm2364, %v2390, %v2391
        %v2393 = vrot.slane %v2266, 5
        %v2394 = vrot.slane %v2393, 4
        %v2395 = vrot.slane %v2267, 5
        %v2396 = vsel %vm2364, %v2394, %v2395
        %v2397 = vrot.slane %v2395, 4
        %v2398 = vrot.slane %v2268, 5
        %v2399 = vsel %vm2364, %v2397, %v2398
        %v2400 = vrot.slane %v2269, 5
        %v2401 = vrot.slane %v2400, 4
        %v2402 = vrot.slane %v2270, 5
        %v2403 = vsel %vm2364, %v2401, %v2402
        %v2404 = vrot.slane %v2402, 4
        %v2405 = vrot.slane %v2271, 5
        %v2406 = vsel %vm2364, %v2404, %v2405
        %v2407 = vrot.slane %v2272, 5
        %v2408 = vrot.slane %v2407, 4
        %v2409 = vrot.slane %v2273, 5
        %v2410 = vsel %vm2364, %v2408, %v2409
        %v2411 = vrot.slane %v2409, 4
        %v2412 = vrot.slane %v2274, 5
        %v2413 = vsel %vm2364, %v2411, %v2412
        %v2414 = vrot.slane %v2275, 5
        %v2415 = vrot.slane %v2414, 4
        %v2416 = vrot.slane %v2276, 5
        %v2417 = vsel %vm2364, %v2415, %v2416
        %v2418 = vrot.slane %v2416, 4
        %v2419 = vrot.slane %v2277, 5
        %v2420 = vsel %vm2364, %v2418, %v2419
        %v2421 = vrot.slane %v2278, 5
        %v2422 = vrot.slane %v2421, 4
        %v2423 = vrot.slane %v2279, 5
        %v2424 = vsel %vm2364, %v2422, %v2423
        %v2425 = vrot.slane %v2423, 4
        %v2426 = vrot.slane %v2280, 5
        %v2427 = vsel %vm2364, %v2425, %v2426
        %v2428 = vrot.slane %v2281, 5
        %v2429 = vrot.slane %v2428, 4
        %v2430 = vrot.slane %v2282, 5
        %v2431 = vsel %vm2364, %v2429, %v2430
        %v2432 = vrot.slane %v2430, 4
        %v2433 = vrot.slane %v2283, 5
        %v2434 = vsel %vm2364, %v2432, %v2433
        %v2435 = vrot.slane %v2284, 5
        %v2436 = vrot.slane %v2435, 4
        %v2437 = vrot.slane %v2285, 5
        %v2438 = vsel %vm2364, %v2436, %v2437
        %v2439 = vrot.slane %v2437, 4
        %v2440 = vrot.slane %v2286, 5
        %v2441 = vsel %vm2364, %v2439, %v2440
        %v2442 = vrot.slane %v2287, 5
        %v2443 = vrot.slane %v2442, 4
        %v2444 = vrot.slane %v2288, 5
        %v2445 = vsel %vm2364, %v2443, %v2444
        %v2446 = vrot.slane %v2444, 4
        %v2447 = vrot.slane %v2289, 5
        %v2448 = vsel %vm2364, %v2446, %v2447
        %v2449 = vrot.slane %v2290, 5
        %v2450 = vrot.slane %v2449, 4
        %v2451 = vrot.slane %v2291, 5
        %v2452 = vsel %vm2364, %v2450, %v2451
        %v2453 = vrot.slane %v2451, 4
        %v2454 = vrot.slane %v2292, 5
        %v2455 = vsel %vm2364, %v2453, %v2454
        %v2456 = vrot.slane %v2293, 5
        %v2457 = vrot.slane %v2456, 4
        %v2458 = vrot.slane %v2294, 5
        %v2459 = vsel %vm2364, %v2457, %v2458
        %v2460 = vrot.slane %v2458, 4
        %v2461 = vrot.slane %v2295, 5
        %v2462 = vsel %vm2364, %v2460, %v2461
        %v2463 = vrot.slane %v2296, 5
        %v2464 = vrot.slane %v2463, 4
        %v2465 = vrot.slane %v2297, 5
        %v2466 = vsel %vm2364, %v2464, %v2465
        %v2467 = vrot.slane %v2465, 4
        %v2468 = vrot.slane %v2298, 5
        %v2469 = vsel %vm2364, %v2467, %v2468
        %v2470 = vrot.slane %v2299, 5
        %v2471 = vrot.slane %v2470, 4
        %v2472 = vrot.slane %v2300, 5
        %v2473 = vsel %vm2364, %v2471, %v2472
        %v2474 = vrot.slane %v2472, 4
        %v2475 = vrot.slane %v2301, 5
        %v2476 = vsel %vm2364, %v2474, %v2475
        %v2477 = vrot.slane %v2302, 5
        %v2478 = vrot.slane %v2477, 4
        %v2479 = vrot.slane %v2303, 5
        %v2480 = vsel %vm2364, %v2478, %v2479
        %v2481 = vrot.slane %v2479, 4
        %v2482 = vrot.slane %v2304, 5
        %v2483 = vsel %vm2364, %v2481, %v2482
        %v2484 = vrot.slane %v2305, 5
        %v2485 = vrot.slane %v2484, 4
        %v2486 = vrot.slane %v2306, 5
        %v2487 = vsel %vm2364, %v2485, %v2486
        %v2488 = vrot.slane %v2486, 4
        %v2489 = vrot.slane %v2307, 5
        %v2490 = vsel %vm2364, %v2488, %v2489
        %2527 = vst.msk [vmem:[#allocation3 + $0x4] sm:$0xf] %vm321, %v2368
        %2528 = vst.msk [vmem:[#allocation3 + $0xc] sm:$0xf] %vm321, %v2371
        %2529 = vst.msk [vmem:[#allocation3 + $0x14] sm:$0xf] %vm321, %v2375
        %2530 = vst.msk [vmem:[#allocation3 + $0x1c] sm:$0xf] %vm321, %v2378
        %2531 = vst.msk [vmem:[#allocation3 + $0x24] sm:$0xf] %vm321, %v2382
        %2532 = vst.msk [vmem:[#allocation3 + $0x2c] sm:$0xf] %vm321, %v2385
        %2533 = vst.msk [vmem:[#allocation3 + $0x34] sm:$0xf] %vm321, %v2389
        %2534 = vst.msk [vmem:[#allocation3 + $0x3c] sm:$0xf] %vm321, %v2392
        %2535 = vst.msk [vmem:[#allocation3 + $0x44] sm:$0xf] %vm321, %v2396
        %2536 = vst.msk [vmem:[#allocation3 + $0x4c] sm:$0xf] %vm321, %v2399
        %2537 = vst.msk [vmem:[#allocation3 + $0x54] sm:$0xf] %vm321, %v2403
        %2538 = vst.msk [vmem:[#allocation3 + $0x5c] sm:$0xf] %vm321, %v2406
        %2539 = vst.msk [vmem:[#allocation3 + $0x64] sm:$0xf] %vm321, %v2410
        %2540 = vst.msk [vmem:[#allocation3 + $0x6c] sm:$0xf] %vm321, %v2413
        %2541 = vst.msk [vmem:[#allocation3 + $0x74] sm:$0xf] %vm321, %v2417
        %2542 = vst.msk [vmem:[#allocation3 + $0x7c] sm:$0xf] %vm321, %v2420
        %2543 = vst.msk [vmem:[#allocation3 + $0x84] sm:$0xf] %vm321, %v2424
        %2544 = vst.msk [vmem:[#allocation3 + $0x8c] sm:$0xf] %vm321, %v2427
        %2545 = vst.msk [vmem:[#allocation3 + $0x94] sm:$0xf] %vm321, %v2431
        %2546 = vst.msk [vmem:[#allocation3 + $0x9c] sm:$0xf] %vm321, %v2434
        %2547 = vst.msk [vmem:[#allocation3 + $0xa4] sm:$0xf] %vm321, %v2438
        %2548 = vst.msk [vmem:[#allocation3 + $0xac] sm:$0xf] %vm321, %v2441
        %2549 = vst.msk [vmem:[#allocation3 + $0xb4] sm:$0xf] %vm321, %v2445
        %2550 = vst.msk [vmem:[#allocation3 + $0xbc] sm:$0xf] %vm321, %v2448
        %2551 = vst.msk [vmem:[#allocation3 + $0xc4] sm:$0xf] %vm321, %v2452
        %2552 = vst.msk [vmem:[#allocation3 + $0xcc] sm:$0xf] %vm321, %v2455
        %2553 = vst.msk [vmem:[#allocation3 + $0xd4] sm:$0xf] %vm321, %v2459
        %2554 = vst.msk [vmem:[#allocation3 + $0xdc] sm:$0xf] %vm321, %v2462
        %2555 = vst.msk [vmem:[#allocation3 + $0xe4] sm:$0xf] %vm321, %v2466
        %2556 = vst.msk [vmem:[#allocation3 + $0xec] sm:$0xf] %vm321, %v2469
        %2557 = vst.msk [vmem:[#allocation3 + $0xf4] sm:$0xf] %vm321, %v2473
        %2558 = vst.msk [vmem:[#allocation3 + $0xfc] sm:$0xf] %vm321, %v2476
        %2559 = vst.msk [vmem:[#allocation3 + $0x104] sm:$0xf] %vm321, %v2480
        %2560 = vst.msk [vmem:[#allocation3 + $0x10c] sm:$0xf] %vm321, %v2483
        %2561 = vst.msk [vmem:[#allocation3 + $0x114] sm:$0xf] %vm321, %v2487
        %2562 = vst.msk [vmem:[#allocation3 + $0x11c] sm:$0xf] %vm321, %v2490
        %v2563 = vld [vmem:[#allocation3] sm:$0xff]
        %v2564 = vld [vmem:[#allocation3 + $0x8] sm:$0xff]
        %v2565 = vld [vmem:[#allocation3 + $0x10] sm:$0xff]
        %v2566 = vld [vmem:[#allocation3 + $0x18] sm:$0xff]
        %v2567 = vld [vmem:[#allocation3 + $0x20] sm:$0xff]
        %v2568 = vld [vmem:[#allocation3 + $0x28] sm:$0xff]
        %v2569 = vld [vmem:[#allocation3 + $0x30] sm:$0xff]
        %v2570 = vld [vmem:[#allocation3 + $0x38] sm:$0xff]
        %v2571 = vld [vmem:[#allocation3 + $0x40] sm:$0xff]
        %v2572 = vld [vmem:[#allocation3 + $0x48] sm:$0xff]
        %v2573 = vld [vmem:[#allocation3 + $0x50] sm:$0xff]
        %v2574 = vld [vmem:[#allocation3 + $0x58] sm:$0xff]
        %v2575 = vld [vmem:[#allocation3 + $0x60] sm:$0xff]
        %v2576 = vld [vmem:[#allocation3 + $0x68] sm:$0xff]
        %v2577 = vld [vmem:[#allocation3 + $0x70] sm:$0xff]
        %v2578 = vld [vmem:[#allocation3 + $0x78] sm:$0xff]
        %v2579 = vld [vmem:[#allocation3 + $0x80] sm:$0xff]
        %v2580 = vld [vmem:[#allocation3 + $0x88] sm:$0xff]
        %v2581 = vld [vmem:[#allocation3 + $0x90] sm:$0xff]
        %v2582 = vld [vmem:[#allocation3 + $0x98] sm:$0xff]
        %v2583 = vld [vmem:[#allocation3 + $0xa0] sm:$0xff]
        %v2584 = vld [vmem:[#allocation3 + $0xa8] sm:$0xff]
        %v2585 = vld [vmem:[#allocation3 + $0xb0] sm:$0xff]
        %v2586 = vld [vmem:[#allocation3 + $0xb8] sm:$0xff]
        %v2587 = vld [vmem:[#allocation3 + $0xc0] sm:$0xff]
        %v2588 = vld [vmem:[#allocation3 + $0xc8] sm:$0xff]
        %v2589 = vld [vmem:[#allocation3 + $0xd0] sm:$0xff]
        %v2590 = vld [vmem:[#allocation3 + $0xd8] sm:$0xff]
        %v2591 = vld [vmem:[#allocation3 + $0xe0] sm:$0xff]
        %v2592 = vld [vmem:[#allocation3 + $0xe8] sm:$0xff]
        %v2593 = vld [vmem:[#allocation3 + $0xf0] sm:$0xff]
        %v2594 = vld [vmem:[#allocation3 + $0xf8] sm:$0xff]
        %v2595 = vld [vmem:[%s3] sm:$0xf]
        %v2596 = vld [vmem:[%s3 + $0x4] sm:$0xf]
        %v2597 = vld [vmem:[%s3 + $0x8] sm:$0xf]
        %v2598 = vld [vmem:[%s3 + $0xc] sm:$0xf]
        %v2599 = vld [vmem:[%s3 + $0x10] sm:$0xf]
        %v2600 = vld [vmem:[%s3 + $0x14] sm:$0xf]
        %v2601 = vld [vmem:[%s3 + $0x18] sm:$0xf]
        %v2602 = vld [vmem:[%s3 + $0x1c] sm:$0xf]
        %v2603 = vld [vmem:[%s3 + $0x20] sm:$0xf]
        %v2604 = vld [vmem:[%s3 + $0x24] sm:$0xf]
        %v2605 = vld [vmem:[%s3 + $0x28] sm:$0xf]
        %v2606 = vld [vmem:[%s3 + $0x2c] sm:$0xf]
        %v2607 = vld [vmem:[%s3 + $0x30] sm:$0xf]
        %v2608 = vld [vmem:[%s3 + $0x34] sm:$0xf]
        %v2609 = vld [vmem:[%s3 + $0x38] sm:$0xf]
        %v2610 = vld [vmem:[%s3 + $0x3c] sm:$0xf]
        %v2611 = vld [vmem:[%s3 + $0x40] sm:$0xf]
        %v2612 = vld [vmem:[%s3 + $0x44] sm:$0xf]
        %v2613 = vld [vmem:[%s3 + $0x48] sm:$0xf]
        %v2614 = vld [vmem:[%s3 + $0x4c] sm:$0xf]
        %v2615 = vld [vmem:[%s3 + $0x50] sm:$0xf]
        %v2616 = vld [vmem:[%s3 + $0x54] sm:$0xf]
        %v2617 = vld [vmem:[%s3 + $0x58] sm:$0xf]
        %v2618 = vld [vmem:[%s3 + $0x5c] sm:$0xf]
        %v2619 = vld [vmem:[%s4] sm:$0x1]
        %v2621 = vperm.slane %v2619, 0
        %v2655 = vunpack.c.l.b16 %v2563
        %v2656 = vunpack.c.h.b16 %v2563
        %v2657 = vunpack.c.l.b16 %v2564
        %v2658 = vunpack.c.h.b16 %v2564
        %v2659 = vunpack.c.l.b16 %v2565
        %v2660 = vunpack.c.h.b16 %v2565
        %v2661 = vunpack.c.l.b16 %v2566
        %v2662 = vunpack.c.h.b16 %v2566
        %v2663 = vunpack.c.l.b16 %v2567
        %v2664 = vunpack.c.h.b16 %v2567
        %v2665 = vunpack.c.l.b16 %v2568
        %v2666 = vunpack.c.h.b16 %v2568
        %v2667 = vunpack.c.l.b16 %v2569
        %v2668 = vunpack.c.h.b16 %v2569
        %v2669 = vunpack.c.l.b16 %v2570
        %v2670 = vunpack.c.h.b16 %v2570
        %v2671 = vunpack.c.l.b16 %v2571
        %v2672 = vunpack.c.h.b16 %v2571
        %v2673 = vunpack.c.l.b16 %v2572
        %v2674 = vunpack.c.h.b16 %v2572
        %v2675 = vunpack.c.l.b16 %v2573
        %v2676 = vunpack.c.h.b16 %v2573
        %v2677 = vunpack.c.l.b16 %v2574
        %v2678 = vunpack.c.h.b16 %v2574
        %v2679 = vunpack.c.l.b16 %v2575
        %v2680 = vunpack.c.h.b16 %v2575
        %v2681 = vunpack.c.l.b16 %v2576
        %v2682 = vunpack.c.h.b16 %v2576
        %v2683 = vunpack.c.l.b16 %v2577
        %v2684 = vunpack.c.h.b16 %v2577
        %v2685 = vunpack.c.l.b16 %v2578
        %v2686 = vunpack.c.h.b16 %v2578
        %v2687 = vunpack.c.l.b16 %v2579
        %v2688 = vunpack.c.h.b16 %v2579
        %v2689 = vunpack.c.l.b16 %v2580
        %v2690 = vunpack.c.h.b16 %v2580
        %v2691 = vunpack.c.l.b16 %v2581
        %v2692 = vunpack.c.h.b16 %v2581
        %v2693 = vunpack.c.l.b16 %v2582
        %v2694 = vunpack.c.h.b16 %v2582
        %v2695 = vunpack.c.l.b16 %v2583
        %v2696 = vunpack.c.h.b16 %v2583
        %v2697 = vunpack.c.l.b16 %v2584
        %v2698 = vunpack.c.h.b16 %v2584
        %v2699 = vunpack.c.l.b16 %v2585
        %v2700 = vunpack.c.h.b16 %v2585
        %v2701 = vunpack.c.l.b16 %v2586
        %v2702 = vunpack.c.h.b16 %v2586
        %v2703 = vunpack.c.l.b16 %v2587
        %v2704 = vunpack.c.h.b16 %v2587
        %v2705 = vunpack.c.l.b16 %v2588
        %v2706 = vunpack.c.h.b16 %v2588
        %v2707 = vunpack.c.l.b16 %v2589
        %v2708 = vunpack.c.h.b16 %v2589
        %v2709 = vunpack.c.l.b16 %v2590
        %v2710 = vunpack.c.h.b16 %v2590
        %v2711 = vunpack.c.l.b16 %v2591
        %v2712 = vunpack.c.h.b16 %v2591
        %v2713 = vunpack.c.l.b16 %v2592
        %v2714 = vunpack.c.h.b16 %v2592
        %v2715 = vunpack.c.l.b16 %v2593
        %v2716 = vunpack.c.h.b16 %v2593
        %v2717 = vunpack.c.l.b16 %v2594
        %v2718 = vunpack.c.h.b16 %v2594
        %v2719 = vpack.c.b16 %v2657, %v2655
        %v2720 = vpack.c.b16 %v2658, %v2656
        %v2721 = vpack.c.b16 %v2661, %v2659
        %v2722 = vpack.c.b16 %v2662, %v2660
        %v2723 = vpack.c.b16 %v2665, %v2663
        %v2724 = vpack.c.b16 %v2666, %v2664
        %v2725 = vpack.c.b16 %v2669, %v2667
        %v2726 = vpack.c.b16 %v2670, %v2668
        %v2727 = vpack.c.b16 %v2673, %v2671
        %v2728 = vpack.c.b16 %v2674, %v2672
        %v2729 = vpack.c.b16 %v2677, %v2675
        %v2730 = vpack.c.b16 %v2678, %v2676
        %v2731 = vpack.c.b16 %v2681, %v2679
        %v2732 = vpack.c.b16 %v2682, %v2680
        %v2733 = vpack.c.b16 %v2685, %v2683
        %v2734 = vpack.c.b16 %v2686, %v2684
        %v2735 = vpack.c.b16 %v2689, %v2687
        %v2736 = vpack.c.b16 %v2690, %v2688
        %v2737 = vpack.c.b16 %v2693, %v2691
        %v2738 = vpack.c.b16 %v2694, %v2692
        %v2739 = vpack.c.b16 %v2697, %v2695
        %v2740 = vpack.c.b16 %v2698, %v2696
        %v2741 = vpack.c.b16 %v2701, %v2699
        %v2742 = vpack.c.b16 %v2702, %v2700
        %v2743 = vpack.c.b16 %v2705, %v2703
        %v2744 = vpack.c.b16 %v2706, %v2704
        %v2745 = vpack.c.b16 %v2709, %v2707
        %v2746 = vpack.c.b16 %v2710, %v2708
        %v2747 = vpack.c.b16 %v2713, %v2711
        %v2748 = vpack.c.b16 %v2714, %v2712
        %v2749 = vpack.c.b16 %v2717, %v2715
        %v2750 = vpack.c.b16 %v2718, %v2716
        %v2791 = vunpack.c.l.b16 %v2595
        %v2792 = vunpack.c.l.b16 %v2596
        %v2793 = vunpack.c.l.b16 %v2597
        %v2794 = vunpack.c.l.b16 %v2598
        %v2795 = vunpack.c.l.b16 %v2599
        %v2796 = vunpack.c.l.b16 %v2600
        %v2797 = vunpack.c.l.b16 %v2601
        %v2798 = vunpack.c.l.b16 %v2602
        %v2799 = vunpack.c.l.b16 %v2603
        %v2800 = vunpack.c.l.b16 %v2604
        %v2801 = vunpack.c.l.b16 %v2605
        %v2802 = vunpack.c.l.b16 %v2606
        %v2803 = vunpack.c.l.b16 %v2607
        %v2804 = vunpack.c.l.b16 %v2608
        %v2805 = vunpack.c.l.b16 %v2609
        %v2806 = vunpack.c.l.b16 %v2610
        %v2807 = vunpack.c.l.b16 %v2611
        %v2808 = vunpack.c.l.b16 %v2612
        %v2809 = vunpack.c.l.b16 %v2613
        %v2810 = vunpack.c.l.b16 %v2614
        %v2811 = vunpack.c.l.b16 %v2615
        %v2812 = vunpack.c.l.b16 %v2616
        %v2813 = vunpack.c.l.b16 %v2617
        %v2814 = vunpack.c.l.b16 %v2618
        %v2815 = vpack.c.b16 %v2792, %v2791
        %v2816 = vpack.c.b16 %v2794, %v2793
        %v2817 = vpack.c.b16 %v2796, %v2795
        %v2818 = vpack.c.b16 %v2798, %v2797
        %v2819 = vpack.c.b16 %v2800, %v2799
        %v2820 = vpack.c.b16 %v2802, %v2801
        %v2821 = vpack.c.b16 %v2804, %v2803
        %v2822 = vpack.c.b16 %v2806, %v2805
        %v2823 = vpack.c.b16 %v2808, %v2807
        %v2824 = vpack.c.b16 %v2810, %v2809
        %v2825 = vpack.c.b16 %v2812, %v2811
        %v2826 = vpack.c.b16 %v2814, %v2813
        %vm2839 = vcmask 523264
        %v2841 = vsel %vm2839, %v2720, 0
        %v2844 = vsel %vm2839, %v2722, 0
        %v2847 = vsel %vm2839, %v2724, 0
        %v2850 = vsel %vm2839, %v2726, 0
        %v2853 = vsel %vm2839, %v2728, 0
        %v2856 = vsel %vm2839, %v2730, 0
        %v2859 = vsel %vm2839, %v2732, 0
        %v2862 = vsel %vm2839, %v2734, 0
        %v2865 = vsel %vm2839, %v2736, 0
        %v2868 = vsel %vm2839, %v2738, 0
        %v2871 = vsel %vm2839, %v2740, 0
        %v2874 = vsel %vm2839, %v2742, 0
        %v2877 = vsel %vm2839, %v2744, 0
        %v2880 = vsel %vm2839, %v2746, 0
        %v2883 = vsel %vm2839, %v2748, 0
        %v2886 = vsel %vm2839, %v2750, 0
        %2888 = vmatpush.bf16.msra.mxu0 %v2822
        %2889 = vmatpush.bf16.msra.mxu0 %v2821
        %2890 = vmatpush.bf16.msra.mxu0 %v2820
        %2891 = vmatpush.bf16.msra.mxu0 %v2819
        %2892 = vmatpush.bf16.msra.mxu0 %v2818
        %2893 = vmatpush.bf16.msra.mxu0 %v2817
        %2894 = vmatpush.bf16.msra.mxu0 %v2816
        %2895 = vmatpush.bf16.msra.mxu0 %v2815
        %2896 = vmatmul.bf16.gmra.mxu0 %v2719
        %v2897 = vpop.f32.mrf.mxu0
        %v2898 = vadd.f32 %v2621, %v2897
        %v2899 = vpop.f32.mrf.mxu0
        %v2900 = vadd.f32 %v2621, %v2899
        %2901 = vmatmul.bf16.gmra.mxu0 %v2721
        %v2902 = vpop.f32.mrf.mxu0
        %v2903 = vadd.f32 %v2621, %v2902
        %v2904 = vpop.f32.mrf.mxu0
        %v2905 = vadd.f32 %v2621, %v2904
        %2906 = vmatmul.bf16.gmra.mxu0 %v2723
        %v2907 = vpop.f32.mrf.mxu0
        %v2908 = vadd.f32 %v2621, %v2907
        %v2909 = vpop.f32.mrf.mxu0
        %v2910 = vadd.f32 %v2621, %v2909
        %2911 = vmatmul.bf16.gmra.mxu0 %v2725
        %v2912 = vpop.f32.mrf.mxu0
        %v2913 = vadd.f32 %v2621, %v2912
        %v2914 = vpop.f32.mrf.mxu0
        %v2915 = vadd.f32 %v2621, %v2914
        %2916 = vmatmul.bf16.gmra.mxu0 %v2727
        %v2917 = vpop.f32.mrf.mxu0
        %v2918 = vadd.f32 %v2621, %v2917
        %v2919 = vpop.f32.mrf.mxu0
        %v2920 = vadd.f32 %v2621, %v2919
        %2921 = vmatmul.bf16.gmra.mxu0 %v2729
        %v2922 = vpop.f32.mrf.mxu0
        %v2923 = vadd.f32 %v2621, %v2922
        %v2924 = vpop.f32.mrf.mxu0
        %v2925 = vadd.f32 %v2621, %v2924
        %2926 = vmatmul.bf16.gmra.mxu0 %v2731
        %v2927 = vpop.f32.mrf.mxu0
        %v2928 = vadd.f32 %v2621, %v2927
        %v2929 = vpop.f32.mrf.mxu0
        %v2930 = vadd.f32 %v2621, %v2929
        %2931 = vmatmul.bf16.gmra.mxu0 %v2733
        %v2932 = vpop.f32.mrf.mxu0
        %v2933 = vadd.f32 %v2621, %v2932
        %v2934 = vpop.f32.mrf.mxu0
        %v2935 = vadd.f32 %v2621, %v2934
        %2936 = vmatmul.bf16.gmra.mxu0 %v2735
        %v2937 = vpop.f32.mrf.mxu0
        %v2938 = vadd.f32 %v2621, %v2937
        %v2939 = vpop.f32.mrf.mxu0
        %v2940 = vadd.f32 %v2621, %v2939
        %2941 = vmatmul.bf16.gmra.mxu0 %v2737
        %v2942 = vpop.f32.mrf.mxu0
        %v2943 = vadd.f32 %v2621, %v2942
        %v2944 = vpop.f32.mrf.mxu0
        %v2945 = vadd.f32 %v2621, %v2944
        %2946 = vmatmul.bf16.gmra.mxu0 %v2739
        %v2947 = vpop.f32.mrf.mxu0
        %v2948 = vadd.f32 %v2621, %v2947
        %v2949 = vpop.f32.mrf.mxu0
        %v2950 = vadd.f32 %v2621, %v2949
        %2951 = vmatmul.bf16.gmra.mxu0 %v2741
        %v2952 = vpop.f32.mrf.mxu0
        %v2953 = vadd.f32 %v2621, %v2952
        %v2954 = vpop.f32.mrf.mxu0
        %v2955 = vadd.f32 %v2621, %v2954
        %2956 = vmatmul.bf16.gmra.mxu0 %v2743
        %v2957 = vpop.f32.mrf.mxu0
        %v2958 = vadd.f32 %v2621, %v2957
        %v2959 = vpop.f32.mrf.mxu0
        %v2960 = vadd.f32 %v2621, %v2959
        %2961 = vmatmul.bf16.gmra.mxu0 %v2745
        %v2962 = vpop.f32.mrf.mxu0
        %v2963 = vadd.f32 %v2621, %v2962
        %v2964 = vpop.f32.mrf.mxu0
        %v2965 = vadd.f32 %v2621, %v2964
        %2966 = vmatmul.bf16.gmra.mxu0 %v2747
        %v2967 = vpop.f32.mrf.mxu0
        %v2968 = vadd.f32 %v2621, %v2967
        %v2969 = vpop.f32.mrf.mxu0
        %v2970 = vadd.f32 %v2621, %v2969
        %2971 = vmatmul.bf16.gmra.mxu0 %v2749
        %v2972 = vpop.f32.mrf.mxu0
        %v2973 = vadd.f32 %v2621, %v2972
        %v2974 = vpop.f32.mrf.mxu0
        %v2975 = vadd.f32 %v2621, %v2974
        %2976 = vdwg.mxu0
        %2977 = vmatpush.bf16.msra.mxu0 0
        %2978 = vmatpush.bf16.msra.mxu0 0
        %2979 = vmatpush.bf16.msra.mxu0 0
        %2980 = vmatpush.bf16.msra.mxu0 0
        %2981 = vmatpush.bf16.msra.mxu0 %v2826
        %2982 = vmatpush.bf16.msra.mxu0 %v2825
        %2983 = vmatpush.bf16.msra.mxu0 %v2824
        %2984 = vmatpush.bf16.msra.mxu0 %v2823
        %2985 = vmatmul.bf16.gmra.mxu0 %v2841
        %v2986 = vpop.f32.mrf.mxu0
        %v2987 = vadd.f32 %v2898, %v2986
        %v2988 = vpop.f32.mrf.mxu0
        %v2989 = vadd.f32 %v2900, %v2988
        %2990 = vmatmul.bf16.gmra.mxu0 %v2844
        %v2991 = vpop.f32.mrf.mxu0
        %v2992 = vadd.f32 %v2903, %v2991
        %v2993 = vpop.f32.mrf.mxu0
        %v2994 = vadd.f32 %v2905, %v2993
        %2995 = vmatmul.bf16.gmra.mxu0 %v2847
        %v2996 = vpop.f32.mrf.mxu0
        %v2997 = vadd.f32 %v2908, %v2996
        %v2998 = vpop.f32.mrf.mxu0
        %v2999 = vadd.f32 %v2910, %v2998
        %3000 = vmatmul.bf16.gmra.mxu0 %v2850
        %v3001 = vpop.f32.mrf.mxu0
        %v3002 = vadd.f32 %v2913, %v3001
        %v3003 = vpop.f32.mrf.mxu0
        %v3004 = vadd.f32 %v2915, %v3003
        %3005 = vmatmul.bf16.gmra.mxu0 %v2853
        %v3006 = vpop.f32.mrf.mxu0
        %v3007 = vadd.f32 %v2918, %v3006
        %v3008 = vpop.f32.mrf.mxu0
        %v3009 = vadd.f32 %v2920, %v3008
        %3010 = vmatmul.bf16.gmra.mxu0 %v2856
        %v3011 = vpop.f32.mrf.mxu0
        %v3012 = vadd.f32 %v2923, %v3011
        %v3013 = vpop.f32.mrf.mxu0
        %v3014 = vadd.f32 %v2925, %v3013
        %3015 = vmatmul.bf16.gmra.mxu0 %v2859
        %v3016 = vpop.f32.mrf.mxu0
        %v3017 = vadd.f32 %v2928, %v3016
        %v3018 = vpop.f32.mrf.mxu0
        %v3019 = vadd.f32 %v2930, %v3018
        %3020 = vmatmul.bf16.gmra.mxu0 %v2862
        %v3021 = vpop.f32.mrf.mxu0
        %v3022 = vadd.f32 %v2933, %v3021
        %v3023 = vpop.f32.mrf.mxu0
        %v3024 = vadd.f32 %v2935, %v3023
        %3025 = vmatmul.bf16.gmra.mxu0 %v2865
        %v3026 = vpop.f32.mrf.mxu0
        %v3027 = vadd.f32 %v2938, %v3026
        %v3028 = vpop.f32.mrf.mxu0
        %v3029 = vadd.f32 %v2940, %v3028
        %3030 = vmatmul.bf16.gmra.mxu0 %v2868
        %v3031 = vpop.f32.mrf.mxu0
        %v3032 = vadd.f32 %v2943, %v3031
        %v3033 = vpop.f32.mrf.mxu0
        %v3034 = vadd.f32 %v2945, %v3033
        %3035 = vmatmul.bf16.gmra.mxu0 %v2871
        %v3036 = vpop.f32.mrf.mxu0
        %v3037 = vadd.f32 %v2948, %v3036
        %v3038 = vpop.f32.mrf.mxu0
        %v3039 = vadd.f32 %v2950, %v3038
        %3040 = vmatmul.bf16.gmra.mxu0 %v2874
        %v3041 = vpop.f32.mrf.mxu0
        %v3042 = vadd.f32 %v2953, %v3041
        %v3043 = vpop.f32.mrf.mxu0
        %v3044 = vadd.f32 %v2955, %v3043
        %3045 = vmatmul.bf16.gmra.mxu0 %v2877
        %v3046 = vpop.f32.mrf.mxu0
        %v3047 = vadd.f32 %v2958, %v3046
        %v3048 = vpop.f32.mrf.mxu0
        %v3049 = vadd.f32 %v2960, %v3048
        %3050 = vmatmul.bf16.gmra.mxu0 %v2880
        %v3051 = vpop.f32.mrf.mxu0
        %v3052 = vadd.f32 %v2963, %v3051
        %v3053 = vpop.f32.mrf.mxu0
        %v3054 = vadd.f32 %v2965, %v3053
        %3055 = vmatmul.bf16.gmra.mxu0 %v2883
        %v3056 = vpop.f32.mrf.mxu0
        %v3057 = vadd.f32 %v2968, %v3056
        %v3058 = vpop.f32.mrf.mxu0
        %v3059 = vadd.f32 %v2970, %v3058
        %3060 = vmatmul.bf16.gmra.mxu0 %v2886
        %v3061 = vpop.f32.mrf.mxu0
        %v3062 = vadd.f32 %v2973, %v3061
        %v3063 = vpop.f32.mrf.mxu0
        %v3064 = vadd.f32 %v2975, %v3063
        %3065 = vdwg.mxu0
        %s3066 = scalar_lea.vmem [#allocation3], 16
        %v3067 = vld [vmem:[%s3066] sm:$0xff]
        %v3068 = vld [vmem:[%s3066 + $0x8] sm:$0xff]
        %v3069 = vld [vmem:[%s3066 + $0x10] sm:$0xff]
        %v3070 = vld [vmem:[%s3066 + $0x18] sm:$0xff]
        %v3071 = vld [vmem:[%s3066 + $0x20] sm:$0xff]
        %v3072 = vld [vmem:[%s3066 + $0x28] sm:$0xff]
        %v3073 = vld [vmem:[%s3066 + $0x30] sm:$0xff]
        %v3074 = vld [vmem:[%s3066 + $0x38] sm:$0xff]
        %v3075 = vld [vmem:[%s3066 + $0x40] sm:$0xff]
        %v3076 = vld [vmem:[%s3066 + $0x48] sm:$0xff]
        %v3077 = vld [vmem:[%s3066 + $0x50] sm:$0xff]
        %v3078 = vld [vmem:[%s3066 + $0x58] sm:$0xff]
        %v3079 = vld [vmem:[%s3066 + $0x60] sm:$0xff]
        %v3080 = vld [vmem:[%s3066 + $0x68] sm:$0xff]
        %v3081 = vld [vmem:[%s3066 + $0x70] sm:$0xff]
        %v3082 = vld [vmem:[%s3066 + $0x78] sm:$0xff]
        %v3083 = vld [vmem:[%s3066 + $0x80] sm:$0xff]
        %v3084 = vld [vmem:[%s3066 + $0x88] sm:$0xff]
        %v3085 = vld [vmem:[%s3066 + $0x90] sm:$0xff]
        %v3086 = vld [vmem:[%s3066 + $0x98] sm:$0xff]
        %v3087 = vld [vmem:[%s3066 + $0xa0] sm:$0xff]
        %v3088 = vld [vmem:[%s3066 + $0xa8] sm:$0xff]
        %v3089 = vld [vmem:[%s3066 + $0xb0] sm:$0xff]
        %v3090 = vld [vmem:[%s3066 + $0xb8] sm:$0xff]
        %v3091 = vld [vmem:[%s3066 + $0xc0] sm:$0xff]
        %v3092 = vld [vmem:[%s3066 + $0xc8] sm:$0xff]
        %v3093 = vld [vmem:[%s3066 + $0xd0] sm:$0xff]
        %v3094 = vld [vmem:[%s3066 + $0xd8] sm:$0xff]
        %v3095 = vld [vmem:[%s3066 + $0xe0] sm:$0xff]
        %v3096 = vld [vmem:[%s3066 + $0xe8] sm:$0xff]
        %v3097 = vld [vmem:[%s3066 + $0xf0] sm:$0xff]
        %v3098 = vld [vmem:[%s3066 + $0xf8] sm:$0xff]
        %s3099 = scalar_lea.vmem %s3, 96
        %v3100 = vld [vmem:[%s3099] sm:$0xf]
        %v3101 = vld [vmem:[%s3099 + $0x4] sm:$0xf]
        %v3102 = vld [vmem:[%s3099 + $0x8] sm:$0xf]
        %v3103 = vld [vmem:[%s3099 + $0xc] sm:$0xf]
        %v3104 = vld [vmem:[%s3099 + $0x10] sm:$0xf]
        %v3105 = vld [vmem:[%s3099 + $0x14] sm:$0xf]
        %v3106 = vld [vmem:[%s3099 + $0x18] sm:$0xf]
        %v3107 = vld [vmem:[%s3099 + $0x1c] sm:$0xf]
        %v3108 = vld [vmem:[%s3099 + $0x20] sm:$0xf]
        %v3109 = vld [vmem:[%s3099 + $0x24] sm:$0xf]
        %v3110 = vld [vmem:[%s3099 + $0x28] sm:$0xf]
        %v3111 = vld [vmem:[%s3099 + $0x2c] sm:$0xf]
        %v3112 = vld [vmem:[%s3099 + $0x30] sm:$0xf]
        %v3113 = vld [vmem:[%s3099 + $0x34] sm:$0xf]
        %v3114 = vld [vmem:[%s3099 + $0x38] sm:$0xf]
        %v3115 = vld [vmem:[%s3099 + $0x3c] sm:$0xf]
        %v3116 = vld [vmem:[%s3099 + $0x40] sm:$0xf]
        %v3117 = vld [vmem:[%s3099 + $0x44] sm:$0xf]
        %v3118 = vld [vmem:[%s3099 + $0x48] sm:$0xf]
        %v3119 = vld [vmem:[%s3099 + $0x4c] sm:$0xf]
        %v3120 = vld [vmem:[%s3099 + $0x50] sm:$0xf]
        %v3121 = vld [vmem:[%s3099 + $0x54] sm:$0xf]
        %v3122 = vld [vmem:[%s3099 + $0x58] sm:$0xf]
        %v3123 = vld [vmem:[%s3099 + $0x5c] sm:$0xf]
        %v3156 = vunpack.c.l.b16 %v3067
        %v3157 = vunpack.c.h.b16 %v3067
        %v3158 = vunpack.c.l.b16 %v3068
        %v3159 = vunpack.c.h.b16 %v3068
        %v3160 = vunpack.c.l.b16 %v3069
        %v3161 = vunpack.c.h.b16 %v3069
        %v3162 = vunpack.c.l.b16 %v3070
        %v3163 = vunpack.c.h.b16 %v3070
        %v3164 = vunpack.c.l.b16 %v3071
        %v3165 = vunpack.c.h.b16 %v3071
        %v3166 = vunpack.c.l.b16 %v3072
        %v3167 = vunpack.c.h.b16 %v3072
        %v3168 = vunpack.c.l.b16 %v3073
        %v3169 = vunpack.c.h.b16 %v3073
        %v3170 = vunpack.c.l.b16 %v3074
        %v3171 = vunpack.c.h.b16 %v3074
        %v3172 = vunpack.c.l.b16 %v3075
        %v3173 = vunpack.c.h.b16 %v3075
        %v3174 = vunpack.c.l.b16 %v3076
        %v3175 = vunpack.c.h.b16 %v3076
        %v3176 = vunpack.c.l.b16 %v3077
        %v3177 = vunpack.c.h.b16 %v3077
        %v3178 = vunpack.c.l.b16 %v3078
        %v3179 = vunpack.c.h.b16 %v3078
        %v3180 = vunpack.c.l.b16 %v3079
        %v3181 = vunpack.c.h.b16 %v3079
        %v3182 = vunpack.c.l.b16 %v3080
        %v3183 = vunpack.c.h.b16 %v3080
        %v3184 = vunpack.c.l.b16 %v3081
        %v3185 = vunpack.c.h.b16 %v3081
        %v3186 = vunpack.c.l.b16 %v3082
        %v3187 = vunpack.c.h.b16 %v3082
        %v3188 = vunpack.c.l.b16 %v3083
        %v3189 = vunpack.c.h.b16 %v3083
        %v3190 = vunpack.c.l.b16 %v3084
        %v3191 = vunpack.c.h.b16 %v3084
        %v3192 = vunpack.c.l.b16 %v3085
        %v3193 = vunpack.c.h.b16 %v3085
        %v3194 = vunpack.c.l.b16 %v3086
        %v3195 = vunpack.c.h.b16 %v3086
        %v3196 = vunpack.c.l.b16 %v3087
        %v3197 = vunpack.c.h.b16 %v3087
        %v3198 = vunpack.c.l.b16 %v3088
        %v3199 = vunpack.c.h.b16 %v3088
        %v3200 = vunpack.c.l.b16 %v3089
        %v3201 = vunpack.c.h.b16 %v3089
        %v3202 = vunpack.c.l.b16 %v3090
        %v3203 = vunpack.c.h.b16 %v3090
        %v3204 = vunpack.c.l.b16 %v3091
        %v3205 = vunpack.c.h.b16 %v3091
        %v3206 = vunpack.c.l.b16 %v3092
        %v3207 = vunpack.c.h.b16 %v3092
        %v3208 = vunpack.c.l.b16 %v3093
        %v3209 = vunpack.c.h.b16 %v3093
        %v3210 = vunpack.c.l.b16 %v3094
        %v3211 = vunpack.c.h.b16 %v3094
        %v3212 = vunpack.c.l.b16 %v3095
        %v3213 = vunpack.c.h.b16 %v3095
        %v3214 = vunpack.c.l.b16 %v3096
        %v3215 = vunpack.c.h.b16 %v3096
        %v3216 = vunpack.c.l.b16 %v3097
        %v3217 = vunpack.c.h.b16 %v3097
        %v3218 = vunpack.c.l.b16 %v3098
        %v3219 = vunpack.c.h.b16 %v3098
        %v3220 = vpack.c.b16 %v3158, %v3156
        %v3221 = vpack.c.b16 %v3159, %v3157
        %v3222 = vpack.c.b16 %v3162, %v3160
        %v3223 = vpack.c.b16 %v3163, %v3161
        %v3224 = vpack.c.b16 %v3166, %v3164
        %v3225 = vpack.c.b16 %v3167, %v3165
        %v3226 = vpack.c.b16 %v3170, %v3168
        %v3227 = vpack.c.b16 %v3171, %v3169
        %v3228 = vpack.c.b16 %v3174, %v3172
        %v3229 = vpack.c.b16 %v3175, %v3173
        %v3230 = vpack.c.b16 %v3178, %v3176
        %v3231 = vpack.c.b16 %v3179, %v3177
        %v3232 = vpack.c.b16 %v3182, %v3180
        %v3233 = vpack.c.b16 %v3183, %v3181
        %v3234 = vpack.c.b16 %v3186, %v3184
        %v3235 = vpack.c.b16 %v3187, %v3185
        %v3236 = vpack.c.b16 %v3190, %v3188
        %v3237 = vpack.c.b16 %v3191, %v3189
        %v3238 = vpack.c.b16 %v3194, %v3192
        %v3239 = vpack.c.b16 %v3195, %v3193
        %v3240 = vpack.c.b16 %v3198, %v3196
        %v3241 = vpack.c.b16 %v3199, %v3197
        %v3242 = vpack.c.b16 %v3202, %v3200
        %v3243 = vpack.c.b16 %v3203, %v3201
        %v3244 = vpack.c.b16 %v3206, %v3204
        %v3245 = vpack.c.b16 %v3207, %v3205
        %v3246 = vpack.c.b16 %v3210, %v3208
        %v3247 = vpack.c.b16 %v3211, %v3209
        %v3248 = vpack.c.b16 %v3214, %v3212
        %v3249 = vpack.c.b16 %v3215, %v3213
        %v3250 = vpack.c.b16 %v3218, %v3216
        %v3251 = vpack.c.b16 %v3219, %v3217
        %v3292 = vunpack.c.l.b16 %v3100
        %v3293 = vunpack.c.l.b16 %v3101
        %v3294 = vunpack.c.l.b16 %v3102
        %v3295 = vunpack.c.l.b16 %v3103
        %v3296 = vunpack.c.l.b16 %v3104
        %v3297 = vunpack.c.l.b16 %v3105
        %v3298 = vunpack.c.l.b16 %v3106
        %v3299 = vunpack.c.l.b16 %v3107
        %v3300 = vunpack.c.l.b16 %v3108
        %v3301 = vunpack.c.l.b16 %v3109
        %v3302 = vunpack.c.l.b16 %v3110
        %v3303 = vunpack.c.l.b16 %v3111
        %v3304 = vunpack.c.l.b16 %v3112
        %v3305 = vunpack.c.l.b16 %v3113
        %v3306 = vunpack.c.l.b16 %v3114
        %v3307 = vunpack.c.l.b16 %v3115
        %v3308 = vunpack.c.l.b16 %v3116
        %v3309 = vunpack.c.l.b16 %v3117
        %v3310 = vunpack.c.l.b16 %v3118
        %v3311 = vunpack.c.l.b16 %v3119
        %v3312 = vunpack.c.l.b16 %v3120
        %v3313 = vunpack.c.l.b16 %v3121
        %v3314 = vunpack.c.l.b16 %v3122
        %v3315 = vunpack.c.l.b16 %v3123
        %v3316 = vpack.c.b16 %v3293, %v3292
        %v3317 = vpack.c.b16 %v3295, %v3294
        %v3318 = vpack.c.b16 %v3297, %v3296
        %v3319 = vpack.c.b16 %v3299, %v3298
        %v3320 = vpack.c.b16 %v3301, %v3300
        %v3321 = vpack.c.b16 %v3303, %v3302
        %v3322 = vpack.c.b16 %v3305, %v3304
        %v3323 = vpack.c.b16 %v3307, %v3306
        %v3324 = vpack.c.b16 %v3309, %v3308
        %v3325 = vpack.c.b16 %v3311, %v3310
        %v3326 = vpack.c.b16 %v3313, %v3312
        %v3327 = vpack.c.b16 %v3315, %v3314
        %v3341 = vsel %vm2839, %v3221, 0
        %v3344 = vsel %vm2839, %v3223, 0
        %v3347 = vsel %vm2839, %v3225, 0
        %v3350 = vsel %vm2839, %v3227, 0
        %v3353 = vsel %vm2839, %v3229, 0
        %v3356 = vsel %vm2839, %v3231, 0
        %v3359 = vsel %vm2839, %v3233, 0
        %v3362 = vsel %vm2839, %v3235, 0
        %v3365 = vsel %vm2839, %v3237, 0
        %v3368 = vsel %vm2839, %v3239, 0
        %v3371 = vsel %vm2839, %v3241, 0
        %v3374 = vsel %vm2839, %v3243, 0
        %v3377 = vsel %vm2839, %v3245, 0
        %v3380 = vsel %vm2839, %v3247, 0
        %v3383 = vsel %vm2839, %v3249, 0
        %v3386 = vsel %vm2839, %v3251, 0
        %3388 = vmatpush.bf16.msra.mxu0 %v3323
        %3389 = vmatpush.bf16.msra.mxu0 %v3322
        %3390 = vmatpush.bf16.msra.mxu0 %v3321
        %3391 = vmatpush.bf16.msra.mxu0 %v3320
        %3392 = vmatpush.bf16.msra.mxu0 %v3319
        %3393 = vmatpush.bf16.msra.mxu0 %v3318
        %3394 = vmatpush.bf16.msra.mxu0 %v3317
        %3395 = vmatpush.bf16.msra.mxu0 %v3316
        %3396 = vmatmul.bf16.gmra.mxu0 %v3220
        %v3397 = vpop.f32.mrf.mxu0
        %v3398 = vadd.f32 0.0, %v3397
        %v3399 = vpop.f32.mrf.mxu0
        %v3400 = vadd.f32 0.0, %v3399
        %3401 = vmatmul.bf16.gmra.mxu0 %v3222
        %v3402 = vpop.f32.mrf.mxu0
        %v3403 = vadd.f32 0.0, %v3402
        %v3404 = vpop.f32.mrf.mxu0
        %v3405 = vadd.f32 0.0, %v3404
        %3406 = vmatmul.bf16.gmra.mxu0 %v3224
        %v3407 = vpop.f32.mrf.mxu0
        %v3408 = vadd.f32 0.0, %v3407
        %v3409 = vpop.f32.mrf.mxu0
        %v3410 = vadd.f32 0.0, %v3409
        %3411 = vmatmul.bf16.gmra.mxu0 %v3226
        %v3412 = vpop.f32.mrf.mxu0
        %v3413 = vadd.f32 0.0, %v3412
        %v3414 = vpop.f32.mrf.mxu0
        %v3415 = vadd.f32 0.0, %v3414
        %3416 = vmatmul.bf16.gmra.mxu0 %v3228
        %v3417 = vpop.f32.mrf.mxu0
        %v3418 = vadd.f32 0.0, %v3417
        %v3419 = vpop.f32.mrf.mxu0
        %v3420 = vadd.f32 0.0, %v3419
        %3421 = vmatmul.bf16.gmra.mxu0 %v3230
        %v3422 = vpop.f32.mrf.mxu0
        %v3423 = vadd.f32 0.0, %v3422
        %v3424 = vpop.f32.mrf.mxu0
        %v3425 = vadd.f32 0.0, %v3424
        %3426 = vmatmul.bf16.gmra.mxu0 %v3232
        %v3427 = vpop.f32.mrf.mxu0
        %v3428 = vadd.f32 0.0, %v3427
        %v3429 = vpop.f32.mrf.mxu0
        %v3430 = vadd.f32 0.0, %v3429
        %3431 = vmatmul.bf16.gmra.mxu0 %v3234
        %v3432 = vpop.f32.mrf.mxu0
        %v3433 = vadd.f32 0.0, %v3432
        %v3434 = vpop.f32.mrf.mxu0
        %v3435 = vadd.f32 0.0, %v3434
        %3436 = vmatmul.bf16.gmra.mxu0 %v3236
        %v3437 = vpop.f32.mrf.mxu0
        %v3438 = vadd.f32 0.0, %v3437
        %v3439 = vpop.f32.mrf.mxu0
        %v3440 = vadd.f32 0.0, %v3439
        %3441 = vmatmul.bf16.gmra.mxu0 %v3238
        %v3442 = vpop.f32.mrf.mxu0
        %v3443 = vadd.f32 0.0, %v3442
        %v3444 = vpop.f32.mrf.mxu0
        %v3445 = vadd.f32 0.0, %v3444
        %3446 = vmatmul.bf16.gmra.mxu0 %v3240
        %v3447 = vpop.f32.mrf.mxu0
        %v3448 = vadd.f32 0.0, %v3447
        %v3449 = vpop.f32.mrf.mxu0
        %v3450 = vadd.f32 0.0, %v3449
        %3451 = vmatmul.bf16.gmra.mxu0 %v3242
        %v3452 = vpop.f32.mrf.mxu0
        %v3453 = vadd.f32 0.0, %v3452
        %v3454 = vpop.f32.mrf.mxu0
        %v3455 = vadd.f32 0.0, %v3454
        %3456 = vmatmul.bf16.gmra.mxu0 %v3244
        %v3457 = vpop.f32.mrf.mxu0
        %v3458 = vadd.f32 0.0, %v3457
        %v3459 = vpop.f32.mrf.mxu0
        %v3460 = vadd.f32 0.0, %v3459
        %3461 = vmatmul.bf16.gmra.mxu0 %v3246
        %v3462 = vpop.f32.mrf.mxu0
        %v3463 = vadd.f32 0.0, %v3462
        %v3464 = vpop.f32.mrf.mxu0
        %v3465 = vadd.f32 0.0, %v3464
        %3466 = vmatmul.bf16.gmra.mxu0 %v3248
        %v3467 = vpop.f32.mrf.mxu0
        %v3468 = vadd.f32 0.0, %v3467
        %v3469 = vpop.f32.mrf.mxu0
        %v3470 = vadd.f32 0.0, %v3469
        %3471 = vmatmul.bf16.gmra.mxu0 %v3250
        %v3472 = vpop.f32.mrf.mxu0
        %v3473 = vadd.f32 0.0, %v3472
        %v3474 = vpop.f32.mrf.mxu0
        %v3475 = vadd.f32 0.0, %v3474
        %3476 = vdwg.mxu0
        %3477 = vmatpush.bf16.msra.mxu0 0
        %3478 = vmatpush.bf16.msra.mxu0 0
        %3479 = vmatpush.bf16.msra.mxu0 0
        %3480 = vmatpush.bf16.msra.mxu0 0
        %3481 = vmatpush.bf16.msra.mxu0 %v3327
        %3482 = vmatpush.bf16.msra.mxu0 %v3326
        %3483 = vmatpush.bf16.msra.mxu0 %v3325
        %3484 = vmatpush.bf16.msra.mxu0 %v3324
        %3485 = vmatmul.bf16.gmra.mxu0 %v3341
        %v3486 = vpop.f32.mrf.mxu0
        %v3487 = vadd.f32 %v3398, %v3486
        %v3488 = vpop.f32.mrf.mxu0
        %v3489 = vadd.f32 %v3400, %v3488
        %3490 = vmatmul.bf16.gmra.mxu0 %v3344
        %v3491 = vpop.f32.mrf.mxu0
        %v3492 = vadd.f32 %v3403, %v3491
        %v3493 = vpop.f32.mrf.mxu0
        %v3494 = vadd.f32 %v3405, %v3493
        %3495 = vmatmul.bf16.gmra.mxu0 %v3347
        %v3496 = vpop.f32.mrf.mxu0
        %v3497 = vadd.f32 %v3408, %v3496
        %v3498 = vpop.f32.mrf.mxu0
        %v3499 = vadd.f32 %v3410, %v3498
        %3500 = vmatmul.bf16.gmra.mxu0 %v3350
        %v3501 = vpop.f32.mrf.mxu0
        %v3502 = vadd.f32 %v3413, %v3501
        %v3503 = vpop.f32.mrf.mxu0
        %v3504 = vadd.f32 %v3415, %v3503
        %3505 = vmatmul.bf16.gmra.mxu0 %v3353
        %v3506 = vpop.f32.mrf.mxu0
        %v3507 = vadd.f32 %v3418, %v3506
        %v3508 = vpop.f32.mrf.mxu0
        %v3509 = vadd.f32 %v3420, %v3508
        %3510 = vmatmul.bf16.gmra.mxu0 %v3356
        %v3511 = vpop.f32.mrf.mxu0
        %v3512 = vadd.f32 %v3423, %v3511
        %v3513 = vpop.f32.mrf.mxu0
        %v3514 = vadd.f32 %v3425, %v3513
        %3515 = vmatmul.bf16.gmra.mxu0 %v3359
        %v3516 = vpop.f32.mrf.mxu0
        %v3517 = vadd.f32 %v3428, %v3516
        %v3518 = vpop.f32.mrf.mxu0
        %v3519 = vadd.f32 %v3430, %v3518
        %3520 = vmatmul.bf16.gmra.mxu0 %v3362
        %v3521 = vpop.f32.mrf.mxu0
        %v3522 = vadd.f32 %v3433, %v3521
        %v3523 = vpop.f32.mrf.mxu0
        %v3524 = vadd.f32 %v3435, %v3523
        %3525 = vmatmul.bf16.gmra.mxu0 %v3365
        %v3526 = vpop.f32.mrf.mxu0
        %v3527 = vadd.f32 %v3438, %v3526
        %v3528 = vpop.f32.mrf.mxu0
        %v3529 = vadd.f32 %v3440, %v3528
        %3530 = vmatmul.bf16.gmra.mxu0 %v3368
        %v3531 = vpop.f32.mrf.mxu0
        %v3532 = vadd.f32 %v3443, %v3531
        %v3533 = vpop.f32.mrf.mxu0
        %v3534 = vadd.f32 %v3445, %v3533
        %3535 = vmatmul.bf16.gmra.mxu0 %v3371
        %v3536 = vpop.f32.mrf.mxu0
        %v3537 = vadd.f32 %v3448, %v3536
        %v3538 = vpop.f32.mrf.mxu0
        %v3539 = vadd.f32 %v3450, %v3538
        %3540 = vmatmul.bf16.gmra.mxu0 %v3374
        %v3541 = vpop.f32.mrf.mxu0
        %v3542 = vadd.f32 %v3453, %v3541
        %v3543 = vpop.f32.mrf.mxu0
        %v3544 = vadd.f32 %v3455, %v3543
        %3545 = vmatmul.bf16.gmra.mxu0 %v3377
        %v3546 = vpop.f32.mrf.mxu0
        %v3547 = vadd.f32 %v3458, %v3546
        %v3548 = vpop.f32.mrf.mxu0
        %v3549 = vadd.f32 %v3460, %v3548
        %3550 = vmatmul.bf16.gmra.mxu0 %v3380
        %v3551 = vpop.f32.mrf.mxu0
        %v3552 = vadd.f32 %v3463, %v3551
        %v3553 = vpop.f32.mrf.mxu0
        %v3554 = vadd.f32 %v3465, %v3553
        %3555 = vmatmul.bf16.gmra.mxu0 %v3383
        %v3556 = vpop.f32.mrf.mxu0
        %v3557 = vadd.f32 %v3468, %v3556
        %v3558 = vpop.f32.mrf.mxu0
        %v3559 = vadd.f32 %v3470, %v3558
        %3560 = vmatmul.bf16.gmra.mxu0 %v3386
        %v3561 = vpop.f32.mrf.mxu0
        %v3562 = vadd.f32 %v3473, %v3561
        %v3563 = vpop.f32.mrf.mxu0
        %v3564 = vadd.f32 %v3475, %v3563
        %3565 = vdwg.mxu0
        %v3566 = vadd.f32 %v2987, %v3487
        %v3567 = vadd.f32 %v2989, %v3489
        %v3568 = vadd.f32 %v2992, %v3492
        %v3569 = vadd.f32 %v2994, %v3494
        %v3570 = vadd.f32 %v2997, %v3497
        %v3571 = vadd.f32 %v2999, %v3499
        %v3572 = vadd.f32 %v3002, %v3502
        %v3573 = vadd.f32 %v3004, %v3504
        %v3574 = vadd.f32 %v3007, %v3507
        %v3575 = vadd.f32 %v3009, %v3509
        %v3576 = vadd.f32 %v3012, %v3512
        %v3577 = vadd.f32 %v3014, %v3514
        %v3578 = vadd.f32 %v3017, %v3517
        %v3579 = vadd.f32 %v3019, %v3519
        %v3580 = vadd.f32 %v3022, %v3522
        %v3581 = vadd.f32 %v3024, %v3524
        %v3582 = vadd.f32 %v3027, %v3527
        %v3583 = vadd.f32 %v3029, %v3529
        %v3584 = vadd.f32 %v3032, %v3532
        %v3585 = vadd.f32 %v3034, %v3534
        %v3586 = vadd.f32 %v3037, %v3537
        %v3587 = vadd.f32 %v3039, %v3539
        %v3588 = vadd.f32 %v3042, %v3542
        %v3589 = vadd.f32 %v3044, %v3544
        %v3590 = vadd.f32 %v3047, %v3547
        %v3591 = vadd.f32 %v3049, %v3549
        %v3592 = vadd.f32 %v3052, %v3552
        %v3593 = vadd.f32 %v3054, %v3554
        %v3594 = vadd.f32 %v3057, %v3557
        %v3595 = vadd.f32 %v3059, %v3559
        %v3596 = vadd.f32 %v3062, %v3562
        %v3597 = vadd.f32 %v3064, %v3564
        %s3598 = scalar_lea.vmem [#allocation3], 32
        %v3599 = vld [vmem:[%s3598] sm:$0xff]
        %v3600 = vld [vmem:[%s3598 + $0x8] sm:$0xff]
        %v3601 = vld [vmem:[%s3598 + $0x10] sm:$0xff]
        %v3602 = vld [vmem:[%s3598 + $0x18] sm:$0xff]
        %v3603 = vld [vmem:[%s3598 + $0x20] sm:$0xff]
        %v3604 = vld [vmem:[%s3598 + $0x28] sm:$0xff]
        %v3605 = vld [vmem:[%s3598 + $0x30] sm:$0xff]
        %v3606 = vld [vmem:[%s3598 + $0x38] sm:$0xff]
        %v3607 = vld [vmem:[%s3598 + $0x40] sm:$0xff]
        %v3608 = vld [vmem:[%s3598 + $0x48] sm:$0xff]
        %v3609 = vld [vmem:[%s3598 + $0x50] sm:$0xff]
        %v3610 = vld [vmem:[%s3598 + $0x58] sm:$0xff]
        %v3611 = vld [vmem:[%s3598 + $0x60] sm:$0xff]
        %v3612 = vld [vmem:[%s3598 + $0x68] sm:$0xff]
        %v3613 = vld [vmem:[%s3598 + $0x70] sm:$0xff]
        %v3614 = vld [vmem:[%s3598 + $0x78] sm:$0xff]
        %v3615 = vld [vmem:[%s3598 + $0x80] sm:$0xff]
        %v3616 = vld [vmem:[%s3598 + $0x88] sm:$0xff]
        %v3617 = vld [vmem:[%s3598 + $0x90] sm:$0xff]
        %v3618 = vld [vmem:[%s3598 + $0x98] sm:$0xff]
        %v3619 = vld [vmem:[%s3598 + $0xa0] sm:$0xff]
        %v3620 = vld [vmem:[%s3598 + $0xa8] sm:$0xff]
        %v3621 = vld [vmem:[%s3598 + $0xb0] sm:$0xff]
        %v3622 = vld [vmem:[%s3598 + $0xb8] sm:$0xff]
        %v3623 = vld [vmem:[%s3598 + $0xc0] sm:$0xff]
        %v3624 = vld [vmem:[%s3598 + $0xc8] sm:$0xff]
        %v3625 = vld [vmem:[%s3598 + $0xd0] sm:$0xff]
        %v3626 = vld [vmem:[%s3598 + $0xd8] sm:$0xff]
        %v3627 = vld [vmem:[%s3598 + $0xe0] sm:$0xff]
        %v3628 = vld [vmem:[%s3598 + $0xe8] sm:$0xff]
        %v3629 = vld [vmem:[%s3598 + $0xf0] sm:$0xff]
        %v3630 = vld [vmem:[%s3598 + $0xf8] sm:$0xff]
        %s3631 = scalar_lea.vmem %s3, 192
        %v3632 = vld [vmem:[%s3631] sm:$0xf]
        %v3633 = vld [vmem:[%s3631 + $0x4] sm:$0xf]
        %v3634 = vld [vmem:[%s3631 + $0x8] sm:$0xf]
        %v3635 = vld [vmem:[%s3631 + $0xc] sm:$0xf]
        %v3636 = vld [vmem:[%s3631 + $0x10] sm:$0xf]
        %v3637 = vld [vmem:[%s3631 + $0x14] sm:$0xf]
        %v3638 = vld [vmem:[%s3631 + $0x18] sm:$0xf]
        %v3639 = vld [vmem:[%s3631 + $0x1c] sm:$0xf]
        %v3640 = vld [vmem:[%s3631 + $0x20] sm:$0xf]
        %v3641 = vld [vmem:[%s3631 + $0x24] sm:$0xf]
        %v3642 = vld [vmem:[%s3631 + $0x28] sm:$0xf]
        %v3643 = vld [vmem:[%s3631 + $0x2c] sm:$0xf]
        %v3644 = vld [vmem:[%s3631 + $0x30] sm:$0xf]
        %v3645 = vld [vmem:[%s3631 + $0x34] sm:$0xf]
        %v3646 = vld [vmem:[%s3631 + $0x38] sm:$0xf]
        %v3647 = vld [vmem:[%s3631 + $0x3c] sm:$0xf]
        %v3648 = vld [vmem:[%s3631 + $0x40] sm:$0xf]
        %v3649 = vld [vmem:[%s3631 + $0x44] sm:$0xf]
        %v3650 = vld [vmem:[%s3631 + $0x48] sm:$0xf]
        %v3651 = vld [vmem:[%s3631 + $0x4c] sm:$0xf]
        %v3652 = vld [vmem:[%s3631 + $0x50] sm:$0xf]
        %v3653 = vld [vmem:[%s3631 + $0x54] sm:$0xf]
        %v3654 = vld [vmem:[%s3631 + $0x58] sm:$0xf]
        %v3655 = vld [vmem:[%s3631 + $0x5c] sm:$0xf]
        %v3688 = vunpack.c.l.b16 %v3599
        %v3689 = vunpack.c.h.b16 %v3599
        %v3690 = vunpack.c.l.b16 %v3600
        %v3691 = vunpack.c.h.b16 %v3600
        %v3692 = vunpack.c.l.b16 %v3601
        %v3693 = vunpack.c.h.b16 %v3601
        %v3694 = vunpack.c.l.b16 %v3602
        %v3695 = vunpack.c.h.b16 %v3602
        %v3696 = vunpack.c.l.b16 %v3603
        %v3697 = vunpack.c.h.b16 %v3603
        %v3698 = vunpack.c.l.b16 %v3604
        %v3699 = vunpack.c.h.b16 %v3604
        %v3700 = vunpack.c.l.b16 %v3605
        %v3701 = vunpack.c.h.b16 %v3605
        %v3702 = vunpack.c.l.b16 %v3606
        %v3703 = vunpack.c.h.b16 %v3606
        %v3704 = vunpack.c.l.b16 %v3607
        %v3705 = vunpack.c.h.b16 %v3607
        %v3706 = vunpack.c.l.b16 %v3608
        %v3707 = vunpack.c.h.b16 %v3608
        %v3708 = vunpack.c.l.b16 %v3609
        %v3709 = vunpack.c.h.b16 %v3609
        %v3710 = vunpack.c.l.b16 %v3610
        %v3711 = vunpack.c.h.b16 %v3610
        %v3712 = vunpack.c.l.b16 %v3611
        %v3713 = vunpack.c.h.b16 %v3611
        %v3714 = vunpack.c.l.b16 %v3612
        %v3715 = vunpack.c.h.b16 %v3612
        %v3716 = vunpack.c.l.b16 %v3613
        %v3717 = vunpack.c.h.b16 %v3613
        %v3718 = vunpack.c.l.b16 %v3614
        %v3719 = vunpack.c.h.b16 %v3614
        %v3720 = vunpack.c.l.b16 %v3615
        %v3721 = vunpack.c.h.b16 %v3615
        %v3722 = vunpack.c.l.b16 %v3616
        %v3723 = vunpack.c.h.b16 %v3616
        %v3724 = vunpack.c.l.b16 %v3617
        %v3725 = vunpack.c.h.b16 %v3617
        %v3726 = vunpack.c.l.b16 %v3618
        %v3727 = vunpack.c.h.b16 %v3618
        %v3728 = vunpack.c.l.b16 %v3619
        %v3729 = vunpack.c.h.b16 %v3619
        %v3730 = vunpack.c.l.b16 %v3620
        %v3731 = vunpack.c.h.b16 %v3620
        %v3732 = vunpack.c.l.b16 %v3621
        %v3733 = vunpack.c.h.b16 %v3621
        %v3734 = vunpack.c.l.b16 %v3622
        %v3735 = vunpack.c.h.b16 %v3622
        %v3736 = vunpack.c.l.b16 %v3623
        %v3737 = vunpack.c.h.b16 %v3623
        %v3738 = vunpack.c.l.b16 %v3624
        %v3739 = vunpack.c.h.b16 %v3624
        %v3740 = vunpack.c.l.b16 %v3625
        %v3741 = vunpack.c.h.b16 %v3625
        %v3742 = vunpack.c.l.b16 %v3626
        %v3743 = vunpack.c.h.b16 %v3626
        %v3744 = vunpack.c.l.b16 %v3627
        %v3745 = vunpack.c.h.b16 %v3627
        %v3746 = vunpack.c.l.b16 %v3628
        %v3747 = vunpack.c.h.b16 %v3628
        %v3748 = vunpack.c.l.b16 %v3629
        %v3749 = vunpack.c.h.b16 %v3629
        %v3750 = vunpack.c.l.b16 %v3630
        %v3751 = vunpack.c.h.b16 %v3630
        %v3752 = vpack.c.b16 %v3690, %v3688
        %v3753 = vpack.c.b16 %v3691, %v3689
        %v3754 = vpack.c.b16 %v3694, %v3692
        %v3755 = vpack.c.b16 %v3695, %v3693
        %v3756 = vpack.c.b16 %v3698, %v3696
        %v3757 = vpack.c.b16 %v3699, %v3697
        %v3758 = vpack.c.b16 %v3702, %v3700
        %v3759 = vpack.c.b16 %v3703, %v3701
        %v3760 = vpack.c.b16 %v3706, %v3704
        %v3761 = vpack.c.b16 %v3707, %v3705
        %v3762 = vpack.c.b16 %v3710, %v3708
        %v3763 = vpack.c.b16 %v3711, %v3709
        %v3764 = vpack.c.b16 %v3714, %v3712
        %v3765 = vpack.c.b16 %v3715, %v3713
        %v3766 = vpack.c.b16 %v3718, %v3716
        %v3767 = vpack.c.b16 %v3719, %v3717
        %v3768 = vpack.c.b16 %v3722, %v3720
        %v3769 = vpack.c.b16 %v3723, %v3721
        %v3770 = vpack.c.b16 %v3726, %v3724
        %v3771 = vpack.c.b16 %v3727, %v3725
        %v3772 = vpack.c.b16 %v3730, %v3728
        %v3773 = vpack.c.b16 %v3731, %v3729
        %v3774 = vpack.c.b16 %v3734, %v3732
        %v3775 = vpack.c.b16 %v3735, %v3733
        %v3776 = vpack.c.b16 %v3738, %v3736
        %v3777 = vpack.c.b16 %v3739, %v3737
        %v3778 = vpack.c.b16 %v3742, %v3740
        %v3779 = vpack.c.b16 %v3743, %v3741
        %v3780 = vpack.c.b16 %v3746, %v3744
        %v3781 = vpack.c.b16 %v3747, %v3745
        %v3782 = vpack.c.b16 %v3750, %v3748
        %v3783 = vpack.c.b16 %v3751, %v3749
        %v3824 = vunpack.c.l.b16 %v3632
        %v3825 = vunpack.c.l.b16 %v3633
        %v3826 = vunpack.c.l.b16 %v3634
        %v3827 = vunpack.c.l.b16 %v3635
        %v3828 = vunpack.c.l.b16 %v3636
        %v3829 = vunpack.c.l.b16 %v3637
        %v3830 = vunpack.c.l.b16 %v3638
        %v3831 = vunpack.c.l.b16 %v3639
        %v3832 = vunpack.c.l.b16 %v3640
        %v3833 = vunpack.c.l.b16 %v3641
        %v3834 = vunpack.c.l.b16 %v3642
        %v3835 = vunpack.c.l.b16 %v3643
        %v3836 = vunpack.c.l.b16 %v3644
        %v3837 = vunpack.c.l.b16 %v3645
        %v3838 = vunpack.c.l.b16 %v3646
        %v3839 = vunpack.c.l.b16 %v3647
        %v3840 = vunpack.c.l.b16 %v3648
        %v3841 = vunpack.c.l.b16 %v3649
        %v3842 = vunpack.c.l.b16 %v3650
        %v3843 = vunpack.c.l.b16 %v3651
        %v3844 = vunpack.c.l.b16 %v3652
        %v3845 = vunpack.c.l.b16 %v3653
        %v3846 = vunpack.c.l.b16 %v3654
        %v3847 = vunpack.c.l.b16 %v3655
        %v3848 = vpack.c.b16 %v3825, %v3824
        %v3849 = vpack.c.b16 %v3827, %v3826
        %v3850 = vpack.c.b16 %v3829, %v3828
        %v3851 = vpack.c.b16 %v3831, %v3830
        %v3852 = vpack.c.b16 %v3833, %v3832
        %v3853 = vpack.c.b16 %v3835, %v3834
        %v3854 = vpack.c.b16 %v3837, %v3836
        %v3855 = vpack.c.b16 %v3839, %v3838
        %v3856 = vpack.c.b16 %v3841, %v3840
        %v3857 = vpack.c.b16 %v3843, %v3842
        %v3858 = vpack.c.b16 %v3845, %v3844
        %v3859 = vpack.c.b16 %v3847, %v3846
        %v3873 = vsel %vm2839, %v3753, 0
        %v3876 = vsel %vm2839, %v3755, 0
        %v3879 = vsel %vm2839, %v3757, 0
        %v3882 = vsel %vm2839, %v3759, 0
        %v3885 = vsel %vm2839, %v3761, 0
        %v3888 = vsel %vm2839, %v3763, 0
        %v3891 = vsel %vm2839, %v3765, 0
        %v3894 = vsel %vm2839, %v3767, 0
        %v3897 = vsel %vm2839, %v3769, 0
        %v3900 = vsel %vm2839, %v3771, 0
        %v3903 = vsel %vm2839, %v3773, 0
        %v3906 = vsel %vm2839, %v3775, 0
        %v3909 = vsel %vm2839, %v3777, 0
        %v3912 = vsel %vm2839, %v3779, 0
        %v3915 = vsel %vm2839, %v3781, 0
        %v3918 = vsel %vm2839, %v3783, 0
        %3920 = vmatpush.bf16.msra.mxu0 %v3855
        %3921 = vmatpush.bf16.msra.mxu0 %v3854
        %3922 = vmatpush.bf16.msra.mxu0 %v3853
        %3923 = vmatpush.bf16.msra.mxu0 %v3852
        %3924 = vmatpush.bf16.msra.mxu0 %v3851
        %3925 = vmatpush.bf16.msra.mxu0 %v3850
        %3926 = vmatpush.bf16.msra.mxu0 %v3849
        %3927 = vmatpush.bf16.msra.mxu0 %v3848
        %3928 = vmatmul.bf16.gmra.mxu0 %v3752
        %v3929 = vpop.f32.mrf.mxu0
        %v3930 = vadd.f32 0.0, %v3929
        %v3931 = vpop.f32.mrf.mxu0
        %v3932 = vadd.f32 0.0, %v3931
        %3933 = vmatmul.bf16.gmra.mxu0 %v3754
        %v3934 = vpop.f32.mrf.mxu0
        %v3935 = vadd.f32 0.0, %v3934
        %v3936 = vpop.f32.mrf.mxu0
        %v3937 = vadd.f32 0.0, %v3936
        %3938 = vmatmul.bf16.gmra.mxu0 %v3756
        %v3939 = vpop.f32.mrf.mxu0
        %v3940 = vadd.f32 0.0, %v3939
        %v3941 = vpop.f32.mrf.mxu0
        %v3942 = vadd.f32 0.0, %v3941
        %3943 = vmatmul.bf16.gmra.mxu0 %v3758
        %v3944 = vpop.f32.mrf.mxu0
        %v3945 = vadd.f32 0.0, %v3944
        %v3946 = vpop.f32.mrf.mxu0
        %v3947 = vadd.f32 0.0, %v3946
        %3948 = vmatmul.bf16.gmra.mxu0 %v3760
        %v3949 = vpop.f32.mrf.mxu0
        %v3950 = vadd.f32 0.0, %v3949
        %v3951 = vpop.f32.mrf.mxu0
        %v3952 = vadd.f32 0.0, %v3951
        %3953 = vmatmul.bf16.gmra.mxu0 %v3762
        %v3954 = vpop.f32.mrf.mxu0
        %v3955 = vadd.f32 0.0, %v3954
        %v3956 = vpop.f32.mrf.mxu0
        %v3957 = vadd.f32 0.0, %v3956
        %3958 = vmatmul.bf16.gmra.mxu0 %v3764
        %v3959 = vpop.f32.mrf.mxu0
        %v3960 = vadd.f32 0.0, %v3959
        %v3961 = vpop.f32.mrf.mxu0
        %v3962 = vadd.f32 0.0, %v3961
        %3963 = vmatmul.bf16.gmra.mxu0 %v3766
        %v3964 = vpop.f32.mrf.mxu0
        %v3965 = vadd.f32 0.0, %v3964
        %v3966 = vpop.f32.mrf.mxu0
        %v3967 = vadd.f32 0.0, %v3966
        %3968 = vmatmul.bf16.gmra.mxu0 %v3768
        %v3969 = vpop.f32.mrf.mxu0
        %v3970 = vadd.f32 0.0, %v3969
        %v3971 = vpop.f32.mrf.mxu0
        %v3972 = vadd.f32 0.0, %v3971
        %3973 = vmatmul.bf16.gmra.mxu0 %v3770
        %v3974 = vpop.f32.mrf.mxu0
        %v3975 = vadd.f32 0.0, %v3974
        %v3976 = vpop.f32.mrf.mxu0
        %v3977 = vadd.f32 0.0, %v3976
        %3978 = vmatmul.bf16.gmra.mxu0 %v3772
        %v3979 = vpop.f32.mrf.mxu0
        %v3980 = vadd.f32 0.0, %v3979
        %v3981 = vpop.f32.mrf.mxu0
        %v3982 = vadd.f32 0.0, %v3981
        %3983 = vmatmul.bf16.gmra.mxu0 %v3774
        %v3984 = vpop.f32.mrf.mxu0
        %v3985 = vadd.f32 0.0, %v3984
        %v3986 = vpop.f32.mrf.mxu0
        %v3987 = vadd.f32 0.0, %v3986
        %3988 = vmatmul.bf16.gmra.mxu0 %v3776
        %v3989 = vpop.f32.mrf.mxu0
        %v3990 = vadd.f32 0.0, %v3989
        %v3991 = vpop.f32.mrf.mxu0
        %v3992 = vadd.f32 0.0, %v3991
        %3993 = vmatmul.bf16.gmra.mxu0 %v3778
        %v3994 = vpop.f32.mrf.mxu0
        %v3995 = vadd.f32 0.0, %v3994
        %v3996 = vpop.f32.mrf.mxu0
        %v3997 = vadd.f32 0.0, %v3996
        %3998 = vmatmul.bf16.gmra.mxu0 %v3780
        %v3999 = vpop.f32.mrf.mxu0
        %v4000 = vadd.f32 0.0, %v3999
        %v4001 = vpop.f32.mrf.mxu0
        %v4002 = vadd.f32 0.0, %v4001
        %4003 = vmatmul.bf16.gmra.mxu0 %v3782
        %v4004 = vpop.f32.mrf.mxu0
        %v4005 = vadd.f32 0.0, %v4004
        %v4006 = vpop.f32.mrf.mxu0
        %v4007 = vadd.f32 0.0, %v4006
        %4008 = vdwg.mxu0
        %4009 = vmatpush.bf16.msra.mxu0 0
        %4010 = vmatpush.bf16.msra.mxu0 0
        %4011 = vmatpush.bf16.msra.mxu0 0
        %4012 = vmatpush.bf16.msra.mxu0 0
        %4013 = vmatpush.bf16.msra.mxu0 %v3859
        %4014 = vmatpush.bf16.msra.mxu0 %v3858
        %4015 = vmatpush.bf16.msra.mxu0 %v3857
        %4016 = vmatpush.bf16.msra.mxu0 %v3856
        %4017 = vmatmul.bf16.gmra.mxu0 %v3873
        %v4018 = vpop.f32.mrf.mxu0
        %v4019 = vadd.f32 %v3930, %v4018
        %v4020 = vpop.f32.mrf.mxu0
        %v4021 = vadd.f32 %v3932, %v4020
        %4022 = vmatmul.bf16.gmra.mxu0 %v3876
        %v4023 = vpop.f32.mrf.mxu0
        %v4024 = vadd.f32 %v3935, %v4023
        %v4025 = vpop.f32.mrf.mxu0
        %v4026 = vadd.f32 %v3937, %v4025
        %4027 = vmatmul.bf16.gmra.mxu0 %v3879
        %v4028 = vpop.f32.mrf.mxu0
        %v4029 = vadd.f32 %v3940, %v4028
        %v4030 = vpop.f32.mrf.mxu0
        %v4031 = vadd.f32 %v3942, %v4030
        %4032 = vmatmul.bf16.gmra.mxu0 %v3882
        %v4033 = vpop.f32.mrf.mxu0
        %v4034 = vadd.f32 %v3945, %v4033
        %v4035 = vpop.f32.mrf.mxu0
        %v4036 = vadd.f32 %v3947, %v4035
        %4037 = vmatmul.bf16.gmra.mxu0 %v3885
        %v4038 = vpop.f32.mrf.mxu0
        %v4039 = vadd.f32 %v3950, %v4038
        %v4040 = vpop.f32.mrf.mxu0
        %v4041 = vadd.f32 %v3952, %v4040
        %4042 = vmatmul.bf16.gmra.mxu0 %v3888
        %v4043 = vpop.f32.mrf.mxu0
        %v4044 = vadd.f32 %v3955, %v4043
        %v4045 = vpop.f32.mrf.mxu0
        %v4046 = vadd.f32 %v3957, %v4045
        %4047 = vmatmul.bf16.gmra.mxu0 %v3891
        %v4048 = vpop.f32.mrf.mxu0
        %v4049 = vadd.f32 %v3960, %v4048
        %v4050 = vpop.f32.mrf.mxu0
        %v4051 = vadd.f32 %v3962, %v4050
        %4052 = vmatmul.bf16.gmra.mxu0 %v3894
        %v4053 = vpop.f32.mrf.mxu0
        %v4054 = vadd.f32 %v3965, %v4053
        %v4055 = vpop.f32.mrf.mxu0
        %v4056 = vadd.f32 %v3967, %v4055
        %4057 = vmatmul.bf16.gmra.mxu0 %v3897
        %v4058 = vpop.f32.mrf.mxu0
        %v4059 = vadd.f32 %v3970, %v4058
        %v4060 = vpop.f32.mrf.mxu0
        %v4061 = vadd.f32 %v3972, %v4060
        %4062 = vmatmul.bf16.gmra.mxu0 %v3900
        %v4063 = vpop.f32.mrf.mxu0
        %v4064 = vadd.f32 %v3975, %v4063
        %v4065 = vpop.f32.mrf.mxu0
        %v4066 = vadd.f32 %v3977, %v4065
        %4067 = vmatmul.bf16.gmra.mxu0 %v3903
        %v4068 = vpop.f32.mrf.mxu0
        %v4069 = vadd.f32 %v3980, %v4068
        %v4070 = vpop.f32.mrf.mxu0
        %v4071 = vadd.f32 %v3982, %v4070
        %4072 = vmatmul.bf16.gmra.mxu0 %v3906
        %v4073 = vpop.f32.mrf.mxu0
        %v4074 = vadd.f32 %v3985, %v4073
        %v4075 = vpop.f32.mrf.mxu0
        %v4076 = vadd.f32 %v3987, %v4075
        %4077 = vmatmul.bf16.gmra.mxu0 %v3909
        %v4078 = vpop.f32.mrf.mxu0
        %v4079 = vadd.f32 %v3990, %v4078
        %v4080 = vpop.f32.mrf.mxu0
        %v4081 = vadd.f32 %v3992, %v4080
        %4082 = vmatmul.bf16.gmra.mxu0 %v3912
        %v4083 = vpop.f32.mrf.mxu0
        %v4084 = vadd.f32 %v3995, %v4083
        %v4085 = vpop.f32.mrf.mxu0
        %v4086 = vadd.f32 %v3997, %v4085
        %4087 = vmatmul.bf16.gmra.mxu0 %v3915
        %v4088 = vpop.f32.mrf.mxu0
        %v4089 = vadd.f32 %v4000, %v4088
        %v4090 = vpop.f32.mrf.mxu0
        %v4091 = vadd.f32 %v4002, %v4090
        %4092 = vmatmul.bf16.gmra.mxu0 %v3918
        %v4093 = vpop.f32.mrf.mxu0
        %v4094 = vadd.f32 %v4005, %v4093
        %v4095 = vpop.f32.mrf.mxu0
        %v4096 = vadd.f32 %v4007, %v4095
        %4097 = vdwg.mxu0
        %v4098 = vadd.f32 %v3566, %v4019
        %v4099 = vadd.f32 %v3567, %v4021
        %v4100 = vadd.f32 %v3568, %v4024
        %v4101 = vadd.f32 %v3569, %v4026
        %v4102 = vadd.f32 %v3570, %v4029
        %v4103 = vadd.f32 %v3571, %v4031
        %v4104 = vadd.f32 %v3572, %v4034
        %v4105 = vadd.f32 %v3573, %v4036
        %v4106 = vadd.f32 %v3574, %v4039
        %v4107 = vadd.f32 %v3575, %v4041
        %v4108 = vadd.f32 %v3576, %v4044
        %v4109 = vadd.f32 %v3577, %v4046
        %v4110 = vadd.f32 %v3578, %v4049
        %v4111 = vadd.f32 %v3579, %v4051
        %v4112 = vadd.f32 %v3580, %v4054
        %v4113 = vadd.f32 %v3581, %v4056
        %v4114 = vadd.f32 %v3582, %v4059
        %v4115 = vadd.f32 %v3583, %v4061
        %v4116 = vadd.f32 %v3584, %v4064
        %v4117 = vadd.f32 %v3585, %v4066
        %v4118 = vadd.f32 %v3586, %v4069
        %v4119 = vadd.f32 %v3587, %v4071
        %v4120 = vadd.f32 %v3588, %v4074
        %v4121 = vadd.f32 %v3589, %v4076
        %v4122 = vadd.f32 %v3590, %v4079
        %v4123 = vadd.f32 %v3591, %v4081
        %v4124 = vadd.f32 %v3592, %v4084
        %v4125 = vadd.f32 %v3593, %v4086
        %v4126 = vadd.f32 %v3594, %v4089
        %v4127 = vadd.f32 %v3595, %v4091
        %v4128 = vadd.f32 %v3596, %v4094
        %v4129 = vadd.f32 %v3597, %v4096
        %s4130 = sld [smem:[#allocation4 + $0x1]]
        %vm4131 = vcmp.ge.f32.partialorder %v4098, 0.0
        %vm4132 = vcmp.ge.f32.partialorder %v4099, 0.0
        %vm4133 = vcmp.ge.f32.partialorder %v4100, 0.0
        %vm4134 = vcmp.ge.f32.partialorder %v4101, 0.0
        %vm4135 = vcmp.ge.f32.partialorder %v4102, 0.0
        %vm4136 = vcmp.ge.f32.partialorder %v4103, 0.0
        %vm4137 = vcmp.ge.f32.partialorder %v4104, 0.0
        %vm4138 = vcmp.ge.f32.partialorder %v4105, 0.0
        %vm4139 = vcmp.ge.f32.partialorder %v4106, 0.0
        %vm4140 = vcmp.ge.f32.partialorder %v4107, 0.0
        %vm4141 = vcmp.ge.f32.partialorder %v4108, 0.0
        %vm4142 = vcmp.ge.f32.partialorder %v4109, 0.0
        %vm4143 = vcmp.ge.f32.partialorder %v4110, 0.0
        %vm4144 = vcmp.ge.f32.partialorder %v4111, 0.0
        %vm4145 = vcmp.ge.f32.partialorder %v4112, 0.0
        %vm4146 = vcmp.ge.f32.partialorder %v4113, 0.0
        %vm4147 = vcmp.ge.f32.partialorder %v4114, 0.0
        %vm4148 = vcmp.ge.f32.partialorder %v4115, 0.0
        %vm4149 = vcmp.ge.f32.partialorder %v4116, 0.0
        %vm4150 = vcmp.ge.f32.partialorder %v4117, 0.0
        %vm4151 = vcmp.ge.f32.partialorder %v4118, 0.0
        %vm4152 = vcmp.ge.f32.partialorder %v4119, 0.0
        %vm4153 = vcmp.ge.f32.partialorder %v4120, 0.0
        %vm4154 = vcmp.ge.f32.partialorder %v4121, 0.0
        %vm4155 = vcmp.ge.f32.partialorder %v4122, 0.0
        %vm4156 = vcmp.ge.f32.partialorder %v4123, 0.0
        %vm4157 = vcmp.ge.f32.partialorder %v4124, 0.0
        %vm4158 = vcmp.ge.f32.partialorder %v4125, 0.0
        %vm4159 = vcmp.ge.f32.partialorder %v4126, 0.0
        %vm4160 = vcmp.ge.f32.partialorder %v4127, 0.0
        %vm4161 = vcmp.ge.f32.partialorder %v4128, 0.0
        %vm4162 = vcmp.ge.f32.partialorder %v4129, 0.0
        %v4163 = vstv %s4130
        %v4164 = vmul.f32 %v4163, %v4098
        %v4165 = vmul.f32 %v4163, %v4099
        %v4166 = vmul.f32 %v4163, %v4100
        %v4167 = vmul.f32 %v4163, %v4101
        %v4168 = vmul.f32 %v4163, %v4102
        %v4169 = vmul.f32 %v4163, %v4103
        %v4170 = vmul.f32 %v4163, %v4104
        %v4171 = vmul.f32 %v4163, %v4105
        %v4172 = vmul.f32 %v4163, %v4106
        %v4173 = vmul.f32 %v4163, %v4107
        %v4174 = vmul.f32 %v4163, %v4108
        %v4175 = vmul.f32 %v4163, %v4109
        %v4176 = vmul.f32 %v4163, %v4110
        %v4177 = vmul.f32 %v4163, %v4111
        %v4178 = vmul.f32 %v4163, %v4112
        %v4179 = vmul.f32 %v4163, %v4113
        %v4180 = vmul.f32 %v4163, %v4114
        %v4181 = vmul.f32 %v4163, %v4115
        %v4182 = vmul.f32 %v4163, %v4116
        %v4183 = vmul.f32 %v4163, %v4117
        %v4184 = vmul.f32 %v4163, %v4118
        %v4185 = vmul.f32 %v4163, %v4119
        %v4186 = vmul.f32 %v4163, %v4120
        %v4187 = vmul.f32 %v4163, %v4121
        %v4188 = vmul.f32 %v4163, %v4122
        %v4189 = vmul.f32 %v4163, %v4123
        %v4190 = vmul.f32 %v4163, %v4124
        %v4191 = vmul.f32 %v4163, %v4125
        %v4192 = vmul.f32 %v4163, %v4126
        %v4193 = vmul.f32 %v4163, %v4127
        %v4194 = vmul.f32 %v4163, %v4128
        %v4195 = vmul.f32 %v4163, %v4129
        %v4196 = vsel %vm4131, %v4098, %v4164
        %v4197 = vsel %vm4132, %v4099, %v4165
        %v4198 = vsel %vm4133, %v4100, %v4166
        %v4199 = vsel %vm4134, %v4101, %v4167
        %v4200 = vsel %vm4135, %v4102, %v4168
        %v4201 = vsel %vm4136, %v4103, %v4169
        %v4202 = vsel %vm4137, %v4104, %v4170
        %v4203 = vsel %vm4138, %v4105, %v4171
        %v4204 = vsel %vm4139, %v4106, %v4172
        %v4205 = vsel %vm4140, %v4107, %v4173
        %v4206 = vsel %vm4141, %v4108, %v4174
        %v4207 = vsel %vm4142, %v4109, %v4175
        %v4208 = vsel %vm4143, %v4110, %v4176
        %v4209 = vsel %vm4144, %v4111, %v4177
        %v4210 = vsel %vm4145, %v4112, %v4178
        %v4211 = vsel %vm4146, %v4113, %v4179
        %v4212 = vsel %vm4147, %v4114, %v4180
        %v4213 = vsel %vm4148, %v4115, %v4181
        %v4214 = vsel %vm4149, %v4116, %v4182
        %v4215 = vsel %vm4150, %v4117, %v4183
        %v4216 = vsel %vm4151, %v4118, %v4184
        %v4217 = vsel %vm4152, %v4119, %v4185
        %v4218 = vsel %vm4153, %v4120, %v4186
        %v4219 = vsel %vm4154, %v4121, %v4187
        %v4220 = vsel %vm4155, %v4122, %v4188
        %v4221 = vsel %vm4156, %v4123, %v4189
        %v4222 = vsel %vm4157, %v4124, %v4190
        %v4223 = vsel %vm4158, %v4125, %v4191
        %v4224 = vsel %vm4159, %v4126, %v4192
        %v4225 = vsel %vm4160, %v4127, %v4193
        %v4226 = vsel %vm4161, %v4128, %v4194
        %v4227 = vsel %vm4162, %v4129, %v4195
        %v4228 = vpack.c.bf16 %v4196, %v4196
        %v4229 = vpack.c.bf16 %v4197, %v4197
        %v4230 = vpack.c.bf16 %v4198, %v4198
        %v4231 = vpack.c.bf16 %v4199, %v4199
        %v4232 = vpack.c.bf16 %v4200, %v4200
        %v4233 = vpack.c.bf16 %v4201, %v4201
        %v4234 = vpack.c.bf16 %v4202, %v4202
        %v4235 = vpack.c.bf16 %v4203, %v4203
        %v4236 = vpack.c.bf16 %v4204, %v4204
        %v4237 = vpack.c.bf16 %v4205, %v4205
        %v4238 = vpack.c.bf16 %v4206, %v4206
        %v4239 = vpack.c.bf16 %v4207, %v4207
        %v4240 = vpack.c.bf16 %v4208, %v4208
        %v4241 = vpack.c.bf16 %v4209, %v4209
        %v4242 = vpack.c.bf16 %v4210, %v4210
        %v4243 = vpack.c.bf16 %v4211, %v4211
        %v4244 = vpack.c.bf16 %v4212, %v4212
        %v4245 = vpack.c.bf16 %v4213, %v4213
        %v4246 = vpack.c.bf16 %v4214, %v4214
        %v4247 = vpack.c.bf16 %v4215, %v4215
        %v4248 = vpack.c.bf16 %v4216, %v4216
        %v4249 = vpack.c.bf16 %v4217, %v4217
        %v4250 = vpack.c.bf16 %v4218, %v4218
        %v4251 = vpack.c.bf16 %v4219, %v4219
        %v4252 = vpack.c.bf16 %v4220, %v4220
        %v4253 = vpack.c.bf16 %v4221, %v4221
        %v4254 = vpack.c.bf16 %v4222, %v4222
        %v4255 = vpack.c.bf16 %v4223, %v4223
        %v4256 = vpack.c.bf16 %v4224, %v4224
        %v4257 = vpack.c.bf16 %v4225, %v4225
        %v4258 = vpack.c.bf16 %v4226, %v4226
        %v4259 = vpack.c.bf16 %v4227, %v4227
        %v4261 = vshrl.u32 %v4228, 16
        %v4263 = vrot.slane %v4261, 7
        %v4264 = vshll.u32 %v4228, 16
        %v4266 = vor.u32 %v4263, %v4264
        %v4267 = vrot.slane %v4263, 4
        %v4269 = vshrl.u32 %v4229, 16
        %v4271 = vrot.slane %v4269, 7
        %v4272 = vshll.u32 %v4229, 16
        %v4274 = vor.u32 %v4271, %v4272
        %v4275 = vsel %vm1112, %v4267, %v4274
        %v4276 = vrot.slane %v4271, 4
        %v4278 = vshrl.u32 %v4230, 16
        %v4280 = vrot.slane %v4278, 7
        %v4281 = vshll.u32 %v4230, 16
        %v4283 = vor.u32 %v4280, %v4281
        %v4284 = vrot.slane %v4280, 4
        %v4286 = vshrl.u32 %v4231, 16
        %v4288 = vrot.slane %v4286, 7
        %v4289 = vshll.u32 %v4231, 16
        %v4291 = vor.u32 %v4288, %v4289
        %v4292 = vsel %vm1112, %v4284, %v4291
        %v4293 = vrot.slane %v4288, 4
        %v4295 = vshrl.u32 %v4232, 16
        %v4297 = vrot.slane %v4295, 7
        %v4298 = vshll.u32 %v4232, 16
        %v4300 = vor.u32 %v4297, %v4298
        %v4301 = vrot.slane %v4297, 4
        %v4303 = vshrl.u32 %v4233, 16
        %v4305 = vrot.slane %v4303, 7
        %v4306 = vshll.u32 %v4233, 16
        %v4308 = vor.u32 %v4305, %v4306
        %v4309 = vsel %vm1112, %v4301, %v4308
        %v4310 = vrot.slane %v4305, 4
        %v4312 = vshrl.u32 %v4234, 16
        %v4314 = vrot.slane %v4312, 7
        %v4315 = vshll.u32 %v4234, 16
        %v4317 = vor.u32 %v4314, %v4315
        %v4318 = vrot.slane %v4314, 4
        %v4320 = vshrl.u32 %v4235, 16
        %v4322 = vrot.slane %v4320, 7
        %v4323 = vshll.u32 %v4235, 16
        %v4325 = vor.u32 %v4322, %v4323
        %v4326 = vsel %vm1112, %v4318, %v4325
        %v4327 = vrot.slane %v4322, 4
        %v4329 = vshrl.u32 %v4236, 16
        %v4331 = vrot.slane %v4329, 7
        %v4332 = vshll.u32 %v4236, 16
        %v4334 = vor.u32 %v4331, %v4332
        %v4335 = vrot.slane %v4331, 4
        %v4337 = vshrl.u32 %v4237, 16
        %v4339 = vrot.slane %v4337, 7
        %v4340 = vshll.u32 %v4237, 16
        %v4342 = vor.u32 %v4339, %v4340
        %v4343 = vsel %vm1112, %v4335, %v4342
        %v4344 = vrot.slane %v4339, 4
        %v4346 = vshrl.u32 %v4238, 16
        %v4348 = vrot.slane %v4346, 7
        %v4349 = vshll.u32 %v4238, 16
        %v4351 = vor.u32 %v4348, %v4349
        %v4352 = vrot.slane %v4348, 4
        %v4354 = vshrl.u32 %v4239, 16
        %v4356 = vrot.slane %v4354, 7
        %v4357 = vshll.u32 %v4239, 16
        %v4359 = vor.u32 %v4356, %v4357
        %v4360 = vsel %vm1112, %v4352, %v4359
        %v4361 = vrot.slane %v4356, 4
        %v4363 = vshrl.u32 %v4240, 16
        %v4365 = vrot.slane %v4363, 7
        %v4366 = vshll.u32 %v4240, 16
        %v4368 = vor.u32 %v4365, %v4366
        %v4369 = vrot.slane %v4365, 4
        %v4371 = vshrl.u32 %v4241, 16
        %v4373 = vrot.slane %v4371, 7
        %v4374 = vshll.u32 %v4241, 16
        %v4376 = vor.u32 %v4373, %v4374
        %v4377 = vsel %vm1112, %v4369, %v4376
        %v4378 = vrot.slane %v4373, 4
        %v4380 = vshrl.u32 %v4242, 16
        %v4382 = vrot.slane %v4380, 7
        %v4383 = vshll.u32 %v4242, 16
        %v4385 = vor.u32 %v4382, %v4383
        %v4386 = vrot.slane %v4382, 4
        %v4388 = vshrl.u32 %v4243, 16
        %v4390 = vrot.slane %v4388, 7
        %v4391 = vshll.u32 %v4243, 16
        %v4393 = vor.u32 %v4390, %v4391
        %v4394 = vsel %vm1112, %v4386, %v4393
        %v4395 = vrot.slane %v4390, 4
        %v4397 = vshrl.u32 %v4244, 16
        %v4399 = vrot.slane %v4397, 7
        %v4400 = vshll.u32 %v4244, 16
        %v4402 = vor.u32 %v4399, %v4400
        %v4403 = vrot.slane %v4399, 4
        %v4405 = vshrl.u32 %v4245, 16
        %v4407 = vrot.slane %v4405, 7
        %v4408 = vshll.u32 %v4245, 16
        %v4410 = vor.u32 %v4407, %v4408
        %v4411 = vsel %vm1112, %v4403, %v4410
        %v4412 = vrot.slane %v4407, 4
        %v4414 = vshrl.u32 %v4246, 16
        %v4416 = vrot.slane %v4414, 7
        %v4417 = vshll.u32 %v4246, 16
        %v4419 = vor.u32 %v4416, %v4417
        %v4420 = vrot.slane %v4416, 4
        %v4422 = vshrl.u32 %v4247, 16
        %v4424 = vrot.slane %v4422, 7
        %v4425 = vshll.u32 %v4247, 16
        %v4427 = vor.u32 %v4424, %v4425
        %v4428 = vsel %vm1112, %v4420, %v4427
        %v4429 = vrot.slane %v4424, 4
        %v4431 = vshrl.u32 %v4248, 16
        %v4433 = vrot.slane %v4431, 7
        %v4434 = vshll.u32 %v4248, 16
        %v4436 = vor.u32 %v4433, %v4434
        %v4437 = vrot.slane %v4433, 4
        %v4439 = vshrl.u32 %v4249, 16
        %v4441 = vrot.slane %v4439, 7
        %v4442 = vshll.u32 %v4249, 16
        %v4444 = vor.u32 %v4441, %v4442
        %v4445 = vsel %vm1112, %v4437, %v4444
        %v4446 = vrot.slane %v4441, 4
        %v4448 = vshrl.u32 %v4250, 16
        %v4450 = vrot.slane %v4448, 7
        %v4451 = vshll.u32 %v4250, 16
        %v4453 = vor.u32 %v4450, %v4451
        %v4454 = vrot.slane %v4450, 4
        %v4456 = vshrl.u32 %v4251, 16
        %v4458 = vrot.slane %v4456, 7
        %v4459 = vshll.u32 %v4251, 16
        %v4461 = vor.u32 %v4458, %v4459
        %v4462 = vsel %vm1112, %v4454, %v4461
        %v4463 = vrot.slane %v4458, 4
        %v4465 = vshrl.u32 %v4252, 16
        %v4467 = vrot.slane %v4465, 7
        %v4468 = vshll.u32 %v4252, 16
        %v4470 = vor.u32 %v4467, %v4468
        %v4471 = vrot.slane %v4467, 4
        %v4473 = vshrl.u32 %v4253, 16
        %v4475 = vrot.slane %v4473, 7
        %v4476 = vshll.u32 %v4253, 16
        %v4478 = vor.u32 %v4475, %v4476
        %v4479 = vsel %vm1112, %v4471, %v4478
        %v4480 = vrot.slane %v4475, 4
        %v4482 = vshrl.u32 %v4254, 16
        %v4484 = vrot.slane %v4482, 7
        %v4485 = vshll.u32 %v4254, 16
        %v4487 = vor.u32 %v4484, %v4485
        %v4488 = vrot.slane %v4484, 4
        %v4490 = vshrl.u32 %v4255, 16
        %v4492 = vrot.slane %v4490, 7
        %v4493 = vshll.u32 %v4255, 16
        %v4495 = vor.u32 %v4492, %v4493
        %v4496 = vsel %vm1112, %v4488, %v4495
        %v4497 = vrot.slane %v4492, 4
        %v4499 = vshrl.u32 %v4256, 16
        %v4501 = vrot.slane %v4499, 7
        %v4502 = vshll.u32 %v4256, 16
        %v4504 = vor.u32 %v4501, %v4502
        %v4505 = vrot.slane %v4501, 4
        %v4507 = vshrl.u32 %v4257, 16
        %v4509 = vrot.slane %v4507, 7
        %v4510 = vshll.u32 %v4257, 16
        %v4512 = vor.u32 %v4509, %v4510
        %v4513 = vsel %vm1112, %v4505, %v4512
        %v4514 = vrot.slane %v4509, 4
        %v4516 = vshrl.u32 %v4258, 16
        %v4518 = vrot.slane %v4516, 7
        %v4519 = vshll.u32 %v4258, 16
        %v4521 = vor.u32 %v4518, %v4519
        %v4522 = vrot.slane %v4518, 4
        %v4524 = vshrl.u32 %v4259, 16
        %v4526 = vrot.slane %v4524, 7
        %v4527 = vshll.u32 %v4259, 16
        %v4529 = vor.u32 %v4526, %v4527
        %v4530 = vsel %vm1112, %v4522, %v4529
        %v4531 = vrot.slane %v4526, 4
        %v4580 = vld [vmem:[%s1433] sm:$0xf]
        %v4581 = vsel %vm1435, %v4266, %v4580
        %4582 = vst [vmem:[%s1433] sm:$0xf] %v4581
        %4583 = vst.msk [vmem:[%s1433 + $0x4] sm:$0xf] %vm321, %v4275
        %v4584 = vld [vmem:[%s1433 + $0x8] sm:$0x1]
        %v4585 = vsel %vm332, %v4276, %v4584
        %4586 = vst [vmem:[%s1433 + $0x8] sm:$0x1] %v4585
        %v4587 = vld [vmem:[%s1433 + $0xc] sm:$0xf]
        %v4588 = vsel %vm1435, %v4283, %v4587
        %4589 = vst [vmem:[%s1433 + $0xc] sm:$0xf] %v4588
        %4590 = vst.msk [vmem:[%s1433 + $0x10] sm:$0xf] %vm321, %v4292
        %v4591 = vld [vmem:[%s1433 + $0x14] sm:$0x1]
        %v4592 = vsel %vm332, %v4293, %v4591
        %4593 = vst [vmem:[%s1433 + $0x14] sm:$0x1] %v4592
        %v4594 = vld [vmem:[%s1433 + $0x18] sm:$0xf]
        %v4595 = vsel %vm1435, %v4300, %v4594
        %4596 = vst [vmem:[%s1433 + $0x18] sm:$0xf] %v4595
        %4597 = vst.msk [vmem:[%s1433 + $0x1c] sm:$0xf] %vm321, %v4309
        %v4598 = vld [vmem:[%s1433 + $0x20] sm:$0x1]
        %v4599 = vsel %vm332, %v4310, %v4598
        %4600 = vst [vmem:[%s1433 + $0x20] sm:$0x1] %v4599
        %v4601 = vld [vmem:[%s1433 + $0x24] sm:$0xf]
        %v4602 = vsel %vm1435, %v4317, %v4601
        %4603 = vst [vmem:[%s1433 + $0x24] sm:$0xf] %v4602
        %4604 = vst.msk [vmem:[%s1433 + $0x28] sm:$0xf] %vm321, %v4326
        %v4605 = vld [vmem:[%s1433 + $0x2c] sm:$0x1]
        %v4606 = vsel %vm332, %v4327, %v4605
        %4607 = vst [vmem:[%s1433 + $0x2c] sm:$0x1] %v4606
        %v4608 = vld [vmem:[%s1433 + $0x30] sm:$0xf]
        %v4609 = vsel %vm1435, %v4334, %v4608
        %4610 = vst [vmem:[%s1433 + $0x30] sm:$0xf] %v4609
        %4611 = vst.msk [vmem:[%s1433 + $0x34] sm:$0xf] %vm321, %v4343
        %v4612 = vld [vmem:[%s1433 + $0x38] sm:$0x1]
        %v4613 = vsel %vm332, %v4344, %v4612
        %4614 = vst [vmem:[%s1433 + $0x38] sm:$0x1] %v4613
        %v4615 = vld [vmem:[%s1433 + $0x3c] sm:$0xf]
        %v4616 = vsel %vm1435, %v4351, %v4615
        %4617 = vst [vmem:[%s1433 + $0x3c] sm:$0xf] %v4616
        %4618 = vst.msk [vmem:[%s1433 + $0x40] sm:$0xf] %vm321, %v4360
        %v4619 = vld [vmem:[%s1433 + $0x44] sm:$0x1]
        %v4620 = vsel %vm332, %v4361, %v4619
        %4621 = vst [vmem:[%s1433 + $0x44] sm:$0x1] %v4620
        %v4622 = vld [vmem:[%s1433 + $0x48] sm:$0xf]
        %v4623 = vsel %vm1435, %v4368, %v4622
        %4624 = vst [vmem:[%s1433 + $0x48] sm:$0xf] %v4623
        %4625 = vst.msk [vmem:[%s1433 + $0x4c] sm:$0xf] %vm321, %v4377
        %v4626 = vld [vmem:[%s1433 + $0x50] sm:$0x1]
        %v4627 = vsel %vm332, %v4378, %v4626
        %4628 = vst [vmem:[%s1433 + $0x50] sm:$0x1] %v4627
        %v4629 = vld [vmem:[%s1433 + $0x54] sm:$0xf]
        %v4630 = vsel %vm1435, %v4385, %v4629
        %4631 = vst [vmem:[%s1433 + $0x54] sm:$0xf] %v4630
        %4632 = vst.msk [vmem:[%s1433 + $0x58] sm:$0xf] %vm321, %v4394
        %v4633 = vld [vmem:[%s1433 + $0x5c] sm:$0x1]
        %v4634 = vsel %vm332, %v4395, %v4633
        %4635 = vst [vmem:[%s1433 + $0x5c] sm:$0x1] %v4634
        %v4636 = vld [vmem:[%s1433 + $0x60] sm:$0xf]
        %v4637 = vsel %vm1435, %v4402, %v4636
        %4638 = vst [vmem:[%s1433 + $0x60] sm:$0xf] %v4637
        %4639 = vst.msk [vmem:[%s1433 + $0x64] sm:$0xf] %vm321, %v4411
        %v4640 = vld [vmem:[%s1433 + $0x68] sm:$0x1]
        %v4641 = vsel %vm332, %v4412, %v4640
        %4642 = vst [vmem:[%s1433 + $0x68] sm:$0x1] %v4641
        %v4643 = vld [vmem:[%s1433 + $0x6c] sm:$0xf]
        %v4644 = vsel %vm1435, %v4419, %v4643
        %4645 = vst [vmem:[%s1433 + $0x6c] sm:$0xf] %v4644
        %4646 = vst.msk [vmem:[%s1433 + $0x70] sm:$0xf] %vm321, %v4428
        %v4647 = vld [vmem:[%s1433 + $0x74] sm:$0x1]
        %v4648 = vsel %vm332, %v4429, %v4647
        %4649 = vst [vmem:[%s1433 + $0x74] sm:$0x1] %v4648
        %v4650 = vld [vmem:[%s1433 + $0x78] sm:$0xf]
        %v4651 = vsel %vm1435, %v4436, %v4650
        %4652 = vst [vmem:[%s1433 + $0x78] sm:$0xf] %v4651
        %4653 = vst.msk [vmem:[%s1433 + $0x7c] sm:$0xf] %vm321, %v4445
        %v4654 = vld [vmem:[%s1433 + $0x80] sm:$0x1]
        %v4655 = vsel %vm332, %v4446, %v4654
        %4656 = vst [vmem:[%s1433 + $0x80] sm:$0x1] %v4655
        %v4657 = vld [vmem:[%s1433 + $0x84] sm:$0xf]
        %v4658 = vsel %vm1435, %v4453, %v4657
        %4659 = vst [vmem:[%s1433 + $0x84] sm:$0xf] %v4658
        %4660 = vst.msk [vmem:[%s1433 + $0x88] sm:$0xf] %vm321, %v4462
        %v4661 = vld [vmem:[%s1433 + $0x8c] sm:$0x1]
        %v4662 = vsel %vm332, %v4463, %v4661
        %4663 = vst [vmem:[%s1433 + $0x8c] sm:$0x1] %v4662
        %v4664 = vld [vmem:[%s1433 + $0x90] sm:$0xf]
        %v4665 = vsel %vm1435, %v4470, %v4664
        %4666 = vst [vmem:[%s1433 + $0x90] sm:$0xf] %v4665
        %4667 = vst.msk [vmem:[%s1433 + $0x94] sm:$0xf] %vm321, %v4479
        %v4668 = vld [vmem:[%s1433 + $0x98] sm:$0x1]
        %v4669 = vsel %vm332, %v4480, %v4668
        %4670 = vst [vmem:[%s1433 + $0x98] sm:$0x1] %v4669
        %v4671 = vld [vmem:[%s1433 + $0x9c] sm:$0xf]
        %v4672 = vsel %vm1435, %v4487, %v4671
        %4673 = vst [vmem:[%s1433 + $0x9c] sm:$0xf] %v4672
        %4674 = vst.msk [vmem:[%s1433 + $0xa0] sm:$0xf] %vm321, %v4496
        %v4675 = vld [vmem:[%s1433 + $0xa4] sm:$0x1]
        %v4676 = vsel %vm332, %v4497, %v4675
        %4677 = vst [vmem:[%s1433 + $0xa4] sm:$0x1] %v4676
        %v4678 = vld [vmem:[%s1433 + $0xa8] sm:$0xf]
        %v4679 = vsel %vm1435, %v4504, %v4678
        %4680 = vst [vmem:[%s1433 + $0xa8] sm:$0xf] %v4679
        %4681 = vst.msk [vmem:[%s1433 + $0xac] sm:$0xf] %vm321, %v4513
        %v4682 = vld [vmem:[%s1433 + $0xb0] sm:$0x1]
        %v4683 = vsel %vm332, %v4514, %v4682
        %4684 = vst [vmem:[%s1433 + $0xb0] sm:$0x1] %v4683
        %v4685 = vld [vmem:[%s1433 + $0xb4] sm:$0xf]
        %v4686 = vsel %vm1435, %v4521, %v4685
        %4687 = vst [vmem:[%s1433 + $0xb4] sm:$0xf] %v4686
        %4688 = vst.msk [vmem:[%s1433 + $0xb8] sm:$0xf] %vm321, %v4530
        %v4689 = vld [vmem:[%s1433 + $0xbc] sm:$0x1]
        %v4690 = vsel %vm332, %v4531, %v4689
        %4691 = vst [vmem:[%s1433 + $0xbc] sm:$0x1] %v4690
        %v4692 = vld [vmem:[#allocation2] sm:$0xf]
        %v4693 = vld [vmem:[#allocation2 + $0x4] sm:$0xf]
        %v4694 = vld [vmem:[#allocation2 + $0xc] sm:$0xf]
        %v4695 = vld [vmem:[#allocation2 + $0x10] sm:$0xf]
        %v4696 = vld [vmem:[#allocation2 + $0x18] sm:$0xf]
        %v4697 = vld [vmem:[#allocation2 + $0x1c] sm:$0xf]
        %v4698 = vld [vmem:[#allocation2 + $0x24] sm:$0xf]
        %v4699 = vld [vmem:[#allocation2 + $0x28] sm:$0xf]
        %v4700 = vld [vmem:[#allocation2 + $0x30] sm:$0xf]
        %v4701 = vld [vmem:[#allocation2 + $0x34] sm:$0xf]
        %v4702 = vld [vmem:[#allocation2 + $0x3c] sm:$0xf]
        %v4703 = vld [vmem:[#allocation2 + $0x40] sm:$0xf]
        %v4704 = vld [vmem:[#allocation2 + $0x48] sm:$0xf]
        %v4705 = vld [vmem:[#allocation2 + $0x4c] sm:$0xf]
        %v4706 = vld [vmem:[#allocation2 + $0x54] sm:$0xf]
        %v4707 = vld [vmem:[#allocation2 + $0x58] sm:$0xf]
        %v4708 = vld [vmem:[#allocation2 + $0x60] sm:$0xf]
        %v4709 = vld [vmem:[#allocation2 + $0x64] sm:$0xf]
        %v4710 = vld [vmem:[#allocation2 + $0x6c] sm:$0xf]
        %v4711 = vld [vmem:[#allocation2 + $0x70] sm:$0xf]
        %v4712 = vld [vmem:[#allocation2 + $0x78] sm:$0xf]
        %v4713 = vld [vmem:[#allocation2 + $0x7c] sm:$0xf]
        %v4714 = vld [vmem:[#allocation2 + $0x84] sm:$0xf]
        %v4715 = vld [vmem:[#allocation2 + $0x88] sm:$0xf]
        %v4716 = vld [vmem:[#allocation2 + $0x90] sm:$0xf]
        %v4717 = vld [vmem:[#allocation2 + $0x94] sm:$0xf]
        %v4718 = vld [vmem:[#allocation2 + $0x9c] sm:$0xf]
        %v4719 = vld [vmem:[#allocation2 + $0xa0] sm:$0xf]
        %v4720 = vld [vmem:[#allocation2 + $0xa8] sm:$0xf]
        %v4721 = vld [vmem:[#allocation2 + $0xac] sm:$0xf]
        %v4722 = vld [vmem:[#allocation2 + $0xb4] sm:$0xf]
        %v4723 = vld [vmem:[#allocation2 + $0xb8] sm:$0xf]
        %v4724 = vld [vmem:[#allocation2 + $0xc0] sm:$0xf]
        %v4725 = vld [vmem:[#allocation2 + $0xc4] sm:$0xf]
        %v4726 = vld [vmem:[#allocation2 + $0xcc] sm:$0xf]
        %v4727 = vld [vmem:[#allocation2 + $0xd0] sm:$0xf]
        %4728 = vst.msk [vmem:[#allocation3] sm:$0xf] %vm321, %v4692
        %4729 = vst.msk [vmem:[#allocation3 + $0x8] sm:$0xf] %vm321, %v4693
        %4730 = vst.msk [vmem:[#allocation3 + $0x10] sm:$0xf] %vm321, %v4694
        %4731 = vst.msk [vmem:[#allocation3 + $0x18] sm:$0xf] %vm321, %v4695
        %4732 = vst.msk [vmem:[#allocation3 + $0x20] sm:$0xf] %vm321, %v4696
        %4733 = vst.msk [vmem:[#allocation3 + $0x28] sm:$0xf] %vm321, %v4697
        %4734 = vst.msk [vmem:[#allocation3 + $0x30] sm:$0xf] %vm321, %v4698
        %4735 = vst.msk [vmem:[#allocation3 + $0x38] sm:$0xf] %vm321, %v4699
        %4736 = vst.msk [vmem:[#allocation3 + $0x40] sm:$0xf] %vm321, %v4700
        %4737 = vst.msk [vmem:[#allocation3 + $0x48] sm:$0xf] %vm321, %v4701
        %4738 = vst.msk [vmem:[#allocation3 + $0x50] sm:$0xf] %vm321, %v4702
        %4739 = vst.msk [vmem:[#allocation3 + $0x58] sm:$0xf] %vm321, %v4703
        %4740 = vst.msk [vmem:[#allocation3 + $0x60] sm:$0xf] %vm321, %v4704
        %4741 = vst.msk [vmem:[#allocation3 + $0x68] sm:$0xf] %vm321, %v4705
        %4742 = vst.msk [vmem:[#allocation3 + $0x70] sm:$0xf] %vm321, %v4706
        %4743 = vst.msk [vmem:[#allocation3 + $0x78] sm:$0xf] %vm321, %v4707
        %4744 = vst.msk [vmem:[#allocation3 + $0x80] sm:$0xf] %vm321, %v4708
        %4745 = vst.msk [vmem:[#allocation3 + $0x88] sm:$0xf] %vm321, %v4709
        %4746 = vst.msk [vmem:[#allocation3 + $0x90] sm:$0xf] %vm321, %v4710
        %4747 = vst.msk [vmem:[#allocation3 + $0x98] sm:$0xf] %vm321, %v4711
        %4748 = vst.msk [vmem:[#allocation3 + $0xa0] sm:$0xf] %vm321, %v4712
        %4749 = vst.msk [vmem:[#allocation3 + $0xa8] sm:$0xf] %vm321, %v4713
        %4750 = vst.msk [vmem:[#allocation3 + $0xb0] sm:$0xf] %vm321, %v4714
        %4751 = vst.msk [vmem:[#allocation3 + $0xb8] sm:$0xf] %vm321, %v4715
        %4752 = vst.msk [vmem:[#allocation3 + $0xc0] sm:$0xf] %vm321, %v4716
        %4753 = vst.msk [vmem:[#allocation3 + $0xc8] sm:$0xf] %vm321, %v4717
        %4754 = vst.msk [vmem:[#allocation3 + $0xd0] sm:$0xf] %vm321, %v4718
        %4755 = vst.msk [vmem:[#allocation3 + $0xd8] sm:$0xf] %vm321, %v4719
        %4756 = vst.msk [vmem:[#allocation3 + $0xe0] sm:$0xf] %vm321, %v4720
        %4757 = vst.msk [vmem:[#allocation3 + $0xe8] sm:$0xf] %vm321, %v4721
        %4758 = vst.msk [vmem:[#allocation3 + $0xf0] sm:$0xf] %vm321, %v4722
        %4759 = vst.msk [vmem:[#allocation3 + $0xf8] sm:$0xf] %vm321, %v4723
        %4760 = vst.msk [vmem:[#allocation3 + $0x100] sm:$0xf] %vm321, %v4724
        %4761 = vst.msk [vmem:[#allocation3 + $0x108] sm:$0xf] %vm321, %v4725
        %4762 = vst.msk [vmem:[#allocation3 + $0x110] sm:$0xf] %vm321, %v4726
        %4763 = vst.msk [vmem:[#allocation3 + $0x118] sm:$0xf] %vm321, %v4727
        %v4764 = vld [vmem:[#allocation2] sm:$0xf]
        %v4765 = vld [vmem:[#allocation2 + $0x4] sm:$0xf]
        %v4766 = vld [vmem:[#allocation2 + $0x8] sm:$0x1]
        %v4767 = vld [vmem:[#allocation2 + $0xc] sm:$0xf]
        %v4768 = vld [vmem:[#allocation2 + $0x10] sm:$0xf]
        %v4769 = vld [vmem:[#allocation2 + $0x14] sm:$0x1]
        %v4770 = vld [vmem:[#allocation2 + $0x18] sm:$0xf]
        %v4771 = vld [vmem:[#allocation2 + $0x1c] sm:$0xf]
        %v4772 = vld [vmem:[#allocation2 + $0x20] sm:$0x1]
        %v4773 = vld [vmem:[#allocation2 + $0x24] sm:$0xf]
        %v4774 = vld [vmem:[#allocation2 + $0x28] sm:$0xf]
        %v4775 = vld [vmem:[#allocation2 + $0x2c] sm:$0x1]
        %v4776 = vld [vmem:[#allocation2 + $0x30] sm:$0xf]
        %v4777 = vld [vmem:[#allocation2 + $0x34] sm:$0xf]
        %v4778 = vld [vmem:[#allocation2 + $0x38] sm:$0x1]
        %v4779 = vld [vmem:[#allocation2 + $0x3c] sm:$0xf]
        %v4780 = vld [vmem:[#allocation2 + $0x40] sm:$0xf]
        %v4781 = vld [vmem:[#allocation2 + $0x44] sm:$0x1]
        %v4782 = vld [vmem:[#allocation2 + $0x48] sm:$0xf]
        %v4783 = vld [vmem:[#allocation2 + $0x4c] sm:$0xf]
        %v4784 = vld [vmem:[#allocation2 + $0x50] sm:$0x1]
        %v4785 = vld [vmem:[#allocation2 + $0x54] sm:$0xf]
        %v4786 = vld [vmem:[#allocation2 + $0x58] sm:$0xf]
        %v4787 = vld [vmem:[#allocation2 + $0x5c] sm:$0x1]
        %v4788 = vld [vmem:[#allocation2 + $0x60] sm:$0xf]
        %v4789 = vld [vmem:[#allocation2 + $0x64] sm:$0xf]
        %v4790 = vld [vmem:[#allocation2 + $0x68] sm:$0x1]
        %v4791 = vld [vmem:[#allocation2 + $0x6c] sm:$0xf]
        %v4792 = vld [vmem:[#allocation2 + $0x70] sm:$0xf]
        %v4793 = vld [vmem:[#allocation2 + $0x74] sm:$0x1]
        %v4794 = vld [vmem:[#allocation2 + $0x78] sm:$0xf]
        %v4795 = vld [vmem:[#allocation2 + $0x7c] sm:$0xf]
        %v4796 = vld [vmem:[#allocation2 + $0x80] sm:$0x1]
        %v4797 = vld [vmem:[#allocation2 + $0x84] sm:$0xf]
        %v4798 = vld [vmem:[#allocation2 + $0x88] sm:$0xf]
        %v4799 = vld [vmem:[#allocation2 + $0x8c] sm:$0x1]
        %v4800 = vld [vmem:[#allocation2 + $0x90] sm:$0xf]
        %v4801 = vld [vmem:[#allocation2 + $0x94] sm:$0xf]
        %v4802 = vld [vmem:[#allocation2 + $0x98] sm:$0x1]
        %v4803 = vld [vmem:[#allocation2 + $0x9c] sm:$0xf]
        %v4804 = vld [vmem:[#allocation2 + $0xa0] sm:$0xf]
        %v4805 = vld [vmem:[#allocation2 + $0xa4] sm:$0x1]
        %v4806 = vld [vmem:[#allocation2 + $0xa8] sm:$0xf]
        %v4807 = vld [vmem:[#allocation2 + $0xac] sm:$0xf]
        %v4808 = vld [vmem:[#allocation2 + $0xb0] sm:$0x1]
        %v4809 = vld [vmem:[#allocation2 + $0xb4] sm:$0xf]
        %v4810 = vld [vmem:[#allocation2 + $0xb8] sm:$0xf]
        %v4811 = vld [vmem:[#allocation2 + $0xbc] sm:$0x1]
        %v4812 = vld [vmem:[#allocation2 + $0xc0] sm:$0xf]
        %v4813 = vld [vmem:[#allocation2 + $0xc4] sm:$0xf]
        %v4814 = vld [vmem:[#allocation2 + $0xc8] sm:$0x1]
        %v4815 = vld [vmem:[#allocation2 + $0xcc] sm:$0xf]
        %v4816 = vld [vmem:[#allocation2 + $0xd0] sm:$0xf]
        %v4817 = vld [vmem:[#allocation2 + $0xd4] sm:$0x1]
        %v4819 = vshrl.u32 %v4764, 16
        %v4821 = vrot.slane %v4819, 4
        %v4822 = vshll.u32 %v4764, 16
        %v4824 = vrot.slane %v4822, 5
        %v4825 = vor.u32 %v4821, %v4824
        %v4826 = vrot.slane %v4825, 4
        %v4828 = vshll.u32 %v4765, 16
        %v4830 = vrot.slane %v4828, 5
        %v4831 = vsel %vm1676, %v4826, %v4830
        %v4832 = vshrl.u32 %v4765, 16
        %v4834 = vrot.slane %v4832, 4
        %v4835 = vor.u32 %v4834, %v4830
        %v4836 = vrot.slane %v4835, 4
        %v4838 = vshll.u32 %v4766, 16
        %v4840 = vrot.slane %v4838, 5
        %v4841 = vsel %vm1676, %v4836, %v4840
        %v4843 = vshrl.u32 %v4767, 16
        %v4845 = vrot.slane %v4843, 4
        %v4846 = vshll.u32 %v4767, 16
        %v4848 = vrot.slane %v4846, 5
        %v4849 = vor.u32 %v4845, %v4848
        %v4850 = vrot.slane %v4849, 4
        %v4852 = vshll.u32 %v4768, 16
        %v4854 = vrot.slane %v4852, 5
        %v4855 = vsel %vm1676, %v4850, %v4854
        %v4856 = vshrl.u32 %v4768, 16
        %v4858 = vrot.slane %v4856, 4
        %v4859 = vor.u32 %v4858, %v4854
        %v4860 = vrot.slane %v4859, 4
        %v4862 = vshll.u32 %v4769, 16
        %v4864 = vrot.slane %v4862, 5
        %v4865 = vsel %vm1676, %v4860, %v4864
        %v4867 = vshrl.u32 %v4770, 16
        %v4869 = vrot.slane %v4867, 4
        %v4870 = vshll.u32 %v4770, 16
        %v4872 = vrot.slane %v4870, 5
        %v4873 = vor.u32 %v4869, %v4872
        %v4874 = vrot.slane %v4873, 4
        %v4876 = vshll.u32 %v4771, 16
        %v4878 = vrot.slane %v4876, 5
        %v4879 = vsel %vm1676, %v4874, %v4878
        %v4880 = vshrl.u32 %v4771, 16
        %v4882 = vrot.slane %v4880, 4
        %v4883 = vor.u32 %v4882, %v4878
        %v4884 = vrot.slane %v4883, 4
        %v4886 = vshll.u32 %v4772, 16
        %v4888 = vrot.slane %v4886, 5
        %v4889 = vsel %vm1676, %v4884, %v4888
        %v4891 = vshrl.u32 %v4773, 16
        %v4893 = vrot.slane %v4891, 4
        %v4894 = vshll.u32 %v4773, 16
        %v4896 = vrot.slane %v4894, 5
        %v4897 = vor.u32 %v4893, %v4896
        %v4898 = vrot.slane %v4897, 4
        %v4900 = vshll.u32 %v4774, 16
        %v4902 = vrot.slane %v4900, 5
        %v4903 = vsel %vm1676, %v4898, %v4902
        %v4904 = vshrl.u32 %v4774, 16
        %v4906 = vrot.slane %v4904, 4
        %v4907 = vor.u32 %v4906, %v4902
        %v4908 = vrot.slane %v4907, 4
        %v4910 = vshll.u32 %v4775, 16
        %v4912 = vrot.slane %v4910, 5
        %v4913 = vsel %vm1676, %v4908, %v4912
        %v4915 = vshrl.u32 %v4776, 16
        %v4917 = vrot.slane %v4915, 4
        %v4918 = vshll.u32 %v4776, 16
        %v4920 = vrot.slane %v4918, 5
        %v4921 = vor.u32 %v4917, %v4920
        %v4922 = vrot.slane %v4921, 4
        %v4924 = vshll.u32 %v4777, 16
        %v4926 = vrot.slane %v4924, 5
        %v4927 = vsel %vm1676, %v4922, %v4926
        %v4928 = vshrl.u32 %v4777, 16
        %v4930 = vrot.slane %v4928, 4
        %v4931 = vor.u32 %v4930, %v4926
        %v4932 = vrot.slane %v4931, 4
        %v4934 = vshll.u32 %v4778, 16
        %v4936 = vrot.slane %v4934, 5
        %v4937 = vsel %vm1676, %v4932, %v4936
        %v4939 = vshrl.u32 %v4779, 16
        %v4941 = vrot.slane %v4939, 4
        %v4942 = vshll.u32 %v4779, 16
        %v4944 = vrot.slane %v4942, 5
        %v4945 = vor.u32 %v4941, %v4944
        %v4946 = vrot.slane %v4945, 4
        %v4948 = vshll.u32 %v4780, 16
        %v4950 = vrot.slane %v4948, 5
        %v4951 = vsel %vm1676, %v4946, %v4950
        %v4952 = vshrl.u32 %v4780, 16
        %v4954 = vrot.slane %v4952, 4
        %v4955 = vor.u32 %v4954, %v4950
        %v4956 = vrot.slane %v4955, 4
        %v4958 = vshll.u32 %v4781, 16
        %v4960 = vrot.slane %v4958, 5
        %v4961 = vsel %vm1676, %v4956, %v4960
        %v4963 = vshrl.u32 %v4782, 16
        %v4965 = vrot.slane %v4963, 4
        %v4966 = vshll.u32 %v4782, 16
        %v4968 = vrot.slane %v4966, 5
        %v4969 = vor.u32 %v4965, %v4968
        %v4970 = vrot.slane %v4969, 4
        %v4972 = vshll.u32 %v4783, 16
        %v4974 = vrot.slane %v4972, 5
        %v4975 = vsel %vm1676, %v4970, %v4974
        %v4976 = vshrl.u32 %v4783, 16
        %v4978 = vrot.slane %v4976, 4
        %v4979 = vor.u32 %v4978, %v4974
        %v4980 = vrot.slane %v4979, 4
        %v4982 = vshll.u32 %v4784, 16
        %v4984 = vrot.slane %v4982, 5
        %v4985 = vsel %vm1676, %v4980, %v4984
        %v4987 = vshrl.u32 %v4785, 16
        %v4989 = vrot.slane %v4987, 4
        %v4990 = vshll.u32 %v4785, 16
        %v4992 = vrot.slane %v4990, 5
        %v4993 = vor.u32 %v4989, %v4992
        %v4994 = vrot.slane %v4993, 4
        %v4996 = vshll.u32 %v4786, 16
        %v4998 = vrot.slane %v4996, 5
        %v4999 = vsel %vm1676, %v4994, %v4998
        %v5000 = vshrl.u32 %v4786, 16
        %v5002 = vrot.slane %v5000, 4
        %v5003 = vor.u32 %v5002, %v4998
        %v5004 = vrot.slane %v5003, 4
        %v5006 = vshll.u32 %v4787, 16
        %v5008 = vrot.slane %v5006, 5
        %v5009 = vsel %vm1676, %v5004, %v5008
        %v5011 = vshrl.u32 %v4788, 16
        %v5013 = vrot.slane %v5011, 4
        %v5014 = vshll.u32 %v4788, 16
        %v5016 = vrot.slane %v5014, 5
        %v5017 = vor.u32 %v5013, %v5016
        %v5018 = vrot.slane %v5017, 4
        %v5020 = vshll.u32 %v4789, 16
        %v5022 = vrot.slane %v5020, 5
        %v5023 = vsel %vm1676, %v5018, %v5022
        %v5024 = vshrl.u32 %v4789, 16
        %v5026 = vrot.slane %v5024, 4
        %v5027 = vor.u32 %v5026, %v5022
        %v5028 = vrot.slane %v5027, 4
        %v5030 = vshll.u32 %v4790, 16
        %v5032 = vrot.slane %v5030, 5
        %v5033 = vsel %vm1676, %v5028, %v5032
        %v5035 = vshrl.u32 %v4791, 16
        %v5037 = vrot.slane %v5035, 4
        %v5038 = vshll.u32 %v4791, 16
        %v5040 = vrot.slane %v5038, 5
        %v5041 = vor.u32 %v5037, %v5040
        %v5042 = vrot.slane %v5041, 4
        %v5044 = vshll.u32 %v4792, 16
        %v5046 = vrot.slane %v5044, 5
        %v5047 = vsel %vm1676, %v5042, %v5046
        %v5048 = vshrl.u32 %v4792, 16
        %v5050 = vrot.slane %v5048, 4
        %v5051 = vor.u32 %v5050, %v5046
        %v5052 = vrot.slane %v5051, 4
        %v5054 = vshll.u32 %v4793, 16
        %v5056 = vrot.slane %v5054, 5
        %v5057 = vsel %vm1676, %v5052, %v5056
        %v5059 = vshrl.u32 %v4794, 16
        %v5061 = vrot.slane %v5059, 4
        %v5062 = vshll.u32 %v4794, 16
        %v5064 = vrot.slane %v5062, 5
        %v5065 = vor.u32 %v5061, %v5064
        %v5066 = vrot.slane %v5065, 4
        %v5068 = vshll.u32 %v4795, 16
        %v5070 = vrot.slane %v5068, 5
        %v5071 = vsel %vm1676, %v5066, %v5070
        %v5072 = vshrl.u32 %v4795, 16
        %v5074 = vrot.slane %v5072, 4
        %v5075 = vor.u32 %v5074, %v5070
        %v5076 = vrot.slane %v5075, 4
        %v5078 = vshll.u32 %v4796, 16
        %v5080 = vrot.slane %v5078, 5
        %v5081 = vsel %vm1676, %v5076, %v5080
        %v5083 = vshrl.u32 %v4797, 16
        %v5085 = vrot.slane %v5083, 4
        %v5086 = vshll.u32 %v4797, 16
        %v5088 = vrot.slane %v5086, 5
        %v5089 = vor.u32 %v5085, %v5088
        %v5090 = vrot.slane %v5089, 4
        %v5092 = vshll.u32 %v4798, 16
        %v5094 = vrot.slane %v5092, 5
        %v5095 = vsel %vm1676, %v5090, %v5094
        %v5096 = vshrl.u32 %v4798, 16
        %v5098 = vrot.slane %v5096, 4
        %v5099 = vor.u32 %v5098, %v5094
        %v5100 = vrot.slane %v5099, 4
        %v5102 = vshll.u32 %v4799, 16
        %v5104 = vrot.slane %v5102, 5
        %v5105 = vsel %vm1676, %v5100, %v5104
        %v5107 = vshrl.u32 %v4800, 16
        %v5109 = vrot.slane %v5107, 4
        %v5110 = vshll.u32 %v4800, 16
        %v5112 = vrot.slane %v5110, 5
        %v5113 = vor.u32 %v5109, %v5112
        %v5114 = vrot.slane %v5113, 4
        %v5116 = vshll.u32 %v4801, 16
        %v5118 = vrot.slane %v5116, 5
        %v5119 = vsel %vm1676, %v5114, %v5118
        %v5120 = vshrl.u32 %v4801, 16
        %v5122 = vrot.slane %v5120, 4
        %v5123 = vor.u32 %v5122, %v5118
        %v5124 = vrot.slane %v5123, 4
        %v5126 = vshll.u32 %v4802, 16
        %v5128 = vrot.slane %v5126, 5
        %v5129 = vsel %vm1676, %v5124, %v5128
        %v5131 = vshrl.u32 %v4803, 16
        %v5133 = vrot.slane %v5131, 4
        %v5134 = vshll.u32 %v4803, 16
        %v5136 = vrot.slane %v5134, 5
        %v5137 = vor.u32 %v5133, %v5136
        %v5138 = vrot.slane %v5137, 4
        %v5140 = vshll.u32 %v4804, 16
        %v5142 = vrot.slane %v5140, 5
        %v5143 = vsel %vm1676, %v5138, %v5142
        %v5144 = vshrl.u32 %v4804, 16
        %v5146 = vrot.slane %v5144, 4
        %v5147 = vor.u32 %v5146, %v5142
        %v5148 = vrot.slane %v5147, 4
        %v5150 = vshll.u32 %v4805, 16
        %v5152 = vrot.slane %v5150, 5
        %v5153 = vsel %vm1676, %v5148, %v5152
        %v5155 = vshrl.u32 %v4806, 16
        %v5157 = vrot.slane %v5155, 4
        %v5158 = vshll.u32 %v4806, 16
        %v5160 = vrot.slane %v5158, 5
        %v5161 = vor.u32 %v5157, %v5160
        %v5162 = vrot.slane %v5161, 4
        %v5164 = vshll.u32 %v4807, 16
        %v5166 = vrot.slane %v5164, 5
        %v5167 = vsel %vm1676, %v5162, %v5166
        %v5168 = vshrl.u32 %v4807, 16
        %v5170 = vrot.slane %v5168, 4
        %v5171 = vor.u32 %v5170, %v5166
        %v5172 = vrot.slane %v5171, 4
        %v5174 = vshll.u32 %v4808, 16
        %v5176 = vrot.slane %v5174, 5
        %v5177 = vsel %vm1676, %v5172, %v5176
        %v5179 = vshrl.u32 %v4809, 16
        %v5181 = vrot.slane %v5179, 4
        %v5182 = vshll.u32 %v4809, 16
        %v5184 = vrot.slane %v5182, 5
        %v5185 = vor.u32 %v5181, %v5184
        %v5186 = vrot.slane %v5185, 4
        %v5188 = vshll.u32 %v4810, 16
        %v5190 = vrot.slane %v5188, 5
        %v5191 = vsel %vm1676, %v5186, %v5190
        %v5192 = vshrl.u32 %v4810, 16
        %v5194 = vrot.slane %v5192, 4
        %v5195 = vor.u32 %v5194, %v5190
        %v5196 = vrot.slane %v5195, 4
        %v5198 = vshll.u32 %v4811, 16
        %v5200 = vrot.slane %v5198, 5
        %v5201 = vsel %vm1676, %v5196, %v5200
        %v5203 = vshrl.u32 %v4812, 16
        %v5205 = vrot.slane %v5203, 4
        %v5206 = vshll.u32 %v4812, 16
        %v5208 = vrot.slane %v5206, 5
        %v5209 = vor.u32 %v5205, %v5208
        %v5210 = vrot.slane %v5209, 4
        %v5212 = vshll.u32 %v4813, 16
        %v5214 = vrot.slane %v5212, 5
        %v5215 = vsel %vm1676, %v5210, %v5214
        %v5216 = vshrl.u32 %v4813, 16
        %v5218 = vrot.slane %v5216, 4
        %v5219 = vor.u32 %v5218, %v5214
        %v5220 = vrot.slane %v5219, 4
        %v5222 = vshll.u32 %v4814, 16
        %v5224 = vrot.slane %v5222, 5
        %v5225 = vsel %vm1676, %v5220, %v5224
        %v5227 = vshrl.u32 %v4815, 16
        %v5229 = vrot.slane %v5227, 4
        %v5230 = vshll.u32 %v4815, 16
        %v5232 = vrot.slane %v5230, 5
        %v5233 = vor.u32 %v5229, %v5232
        %v5234 = vrot.slane %v5233, 4
        %v5236 = vshll.u32 %v4816, 16
        %v5238 = vrot.slane %v5236, 5
        %v5239 = vsel %vm1676, %v5234, %v5238
        %v5240 = vshrl.u32 %v4816, 16
        %v5242 = vrot.slane %v5240, 4
        %v5243 = vor.u32 %v5242, %v5238
        %v5244 = vrot.slane %v5243, 4
        %v5246 = vshll.u32 %v4817, 16
        %v5248 = vrot.slane %v5246, 5
        %v5249 = vsel %vm1676, %v5244, %v5248
        %5250 = vrot.lane.b32.xlu0 %v4831, 64
        %v5251 = vpop.permute.xlu0 %5250
        %5252 = vrot.lane.b32.xlu0 %v4841, 64
        %v5253 = vpop.permute.xlu0 %5252
        %5254 = vrot.lane.b32.xlu0 %v4855, 64
        %v5255 = vpop.permute.xlu0 %5254
        %5256 = vrot.lane.b32.xlu0 %v4865, 64
        %v5257 = vpop.permute.xlu0 %5256
        %5258 = vrot.lane.b32.xlu0 %v4879, 64
        %v5259 = vpop.permute.xlu0 %5258
        %5260 = vrot.lane.b32.xlu0 %v4889, 64
        %v5261 = vpop.permute.xlu0 %5260
        %5262 = vrot.lane.b32.xlu0 %v4903, 64
        %v5263 = vpop.permute.xlu0 %5262
        %5264 = vrot.lane.b32.xlu0 %v4913, 64
        %v5265 = vpop.permute.xlu0 %5264
        %5266 = vrot.lane.b32.xlu0 %v4927, 64
        %v5267 = vpop.permute.xlu0 %5266
        %5268 = vrot.lane.b32.xlu0 %v4937, 64
        %v5269 = vpop.permute.xlu0 %5268
        %5270 = vrot.lane.b32.xlu0 %v4951, 64
        %v5271 = vpop.permute.xlu0 %5270
        %5272 = vrot.lane.b32.xlu0 %v4961, 64
        %v5273 = vpop.permute.xlu0 %5272
        %5274 = vrot.lane.b32.xlu0 %v4975, 64
        %v5275 = vpop.permute.xlu0 %5274
        %5276 = vrot.lane.b32.xlu0 %v4985, 64
        %v5277 = vpop.permute.xlu0 %5276
        %5278 = vrot.lane.b32.xlu0 %v4999, 64
        %v5279 = vpop.permute.xlu0 %5278
        %5280 = vrot.lane.b32.xlu0 %v5009, 64
        %v5281 = vpop.permute.xlu0 %5280
        %5282 = vrot.lane.b32.xlu0 %v5023, 64
        %v5283 = vpop.permute.xlu0 %5282
        %5284 = vrot.lane.b32.xlu0 %v5033, 64
        %v5285 = vpop.permute.xlu0 %5284
        %5286 = vrot.lane.b32.xlu0 %v5047, 64
        %v5287 = vpop.permute.xlu0 %5286
        %5288 = vrot.lane.b32.xlu0 %v5057, 64
        %v5289 = vpop.permute.xlu0 %5288
        %5290 = vrot.lane.b32.xlu0 %v5071, 64
        %v5291 = vpop.permute.xlu0 %5290
        %5292 = vrot.lane.b32.xlu0 %v5081, 64
        %v5293 = vpop.permute.xlu0 %5292
        %5294 = vrot.lane.b32.xlu0 %v5095, 64
        %v5295 = vpop.permute.xlu0 %5294
        %5296 = vrot.lane.b32.xlu0 %v5105, 64
        %v5297 = vpop.permute.xlu0 %5296
        %5298 = vrot.lane.b32.xlu0 %v5119, 64
        %v5299 = vpop.permute.xlu0 %5298
        %5300 = vrot.lane.b32.xlu0 %v5129, 64
        %v5301 = vpop.permute.xlu0 %5300
        %5302 = vrot.lane.b32.xlu0 %v5143, 64
        %v5303 = vpop.permute.xlu0 %5302
        %5304 = vrot.lane.b32.xlu0 %v5153, 64
        %v5305 = vpop.permute.xlu0 %5304
        %5306 = vrot.lane.b32.xlu0 %v5167, 64
        %v5307 = vpop.permute.xlu0 %5306
        %5308 = vrot.lane.b32.xlu0 %v5177, 64
        %v5309 = vpop.permute.xlu0 %5308
        %5310 = vrot.lane.b32.xlu0 %v5191, 64
        %v5311 = vpop.permute.xlu0 %5310
        %5312 = vrot.lane.b32.xlu0 %v5201, 64
        %v5313 = vpop.permute.xlu0 %5312
        %5314 = vrot.lane.b32.xlu0 %v5215, 64
        %v5315 = vpop.permute.xlu0 %5314
        %5316 = vrot.lane.b32.xlu0 %v5225, 64
        %v5317 = vpop.permute.xlu0 %5316
        %5318 = vrot.lane.b32.xlu0 %v5239, 64
        %v5319 = vpop.permute.xlu0 %5318
        %5320 = vrot.lane.b32.xlu0 %v5249, 64
        %v5321 = vpop.permute.xlu0 %5320
        %5358 = vst.msk [vmem:[#allocation3] sm:$0xf] %vm2217, %v5251
        %5359 = vst.msk [vmem:[#allocation3 + $0x8] sm:$0xf] %vm2217, %v5253
        %5360 = vst.msk [vmem:[#allocation3 + $0x10] sm:$0xf] %vm2217, %v5255
        %5361 = vst.msk [vmem:[#allocation3 + $0x18] sm:$0xf] %vm2217, %v5257
        %5362 = vst.msk [vmem:[#allocation3 + $0x20] sm:$0xf] %vm2217, %v5259
        %5363 = vst.msk [vmem:[#allocation3 + $0x28] sm:$0xf] %vm2217, %v5261
        %5364 = vst.msk [vmem:[#allocation3 + $0x30] sm:$0xf] %vm2217, %v5263
        %5365 = vst.msk [vmem:[#allocation3 + $0x38] sm:$0xf] %vm2217, %v5265
        %5366 = vst.msk [vmem:[#allocation3 + $0x40] sm:$0xf] %vm2217, %v5267
        %5367 = vst.msk [vmem:[#allocation3 + $0x48] sm:$0xf] %vm2217, %v5269
        %5368 = vst.msk [vmem:[#allocation3 + $0x50] sm:$0xf] %vm2217, %v5271
        %5369 = vst.msk [vmem:[#allocation3 + $0x58] sm:$0xf] %vm2217, %v5273
        %5370 = vst.msk [vmem:[#allocation3 + $0x60] sm:$0xf] %vm2217, %v5275
        %5371 = vst.msk [vmem:[#allocation3 + $0x68] sm:$0xf] %vm2217, %v5277
        %5372 = vst.msk [vmem:[#allocation3 + $0x70] sm:$0xf] %vm2217, %v5279
        %5373 = vst.msk [vmem:[#allocation3 + $0x78] sm:$0xf] %vm2217, %v5281
        %5374 = vst.msk [vmem:[#allocation3 + $0x80] sm:$0xf] %vm2217, %v5283
        %5375 = vst.msk [vmem:[#allocation3 + $0x88] sm:$0xf] %vm2217, %v5285
        %5376 = vst.msk [vmem:[#allocation3 + $0x90] sm:$0xf] %vm2217, %v5287
        %5377 = vst.msk [vmem:[#allocation3 + $0x98] sm:$0xf] %vm2217, %v5289
        %5378 = vst.msk [vmem:[#allocation3 + $0xa0] sm:$0xf] %vm2217, %v5291
        %5379 = vst.msk [vmem:[#allocation3 + $0xa8] sm:$0xf] %vm2217, %v5293
        %5380 = vst.msk [vmem:[#allocation3 + $0xb0] sm:$0xf] %vm2217, %v5295
        %5381 = vst.msk [vmem:[#allocation3 + $0xb8] sm:$0xf] %vm2217, %v5297
        %5382 = vst.msk [vmem:[#allocation3 + $0xc0] sm:$0xf] %vm2217, %v5299
        %5383 = vst.msk [vmem:[#allocation3 + $0xc8] sm:$0xf] %vm2217, %v5301
        %5384 = vst.msk [vmem:[#allocation3 + $0xd0] sm:$0xf] %vm2217, %v5303
        %5385 = vst.msk [vmem:[#allocation3 + $0xd8] sm:$0xf] %vm2217, %v5305
        %5386 = vst.msk [vmem:[#allocation3 + $0xe0] sm:$0xf] %vm2217, %v5307
        %5387 = vst.msk [vmem:[#allocation3 + $0xe8] sm:$0xf] %vm2217, %v5309
        %5388 = vst.msk [vmem:[#allocation3 + $0xf0] sm:$0xf] %vm2217, %v5311
        %5389 = vst.msk [vmem:[#allocation3 + $0xf8] sm:$0xf] %vm2217, %v5313
        %5390 = vst.msk [vmem:[#allocation3 + $0x100] sm:$0xf] %vm2217, %v5315
        %5391 = vst.msk [vmem:[#allocation3 + $0x108] sm:$0xf] %vm2217, %v5317
        %5392 = vst.msk [vmem:[#allocation3 + $0x110] sm:$0xf] %vm2217, %v5319
        %5393 = vst.msk [vmem:[#allocation3 + $0x118] sm:$0xf] %vm2217, %v5321
        %v5394 = vld [vmem:[#allocation2] sm:$0xe]
        %v5395 = vld [vmem:[#allocation2 + $0x4] sm:$0xf]
        %v5396 = vld [vmem:[#allocation2 + $0x8] sm:$0x1]
        %v5397 = vld [vmem:[#allocation2 + $0xc] sm:$0xe]
        %v5398 = vld [vmem:[#allocation2 + $0x10] sm:$0xf]
        %v5399 = vld [vmem:[#allocation2 + $0x14] sm:$0x1]
        %v5400 = vld [vmem:[#allocation2 + $0x18] sm:$0xe]
        %v5401 = vld [vmem:[#allocation2 + $0x1c] sm:$0xf]
        %v5402 = vld [vmem:[#allocation2 + $0x20] sm:$0x1]
        %v5403 = vld [vmem:[#allocation2 + $0x24] sm:$0xe]
        %v5404 = vld [vmem:[#allocation2 + $0x28] sm:$0xf]
        %v5405 = vld [vmem:[#allocation2 + $0x2c] sm:$0x1]
        %v5406 = vld [vmem:[#allocation2 + $0x30] sm:$0xe]
        %v5407 = vld [vmem:[#allocation2 + $0x34] sm:$0xf]
        %v5408 = vld [vmem:[#allocation2 + $0x38] sm:$0x1]
        %v5409 = vld [vmem:[#allocation2 + $0x3c] sm:$0xe]
        %v5410 = vld [vmem:[#allocation2 + $0x40] sm:$0xf]
        %v5411 = vld [vmem:[#allocation2 + $0x44] sm:$0x1]
        %v5412 = vld [vmem:[#allocation2 + $0x48] sm:$0xe]
        %v5413 = vld [vmem:[#allocation2 + $0x4c] sm:$0xf]
        %v5414 = vld [vmem:[#allocation2 + $0x50] sm:$0x1]
        %v5415 = vld [vmem:[#allocation2 + $0x54] sm:$0xe]
        %v5416 = vld [vmem:[#allocation2 + $0x58] sm:$0xf]
        %v5417 = vld [vmem:[#allocation2 + $0x5c] sm:$0x1]
        %v5418 = vld [vmem:[#allocation2 + $0x60] sm:$0xe]
        %v5419 = vld [vmem:[#allocation2 + $0x64] sm:$0xf]
        %v5420 = vld [vmem:[#allocation2 + $0x68] sm:$0x1]
        %v5421 = vld [vmem:[#allocation2 + $0x6c] sm:$0xe]
        %v5422 = vld [vmem:[#allocation2 + $0x70] sm:$0xf]
        %v5423 = vld [vmem:[#allocation2 + $0x74] sm:$0x1]
        %v5424 = vld [vmem:[#allocation2 + $0x78] sm:$0xe]
        %v5425 = vld [vmem:[#allocation2 + $0x7c] sm:$0xf]
        %v5426 = vld [vmem:[#allocation2 + $0x80] sm:$0x1]
        %v5427 = vld [vmem:[#allocation2 + $0x84] sm:$0xe]
        %v5428 = vld [vmem:[#allocation2 + $0x88] sm:$0xf]
        %v5429 = vld [vmem:[#allocation2 + $0x8c] sm:$0x1]
        %v5430 = vld [vmem:[#allocation2 + $0x90] sm:$0xe]
        %v5431 = vld [vmem:[#allocation2 + $0x94] sm:$0xf]
        %v5432 = vld [vmem:[#allocation2 + $0x98] sm:$0x1]
        %v5433 = vld [vmem:[#allocation2 + $0x9c] sm:$0xe]
        %v5434 = vld [vmem:[#allocation2 + $0xa0] sm:$0xf]
        %v5435 = vld [vmem:[#allocation2 + $0xa4] sm:$0x1]
        %v5436 = vld [vmem:[#allocation2 + $0xa8] sm:$0xe]
        %v5437 = vld [vmem:[#allocation2 + $0xac] sm:$0xf]
        %v5438 = vld [vmem:[#allocation2 + $0xb0] sm:$0x1]
        %v5439 = vld [vmem:[#allocation2 + $0xb4] sm:$0xe]
        %v5440 = vld [vmem:[#allocation2 + $0xb8] sm:$0xf]
        %v5441 = vld [vmem:[#allocation2 + $0xbc] sm:$0x1]
        %v5442 = vld [vmem:[#allocation2 + $0xc0] sm:$0xe]
        %v5443 = vld [vmem:[#allocation2 + $0xc4] sm:$0xf]
        %v5444 = vld [vmem:[#allocation2 + $0xc8] sm:$0x1]
        %v5445 = vld [vmem:[#allocation2 + $0xcc] sm:$0xe]
        %v5446 = vld [vmem:[#allocation2 + $0xd0] sm:$0xf]
        %v5447 = vld [vmem:[#allocation2 + $0xd4] sm:$0x1]
        %v5502 = vrot.slane %v5394, 5
        %v5503 = vrot.slane %v5502, 4
        %v5504 = vrot.slane %v5395, 5
        %v5505 = vsel %vm2364, %v5503, %v5504
        %v5506 = vrot.slane %v5504, 4
        %v5507 = vrot.slane %v5396, 5
        %v5508 = vsel %vm2364, %v5506, %v5507
        %v5509 = vrot.slane %v5397, 5
        %v5510 = vrot.slane %v5509, 4
        %v5511 = vrot.slane %v5398, 5
        %v5512 = vsel %vm2364, %v5510, %v5511
        %v5513 = vrot.slane %v5511, 4
        %v5514 = vrot.slane %v5399, 5
        %v5515 = vsel %vm2364, %v5513, %v5514
        %v5516 = vrot.slane %v5400, 5
        %v5517 = vrot.slane %v5516, 4
        %v5518 = vrot.slane %v5401, 5
        %v5519 = vsel %vm2364, %v5517, %v5518
        %v5520 = vrot.slane %v5518, 4
        %v5521 = vrot.slane %v5402, 5
        %v5522 = vsel %vm2364, %v5520, %v5521
        %v5523 = vrot.slane %v5403, 5
        %v5524 = vrot.slane %v5523, 4
        %v5525 = vrot.slane %v5404, 5
        %v5526 = vsel %vm2364, %v5524, %v5525
        %v5527 = vrot.slane %v5525, 4
        %v5528 = vrot.slane %v5405, 5
        %v5529 = vsel %vm2364, %v5527, %v5528
        %v5530 = vrot.slane %v5406, 5
        %v5531 = vrot.slane %v5530, 4
        %v5532 = vrot.slane %v5407, 5
        %v5533 = vsel %vm2364, %v5531, %v5532
        %v5534 = vrot.slane %v5532, 4
        %v5535 = vrot.slane %v5408, 5
        %v5536 = vsel %vm2364, %v5534, %v5535
        %v5537 = vrot.slane %v5409, 5
        %v5538 = vrot.slane %v5537, 4
        %v5539 = vrot.slane %v5410, 5
        %v5540 = vsel %vm2364, %v5538, %v5539
        %v5541 = vrot.slane %v5539, 4
        %v5542 = vrot.slane %v5411, 5
        %v5543 = vsel %vm2364, %v5541, %v5542
        %v5544 = vrot.slane %v5412, 5
        %v5545 = vrot.slane %v5544, 4
        %v5546 = vrot.slane %v5413, 5
        %v5547 = vsel %vm2364, %v5545, %v5546
        %v5548 = vrot.slane %v5546, 4
        %v5549 = vrot.slane %v5414, 5
        %v5550 = vsel %vm2364, %v5548, %v5549
        %v5551 = vrot.slane %v5415, 5
        %v5552 = vrot.slane %v5551, 4
        %v5553 = vrot.slane %v5416, 5
        %v5554 = vsel %vm2364, %v5552, %v5553
        %v5555 = vrot.slane %v5553, 4
        %v5556 = vrot.slane %v5417, 5
        %v5557 = vsel %vm2364, %v5555, %v5556
        %v5558 = vrot.slane %v5418, 5
        %v5559 = vrot.slane %v5558, 4
        %v5560 = vrot.slane %v5419, 5
        %v5561 = vsel %vm2364, %v5559, %v5560
        %v5562 = vrot.slane %v5560, 4
        %v5563 = vrot.slane %v5420, 5
        %v5564 = vsel %vm2364, %v5562, %v5563
        %v5565 = vrot.slane %v5421, 5
        %v5566 = vrot.slane %v5565, 4
        %v5567 = vrot.slane %v5422, 5
        %v5568 = vsel %vm2364, %v5566, %v5567
        %v5569 = vrot.slane %v5567, 4
        %v5570 = vrot.slane %v5423, 5
        %v5571 = vsel %vm2364, %v5569, %v5570
        %v5572 = vrot.slane %v5424, 5
        %v5573 = vrot.slane %v5572, 4
        %v5574 = vrot.slane %v5425, 5
        %v5575 = vsel %vm2364, %v5573, %v5574
        %v5576 = vrot.slane %v5574, 4
        %v5577 = vrot.slane %v5426, 5
        %v5578 = vsel %vm2364, %v5576, %v5577
        %v5579 = vrot.slane %v5427, 5
        %v5580 = vrot.slane %v5579, 4
        %v5581 = vrot.slane %v5428, 5
        %v5582 = vsel %vm2364, %v5580, %v5581
        %v5583 = vrot.slane %v5581, 4
        %v5584 = vrot.slane %v5429, 5
        %v5585 = vsel %vm2364, %v5583, %v5584
        %v5586 = vrot.slane %v5430, 5
        %v5587 = vrot.slane %v5586, 4
        %v5588 = vrot.slane %v5431, 5
        %v5589 = vsel %vm2364, %v5587, %v5588
        %v5590 = vrot.slane %v5588, 4
        %v5591 = vrot.slane %v5432, 5
        %v5592 = vsel %vm2364, %v5590, %v5591
        %v5593 = vrot.slane %v5433, 5
        %v5594 = vrot.slane %v5593, 4
        %v5595 = vrot.slane %v5434, 5
        %v5596 = vsel %vm2364, %v5594, %v5595
        %v5597 = vrot.slane %v5595, 4
        %v5598 = vrot.slane %v5435, 5
        %v5599 = vsel %vm2364, %v5597, %v5598
        %v5600 = vrot.slane %v5436, 5
        %v5601 = vrot.slane %v5600, 4
        %v5602 = vrot.slane %v5437, 5
        %v5603 = vsel %vm2364, %v5601, %v5602
        %v5604 = vrot.slane %v5602, 4
        %v5605 = vrot.slane %v5438, 5
        %v5606 = vsel %vm2364, %v5604, %v5605
        %v5607 = vrot.slane %v5439, 5
        %v5608 = vrot.slane %v5607, 4
        %v5609 = vrot.slane %v5440, 5
        %v5610 = vsel %vm2364, %v5608, %v5609
        %v5611 = vrot.slane %v5609, 4
        %v5612 = vrot.slane %v5441, 5
        %v5613 = vsel %vm2364, %v5611, %v5612
        %v5614 = vrot.slane %v5442, 5
        %v5615 = vrot.slane %v5614, 4
        %v5616 = vrot.slane %v5443, 5
        %v5617 = vsel %vm2364, %v5615, %v5616
        %v5618 = vrot.slane %v5616, 4
        %v5619 = vrot.slane %v5444, 5
        %v5620 = vsel %vm2364, %v5618, %v5619
        %v5621 = vrot.slane %v5445, 5
        %v5622 = vrot.slane %v5621, 4
        %v5623 = vrot.slane %v5446, 5
        %v5624 = vsel %vm2364, %v5622, %v5623
        %v5625 = vrot.slane %v5623, 4
        %v5626 = vrot.slane %v5447, 5
        %v5627 = vsel %vm2364, %v5625, %v5626
        %5664 = vst.msk [vmem:[#allocation3 + $0x4] sm:$0xf] %vm321, %v5505
        %5665 = vst.msk [vmem:[#allocation3 + $0xc] sm:$0xf] %vm321, %v5508
        %5666 = vst.msk [vmem:[#allocation3 + $0x14] sm:$0xf] %vm321, %v5512
        %5667 = vst.msk [vmem:[#allocation3 + $0x1c] sm:$0xf] %vm321, %v5515
        %5668 = vst.msk [vmem:[#allocation3 + $0x24] sm:$0xf] %vm321, %v5519
        %5669 = vst.msk [vmem:[#allocation3 + $0x2c] sm:$0xf] %vm321, %v5522
        %5670 = vst.msk [vmem:[#allocation3 + $0x34] sm:$0xf] %vm321, %v5526
        %5671 = vst.msk [vmem:[#allocation3 + $0x3c] sm:$0xf] %vm321, %v5529
        %5672 = vst.msk [vmem:[#allocation3 + $0x44] sm:$0xf] %vm321, %v5533
        %5673 = vst.msk [vmem:[#allocation3 + $0x4c] sm:$0xf] %vm321, %v5536
        %5674 = vst.msk [vmem:[#allocation3 + $0x54] sm:$0xf] %vm321, %v5540
        %5675 = vst.msk [vmem:[#allocation3 + $0x5c] sm:$0xf] %vm321, %v5543
        %5676 = vst.msk [vmem:[#allocation3 + $0x64] sm:$0xf] %vm321, %v5547
        %5677 = vst.msk [vmem:[#allocation3 + $0x6c] sm:$0xf] %vm321, %v5550
        %5678 = vst.msk [vmem:[#allocation3 + $0x74] sm:$0xf] %vm321, %v5554
        %5679 = vst.msk [vmem:[#allocation3 + $0x7c] sm:$0xf] %vm321, %v5557
        %5680 = vst.msk [vmem:[#allocation3 + $0x84] sm:$0xf] %vm321, %v5561
        %5681 = vst.msk [vmem:[#allocation3 + $0x8c] sm:$0xf] %vm321, %v5564
        %5682 = vst.msk [vmem:[#allocation3 + $0x94] sm:$0xf] %vm321, %v5568
        %5683 = vst.msk [vmem:[#allocation3 + $0x9c] sm:$0xf] %vm321, %v5571
        %5684 = vst.msk [vmem:[#allocation3 + $0xa4] sm:$0xf] %vm321, %v5575
        %5685 = vst.msk [vmem:[#allocation3 + $0xac] sm:$0xf] %vm321, %v5578
        %5686 = vst.msk [vmem:[#allocation3 + $0xb4] sm:$0xf] %vm321, %v5582
        %5687 = vst.msk [vmem:[#allocation3 + $0xbc] sm:$0xf] %vm321, %v5585
        %5688 = vst.msk [vmem:[#allocation3 + $0xc4] sm:$0xf] %vm321, %v5589
        %5689 = vst.msk [vmem:[#allocation3 + $0xcc] sm:$0xf] %vm321, %v5592
        %5690 = vst.msk [vmem:[#allocation3 + $0xd4] sm:$0xf] %vm321, %v5596
        %5691 = vst.msk [vmem:[#allocation3 + $0xdc] sm:$0xf] %vm321, %v5599
        %5692 = vst.msk [vmem:[#allocation3 + $0xe4] sm:$0xf] %vm321, %v5603
        %5693 = vst.msk [vmem:[#allocation3 + $0xec] sm:$0xf] %vm321, %v5606
        %5694 = vst.msk [vmem:[#allocation3 + $0xf4] sm:$0xf] %vm321, %v5610
        %5695 = vst.msk [vmem:[#allocation3 + $0xfc] sm:$0xf] %vm321, %v5613
        %5696 = vst.msk [vmem:[#allocation3 + $0x104] sm:$0xf] %vm321, %v5617
        %5697 = vst.msk [vmem:[#allocation3 + $0x10c] sm:$0xf] %vm321, %v5620
        %5698 = vst.msk [vmem:[#allocation3 + $0x114] sm:$0xf] %vm321, %v5624
        %5699 = vst.msk [vmem:[#allocation3 + $0x11c] sm:$0xf] %vm321, %v5627
        %v5700 = vld [vmem:[#allocation3] sm:$0xff]
        %v5701 = vld [vmem:[#allocation3 + $0x8] sm:$0xff]
        %v5702 = vld [vmem:[#allocation3 + $0x10] sm:$0xff]
        %v5703 = vld [vmem:[#allocation3 + $0x18] sm:$0xff]
        %v5704 = vld [vmem:[#allocation3 + $0x20] sm:$0xff]
        %v5705 = vld [vmem:[#allocation3 + $0x28] sm:$0xff]
        %v5706 = vld [vmem:[#allocation3 + $0x30] sm:$0xff]
        %v5707 = vld [vmem:[#allocation3 + $0x38] sm:$0xff]
        %v5708 = vld [vmem:[#allocation3 + $0x40] sm:$0xff]
        %v5709 = vld [vmem:[#allocation3 + $0x48] sm:$0xff]
        %v5710 = vld [vmem:[#allocation3 + $0x50] sm:$0xff]
        %v5711 = vld [vmem:[#allocation3 + $0x58] sm:$0xff]
        %v5712 = vld [vmem:[#allocation3 + $0x60] sm:$0xff]
        %v5713 = vld [vmem:[#allocation3 + $0x68] sm:$0xff]
        %v5714 = vld [vmem:[#allocation3 + $0x70] sm:$0xff]
        %v5715 = vld [vmem:[#allocation3 + $0x78] sm:$0xff]
        %v5716 = vld [vmem:[#allocation3 + $0x80] sm:$0xff]
        %v5717 = vld [vmem:[#allocation3 + $0x88] sm:$0xff]
        %v5718 = vld [vmem:[#allocation3 + $0x90] sm:$0xff]
        %v5719 = vld [vmem:[#allocation3 + $0x98] sm:$0xff]
        %v5720 = vld [vmem:[#allocation3 + $0xa0] sm:$0xff]
        %v5721 = vld [vmem:[#allocation3 + $0xa8] sm:$0xff]
        %v5722 = vld [vmem:[#allocation3 + $0xb0] sm:$0xff]
        %v5723 = vld [vmem:[#allocation3 + $0xb8] sm:$0xff]
        %v5724 = vld [vmem:[#allocation3 + $0xc0] sm:$0xff]
        %v5725 = vld [vmem:[#allocation3 + $0xc8] sm:$0xff]
        %v5726 = vld [vmem:[#allocation3 + $0xd0] sm:$0xff]
        %v5727 = vld [vmem:[#allocation3 + $0xd8] sm:$0xff]
        %v5728 = vld [vmem:[#allocation3 + $0xe0] sm:$0xff]
        %v5729 = vld [vmem:[#allocation3 + $0xe8] sm:$0xff]
        %v5730 = vld [vmem:[#allocation3 + $0xf0] sm:$0xff]
        %v5731 = vld [vmem:[#allocation3 + $0xf8] sm:$0xff]
        %v5732 = vld [vmem:[%s5] sm:$0xf]
        %v5733 = vld [vmem:[%s5 + $0x4] sm:$0xf]
        %v5734 = vld [vmem:[%s5 + $0x8] sm:$0xf]
        %v5735 = vld [vmem:[%s5 + $0xc] sm:$0xf]
        %v5736 = vld [vmem:[%s5 + $0x10] sm:$0xf]
        %v5737 = vld [vmem:[%s5 + $0x14] sm:$0xf]
        %v5738 = vld [vmem:[%s5 + $0x18] sm:$0xf]
        %v5739 = vld [vmem:[%s5 + $0x1c] sm:$0xf]
        %v5740 = vld [vmem:[%s5 + $0x20] sm:$0xf]
        %v5741 = vld [vmem:[%s5 + $0x24] sm:$0xf]
        %v5742 = vld [vmem:[%s5 + $0x28] sm:$0xf]
        %v5743 = vld [vmem:[%s5 + $0x2c] sm:$0xf]
        %v5744 = vld [vmem:[%s5 + $0x30] sm:$0xf]
        %v5745 = vld [vmem:[%s5 + $0x34] sm:$0xf]
        %v5746 = vld [vmem:[%s5 + $0x38] sm:$0xf]
        %v5747 = vld [vmem:[%s5 + $0x3c] sm:$0xf]
        %v5748 = vld [vmem:[%s5 + $0x40] sm:$0xf]
        %v5749 = vld [vmem:[%s5 + $0x44] sm:$0xf]
        %v5750 = vld [vmem:[%s5 + $0x48] sm:$0xf]
        %v5751 = vld [vmem:[%s5 + $0x4c] sm:$0xf]
        %v5752 = vld [vmem:[%s5 + $0x50] sm:$0xf]
        %v5753 = vld [vmem:[%s5 + $0x54] sm:$0xf]
        %v5754 = vld [vmem:[%s5 + $0x58] sm:$0xf]
        %v5755 = vld [vmem:[%s5 + $0x5c] sm:$0xf]
        %v5756 = vld [vmem:[%s6] sm:$0x1]
        %v5758 = vperm.slane %v5756, 0
        %v5792 = vunpack.c.l.b16 %v5700
        %v5793 = vunpack.c.h.b16 %v5700
        %v5794 = vunpack.c.l.b16 %v5701
        %v5795 = vunpack.c.h.b16 %v5701
        %v5796 = vunpack.c.l.b16 %v5702
        %v5797 = vunpack.c.h.b16 %v5702
        %v5798 = vunpack.c.l.b16 %v5703
        %v5799 = vunpack.c.h.b16 %v5703
        %v5800 = vunpack.c.l.b16 %v5704
        %v5801 = vunpack.c.h.b16 %v5704
        %v5802 = vunpack.c.l.b16 %v5705
        %v5803 = vunpack.c.h.b16 %v5705
        %v5804 = vunpack.c.l.b16 %v5706
        %v5805 = vunpack.c.h.b16 %v5706
        %v5806 = vunpack.c.l.b16 %v5707
        %v5807 = vunpack.c.h.b16 %v5707
        %v5808 = vunpack.c.l.b16 %v5708
        %v5809 = vunpack.c.h.b16 %v5708
        %v5810 = vunpack.c.l.b16 %v5709
        %v5811 = vunpack.c.h.b16 %v5709
        %v5812 = vunpack.c.l.b16 %v5710
        %v5813 = vunpack.c.h.b16 %v5710
        %v5814 = vunpack.c.l.b16 %v5711
        %v5815 = vunpack.c.h.b16 %v5711
        %v5816 = vunpack.c.l.b16 %v5712
        %v5817 = vunpack.c.h.b16 %v5712
        %v5818 = vunpack.c.l.b16 %v5713
        %v5819 = vunpack.c.h.b16 %v5713
        %v5820 = vunpack.c.l.b16 %v5714
        %v5821 = vunpack.c.h.b16 %v5714
        %v5822 = vunpack.c.l.b16 %v5715
        %v5823 = vunpack.c.h.b16 %v5715
        %v5824 = vunpack.c.l.b16 %v5716
        %v5825 = vunpack.c.h.b16 %v5716
        %v5826 = vunpack.c.l.b16 %v5717
        %v5827 = vunpack.c.h.b16 %v5717
        %v5828 = vunpack.c.l.b16 %v5718
        %v5829 = vunpack.c.h.b16 %v5718
        %v5830 = vunpack.c.l.b16 %v5719
        %v5831 = vunpack.c.h.b16 %v5719
        %v5832 = vunpack.c.l.b16 %v5720
        %v5833 = vunpack.c.h.b16 %v5720
        %v5834 = vunpack.c.l.b16 %v5721
        %v5835 = vunpack.c.h.b16 %v5721
        %v5836 = vunpack.c.l.b16 %v5722
        %v5837 = vunpack.c.h.b16 %v5722
        %v5838 = vunpack.c.l.b16 %v5723
        %v5839 = vunpack.c.h.b16 %v5723
        %v5840 = vunpack.c.l.b16 %v5724
        %v5841 = vunpack.c.h.b16 %v5724
        %v5842 = vunpack.c.l.b16 %v5725
        %v5843 = vunpack.c.h.b16 %v5725
        %v5844 = vunpack.c.l.b16 %v5726
        %v5845 = vunpack.c.h.b16 %v5726
        %v5846 = vunpack.c.l.b16 %v5727
        %v5847 = vunpack.c.h.b16 %v5727
        %v5848 = vunpack.c.l.b16 %v5728
        %v5849 = vunpack.c.h.b16 %v5728
        %v5850 = vunpack.c.l.b16 %v5729
        %v5851 = vunpack.c.h.b16 %v5729
        %v5852 = vunpack.c.l.b16 %v5730
        %v5853 = vunpack.c.h.b16 %v5730
        %v5854 = vunpack.c.l.b16 %v5731
        %v5855 = vunpack.c.h.b16 %v5731
        %v5856 = vpack.c.b16 %v5794, %v5792
        %v5857 = vpack.c.b16 %v5795, %v5793
        %v5858 = vpack.c.b16 %v5798, %v5796
        %v5859 = vpack.c.b16 %v5799, %v5797
        %v5860 = vpack.c.b16 %v5802, %v5800
        %v5861 = vpack.c.b16 %v5803, %v5801
        %v5862 = vpack.c.b16 %v5806, %v5804
        %v5863 = vpack.c.b16 %v5807, %v5805
        %v5864 = vpack.c.b16 %v5810, %v5808
        %v5865 = vpack.c.b16 %v5811, %v5809
        %v5866 = vpack.c.b16 %v5814, %v5812
        %v5867 = vpack.c.b16 %v5815, %v5813
        %v5868 = vpack.c.b16 %v5818, %v5816
        %v5869 = vpack.c.b16 %v5819, %v5817
        %v5870 = vpack.c.b16 %v5822, %v5820
        %v5871 = vpack.c.b16 %v5823, %v5821
        %v5872 = vpack.c.b16 %v5826, %v5824
        %v5873 = vpack.c.b16 %v5827, %v5825
        %v5874 = vpack.c.b16 %v5830, %v5828
        %v5875 = vpack.c.b16 %v5831, %v5829
        %v5876 = vpack.c.b16 %v5834, %v5832
        %v5877 = vpack.c.b16 %v5835, %v5833
        %v5878 = vpack.c.b16 %v5838, %v5836
        %v5879 = vpack.c.b16 %v5839, %v5837
        %v5880 = vpack.c.b16 %v5842, %v5840
        %v5881 = vpack.c.b16 %v5843, %v5841
        %v5882 = vpack.c.b16 %v5846, %v5844
        %v5883 = vpack.c.b16 %v5847, %v5845
        %v5884 = vpack.c.b16 %v5850, %v5848
        %v5885 = vpack.c.b16 %v5851, %v5849
        %v5886 = vpack.c.b16 %v5854, %v5852
        %v5887 = vpack.c.b16 %v5855, %v5853
        %v5928 = vunpack.c.l.b16 %v5732
        %v5929 = vunpack.c.l.b16 %v5733
        %v5930 = vunpack.c.l.b16 %v5734
        %v5931 = vunpack.c.l.b16 %v5735
        %v5932 = vunpack.c.l.b16 %v5736
        %v5933 = vunpack.c.l.b16 %v5737
        %v5934 = vunpack.c.l.b16 %v5738
        %v5935 = vunpack.c.l.b16 %v5739
        %v5936 = vunpack.c.l.b16 %v5740
        %v5937 = vunpack.c.l.b16 %v5741
        %v5938 = vunpack.c.l.b16 %v5742
        %v5939 = vunpack.c.l.b16 %v5743
        %v5940 = vunpack.c.l.b16 %v5744
        %v5941 = vunpack.c.l.b16 %v5745
        %v5942 = vunpack.c.l.b16 %v5746
        %v5943 = vunpack.c.l.b16 %v5747
        %v5944 = vunpack.c.l.b16 %v5748
        %v5945 = vunpack.c.l.b16 %v5749
        %v5946 = vunpack.c.l.b16 %v5750
        %v5947 = vunpack.c.l.b16 %v5751
        %v5948 = vunpack.c.l.b16 %v5752
        %v5949 = vunpack.c.l.b16 %v5753
        %v5950 = vunpack.c.l.b16 %v5754
        %v5951 = vunpack.c.l.b16 %v5755
        %v5952 = vpack.c.b16 %v5929, %v5928
        %v5953 = vpack.c.b16 %v5931, %v5930
        %v5954 = vpack.c.b16 %v5933, %v5932
        %v5955 = vpack.c.b16 %v5935, %v5934
        %v5956 = vpack.c.b16 %v5937, %v5936
        %v5957 = vpack.c.b16 %v5939, %v5938
        %v5958 = vpack.c.b16 %v5941, %v5940
        %v5959 = vpack.c.b16 %v5943, %v5942
        %v5960 = vpack.c.b16 %v5945, %v5944
        %v5961 = vpack.c.b16 %v5947, %v5946
        %v5962 = vpack.c.b16 %v5949, %v5948
        %v5963 = vpack.c.b16 %v5951, %v5950
        %v5977 = vsel %vm2839, %v5857, 0
        %v5980 = vsel %vm2839, %v5859, 0
        %v5983 = vsel %vm2839, %v5861, 0
        %v5986 = vsel %vm2839, %v5863, 0
        %v5989 = vsel %vm2839, %v5865, 0
        %v5992 = vsel %vm2839, %v5867, 0
        %v5995 = vsel %vm2839, %v5869, 0
        %v5998 = vsel %vm2839, %v5871, 0
        %v6001 = vsel %vm2839, %v5873, 0
        %v6004 = vsel %vm2839, %v5875, 0
        %v6007 = vsel %vm2839, %v5877, 0
        %v6010 = vsel %vm2839, %v5879, 0
        %v6013 = vsel %vm2839, %v5881, 0
        %v6016 = vsel %vm2839, %v5883, 0
        %v6019 = vsel %vm2839, %v5885, 0
        %v6022 = vsel %vm2839, %v5887, 0
        %6024 = vmatpush.bf16.msra.mxu0 %v5959
        %6025 = vmatpush.bf16.msra.mxu0 %v5958
        %6026 = vmatpush.bf16.msra.mxu0 %v5957
        %6027 = vmatpush.bf16.msra.mxu0 %v5956
        %6028 = vmatpush.bf16.msra.mxu0 %v5955
        %6029 = vmatpush.bf16.msra.mxu0 %v5954
        %6030 = vmatpush.bf16.msra.mxu0 %v5953
        %6031 = vmatpush.bf16.msra.mxu0 %v5952
        %6032 = vmatmul.bf16.gmra.mxu0 %v5856
        %v6033 = vpop.f32.mrf.mxu0
        %v6034 = vadd.f32 %v5758, %v6033
        %v6035 = vpop.f32.mrf.mxu0
        %v6036 = vadd.f32 %v5758, %v6035
        %6037 = vmatmul.bf16.gmra.mxu0 %v5858
        %v6038 = vpop.f32.mrf.mxu0
        %v6039 = vadd.f32 %v5758, %v6038
        %v6040 = vpop.f32.mrf.mxu0
        %v6041 = vadd.f32 %v5758, %v6040
        %6042 = vmatmul.bf16.gmra.mxu0 %v5860
        %v6043 = vpop.f32.mrf.mxu0
        %v6044 = vadd.f32 %v5758, %v6043
        %v6045 = vpop.f32.mrf.mxu0
        %v6046 = vadd.f32 %v5758, %v6045
        %6047 = vmatmul.bf16.gmra.mxu0 %v5862
        %v6048 = vpop.f32.mrf.mxu0
        %v6049 = vadd.f32 %v5758, %v6048
        %v6050 = vpop.f32.mrf.mxu0
        %v6051 = vadd.f32 %v5758, %v6050
        %6052 = vmatmul.bf16.gmra.mxu0 %v5864
        %v6053 = vpop.f32.mrf.mxu0
        %v6054 = vadd.f32 %v5758, %v6053
        %v6055 = vpop.f32.mrf.mxu0
        %v6056 = vadd.f32 %v5758, %v6055
        %6057 = vmatmul.bf16.gmra.mxu0 %v5866
        %v6058 = vpop.f32.mrf.mxu0
        %v6059 = vadd.f32 %v5758, %v6058
        %v6060 = vpop.f32.mrf.mxu0
        %v6061 = vadd.f32 %v5758, %v6060
        %6062 = vmatmul.bf16.gmra.mxu0 %v5868
        %v6063 = vpop.f32.mrf.mxu0
        %v6064 = vadd.f32 %v5758, %v6063
        %v6065 = vpop.f32.mrf.mxu0
        %v6066 = vadd.f32 %v5758, %v6065
        %6067 = vmatmul.bf16.gmra.mxu0 %v5870
        %v6068 = vpop.f32.mrf.mxu0
        %v6069 = vadd.f32 %v5758, %v6068
        %v6070 = vpop.f32.mrf.mxu0
        %v6071 = vadd.f32 %v5758, %v6070
        %6072 = vmatmul.bf16.gmra.mxu0 %v5872
        %v6073 = vpop.f32.mrf.mxu0
        %v6074 = vadd.f32 %v5758, %v6073
        %v6075 = vpop.f32.mrf.mxu0
        %v6076 = vadd.f32 %v5758, %v6075
        %6077 = vmatmul.bf16.gmra.mxu0 %v5874
        %v6078 = vpop.f32.mrf.mxu0
        %v6079 = vadd.f32 %v5758, %v6078
        %v6080 = vpop.f32.mrf.mxu0
        %v6081 = vadd.f32 %v5758, %v6080
        %6082 = vmatmul.bf16.gmra.mxu0 %v5876
        %v6083 = vpop.f32.mrf.mxu0
        %v6084 = vadd.f32 %v5758, %v6083
        %v6085 = vpop.f32.mrf.mxu0
        %v6086 = vadd.f32 %v5758, %v6085
        %6087 = vmatmul.bf16.gmra.mxu0 %v5878
        %v6088 = vpop.f32.mrf.mxu0
        %v6089 = vadd.f32 %v5758, %v6088
        %v6090 = vpop.f32.mrf.mxu0
        %v6091 = vadd.f32 %v5758, %v6090
        %6092 = vmatmul.bf16.gmra.mxu0 %v5880
        %v6093 = vpop.f32.mrf.mxu0
        %v6094 = vadd.f32 %v5758, %v6093
        %v6095 = vpop.f32.mrf.mxu0
        %v6096 = vadd.f32 %v5758, %v6095
        %6097 = vmatmul.bf16.gmra.mxu0 %v5882
        %v6098 = vpop.f32.mrf.mxu0
        %v6099 = vadd.f32 %v5758, %v6098
        %v6100 = vpop.f32.mrf.mxu0
        %v6101 = vadd.f32 %v5758, %v6100
        %6102 = vmatmul.bf16.gmra.mxu0 %v5884
        %v6103 = vpop.f32.mrf.mxu0
        %v6104 = vadd.f32 %v5758, %v6103
        %v6105 = vpop.f32.mrf.mxu0
        %v6106 = vadd.f32 %v5758, %v6105
        %6107 = vmatmul.bf16.gmra.mxu0 %v5886
        %v6108 = vpop.f32.mrf.mxu0
        %v6109 = vadd.f32 %v5758, %v6108
        %v6110 = vpop.f32.mrf.mxu0
        %v6111 = vadd.f32 %v5758, %v6110
        %6112 = vdwg.mxu0
        %6113 = vmatpush.bf16.msra.mxu0 0
        %6114 = vmatpush.bf16.msra.mxu0 0
        %6115 = vmatpush.bf16.msra.mxu0 0
        %6116 = vmatpush.bf16.msra.mxu0 0
        %6117 = vmatpush.bf16.msra.mxu0 %v5963
        %6118 = vmatpush.bf16.msra.mxu0 %v5962
        %6119 = vmatpush.bf16.msra.mxu0 %v5961
        %6120 = vmatpush.bf16.msra.mxu0 %v5960
        %6121 = vmatmul.bf16.gmra.mxu0 %v5977
        %v6122 = vpop.f32.mrf.mxu0
        %v6123 = vadd.f32 %v6034, %v6122
        %v6124 = vpop.f32.mrf.mxu0
        %v6125 = vadd.f32 %v6036, %v6124
        %6126 = vmatmul.bf16.gmra.mxu0 %v5980
        %v6127 = vpop.f32.mrf.mxu0
        %v6128 = vadd.f32 %v6039, %v6127
        %v6129 = vpop.f32.mrf.mxu0
        %v6130 = vadd.f32 %v6041, %v6129
        %6131 = vmatmul.bf16.gmra.mxu0 %v5983
        %v6132 = vpop.f32.mrf.mxu0
        %v6133 = vadd.f32 %v6044, %v6132
        %v6134 = vpop.f32.mrf.mxu0
        %v6135 = vadd.f32 %v6046, %v6134
        %6136 = vmatmul.bf16.gmra.mxu0 %v5986
        %v6137 = vpop.f32.mrf.mxu0
        %v6138 = vadd.f32 %v6049, %v6137
        %v6139 = vpop.f32.mrf.mxu0
        %v6140 = vadd.f32 %v6051, %v6139
        %6141 = vmatmul.bf16.gmra.mxu0 %v5989
        %v6142 = vpop.f32.mrf.mxu0
        %v6143 = vadd.f32 %v6054, %v6142
        %v6144 = vpop.f32.mrf.mxu0
        %v6145 = vadd.f32 %v6056, %v6144
        %6146 = vmatmul.bf16.gmra.mxu0 %v5992
        %v6147 = vpop.f32.mrf.mxu0
        %v6148 = vadd.f32 %v6059, %v6147
        %v6149 = vpop.f32.mrf.mxu0
        %v6150 = vadd.f32 %v6061, %v6149
        %6151 = vmatmul.bf16.gmra.mxu0 %v5995
        %v6152 = vpop.f32.mrf.mxu0
        %v6153 = vadd.f32 %v6064, %v6152
        %v6154 = vpop.f32.mrf.mxu0
        %v6155 = vadd.f32 %v6066, %v6154
        %6156 = vmatmul.bf16.gmra.mxu0 %v5998
        %v6157 = vpop.f32.mrf.mxu0
        %v6158 = vadd.f32 %v6069, %v6157
        %v6159 = vpop.f32.mrf.mxu0
        %v6160 = vadd.f32 %v6071, %v6159
        %6161 = vmatmul.bf16.gmra.mxu0 %v6001
        %v6162 = vpop.f32.mrf.mxu0
        %v6163 = vadd.f32 %v6074, %v6162
        %v6164 = vpop.f32.mrf.mxu0
        %v6165 = vadd.f32 %v6076, %v6164
        %6166 = vmatmul.bf16.gmra.mxu0 %v6004
        %v6167 = vpop.f32.mrf.mxu0
        %v6168 = vadd.f32 %v6079, %v6167
        %v6169 = vpop.f32.mrf.mxu0
        %v6170 = vadd.f32 %v6081, %v6169
        %6171 = vmatmul.bf16.gmra.mxu0 %v6007
        %v6172 = vpop.f32.mrf.mxu0
        %v6173 = vadd.f32 %v6084, %v6172
        %v6174 = vpop.f32.mrf.mxu0
        %v6175 = vadd.f32 %v6086, %v6174
        %6176 = vmatmul.bf16.gmra.mxu0 %v6010
        %v6177 = vpop.f32.mrf.mxu0
        %v6178 = vadd.f32 %v6089, %v6177
        %v6179 = vpop.f32.mrf.mxu0
        %v6180 = vadd.f32 %v6091, %v6179
        %6181 = vmatmul.bf16.gmra.mxu0 %v6013
        %v6182 = vpop.f32.mrf.mxu0
        %v6183 = vadd.f32 %v6094, %v6182
        %v6184 = vpop.f32.mrf.mxu0
        %v6185 = vadd.f32 %v6096, %v6184
        %6186 = vmatmul.bf16.gmra.mxu0 %v6016
        %v6187 = vpop.f32.mrf.mxu0
        %v6188 = vadd.f32 %v6099, %v6187
        %v6189 = vpop.f32.mrf.mxu0
        %v6190 = vadd.f32 %v6101, %v6189
        %6191 = vmatmul.bf16.gmra.mxu0 %v6019
        %v6192 = vpop.f32.mrf.mxu0
        %v6193 = vadd.f32 %v6104, %v6192
        %v6194 = vpop.f32.mrf.mxu0
        %v6195 = vadd.f32 %v6106, %v6194
        %6196 = vmatmul.bf16.gmra.mxu0 %v6022
        %v6197 = vpop.f32.mrf.mxu0
        %v6198 = vadd.f32 %v6109, %v6197
        %v6199 = vpop.f32.mrf.mxu0
        %v6200 = vadd.f32 %v6111, %v6199
        %6201 = vdwg.mxu0
        %v6202 = vld [vmem:[%s3066] sm:$0xff]
        %v6203 = vld [vmem:[%s3066 + $0x8] sm:$0xff]
        %v6204 = vld [vmem:[%s3066 + $0x10] sm:$0xff]
        %v6205 = vld [vmem:[%s3066 + $0x18] sm:$0xff]
        %v6206 = vld [vmem:[%s3066 + $0x20] sm:$0xff]
        %v6207 = vld [vmem:[%s3066 + $0x28] sm:$0xff]
        %v6208 = vld [vmem:[%s3066 + $0x30] sm:$0xff]
        %v6209 = vld [vmem:[%s3066 + $0x38] sm:$0xff]
        %v6210 = vld [vmem:[%s3066 + $0x40] sm:$0xff]
        %v6211 = vld [vmem:[%s3066 + $0x48] sm:$0xff]
        %v6212 = vld [vmem:[%s3066 + $0x50] sm:$0xff]
        %v6213 = vld [vmem:[%s3066 + $0x58] sm:$0xff]
        %v6214 = vld [vmem:[%s3066 + $0x60] sm:$0xff]
        %v6215 = vld [vmem:[%s3066 + $0x68] sm:$0xff]
        %v6216 = vld [vmem:[%s3066 + $0x70] sm:$0xff]
        %v6217 = vld [vmem:[%s3066 + $0x78] sm:$0xff]
        %v6218 = vld [vmem:[%s3066 + $0x80] sm:$0xff]
        %v6219 = vld [vmem:[%s3066 + $0x88] sm:$0xff]
        %v6220 = vld [vmem:[%s3066 + $0x90] sm:$0xff]
        %v6221 = vld [vmem:[%s3066 + $0x98] sm:$0xff]
        %v6222 = vld [vmem:[%s3066 + $0xa0] sm:$0xff]
        %v6223 = vld [vmem:[%s3066 + $0xa8] sm:$0xff]
        %v6224 = vld [vmem:[%s3066 + $0xb0] sm:$0xff]
        %v6225 = vld [vmem:[%s3066 + $0xb8] sm:$0xff]
        %v6226 = vld [vmem:[%s3066 + $0xc0] sm:$0xff]
        %v6227 = vld [vmem:[%s3066 + $0xc8] sm:$0xff]
        %v6228 = vld [vmem:[%s3066 + $0xd0] sm:$0xff]
        %v6229 = vld [vmem:[%s3066 + $0xd8] sm:$0xff]
        %v6230 = vld [vmem:[%s3066 + $0xe0] sm:$0xff]
        %v6231 = vld [vmem:[%s3066 + $0xe8] sm:$0xff]
        %v6232 = vld [vmem:[%s3066 + $0xf0] sm:$0xff]
        %v6233 = vld [vmem:[%s3066 + $0xf8] sm:$0xff]
        %s6234 = scalar_lea.vmem %s5, 96
        %v6235 = vld [vmem:[%s6234] sm:$0xf]
        %v6236 = vld [vmem:[%s6234 + $0x4] sm:$0xf]
        %v6237 = vld [vmem:[%s6234 + $0x8] sm:$0xf]
        %v6238 = vld [vmem:[%s6234 + $0xc] sm:$0xf]
        %v6239 = vld [vmem:[%s6234 + $0x10] sm:$0xf]
        %v6240 = vld [vmem:[%s6234 + $0x14] sm:$0xf]
        %v6241 = vld [vmem:[%s6234 + $0x18] sm:$0xf]
        %v6242 = vld [vmem:[%s6234 + $0x1c] sm:$0xf]
        %v6243 = vld [vmem:[%s6234 + $0x20] sm:$0xf]
        %v6244 = vld [vmem:[%s6234 + $0x24] sm:$0xf]
        %v6245 = vld [vmem:[%s6234 + $0x28] sm:$0xf]
        %v6246 = vld [vmem:[%s6234 + $0x2c] sm:$0xf]
        %v6247 = vld [vmem:[%s6234 + $0x30] sm:$0xf]
        %v6248 = vld [vmem:[%s6234 + $0x34] sm:$0xf]
        %v6249 = vld [vmem:[%s6234 + $0x38] sm:$0xf]
        %v6250 = vld [vmem:[%s6234 + $0x3c] sm:$0xf]
        %v6251 = vld [vmem:[%s6234 + $0x40] sm:$0xf]
        %v6252 = vld [vmem:[%s6234 + $0x44] sm:$0xf]
        %v6253 = vld [vmem:[%s6234 + $0x48] sm:$0xf]
        %v6254 = vld [vmem:[%s6234 + $0x4c] sm:$0xf]
        %v6255 = vld [vmem:[%s6234 + $0x50] sm:$0xf]
        %v6256 = vld [vmem:[%s6234 + $0x54] sm:$0xf]
        %v6257 = vld [vmem:[%s6234 + $0x58] sm:$0xf]
        %v6258 = vld [vmem:[%s6234 + $0x5c] sm:$0xf]
        %v6291 = vunpack.c.l.b16 %v6202
        %v6292 = vunpack.c.h.b16 %v6202
        %v6293 = vunpack.c.l.b16 %v6203
        %v6294 = vunpack.c.h.b16 %v6203
        %v6295 = vunpack.c.l.b16 %v6204
        %v6296 = vunpack.c.h.b16 %v6204
        %v6297 = vunpack.c.l.b16 %v6205
        %v6298 = vunpack.c.h.b16 %v6205
        %v6299 = vunpack.c.l.b16 %v6206
        %v6300 = vunpack.c.h.b16 %v6206
        %v6301 = vunpack.c.l.b16 %v6207
        %v6302 = vunpack.c.h.b16 %v6207
        %v6303 = vunpack.c.l.b16 %v6208
        %v6304 = vunpack.c.h.b16 %v6208
        %v6305 = vunpack.c.l.b16 %v6209
        %v6306 = vunpack.c.h.b16 %v6209
        %v6307 = vunpack.c.l.b16 %v6210
        %v6308 = vunpack.c.h.b16 %v6210
        %v6309 = vunpack.c.l.b16 %v6211
        %v6310 = vunpack.c.h.b16 %v6211
        %v6311 = vunpack.c.l.b16 %v6212
        %v6312 = vunpack.c.h.b16 %v6212
        %v6313 = vunpack.c.l.b16 %v6213
        %v6314 = vunpack.c.h.b16 %v6213
        %v6315 = vunpack.c.l.b16 %v6214
        %v6316 = vunpack.c.h.b16 %v6214
        %v6317 = vunpack.c.l.b16 %v6215
        %v6318 = vunpack.c.h.b16 %v6215
        %v6319 = vunpack.c.l.b16 %v6216
        %v6320 = vunpack.c.h.b16 %v6216
        %v6321 = vunpack.c.l.b16 %v6217
        %v6322 = vunpack.c.h.b16 %v6217
        %v6323 = vunpack.c.l.b16 %v6218
        %v6324 = vunpack.c.h.b16 %v6218
        %v6325 = vunpack.c.l.b16 %v6219
        %v6326 = vunpack.c.h.b16 %v6219
        %v6327 = vunpack.c.l.b16 %v6220
        %v6328 = vunpack.c.h.b16 %v6220
        %v6329 = vunpack.c.l.b16 %v6221
        %v6330 = vunpack.c.h.b16 %v6221
        %v6331 = vunpack.c.l.b16 %v6222
        %v6332 = vunpack.c.h.b16 %v6222
        %v6333 = vunpack.c.l.b16 %v6223
        %v6334 = vunpack.c.h.b16 %v6223
        %v6335 = vunpack.c.l.b16 %v6224
        %v6336 = vunpack.c.h.b16 %v6224
        %v6337 = vunpack.c.l.b16 %v6225
        %v6338 = vunpack.c.h.b16 %v6225
        %v6339 = vunpack.c.l.b16 %v6226
        %v6340 = vunpack.c.h.b16 %v6226
        %v6341 = vunpack.c.l.b16 %v6227
        %v6342 = vunpack.c.h.b16 %v6227
        %v6343 = vunpack.c.l.b16 %v6228
        %v6344 = vunpack.c.h.b16 %v6228
        %v6345 = vunpack.c.l.b16 %v6229
        %v6346 = vunpack.c.h.b16 %v6229
        %v6347 = vunpack.c.l.b16 %v6230
        %v6348 = vunpack.c.h.b16 %v6230
        %v6349 = vunpack.c.l.b16 %v6231
        %v6350 = vunpack.c.h.b16 %v6231
        %v6351 = vunpack.c.l.b16 %v6232
        %v6352 = vunpack.c.h.b16 %v6232
        %v6353 = vunpack.c.l.b16 %v6233
        %v6354 = vunpack.c.h.b16 %v6233
        %v6355 = vpack.c.b16 %v6293, %v6291
        %v6356 = vpack.c.b16 %v6294, %v6292
        %v6357 = vpack.c.b16 %v6297, %v6295
        %v6358 = vpack.c.b16 %v6298, %v6296
        %v6359 = vpack.c.b16 %v6301, %v6299
        %v6360 = vpack.c.b16 %v6302, %v6300
        %v6361 = vpack.c.b16 %v6305, %v6303
        %v6362 = vpack.c.b16 %v6306, %v6304
        %v6363 = vpack.c.b16 %v6309, %v6307
        %v6364 = vpack.c.b16 %v6310, %v6308
        %v6365 = vpack.c.b16 %v6313, %v6311
        %v6366 = vpack.c.b16 %v6314, %v6312
        %v6367 = vpack.c.b16 %v6317, %v6315
        %v6368 = vpack.c.b16 %v6318, %v6316
        %v6369 = vpack.c.b16 %v6321, %v6319
        %v6370 = vpack.c.b16 %v6322, %v6320
        %v6371 = vpack.c.b16 %v6325, %v6323
        %v6372 = vpack.c.b16 %v6326, %v6324
        %v6373 = vpack.c.b16 %v6329, %v6327
        %v6374 = vpack.c.b16 %v6330, %v6328
        %v6375 = vpack.c.b16 %v6333, %v6331
        %v6376 = vpack.c.b16 %v6334, %v6332
        %v6377 = vpack.c.b16 %v6337, %v6335
        %v6378 = vpack.c.b16 %v6338, %v6336
        %v6379 = vpack.c.b16 %v6341, %v6339
        %v6380 = vpack.c.b16 %v6342, %v6340
        %v6381 = vpack.c.b16 %v6345, %v6343
        %v6382 = vpack.c.b16 %v6346, %v6344
        %v6383 = vpack.c.b16 %v6349, %v6347
        %v6384 = vpack.c.b16 %v6350, %v6348
        %v6385 = vpack.c.b16 %v6353, %v6351
        %v6386 = vpack.c.b16 %v6354, %v6352
        %v6427 = vunpack.c.l.b16 %v6235
        %v6428 = vunpack.c.l.b16 %v6236
        %v6429 = vunpack.c.l.b16 %v6237
        %v6430 = vunpack.c.l.b16 %v6238
        %v6431 = vunpack.c.l.b16 %v6239
        %v6432 = vunpack.c.l.b16 %v6240
        %v6433 = vunpack.c.l.b16 %v6241
        %v6434 = vunpack.c.l.b16 %v6242
        %v6435 = vunpack.c.l.b16 %v6243
        %v6436 = vunpack.c.l.b16 %v6244
        %v6437 = vunpack.c.l.b16 %v6245
        %v6438 = vunpack.c.l.b16 %v6246
        %v6439 = vunpack.c.l.b16 %v6247
        %v6440 = vunpack.c.l.b16 %v6248
        %v6441 = vunpack.c.l.b16 %v6249
        %v6442 = vunpack.c.l.b16 %v6250
        %v6443 = vunpack.c.l.b16 %v6251
        %v6444 = vunpack.c.l.b16 %v6252
        %v6445 = vunpack.c.l.b16 %v6253
        %v6446 = vunpack.c.l.b16 %v6254
        %v6447 = vunpack.c.l.b16 %v6255
        %v6448 = vunpack.c.l.b16 %v6256
        %v6449 = vunpack.c.l.b16 %v6257
        %v6450 = vunpack.c.l.b16 %v6258
        %v6451 = vpack.c.b16 %v6428, %v6427
        %v6452 = vpack.c.b16 %v6430, %v6429
        %v6453 = vpack.c.b16 %v6432, %v6431
        %v6454 = vpack.c.b16 %v6434, %v6433
        %v6455 = vpack.c.b16 %v6436, %v6435
        %v6456 = vpack.c.b16 %v6438, %v6437
        %v6457 = vpack.c.b16 %v6440, %v6439
        %v6458 = vpack.c.b16 %v6442, %v6441
        %v6459 = vpack.c.b16 %v6444, %v6443
        %v6460 = vpack.c.b16 %v6446, %v6445
        %v6461 = vpack.c.b16 %v6448, %v6447
        %v6462 = vpack.c.b16 %v6450, %v6449
        %v6476 = vsel %vm2839, %v6356, 0
        %v6479 = vsel %vm2839, %v6358, 0
        %v6482 = vsel %vm2839, %v6360, 0
        %v6485 = vsel %vm2839, %v6362, 0
        %v6488 = vsel %vm2839, %v6364, 0
        %v6491 = vsel %vm2839, %v6366, 0
        %v6494 = vsel %vm2839, %v6368, 0
        %v6497 = vsel %vm2839, %v6370, 0
        %v6500 = vsel %vm2839, %v6372, 0
        %v6503 = vsel %vm2839, %v6374, 0
        %v6506 = vsel %vm2839, %v6376, 0
        %v6509 = vsel %vm2839, %v6378, 0
        %v6512 = vsel %vm2839, %v6380, 0
        %v6515 = vsel %vm2839, %v6382, 0
        %v6518 = vsel %vm2839, %v6384, 0
        %v6521 = vsel %vm2839, %v6386, 0
        %6523 = vmatpush.bf16.msra.mxu0 %v6458
        %6524 = vmatpush.bf16.msra.mxu0 %v6457
        %6525 = vmatpush.bf16.msra.mxu0 %v6456
        %6526 = vmatpush.bf16.msra.mxu0 %v6455
        %6527 = vmatpush.bf16.msra.mxu0 %v6454
        %6528 = vmatpush.bf16.msra.mxu0 %v6453
        %6529 = vmatpush.bf16.msra.mxu0 %v6452
        %6530 = vmatpush.bf16.msra.mxu0 %v6451
        %6531 = vmatmul.bf16.gmra.mxu0 %v6355
        %v6532 = vpop.f32.mrf.mxu0
        %v6533 = vadd.f32 0.0, %v6532
        %v6534 = vpop.f32.mrf.mxu0
        %v6535 = vadd.f32 0.0, %v6534
        %6536 = vmatmul.bf16.gmra.mxu0 %v6357
        %v6537 = vpop.f32.mrf.mxu0
        %v6538 = vadd.f32 0.0, %v6537
        %v6539 = vpop.f32.mrf.mxu0
        %v6540 = vadd.f32 0.0, %v6539
        %6541 = vmatmul.bf16.gmra.mxu0 %v6359
        %v6542 = vpop.f32.mrf.mxu0
        %v6543 = vadd.f32 0.0, %v6542
        %v6544 = vpop.f32.mrf.mxu0
        %v6545 = vadd.f32 0.0, %v6544
        %6546 = vmatmul.bf16.gmra.mxu0 %v6361
        %v6547 = vpop.f32.mrf.mxu0
        %v6548 = vadd.f32 0.0, %v6547
        %v6549 = vpop.f32.mrf.mxu0
        %v6550 = vadd.f32 0.0, %v6549
        %6551 = vmatmul.bf16.gmra.mxu0 %v6363
        %v6552 = vpop.f32.mrf.mxu0
        %v6553 = vadd.f32 0.0, %v6552
        %v6554 = vpop.f32.mrf.mxu0
        %v6555 = vadd.f32 0.0, %v6554
        %6556 = vmatmul.bf16.gmra.mxu0 %v6365
        %v6557 = vpop.f32.mrf.mxu0
        %v6558 = vadd.f32 0.0, %v6557
        %v6559 = vpop.f32.mrf.mxu0
        %v6560 = vadd.f32 0.0, %v6559
        %6561 = vmatmul.bf16.gmra.mxu0 %v6367
        %v6562 = vpop.f32.mrf.mxu0
        %v6563 = vadd.f32 0.0, %v6562
        %v6564 = vpop.f32.mrf.mxu0
        %v6565 = vadd.f32 0.0, %v6564
        %6566 = vmatmul.bf16.gmra.mxu0 %v6369
        %v6567 = vpop.f32.mrf.mxu0
        %v6568 = vadd.f32 0.0, %v6567
        %v6569 = vpop.f32.mrf.mxu0
        %v6570 = vadd.f32 0.0, %v6569
        %6571 = vmatmul.bf16.gmra.mxu0 %v6371
        %v6572 = vpop.f32.mrf.mxu0
        %v6573 = vadd.f32 0.0, %v6572
        %v6574 = vpop.f32.mrf.mxu0
        %v6575 = vadd.f32 0.0, %v6574
        %6576 = vmatmul.bf16.gmra.mxu0 %v6373
        %v6577 = vpop.f32.mrf.mxu0
        %v6578 = vadd.f32 0.0, %v6577
        %v6579 = vpop.f32.mrf.mxu0
        %v6580 = vadd.f32 0.0, %v6579
        %6581 = vmatmul.bf16.gmra.mxu0 %v6375
        %v6582 = vpop.f32.mrf.mxu0
        %v6583 = vadd.f32 0.0, %v6582
        %v6584 = vpop.f32.mrf.mxu0
        %v6585 = vadd.f32 0.0, %v6584
        %6586 = vmatmul.bf16.gmra.mxu0 %v6377
        %v6587 = vpop.f32.mrf.mxu0
        %v6588 = vadd.f32 0.0, %v6587
        %v6589 = vpop.f32.mrf.mxu0
        %v6590 = vadd.f32 0.0, %v6589
        %6591 = vmatmul.bf16.gmra.mxu0 %v6379
        %v6592 = vpop.f32.mrf.mxu0
        %v6593 = vadd.f32 0.0, %v6592
        %v6594 = vpop.f32.mrf.mxu0
        %v6595 = vadd.f32 0.0, %v6594
        %6596 = vmatmul.bf16.gmra.mxu0 %v6381
        %v6597 = vpop.f32.mrf.mxu0
        %v6598 = vadd.f32 0.0, %v6597
        %v6599 = vpop.f32.mrf.mxu0
        %v6600 = vadd.f32 0.0, %v6599
        %6601 = vmatmul.bf16.gmra.mxu0 %v6383
        %v6602 = vpop.f32.mrf.mxu0
        %v6603 = vadd.f32 0.0, %v6602
        %v6604 = vpop.f32.mrf.mxu0
        %v6605 = vadd.f32 0.0, %v6604
        %6606 = vmatmul.bf16.gmra.mxu0 %v6385
        %v6607 = vpop.f32.mrf.mxu0
        %v6608 = vadd.f32 0.0, %v6607
        %v6609 = vpop.f32.mrf.mxu0
        %v6610 = vadd.f32 0.0, %v6609
        %6611 = vdwg.mxu0
        %6612 = vmatpush.bf16.msra.mxu0 0
        %6613 = vmatpush.bf16.msra.mxu0 0
        %6614 = vmatpush.bf16.msra.mxu0 0
        %6615 = vmatpush.bf16.msra.mxu0 0
        %6616 = vmatpush.bf16.msra.mxu0 %v6462
        %6617 = vmatpush.bf16.msra.mxu0 %v6461
        %6618 = vmatpush.bf16.msra.mxu0 %v6460
        %6619 = vmatpush.bf16.msra.mxu0 %v6459
        %6620 = vmatmul.bf16.gmra.mxu0 %v6476
        %v6621 = vpop.f32.mrf.mxu0
        %v6622 = vadd.f32 %v6533, %v6621
        %v6623 = vpop.f32.mrf.mxu0
        %v6624 = vadd.f32 %v6535, %v6623
        %6625 = vmatmul.bf16.gmra.mxu0 %v6479
        %v6626 = vpop.f32.mrf.mxu0
        %v6627 = vadd.f32 %v6538, %v6626
        %v6628 = vpop.f32.mrf.mxu0
        %v6629 = vadd.f32 %v6540, %v6628
        %6630 = vmatmul.bf16.gmra.mxu0 %v6482
        %v6631 = vpop.f32.mrf.mxu0
        %v6632 = vadd.f32 %v6543, %v6631
        %v6633 = vpop.f32.mrf.mxu0
        %v6634 = vadd.f32 %v6545, %v6633
        %6635 = vmatmul.bf16.gmra.mxu0 %v6485
        %v6636 = vpop.f32.mrf.mxu0
        %v6637 = vadd.f32 %v6548, %v6636
        %v6638 = vpop.f32.mrf.mxu0
        %v6639 = vadd.f32 %v6550, %v6638
        %6640 = vmatmul.bf16.gmra.mxu0 %v6488
        %v6641 = vpop.f32.mrf.mxu0
        %v6642 = vadd.f32 %v6553, %v6641
        %v6643 = vpop.f32.mrf.mxu0
        %v6644 = vadd.f32 %v6555, %v6643
        %6645 = vmatmul.bf16.gmra.mxu0 %v6491
        %v6646 = vpop.f32.mrf.mxu0
        %v6647 = vadd.f32 %v6558, %v6646
        %v6648 = vpop.f32.mrf.mxu0
        %v6649 = vadd.f32 %v6560, %v6648
        %6650 = vmatmul.bf16.gmra.mxu0 %v6494
        %v6651 = vpop.f32.mrf.mxu0
        %v6652 = vadd.f32 %v6563, %v6651
        %v6653 = vpop.f32.mrf.mxu0
        %v6654 = vadd.f32 %v6565, %v6653
        %6655 = vmatmul.bf16.gmra.mxu0 %v6497
        %v6656 = vpop.f32.mrf.mxu0
        %v6657 = vadd.f32 %v6568, %v6656
        %v6658 = vpop.f32.mrf.mxu0
        %v6659 = vadd.f32 %v6570, %v6658
        %6660 = vmatmul.bf16.gmra.mxu0 %v6500
        %v6661 = vpop.f32.mrf.mxu0
        %v6662 = vadd.f32 %v6573, %v6661
        %v6663 = vpop.f32.mrf.mxu0
        %v6664 = vadd.f32 %v6575, %v6663
        %6665 = vmatmul.bf16.gmra.mxu0 %v6503
        %v6666 = vpop.f32.mrf.mxu0
        %v6667 = vadd.f32 %v6578, %v6666
        %v6668 = vpop.f32.mrf.mxu0
        %v6669 = vadd.f32 %v6580, %v6668
        %6670 = vmatmul.bf16.gmra.mxu0 %v6506
        %v6671 = vpop.f32.mrf.mxu0
        %v6672 = vadd.f32 %v6583, %v6671
        %v6673 = vpop.f32.mrf.mxu0
        %v6674 = vadd.f32 %v6585, %v6673
        %6675 = vmatmul.bf16.gmra.mxu0 %v6509
        %v6676 = vpop.f32.mrf.mxu0
        %v6677 = vadd.f32 %v6588, %v6676
        %v6678 = vpop.f32.mrf.mxu0
        %v6679 = vadd.f32 %v6590, %v6678
        %6680 = vmatmul.bf16.gmra.mxu0 %v6512
        %v6681 = vpop.f32.mrf.mxu0
        %v6682 = vadd.f32 %v6593, %v6681
        %v6683 = vpop.f32.mrf.mxu0
        %v6684 = vadd.f32 %v6595, %v6683
        %6685 = vmatmul.bf16.gmra.mxu0 %v6515
        %v6686 = vpop.f32.mrf.mxu0
        %v6687 = vadd.f32 %v6598, %v6686
        %v6688 = vpop.f32.mrf.mxu0
        %v6689 = vadd.f32 %v6600, %v6688
        %6690 = vmatmul.bf16.gmra.mxu0 %v6518
        %v6691 = vpop.f32.mrf.mxu0
        %v6692 = vadd.f32 %v6603, %v6691
        %v6693 = vpop.f32.mrf.mxu0
        %v6694 = vadd.f32 %v6605, %v6693
        %6695 = vmatmul.bf16.gmra.mxu0 %v6521
        %v6696 = vpop.f32.mrf.mxu0
        %v6697 = vadd.f32 %v6608, %v6696
        %v6698 = vpop.f32.mrf.mxu0
        %v6699 = vadd.f32 %v6610, %v6698
        %6700 = vdwg.mxu0
        %v6701 = vadd.f32 %v6123, %v6622
        %v6702 = vadd.f32 %v6125, %v6624
        %v6703 = vadd.f32 %v6128, %v6627
        %v6704 = vadd.f32 %v6130, %v6629
        %v6705 = vadd.f32 %v6133, %v6632
        %v6706 = vadd.f32 %v6135, %v6634
        %v6707 = vadd.f32 %v6138, %v6637
        %v6708 = vadd.f32 %v6140, %v6639
        %v6709 = vadd.f32 %v6143, %v6642
        %v6710 = vadd.f32 %v6145, %v6644
        %v6711 = vadd.f32 %v6148, %v6647
        %v6712 = vadd.f32 %v6150, %v6649
        %v6713 = vadd.f32 %v6153, %v6652
        %v6714 = vadd.f32 %v6155, %v6654
        %v6715 = vadd.f32 %v6158, %v6657
        %v6716 = vadd.f32 %v6160, %v6659
        %v6717 = vadd.f32 %v6163, %v6662
        %v6718 = vadd.f32 %v6165, %v6664
        %v6719 = vadd.f32 %v6168, %v6667
        %v6720 = vadd.f32 %v6170, %v6669
        %v6721 = vadd.f32 %v6173, %v6672
        %v6722 = vadd.f32 %v6175, %v6674
        %v6723 = vadd.f32 %v6178, %v6677
        %v6724 = vadd.f32 %v6180, %v6679
        %v6725 = vadd.f32 %v6183, %v6682
        %v6726 = vadd.f32 %v6185, %v6684
        %v6727 = vadd.f32 %v6188, %v6687
        %v6728 = vadd.f32 %v6190, %v6689
        %v6729 = vadd.f32 %v6193, %v6692
        %v6730 = vadd.f32 %v6195, %v6694
        %v6731 = vadd.f32 %v6198, %v6697
        %v6732 = vadd.f32 %v6200, %v6699
        %v6733 = vld [vmem:[%s3598] sm:$0xff]
        %v6734 = vld [vmem:[%s3598 + $0x8] sm:$0xff]
        %v6735 = vld [vmem:[%s3598 + $0x10] sm:$0xff]
        %v6736 = vld [vmem:[%s3598 + $0x18] sm:$0xff]
        %v6737 = vld [vmem:[%s3598 + $0x20] sm:$0xff]
        %v6738 = vld [vmem:[%s3598 + $0x28] sm:$0xff]
        %v6739 = vld [vmem:[%s3598 + $0x30] sm:$0xff]
        %v6740 = vld [vmem:[%s3598 + $0x38] sm:$0xff]
        %v6741 = vld [vmem:[%s3598 + $0x40] sm:$0xff]
        %v6742 = vld [vmem:[%s3598 + $0x48] sm:$0xff]
        %v6743 = vld [vmem:[%s3598 + $0x50] sm:$0xff]
        %v6744 = vld [vmem:[%s3598 + $0x58] sm:$0xff]
        %v6745 = vld [vmem:[%s3598 + $0x60] sm:$0xff]
        %v6746 = vld [vmem:[%s3598 + $0x68] sm:$0xff]
        %v6747 = vld [vmem:[%s3598 + $0x70] sm:$0xff]
        %v6748 = vld [vmem:[%s3598 + $0x78] sm:$0xff]
        %v6749 = vld [vmem:[%s3598 + $0x80] sm:$0xff]
        %v6750 = vld [vmem:[%s3598 + $0x88] sm:$0xff]
        %v6751 = vld [vmem:[%s3598 + $0x90] sm:$0xff]
        %v6752 = vld [vmem:[%s3598 + $0x98] sm:$0xff]
        %v6753 = vld [vmem:[%s3598 + $0xa0] sm:$0xff]
        %v6754 = vld [vmem:[%s3598 + $0xa8] sm:$0xff]
        %v6755 = vld [vmem:[%s3598 + $0xb0] sm:$0xff]
        %v6756 = vld [vmem:[%s3598 + $0xb8] sm:$0xff]
        %v6757 = vld [vmem:[%s3598 + $0xc0] sm:$0xff]
        %v6758 = vld [vmem:[%s3598 + $0xc8] sm:$0xff]
        %v6759 = vld [vmem:[%s3598 + $0xd0] sm:$0xff]
        %v6760 = vld [vmem:[%s3598 + $0xd8] sm:$0xff]
        %v6761 = vld [vmem:[%s3598 + $0xe0] sm:$0xff]
        %v6762 = vld [vmem:[%s3598 + $0xe8] sm:$0xff]
        %v6763 = vld [vmem:[%s3598 + $0xf0] sm:$0xff]
        %v6764 = vld [vmem:[%s3598 + $0xf8] sm:$0xff]
        %s6765 = scalar_lea.vmem %s5, 192
        %v6766 = vld [vmem:[%s6765] sm:$0xf]
        %v6767 = vld [vmem:[%s6765 + $0x4] sm:$0xf]
        %v6768 = vld [vmem:[%s6765 + $0x8] sm:$0xf]
        %v6769 = vld [vmem:[%s6765 + $0xc] sm:$0xf]
        %v6770 = vld [vmem:[%s6765 + $0x10] sm:$0xf]
        %v6771 = vld [vmem:[%s6765 + $0x14] sm:$0xf]
        %v6772 = vld [vmem:[%s6765 + $0x18] sm:$0xf]
        %v6773 = vld [vmem:[%s6765 + $0x1c] sm:$0xf]
        %v6774 = vld [vmem:[%s6765 + $0x20] sm:$0xf]
        %v6775 = vld [vmem:[%s6765 + $0x24] sm:$0xf]
        %v6776 = vld [vmem:[%s6765 + $0x28] sm:$0xf]
        %v6777 = vld [vmem:[%s6765 + $0x2c] sm:$0xf]
        %v6778 = vld [vmem:[%s6765 + $0x30] sm:$0xf]
        %v6779 = vld [vmem:[%s6765 + $0x34] sm:$0xf]
        %v6780 = vld [vmem:[%s6765 + $0x38] sm:$0xf]
        %v6781 = vld [vmem:[%s6765 + $0x3c] sm:$0xf]
        %v6782 = vld [vmem:[%s6765 + $0x40] sm:$0xf]
        %v6783 = vld [vmem:[%s6765 + $0x44] sm:$0xf]
        %v6784 = vld [vmem:[%s6765 + $0x48] sm:$0xf]
        %v6785 = vld [vmem:[%s6765 + $0x4c] sm:$0xf]
        %v6786 = vld [vmem:[%s6765 + $0x50] sm:$0xf]
        %v6787 = vld [vmem:[%s6765 + $0x54] sm:$0xf]
        %v6788 = vld [vmem:[%s6765 + $0x58] sm:$0xf]
        %v6789 = vld [vmem:[%s6765 + $0x5c] sm:$0xf]
        %v6822 = vunpack.c.l.b16 %v6733
        %v6823 = vunpack.c.h.b16 %v6733
        %v6824 = vunpack.c.l.b16 %v6734
        %v6825 = vunpack.c.h.b16 %v6734
        %v6826 = vunpack.c.l.b16 %v6735
        %v6827 = vunpack.c.h.b16 %v6735
        %v6828 = vunpack.c.l.b16 %v6736
        %v6829 = vunpack.c.h.b16 %v6736
        %v6830 = vunpack.c.l.b16 %v6737
        %v6831 = vunpack.c.h.b16 %v6737
        %v6832 = vunpack.c.l.b16 %v6738
        %v6833 = vunpack.c.h.b16 %v6738
        %v6834 = vunpack.c.l.b16 %v6739
        %v6835 = vunpack.c.h.b16 %v6739
        %v6836 = vunpack.c.l.b16 %v6740
        %v6837 = vunpack.c.h.b16 %v6740
        %v6838 = vunpack.c.l.b16 %v6741
        %v6839 = vunpack.c.h.b16 %v6741
        %v6840 = vunpack.c.l.b16 %v6742
        %v6841 = vunpack.c.h.b16 %v6742
        %v6842 = vunpack.c.l.b16 %v6743
        %v6843 = vunpack.c.h.b16 %v6743
        %v6844 = vunpack.c.l.b16 %v6744
        %v6845 = vunpack.c.h.b16 %v6744
        %v6846 = vunpack.c.l.b16 %v6745
        %v6847 = vunpack.c.h.b16 %v6745
        %v6848 = vunpack.c.l.b16 %v6746
        %v6849 = vunpack.c.h.b16 %v6746
        %v6850 = vunpack.c.l.b16 %v6747
        %v6851 = vunpack.c.h.b16 %v6747
        %v6852 = vunpack.c.l.b16 %v6748
        %v6853 = vunpack.c.h.b16 %v6748
        %v6854 = vunpack.c.l.b16 %v6749
        %v6855 = vunpack.c.h.b16 %v6749
        %v6856 = vunpack.c.l.b16 %v6750
        %v6857 = vunpack.c.h.b16 %v6750
        %v6858 = vunpack.c.l.b16 %v6751
        %v6859 = vunpack.c.h.b16 %v6751
        %v6860 = vunpack.c.l.b16 %v6752
        %v6861 = vunpack.c.h.b16 %v6752
        %v6862 = vunpack.c.l.b16 %v6753
        %v6863 = vunpack.c.h.b16 %v6753
        %v6864 = vunpack.c.l.b16 %v6754
        %v6865 = vunpack.c.h.b16 %v6754
        %v6866 = vunpack.c.l.b16 %v6755
        %v6867 = vunpack.c.h.b16 %v6755
        %v6868 = vunpack.c.l.b16 %v6756
        %v6869 = vunpack.c.h.b16 %v6756
        %v6870 = vunpack.c.l.b16 %v6757
        %v6871 = vunpack.c.h.b16 %v6757
        %v6872 = vunpack.c.l.b16 %v6758
        %v6873 = vunpack.c.h.b16 %v6758
        %v6874 = vunpack.c.l.b16 %v6759
        %v6875 = vunpack.c.h.b16 %v6759
        %v6876 = vunpack.c.l.b16 %v6760
        %v6877 = vunpack.c.h.b16 %v6760
        %v6878 = vunpack.c.l.b16 %v6761
        %v6879 = vunpack.c.h.b16 %v6761
        %v6880 = vunpack.c.l.b16 %v6762
        %v6881 = vunpack.c.h.b16 %v6762
        %v6882 = vunpack.c.l.b16 %v6763
        %v6883 = vunpack.c.h.b16 %v6763
        %v6884 = vunpack.c.l.b16 %v6764
        %v6885 = vunpack.c.h.b16 %v6764
        %v6886 = vpack.c.b16 %v6824, %v6822
        %v6887 = vpack.c.b16 %v6825, %v6823
        %v6888 = vpack.c.b16 %v6828, %v6826
        %v6889 = vpack.c.b16 %v6829, %v6827
        %v6890 = vpack.c.b16 %v6832, %v6830
        %v6891 = vpack.c.b16 %v6833, %v6831
        %v6892 = vpack.c.b16 %v6836, %v6834
        %v6893 = vpack.c.b16 %v6837, %v6835
        %v6894 = vpack.c.b16 %v6840, %v6838
        %v6895 = vpack.c.b16 %v6841, %v6839
        %v6896 = vpack.c.b16 %v6844, %v6842
        %v6897 = vpack.c.b16 %v6845, %v6843
        %v6898 = vpack.c.b16 %v6848, %v6846
        %v6899 = vpack.c.b16 %v6849, %v6847
        %v6900 = vpack.c.b16 %v6852, %v6850
        %v6901 = vpack.c.b16 %v6853, %v6851
        %v6902 = vpack.c.b16 %v6856, %v6854
        %v6903 = vpack.c.b16 %v6857, %v6855
        %v6904 = vpack.c.b16 %v6860, %v6858
        %v6905 = vpack.c.b16 %v6861, %v6859
        %v6906 = vpack.c.b16 %v6864, %v6862
        %v6907 = vpack.c.b16 %v6865, %v6863
        %v6908 = vpack.c.b16 %v6868, %v6866
        %v6909 = vpack.c.b16 %v6869, %v6867
        %v6910 = vpack.c.b16 %v6872, %v6870
        %v6911 = vpack.c.b16 %v6873, %v6871
        %v6912 = vpack.c.b16 %v6876, %v6874
        %v6913 = vpack.c.b16 %v6877, %v6875
        %v6914 = vpack.c.b16 %v6880, %v6878
        %v6915 = vpack.c.b16 %v6881, %v6879
        %v6916 = vpack.c.b16 %v6884, %v6882
        %v6917 = vpack.c.b16 %v6885, %v6883
        %v6958 = vunpack.c.l.b16 %v6766
        %v6959 = vunpack.c.l.b16 %v6767
        %v6960 = vunpack.c.l.b16 %v6768
        %v6961 = vunpack.c.l.b16 %v6769
        %v6962 = vunpack.c.l.b16 %v6770
        %v6963 = vunpack.c.l.b16 %v6771
        %v6964 = vunpack.c.l.b16 %v6772
        %v6965 = vunpack.c.l.b16 %v6773
        %v6966 = vunpack.c.l.b16 %v6774
        %v6967 = vunpack.c.l.b16 %v6775
        %v6968 = vunpack.c.l.b16 %v6776
        %v6969 = vunpack.c.l.b16 %v6777
        %v6970 = vunpack.c.l.b16 %v6778
        %v6971 = vunpack.c.l.b16 %v6779
        %v6972 = vunpack.c.l.b16 %v6780
        %v6973 = vunpack.c.l.b16 %v6781
        %v6974 = vunpack.c.l.b16 %v6782
        %v6975 = vunpack.c.l.b16 %v6783
        %v6976 = vunpack.c.l.b16 %v6784
        %v6977 = vunpack.c.l.b16 %v6785
        %v6978 = vunpack.c.l.b16 %v6786
        %v6979 = vunpack.c.l.b16 %v6787
        %v6980 = vunpack.c.l.b16 %v6788
        %v6981 = vunpack.c.l.b16 %v6789
        %v6982 = vpack.c.b16 %v6959, %v6958
        %v6983 = vpack.c.b16 %v6961, %v6960
        %v6984 = vpack.c.b16 %v6963, %v6962
        %v6985 = vpack.c.b16 %v6965, %v6964
        %v6986 = vpack.c.b16 %v6967, %v6966
        %v6987 = vpack.c.b16 %v6969, %v6968
        %v6988 = vpack.c.b16 %v6971, %v6970
        %v6989 = vpack.c.b16 %v6973, %v6972
        %v6990 = vpack.c.b16 %v6975, %v6974
        %v6991 = vpack.c.b16 %v6977, %v6976
        %v6992 = vpack.c.b16 %v6979, %v6978
        %v6993 = vpack.c.b16 %v6981, %v6980
        %v7007 = vsel %vm2839, %v6887, 0
        %v7010 = vsel %vm2839, %v6889, 0
        %v7013 = vsel %vm2839, %v6891, 0
        %v7016 = vsel %vm2839, %v6893, 0
        %v7019 = vsel %vm2839, %v6895, 0
        %v7022 = vsel %vm2839, %v6897, 0
        %v7025 = vsel %vm2839, %v6899, 0
        %v7028 = vsel %vm2839, %v6901, 0
        %v7031 = vsel %vm2839, %v6903, 0
        %v7034 = vsel %vm2839, %v6905, 0
        %v7037 = vsel %vm2839, %v6907, 0
        %v7040 = vsel %vm2839, %v6909, 0
        %v7043 = vsel %vm2839, %v6911, 0
        %v7046 = vsel %vm2839, %v6913, 0
        %v7049 = vsel %vm2839, %v6915, 0
        %v7052 = vsel %vm2839, %v6917, 0
        %7054 = vmatpush.bf16.msra.mxu0 %v6989
        %7055 = vmatpush.bf16.msra.mxu0 %v6988
        %7056 = vmatpush.bf16.msra.mxu0 %v6987
        %7057 = vmatpush.bf16.msra.mxu0 %v6986
        %7058 = vmatpush.bf16.msra.mxu0 %v6985
        %7059 = vmatpush.bf16.msra.mxu0 %v6984
        %7060 = vmatpush.bf16.msra.mxu0 %v6983
        %7061 = vmatpush.bf16.msra.mxu0 %v6982
        %7062 = vmatmul.bf16.gmra.mxu0 %v6886
        %v7063 = vpop.f32.mrf.mxu0
        %v7064 = vadd.f32 0.0, %v7063
        %v7065 = vpop.f32.mrf.mxu0
        %v7066 = vadd.f32 0.0, %v7065
        %7067 = vmatmul.bf16.gmra.mxu0 %v6888
        %v7068 = vpop.f32.mrf.mxu0
        %v7069 = vadd.f32 0.0, %v7068
        %v7070 = vpop.f32.mrf.mxu0
        %v7071 = vadd.f32 0.0, %v7070
        %7072 = vmatmul.bf16.gmra.mxu0 %v6890
        %v7073 = vpop.f32.mrf.mxu0
        %v7074 = vadd.f32 0.0, %v7073
        %v7075 = vpop.f32.mrf.mxu0
        %v7076 = vadd.f32 0.0, %v7075
        %7077 = vmatmul.bf16.gmra.mxu0 %v6892
        %v7078 = vpop.f32.mrf.mxu0
        %v7079 = vadd.f32 0.0, %v7078
        %v7080 = vpop.f32.mrf.mxu0
        %v7081 = vadd.f32 0.0, %v7080
        %7082 = vmatmul.bf16.gmra.mxu0 %v6894
        %v7083 = vpop.f32.mrf.mxu0
        %v7084 = vadd.f32 0.0, %v7083
        %v7085 = vpop.f32.mrf.mxu0
        %v7086 = vadd.f32 0.0, %v7085
        %7087 = vmatmul.bf16.gmra.mxu0 %v6896
        %v7088 = vpop.f32.mrf.mxu0
        %v7089 = vadd.f32 0.0, %v7088
        %v7090 = vpop.f32.mrf.mxu0
        %v7091 = vadd.f32 0.0, %v7090
        %7092 = vmatmul.bf16.gmra.mxu0 %v6898
        %v7093 = vpop.f32.mrf.mxu0
        %v7094 = vadd.f32 0.0, %v7093
        %v7095 = vpop.f32.mrf.mxu0
        %v7096 = vadd.f32 0.0, %v7095
        %7097 = vmatmul.bf16.gmra.mxu0 %v6900
        %v7098 = vpop.f32.mrf.mxu0
        %v7099 = vadd.f32 0.0, %v7098
        %v7100 = vpop.f32.mrf.mxu0
        %v7101 = vadd.f32 0.0, %v7100
        %7102 = vmatmul.bf16.gmra.mxu0 %v6902
        %v7103 = vpop.f32.mrf.mxu0
        %v7104 = vadd.f32 0.0, %v7103
        %v7105 = vpop.f32.mrf.mxu0
        %v7106 = vadd.f32 0.0, %v7105
        %7107 = vmatmul.bf16.gmra.mxu0 %v6904
        %v7108 = vpop.f32.mrf.mxu0
        %v7109 = vadd.f32 0.0, %v7108
        %v7110 = vpop.f32.mrf.mxu0
        %v7111 = vadd.f32 0.0, %v7110
        %7112 = vmatmul.bf16.gmra.mxu0 %v6906
        %v7113 = vpop.f32.mrf.mxu0
        %v7114 = vadd.f32 0.0, %v7113
        %v7115 = vpop.f32.mrf.mxu0
        %v7116 = vadd.f32 0.0, %v7115
        %7117 = vmatmul.bf16.gmra.mxu0 %v6908
        %v7118 = vpop.f32.mrf.mxu0
        %v7119 = vadd.f32 0.0, %v7118
        %v7120 = vpop.f32.mrf.mxu0
        %v7121 = vadd.f32 0.0, %v7120
        %7122 = vmatmul.bf16.gmra.mxu0 %v6910
        %v7123 = vpop.f32.mrf.mxu0
        %v7124 = vadd.f32 0.0, %v7123
        %v7125 = vpop.f32.mrf.mxu0
        %v7126 = vadd.f32 0.0, %v7125
        %7127 = vmatmul.bf16.gmra.mxu0 %v6912
        %v7128 = vpop.f32.mrf.mxu0
        %v7129 = vadd.f32 0.0, %v7128
        %v7130 = vpop.f32.mrf.mxu0
        %v7131 = vadd.f32 0.0, %v7130
        %7132 = vmatmul.bf16.gmra.mxu0 %v6914
        %v7133 = vpop.f32.mrf.mxu0
        %v7134 = vadd.f32 0.0, %v7133
        %v7135 = vpop.f32.mrf.mxu0
        %v7136 = vadd.f32 0.0, %v7135
        %7137 = vmatmul.bf16.gmra.mxu0 %v6916
        %v7138 = vpop.f32.mrf.mxu0
        %v7139 = vadd.f32 0.0, %v7138
        %v7140 = vpop.f32.mrf.mxu0
        %v7141 = vadd.f32 0.0, %v7140
        %7142 = vdwg.mxu0
        %7143 = vmatpush.bf16.msra.mxu0 0
        %7144 = vmatpush.bf16.msra.mxu0 0
        %7145 = vmatpush.bf16.msra.mxu0 0
        %7146 = vmatpush.bf16.msra.mxu0 0
        %7147 = vmatpush.bf16.msra.mxu0 %v6993
        %7148 = vmatpush.bf16.msra.mxu0 %v6992
        %7149 = vmatpush.bf16.msra.mxu0 %v6991
        %7150 = vmatpush.bf16.msra.mxu0 %v6990
        %7151 = vmatmul.bf16.gmra.mxu0 %v7007
        %v7152 = vpop.f32.mrf.mxu0
        %v7153 = vadd.f32 %v7064, %v7152
        %v7154 = vpop.f32.mrf.mxu0
        %v7155 = vadd.f32 %v7066, %v7154
        %7156 = vmatmul.bf16.gmra.mxu0 %v7010
        %v7157 = vpop.f32.mrf.mxu0
        %v7158 = vadd.f32 %v7069, %v7157
        %v7159 = vpop.f32.mrf.mxu0
        %v7160 = vadd.f32 %v7071, %v7159
        %7161 = vmatmul.bf16.gmra.mxu0 %v7013
        %v7162 = vpop.f32.mrf.mxu0
        %v7163 = vadd.f32 %v7074, %v7162
        %v7164 = vpop.f32.mrf.mxu0
        %v7165 = vadd.f32 %v7076, %v7164
        %7166 = vmatmul.bf16.gmra.mxu0 %v7016
        %v7167 = vpop.f32.mrf.mxu0
        %v7168 = vadd.f32 %v7079, %v7167
        %v7169 = vpop.f32.mrf.mxu0
        %v7170 = vadd.f32 %v7081, %v7169
        %7171 = vmatmul.bf16.gmra.mxu0 %v7019
        %v7172 = vpop.f32.mrf.mxu0
        %v7173 = vadd.f32 %v7084, %v7172
        %v7174 = vpop.f32.mrf.mxu0
        %v7175 = vadd.f32 %v7086, %v7174
        %7176 = vmatmul.bf16.gmra.mxu0 %v7022
        %v7177 = vpop.f32.mrf.mxu0
        %v7178 = vadd.f32 %v7089, %v7177
        %v7179 = vpop.f32.mrf.mxu0
        %v7180 = vadd.f32 %v7091, %v7179
        %7181 = vmatmul.bf16.gmra.mxu0 %v7025
        %v7182 = vpop.f32.mrf.mxu0
        %v7183 = vadd.f32 %v7094, %v7182
        %v7184 = vpop.f32.mrf.mxu0
        %v7185 = vadd.f32 %v7096, %v7184
        %7186 = vmatmul.bf16.gmra.mxu0 %v7028
        %v7187 = vpop.f32.mrf.mxu0
        %v7188 = vadd.f32 %v7099, %v7187
        %v7189 = vpop.f32.mrf.mxu0
        %v7190 = vadd.f32 %v7101, %v7189
        %7191 = vmatmul.bf16.gmra.mxu0 %v7031
        %v7192 = vpop.f32.mrf.mxu0
        %v7193 = vadd.f32 %v7104, %v7192
        %v7194 = vpop.f32.mrf.mxu0
        %v7195 = vadd.f32 %v7106, %v7194
        %7196 = vmatmul.bf16.gmra.mxu0 %v7034
        %v7197 = vpop.f32.mrf.mxu0
        %v7198 = vadd.f32 %v7109, %v7197
        %v7199 = vpop.f32.mrf.mxu0
        %v7200 = vadd.f32 %v7111, %v7199
        %7201 = vmatmul.bf16.gmra.mxu0 %v7037
        %v7202 = vpop.f32.mrf.mxu0
        %v7203 = vadd.f32 %v7114, %v7202
        %v7204 = vpop.f32.mrf.mxu0
        %v7205 = vadd.f32 %v7116, %v7204
        %7206 = vmatmul.bf16.gmra.mxu0 %v7040
        %v7207 = vpop.f32.mrf.mxu0
        %v7208 = vadd.f32 %v7119, %v7207
        %v7209 = vpop.f32.mrf.mxu0
        %v7210 = vadd.f32 %v7121, %v7209
        %7211 = vmatmul.bf16.gmra.mxu0 %v7043
        %v7212 = vpop.f32.mrf.mxu0
        %v7213 = vadd.f32 %v7124, %v7212
        %v7214 = vpop.f32.mrf.mxu0
        %v7215 = vadd.f32 %v7126, %v7214
        %7216 = vmatmul.bf16.gmra.mxu0 %v7046
        %v7217 = vpop.f32.mrf.mxu0
        %v7218 = vadd.f32 %v7129, %v7217
        %v7219 = vpop.f32.mrf.mxu0
        %v7220 = vadd.f32 %v7131, %v7219
        %7221 = vmatmul.bf16.gmra.mxu0 %v7049
        %v7222 = vpop.f32.mrf.mxu0
        %v7223 = vadd.f32 %v7134, %v7222
        %v7224 = vpop.f32.mrf.mxu0
        %v7225 = vadd.f32 %v7136, %v7224
        %7226 = vmatmul.bf16.gmra.mxu0 %v7052
        %v7227 = vpop.f32.mrf.mxu0
        %v7228 = vadd.f32 %v7139, %v7227
        %v7229 = vpop.f32.mrf.mxu0
        %v7230 = vadd.f32 %v7141, %v7229
        %7231 = vdwg.mxu0
        %v7232 = vadd.f32 %v6701, %v7153
        %v7233 = vadd.f32 %v6702, %v7155
        %v7234 = vadd.f32 %v6703, %v7158
        %v7235 = vadd.f32 %v6704, %v7160
        %v7236 = vadd.f32 %v6705, %v7163
        %v7237 = vadd.f32 %v6706, %v7165
        %v7238 = vadd.f32 %v6707, %v7168
        %v7239 = vadd.f32 %v6708, %v7170
        %v7240 = vadd.f32 %v6709, %v7173
        %v7241 = vadd.f32 %v6710, %v7175
        %v7242 = vadd.f32 %v6711, %v7178
        %v7243 = vadd.f32 %v6712, %v7180
        %v7244 = vadd.f32 %v6713, %v7183
        %v7245 = vadd.f32 %v6714, %v7185
        %v7246 = vadd.f32 %v6715, %v7188
        %v7247 = vadd.f32 %v6716, %v7190
        %v7248 = vadd.f32 %v6717, %v7193
        %v7249 = vadd.f32 %v6718, %v7195
        %v7250 = vadd.f32 %v6719, %v7198
        %v7251 = vadd.f32 %v6720, %v7200
        %v7252 = vadd.f32 %v6721, %v7203
        %v7253 = vadd.f32 %v6722, %v7205
        %v7254 = vadd.f32 %v6723, %v7208
        %v7255 = vadd.f32 %v6724, %v7210
        %v7256 = vadd.f32 %v6725, %v7213
        %v7257 = vadd.f32 %v6726, %v7215
        %v7258 = vadd.f32 %v6727, %v7218
        %v7259 = vadd.f32 %v6728, %v7220
        %v7260 = vadd.f32 %v6729, %v7223
        %v7261 = vadd.f32 %v6730, %v7225
        %v7262 = vadd.f32 %v6731, %v7228
        %v7263 = vadd.f32 %v6732, %v7230
        %v7264 = vtanh.pop %v7232
        %v7265 = vtanh.pop %v7233
        %v7266 = vtanh.pop %v7234
        %v7267 = vtanh.pop %v7235
        %v7268 = vtanh.pop %v7236
        %v7269 = vtanh.pop %v7237
        %v7270 = vtanh.pop %v7238
        %v7271 = vtanh.pop %v7239
        %v7272 = vtanh.pop %v7240
        %v7273 = vtanh.pop %v7241
        %v7274 = vtanh.pop %v7242
        %v7275 = vtanh.pop %v7243
        %v7276 = vtanh.pop %v7244
        %v7277 = vtanh.pop %v7245
        %v7278 = vtanh.pop %v7246
        %v7279 = vtanh.pop %v7247
        %v7280 = vtanh.pop %v7248
        %v7281 = vtanh.pop %v7249
        %v7282 = vtanh.pop %v7250
        %v7283 = vtanh.pop %v7251
        %v7284 = vtanh.pop %v7252
        %v7285 = vtanh.pop %v7253
        %v7286 = vtanh.pop %v7254
        %v7287 = vtanh.pop %v7255
        %v7288 = vtanh.pop %v7256
        %v7289 = vtanh.pop %v7257
        %v7290 = vtanh.pop %v7258
        %v7291 = vtanh.pop %v7259
        %v7292 = vtanh.pop %v7260
        %v7293 = vtanh.pop %v7261
        %v7294 = vtanh.pop %v7262
        %v7295 = vtanh.pop %v7263
        %v7296 = vpack.c.bf16 %v7264, %v7264
        %v7297 = vpack.c.bf16 %v7265, %v7265
        %v7298 = vpack.c.bf16 %v7266, %v7266
        %v7299 = vpack.c.bf16 %v7267, %v7267
        %v7300 = vpack.c.bf16 %v7268, %v7268
        %v7301 = vpack.c.bf16 %v7269, %v7269
        %v7302 = vpack.c.bf16 %v7270, %v7270
        %v7303 = vpack.c.bf16 %v7271, %v7271
        %v7304 = vpack.c.bf16 %v7272, %v7272
        %v7305 = vpack.c.bf16 %v7273, %v7273
        %v7306 = vpack.c.bf16 %v7274, %v7274
        %v7307 = vpack.c.bf16 %v7275, %v7275
        %v7308 = vpack.c.bf16 %v7276, %v7276
        %v7309 = vpack.c.bf16 %v7277, %v7277
        %v7310 = vpack.c.bf16 %v7278, %v7278
        %v7311 = vpack.c.bf16 %v7279, %v7279
        %v7312 = vpack.c.bf16 %v7280, %v7280
        %v7313 = vpack.c.bf16 %v7281, %v7281
        %v7314 = vpack.c.bf16 %v7282, %v7282
        %v7315 = vpack.c.bf16 %v7283, %v7283
        %v7316 = vpack.c.bf16 %v7284, %v7284
        %v7317 = vpack.c.bf16 %v7285, %v7285
        %v7318 = vpack.c.bf16 %v7286, %v7286
        %v7319 = vpack.c.bf16 %v7287, %v7287
        %v7320 = vpack.c.bf16 %v7288, %v7288
        %v7321 = vpack.c.bf16 %v7289, %v7289
        %v7322 = vpack.c.bf16 %v7290, %v7290
        %v7323 = vpack.c.bf16 %v7291, %v7291
        %v7324 = vpack.c.bf16 %v7292, %v7292
        %v7325 = vpack.c.bf16 %v7293, %v7293
        %v7326 = vpack.c.bf16 %v7294, %v7294
        %v7327 = vpack.c.bf16 %v7295, %v7295
        %7328 = vst [vmem:[%s319] sm:$0xf] %v7296
        %7329 = vst [vmem:[%s319 + $0x4] sm:$0xf] %v7297
        %7330 = vst [vmem:[%s319 + $0x8] sm:$0xf] %v7298
        %7331 = vst [vmem:[%s319 + $0xc] sm:$0xf] %v7299
        %7332 = vst [vmem:[%s319 + $0x10] sm:$0xf] %v7300
        %7333 = vst [vmem:[%s319 + $0x14] sm:$0xf] %v7301
        %7334 = vst [vmem:[%s319 + $0x18] sm:$0xf] %v7302
        %7335 = vst [vmem:[%s319 + $0x1c] sm:$0xf] %v7303
        %7336 = vst [vmem:[%s319 + $0x20] sm:$0xf] %v7304
        %7337 = vst [vmem:[%s319 + $0x24] sm:$0xf] %v7305
        %7338 = vst [vmem:[%s319 + $0x28] sm:$0xf] %v7306
        %7339 = vst [vmem:[%s319 + $0x2c] sm:$0xf] %v7307
        %7340 = vst [vmem:[%s319 + $0x30] sm:$0xf] %v7308
        %7341 = vst [vmem:[%s319 + $0x34] sm:$0xf] %v7309
        %7342 = vst [vmem:[%s319 + $0x38] sm:$0xf] %v7310
        %7343 = vst [vmem:[%s319 + $0x3c] sm:$0xf] %v7311
        %7344 = vst [vmem:[%s319 + $0x40] sm:$0xf] %v7312
        %7345 = vst [vmem:[%s319 + $0x44] sm:$0xf] %v7313
        %7346 = vst [vmem:[%s319 + $0x48] sm:$0xf] %v7314
        %7347 = vst [vmem:[%s319 + $0x4c] sm:$0xf] %v7315
        %7348 = vst [vmem:[%s319 + $0x50] sm:$0xf] %v7316
        %7349 = vst [vmem:[%s319 + $0x54] sm:$0xf] %v7317
        %7350 = vst [vmem:[%s319 + $0x58] sm:$0xf] %v7318
        %7351 = vst [vmem:[%s319 + $0x5c] sm:$0xf] %v7319
        %7352 = vst [vmem:[%s319 + $0x60] sm:$0xf] %v7320
        %7353 = vst [vmem:[%s319 + $0x64] sm:$0xf] %v7321
        %7354 = vst [vmem:[%s319 + $0x68] sm:$0xf] %v7322
        %7355 = vst [vmem:[%s319 + $0x6c] sm:$0xf] %v7323
        %7356 = vst [vmem:[%s319 + $0x70] sm:$0xf] %v7324
        %7357 = vst [vmem:[%s319 + $0x74] sm:$0xf] %v7325
        %7358 = vst [vmem:[%s319 + $0x78] sm:$0xf] %v7326
        %7359 = vst [vmem:[%s319 + $0x7c] sm:$0xf] %v7327
        %p7360 = scmp.lt.s32.totalorder %s20, 1
        %s7361 = scalar_select %p7360, %s20, 1
        %s7362 = smul.addr %s7361, 32
        %s7363 = smul.addr %s7362, 4
        %s7364 = scalar_lea.vmem %s8, %s7363
        // Predicated region
        $region57: #{srgan_generator_forward.1} parent=51 // pred_check
          %p7365 = pneg %p211
        $region58: #{srgan_generator_forward.1} parent=51 // pred_check_branch
          %7367 = sbr.rel (%p7365) target = $region60
        $region59: #{srgan_generator_forward.1} parent=51 // pred_region
          _
        $region60: #{srgan_generator_forward.1} parent=51 // pred_fallthru
          _
      $region52: #{srgan_generator_forward.1} parent=5 // pred_fallthru
        _
      %p7368 = scmp.le.s32.totalorder 2, %s15
      // Predicated region
      $region61: #{srgan_generator_forward.1} parent=5 // pred_check
        %p7369 = pneg %p7368
      $region62: #{srgan_generator_forward.1} parent=5 // pred_check_branch
        %7371 = sbr.rel (%p7369) target = $region64
      $region63: #{srgan_generator_forward.1} parent=5 // pred_region
        %s7372 = ssub.s32 %s15, 2
        // Predicated region
        $region65: #{srgan_generator_forward.1} parent=63 // pred_check
          %p7373 = pneg %p217
        $region66: #{srgan_generator_forward.1} parent=63 // pred_check_branch
          %7375 = sbr.rel (%p7373) target = $region68
        $region67: #{srgan_generator_forward.1} parent=63 // pred_region
          %p7376 = scmp.lt.s32.totalorder %s21, 1
          %s7377 = scalar_select %p7376, %s21, 1
          %s7378 = smul.addr %s7377, 32
          %s7379 = smul.addr %s7378, 4
          %s7380 = scalar_lea.vmem %s8, %s7379
        $region68: #{srgan_generator_forward.1} parent=63 // pred_fallthru
          _
      $region64: #{srgan_generator_forward.1} parent=5 // pred_fallthru
        _
    $region6: #{srgan_generator_forward.1} parent=1 // loop_footer
      %s19 = sadd.s32 1, %s15
    $region7: #{srgan_generator_forward.1} parent=1 // loop_footer_branch
      %14 = sbr.rel target = $region3
    $region8: #{srgan_generator_forward.1} parent=1 // loop_exit
      _
    %7381 = vsyncpa [#allocation5], 1
    %s7382 = scalar_lea.sflag [#allocation5], 1
    %7383 = vsyncpa %s7382, 1

</llo_original>
